<compile_context>
chip_gen: v6e
topology: v6e:2x2x1
jax: 0.10.0
libtpu: 0.0.40
codegen_flags: <defaults>
</compile_context>

<pallas_src>
import functools

import jax
import jax.numpy as jnp
from jax.experimental import pallas as pl
from jax.experimental.pallas import tpu as pltpu


# --------------------------------------------------------------------------- kernels
def _conv_lrelu_kernel(x_ref, w_ref, o_ref, acc_ref, *, oh, ow, alpha):
    """Fused (space-to-depth) 4-tap conv + LeakyReLU for one batch element.

    x_ref  : (1, 2, (oh+1)*ow, K)  bf16  -- tap-b shifted, spatially flattened s2d input
    w_ref  : (4, K, coutp)         bf16  -- per-tap weight matrices (K, coutp lane-dense)
    o_ref  : (1, oh*ow, coutp)     bf16  -- NHWC-flattened activation
    acc_ref: (oh*ow, coutp)        f32   -- VMEM accumulator scratch
    """
    m = oh * ow
    acc_ref[...] = jnp.zeros_like(acc_ref)
    for a in range(2):            # static unroll: vertical tap
        for b in range(2):        # static unroll: horizontal tap
            lhs = x_ref[0, b, pl.ds(a * ow, m), :]              # (m, K) bf16
            acc_ref[...] += jnp.dot(lhs, w_ref[2 * a + b],
                                    preferred_element_type=jnp.float32)
    acc = acc_ref[...]
    acc = jnp.where(acc > 0, acc, alpha * acc)                  # LeakyReLU on f32
    o_ref[0] = acc.astype(o_ref.dtype)


def _conv_fc_kernel(x_ref, w_ref, wfc_ref, b_ref, o_ref, *, oh, ow, alpha):
    """Fused: last conv + LeakyReLU + Flatten + Linear for one batch element.

    x_ref  : (1, 2, (oh+1)*ow, K)   bf16
    w_ref  : (4, K, coutp)          bf16
    wfc_ref: (oh*ow, coutp, nout)   bf16  -- FC weight, rows in NHWC flatten order
    b_ref  : (1,)                   f32   -- FC bias (SMEM scalar)
    o_ref  : (1, 1, nout)           f32   -- padded to 128 lanes; col 0 is the score
    """
    m = oh * ow
    coutp = w_ref.shape[-1]
    nout = o_ref.shape[-1]
    acc = jnp.zeros((m, coutp), jnp.float32)
    for a in range(2):
        for b in range(2):
            lhs = x_ref[0, b, pl.ds(a * ow, m), :]
            acc = acc + jnp.dot(lhs, w_ref[2 * a + b],
                                preferred_element_type=jnp.float32)
    act = jnp.where(acc > 0, acc, alpha * acc).astype(jnp.bfloat16)
    score = jnp.zeros((1, nout), jnp.float32)
    for r in range(m):            # static unroll over flattened spatial positions
        score = score + jnp.dot(act[r:r + 1, :], wfc_ref[r],
                                preferred_element_type=jnp.float32)
    o_ref[0] = score + b_ref[0]


# --------------------------------------------------------------------------- wrappers
def conv_lrelu(x_taps, w_taps, oh, ow, alpha=0.2):
    n, _, rows, k = x_taps.shape
    coutp = w_taps.shape[-1]
    return pl.pallas_call(
        functools.partial(_conv_lrelu_kernel, oh=oh, ow=ow, alpha=alpha),
        out_shape=jax.ShapeDtypeStruct((n, oh * ow, coutp), jnp.bfloat16),
        grid=(n,),
        in_specs=[
            pl.BlockSpec((1, 2, rows, k), lambda i: (i, 0, 0, 0)),
            pl.BlockSpec((4, k, coutp), lambda i: (0, 0, 0)),
        ],
        out_specs=pl.BlockSpec((1, oh * ow, coutp), lambda i: (i, 0, 0)),
        scratch_shapes=[pltpu.VMEM((oh * ow, coutp), jnp.float32)],
        compiler_params=pltpu.CompilerParams(dimension_semantics=("parallel",)),
    )(x_taps, w_taps)


def conv_lrelu_fc(x_taps, w_taps, wfc, fc_b, oh, ow, alpha=0.2):
    n, _, rows, k = x_taps.shape
    coutp = w_taps.shape[-1]
    nout = wfc.shape[-1]
    return pl.pallas_call(
        functools.partial(_conv_fc_kernel, oh=oh, ow=ow, alpha=alpha),
        out_shape=jax.ShapeDtypeStruct((n, 1, nout), jnp.float32),
        grid=(n,),
        in_specs=[
            pl.BlockSpec((1, 2, rows, k), lambda i: (i, 0, 0, 0)),
            pl.BlockSpec((4, k, coutp), lambda i: (0, 0, 0)),
            pl.BlockSpec((oh * ow, coutp, nout), lambda i: (0, 0, 0)),
            pl.BlockSpec(memory_space=pltpu.MemorySpace.SMEM),
        ],
        out_specs=pl.BlockSpec((1, 1, nout), lambda i: (i, 0, 0)),
        compiler_params=pltpu.CompilerParams(dimension_semantics=("parallel",)),
    )(x_taps, w_taps, wfc, fc_b)


# --------------------------------------------------------------------------- layout glue
def _space_to_depth_taps(x):
    """NHWC -> stacked unit-stride tap inputs for the fused conv kernel.

    x: (N, H, W, C) bf16.  Returns (taps, oh, ow) with taps of shape
    (N, 2, (oh+1)*ow, 4*C) where taps[n, b, y*ow + xw, :] = s2d(pad1(x))[n, y, xw+b, :].
    ~1x the activation bytes (vs ~4x for an im2col patch matrix).
    """
    n, h, w, c = x.shape
    oh, ow = h // 2, w // 2
    xp = jnp.pad(x, ((0, 0), (1, 1), (1, 1), (0, 0)))
    s2d = xp.reshape(n, oh + 1, 2, ow + 1, 2, c)
    s2d = jnp.transpose(s2d, (0, 1, 3, 2, 4, 5)).reshape(n, oh + 1, ow + 1, 4 * c)
    xb0 = s2d[:, :, 0:ow, :].reshape(n, (oh + 1) * ow, 4 * c)
    xb1 = s2d[:, :, 1:ow + 1, :].reshape(n, (oh + 1) * ow, 4 * c)
    return jnp.stack([xb0, xb1], axis=1), oh, ow


# --------------------------------------------------------------------------- weight packing (hoisted, done once)
def _round_up(x, m):
    return ((x + m - 1) // m) * m


def _pack_conv_weight(w_oihw, cin_pad, cout_pad):
    """(cout, cin, 4, 4) torch weight -> (4, 4*cin_pad, cout_pad) bf16 tap matrices.

    Tap t = 2a+b holds W'[t][(2i+j)*cin_pad + c, co] = w[co, c, 2a+i, 2b+j]
    (zero-padded so K and cout are multiples of 128)."""
    cout, cin, _, _ = w_oihw.shape
    w = jnp.transpose(w_oihw, (2, 3, 1, 0))                       # (kh, kw, cin, cout)
    w = jnp.pad(w, ((0, 0), (0, 0), (0, cin_pad - cin), (0, cout_pad - cout)))
    w = w.reshape(2, 2, 2, 2, cin_pad, cout_pad)                  # (a, i, b, j, c, co)
    w = jnp.transpose(w, (0, 2, 1, 3, 4, 5))                      # (a, b, i, j, c, co)
    return w.reshape(4, 4 * cin_pad, cout_pad).astype(jnp.bfloat16)


def _pack_fc_weight(fc_w, cout_true, cout_pad, ffm, nout=128):
    """(1, cout_true*ffm*ffm) torch FC weight (CHW flatten) -> (ffm*ffm, cout_pad, nout)
    bf16, rows in NHWC order so no activation transpose is needed before the FC."""
    w = fc_w.reshape(cout_true, ffm, ffm)
    w = jnp.transpose(w, (1, 2, 0))                               # (h, w, c)
    w = jnp.pad(w, ((0, 0), (0, 0), (0, cout_pad - cout_true)))
    w = w.reshape(ffm * ffm, cout_pad)
    wfc = jnp.zeros((ffm * ffm, cout_pad, nout), jnp.float32)
    wfc = wfc.at[:, :, 0].set(w)                                  # only lane 0 is real
    return wfc.astype(jnp.bfloat16)


# --------------------------------------------------------------------------- model
def init_params(key, img_channels, img_size, features_d):
    chans = [img_channels, features_d, features_d * 2, features_d * 4,
             features_d * 8, features_d * 16]
    conv_ws = []
    for i in range(5):
        key, sub = jax.random.split(key)
        fan_in = chans[i] * 16
        conv_ws.append(jax.random.normal(sub, (chans[i + 1], chans[i], 4, 4),
                                         jnp.float32) / jnp.sqrt(fan_in))
    ffm = img_size // 32
    in_features = chans[5] * ffm * ffm
    key, k1, k2 = jax.random.split(key, 3)
    fc_w = jax.random.normal(k1, (1, in_features), jnp.float32) / jnp.sqrt(in_features)
    fc_b = jax.random.normal(k2, (1,), jnp.float32) * 0.01
    raw = {"conv_ws": conv_ws, "fc_w": fc_w, "fc_b": fc_b}

    # Pre-packed / padded kernel parameters (all reshapes hoisted out of the forward).
    packed_convs = []
    cin_pad = _round_up(chans[0], 32)         # so K = 4 * cin_pad is a multiple of 128
    for i in range(5):
        cout_pad = _round_up(chans[i + 1], 128)   # lane-dense output stores
        packed_convs.append(_pack_conv_weight(conv_ws[i], cin_pad, cout_pad))
        cin_pad = cout_pad                        # channel padding flows into next K
    params = {
        "conv_w_taps": packed_convs,
        "fc_w_taps": _pack_fc_weight(fc_w, chans[5], cin_pad, ffm),
        "fc_b": fc_b.astype(jnp.float32),
    }
    return raw, params


def discriminator_forward(img_nchw, params):
    conv_ws = params["conv_w_taps"]
    cin_pad0 = conv_ws[0].shape[1] // 4
    x = jnp.transpose(img_nchw, (0, 2, 3, 1)).astype(jnp.bfloat16)      # NCHW -> NHWC
    x = jnp.pad(x, ((0, 0), (0, 0), (0, 0), (0, cin_pad0 - x.shape[-1])))
    for w_taps in conv_ws[:-1]:
        taps, oh, ow = _space_to_depth_taps(x)
        y = conv_lrelu(taps, w_taps, oh, ow)                            # (N, oh*ow, Cp)
        x = y.reshape(y.shape[0], oh, ow, y.shape[-1])
    taps, oh, ow = _space_to_depth_taps(x)
    out = conv_lrelu_fc(taps, conv_ws[-1], params["fc_w_taps"], params["fc_b"], oh, ow)
    return out[:, 0, :1]                                                # (batch, 1) f32


def reference_forward(img_nchw, raw):
    """Pure-JAX reference with matching bf16-storage / f32-accumulation semantics."""
    x = img_nchw.astype(jnp.bfloat16)
    for w in raw["conv_ws"]:
        x = jax.lax.conv_general_dilated(
            x, w.astype(jnp.bfloat16), window_strides=(2, 2),
            padding=((1, 1), (1, 1)),
            dimension_numbers=("NCHW", "OIHW", "NCHW"),
            preferred_element_type=jnp.float32)
        x = jnp.where(x > 0, x, 0.2 * x).astype(jnp.bfloat16)
    x = x.reshape(x.shape[0], -1)                                       # CHW flatten
    return jnp.dot(x, raw["fc_w"].T.astype(jnp.bfloat16),
                   preferred_element_type=jnp.float32) + raw["fc_b"]


# --------------------------------------------------------------------------- main
if __name__ == "__main__":
    batch, img_channels, img_size, features_d = 2, 3, 32, 8

    key = jax.random.PRNGKey(0)
    key, kp, kx = jax.random.split(key, 3)
    raw, params = init_params(kp, img_channels, img_size, features_d)
    img = jax.random.normal(kx, (batch, img_channels, img_size, img_size), jnp.float32)

    fwd = jax.jit(discriminator_forward)
    score = jax.block_until_ready(fwd(img, params))

    ref = jax.block_until_ready(reference_forward(img, raw))
    assert score.shape == (batch, 1), score.shape
    assert jnp.allclose(score, ref, atol=1e-2, rtol=1e-2), (score, ref)

    print("KERNEL_OK")
</pallas_src>

<mosaic_0001>
module attributes {stable_mosaic.version = 11 : i64} {
  func.func @_conv_lrelu_kernel(%arg0: i32, %arg1: memref<1x2x272x128xbf16, #tpu.memory_space<vmem>>, %arg2: memref<4x128x128xbf16, #tpu.memory_space<vmem>>, %arg3: memref<1x256x128xbf16, #tpu.memory_space<vmem>>, %arg4: memref<256x128xf32, #tpu.memory_space<vmem>>) attributes {dimension_semantics = [#tpu.dimension_semantics<parallel>], iteration_bounds = array<i64: 2>, scalar_prefetch = 0 : i64, scratch_operands = 1 : i64, tpu.core_type = #tpu.core_type<tc>, window_params = [{transform_indices = @transform_0, window_bounds = array<i64: 1, 2, 272, 128>}, {pipeline_mode = #tpu.pipeline_mode<synchronous>, transform_indices = @transform_1, window_bounds = array<i64: 4, 128, 128>}, {transform_indices = @transform_2, window_bounds = array<i64: 1, 256, 128>}]} {
    %cst = arith.constant 0.000000e+00 : f32
    %0 = vector.broadcast %cst : f32 to vector<256x128xf32>
    %c0 = arith.constant 0 : index
    %c0_0 = arith.constant 0 : index
    %1 = vector.load %arg4[%c0, %c0_0] : memref<256x128xf32, #tpu.memory_space<vmem>>, vector<256x128xf32>
    tpu.vector_store %arg4[%c0, %c0_0], %0 {strides = array<i32>} : memref<256x128xf32, #tpu.memory_space<vmem>>, vector<256x128xf32>,
    %c0_1 = arith.constant 0 : index
    %c0_2 = arith.constant 0 : index
    %c0_3 = arith.constant 0 : index
    %c0_4 = arith.constant 0 : index
    %2 = vector.load %arg1[%c0_1, %c0_2, %c0_3, %c0_4] : memref<1x2x272x128xbf16, #tpu.memory_space<vmem>>, vector<1x1x256x128xbf16>
    %3 = vector.shape_cast %2 : vector<1x1x256x128xbf16> to vector<256x128xbf16>
    %c0_5 = arith.constant 0 : index
    %c0_6 = arith.constant 0 : index
    %4 = vector.load %arg4[%c0_5, %c0_6] : memref<256x128xf32, #tpu.memory_space<vmem>>, vector<256x128xf32>
    %c0_7 = arith.constant 0 : index
    %c0_8 = arith.constant 0 : index
    %c0_9 = arith.constant 0 : index
    %5 = vector.load %arg2[%c0_7, %c0_8, %c0_9] : memref<4x128x128xbf16, #tpu.memory_space<vmem>>, vector<1x128x128xbf16>
    %6 = vector.shape_cast %5 : vector<1x128x128xbf16> to vector<128x128xbf16>
    %cst_10 = arith.constant dense<0.000000e+00> : vector<256x128xf32>
    %7 = tpu.matmul %3, %6, %cst_10 {dimension_numbers = #tpu.dot_dimension_numbers<[1], [0], [0], [1], [0, 0, 1, 1], [], []>} : vector<256x128xbf16>, vector<128x128xbf16>, vector<256x128xf32> -> vector<256x128xf32>
    %8 = arith.addf %4, %7 : vector<256x128xf32>
    %c0_11 = arith.constant 0 : index
    %c0_12 = arith.constant 0 : index
    %9 = vector.load %arg4[%c0_11, %c0_12] : memref<256x128xf32, #tpu.memory_space<vmem>>, vector<256x128xf32>
    tpu.vector_store %arg4[%c0_11, %c0_12], %8 {strides = array<i32>} : memref<256x128xf32, #tpu.memory_space<vmem>>, vector<256x128xf32>,
    %c0_13 = arith.constant 0 : index
    %c1 = arith.constant 1 : index
    %c0_14 = arith.constant 0 : index
    %c0_15 = arith.constant 0 : index
    %10 = vector.load %arg1[%c0_13, %c1, %c0_14, %c0_15] : memref<1x2x272x128xbf16, #tpu.memory_space<vmem>>, vector<1x1x256x128xbf16>
    %11 = vector.shape_cast %10 : vector<1x1x256x128xbf16> to vector<256x128xbf16>
    %c0_16 = arith.constant 0 : index
    %c0_17 = arith.constant 0 : index
    %12 = vector.load %arg4[%c0_16, %c0_17] : memref<256x128xf32, #tpu.memory_space<vmem>>, vector<256x128xf32>
    %c1_18 = arith.constant 1 : index
    %c0_19 = arith.constant 0 : index
    %c0_20 = arith.constant 0 : index
    %13 = vector.load %arg2[%c1_18, %c0_19, %c0_20] : memref<4x128x128xbf16, #tpu.memory_space<vmem>>, vector<1x128x128xbf16>
    %14 = vector.shape_cast %13 : vector<1x128x128xbf16> to vector<128x128xbf16>
    %cst_21 = arith.constant dense<0.000000e+00> : vector<256x128xf32>
    %15 = tpu.matmul %11, %14, %cst_21 {dimension_numbers = #tpu.dot_dimension_numbers<[1], [0], [0], [1], [0, 0, 1, 1], [], []>} : vector<256x128xbf16>, vector<128x128xbf16>, vector<256x128xf32> -> vector<256x128xf32>
    %16 = arith.addf %12, %15 : vector<256x128xf32>
    %c0_22 = arith.constant 0 : index
    %c0_23 = arith.constant 0 : index
    %17 = vector.load %arg4[%c0_22, %c0_23] : memref<256x128xf32, #tpu.memory_space<vmem>>, vector<256x128xf32>
    tpu.vector_store %arg4[%c0_22, %c0_23], %16 {strides = array<i32>} : memref<256x128xf32, #tpu.memory_space<vmem>>, vector<256x128xf32>,
    %c0_24 = arith.constant 0 : index
    %c0_25 = arith.constant 0 : index
    %c16 = arith.constant 16 : index
    %c0_26 = arith.constant 0 : index
    %18 = vector.load %arg1[%c0_24, %c0_25, %c16, %c0_26] : memref<1x2x272x128xbf16, #tpu.memory_space<vmem>>, vector<1x1x256x128xbf16>
    %19 = vector.shape_cast %18 : vector<1x1x256x128xbf16> to vector<256x128xbf16>
    %c0_27 = arith.constant 0 : index
    %c0_28 = arith.constant 0 : index
    %20 = vector.load %arg4[%c0_27, %c0_28] : memref<256x128xf32, #tpu.memory_space<vmem>>, vector<256x128xf32>
    %c2 = arith.constant 2 : index
    %c0_29 = arith.constant 0 : index
    %c0_30 = arith.constant 0 : index
    %21 = vector.load %arg2[%c2, %c0_29, %c0_30] : memref<4x128x128xbf16, #tpu.memory_space<vmem>>, vector<1x128x128xbf16>
    %22 = vector.shape_cast %21 : vector<1x128x128xbf16> to vector<128x128xbf16>
    %cst_31 = arith.constant dense<0.000000e+00> : vector<256x128xf32>
    %23 = tpu.matmul %19, %22, %cst_31 {dimension_numbers = #tpu.dot_dimension_numbers<[1], [0], [0], [1], [0, 0, 1, 1], [], []>} : vector<256x128xbf16>, vector<128x128xbf16>, vector<256x128xf32> -> vector<256x128xf32>
    %24 = arith.addf %20, %23 : vector<256x128xf32>
    %c0_32 = arith.constant 0 : index
    %c0_33 = arith.constant 0 : index
    %25 = vector.load %arg4[%c0_32, %c0_33] : memref<256x128xf32, #tpu.memory_space<vmem>>, vector<256x128xf32>
    tpu.vector_store %arg4[%c0_32, %c0_33], %24 {strides = array<i32>} : memref<256x128xf32, #tpu.memory_space<vmem>>, vector<256x128xf32>,
    %c0_34 = arith.constant 0 : index
    %c1_35 = arith.constant 1 : index
    %c16_36 = arith.constant 16 : index
    %c0_37 = arith.constant 0 : index
    %26 = vector.load %arg1[%c0_34, %c1_35, %c16_36, %c0_37] : memref<1x2x272x128xbf16, #tpu.memory_space<vmem>>, vector<1x1x256x128xbf16>
    %27 = vector.shape_cast %26 : vector<1x1x256x128xbf16> to vector<256x128xbf16>
    %c0_38 = arith.constant 0 : index
    %c0_39 = arith.constant 0 : index
    %28 = vector.load %arg4[%c0_38, %c0_39] : memref<256x128xf32, #tpu.memory_space<vmem>>, vector<256x128xf32>
    %c3 = arith.constant 3 : index
    %c0_40 = arith.constant 0 : index
    %c0_41 = arith.constant 0 : index
    %29 = vector.load %arg2[%c3, %c0_40, %c0_41] : memref<4x128x128xbf16, #tpu.memory_space<vmem>>, vector<1x128x128xbf16>
    %30 = vector.shape_cast %29 : vector<1x128x128xbf16> to vector<128x128xbf16>
    %cst_42 = arith.constant dense<0.000000e+00> : vector<256x128xf32>
    %31 = tpu.matmul %27, %30, %cst_42 {dimension_numbers = #tpu.dot_dimension_numbers<[1], [0], [0], [1], [0, 0, 1, 1], [], []>} : vector<256x128xbf16>, vector<128x128xbf16>, vector<256x128xf32> -> vector<256x128xf32>
    %32 = arith.addf %28, %31 : vector<256x128xf32>
    %c0_43 = arith.constant 0 : index
    %c0_44 = arith.constant 0 : index
    %33 = vector.load %arg4[%c0_43, %c0_44] : memref<256x128xf32, #tpu.memory_space<vmem>>, vector<256x128xf32>
    tpu.vector_store %arg4[%c0_43, %c0_44], %32 {strides = array<i32>} : memref<256x128xf32, #tpu.memory_space<vmem>>, vector<256x128xf32>,
    %c0_45 = arith.constant 0 : index
    %c0_46 = arith.constant 0 : index
    %34 = vector.load %arg4[%c0_45, %c0_46] : memref<256x128xf32, #tpu.memory_space<vmem>>, vector<256x128xf32>
    %cst_47 = arith.constant 0.000000e+00 : f32
    %35 = vector.broadcast %cst_47 : f32 to vector<256x128xf32>
    %36 = arith.cmpf ogt, %34, %35 : vector<256x128xf32>
    %cst_48 = arith.constant 2.000000e-01 : f32
    %37 = vector.broadcast %cst_48 : f32 to vector<256x128xf32>
    %38 = arith.mulf %37, %34 : vector<256x128xf32>
    %39 = arith.select %36, %34, %38 : vector<256x128xi1>, vector<256x128xf32>
    %40 = arith.truncf %39 : vector<256x128xf32> to vector<256x128xbf16>
    %c0_49 = arith.constant 0 : index
    %c0_50 = arith.constant 0 : index
    %c0_51 = arith.constant 0 : index
    %41 = vector.load %arg3[%c0_49, %c0_50, %c0_51] : memref<1x256x128xbf16, #tpu.memory_space<vmem>>, vector<1x256x128xbf16>
    %42 = vector.shape_cast %41 : vector<1x256x128xbf16> to vector<256x128xbf16>
    %43 = vector.shape_cast %40 : vector<256x128xbf16> to vector<1x256x128xbf16>
    tpu.vector_store %arg3[%c0_49, %c0_50, %c0_51], %43 {strides = array<i32>} : memref<1x256x128xbf16, #tpu.memory_space<vmem>>, vector<1x256x128xbf16>,
    return
  }
  func.func @transform_0(%arg0: i32) -> (i32, i32, i32, i32) {
    %c0_i32 = arith.constant 0 : i32
    %c0_i32_0 = arith.constant 0 : i32
    %c0_i32_1 = arith.constant 0 : i32
    %c0_i32_2 = arith.constant 0 : i32
    return %arg0, %c0_i32, %c0_i32_0, %c0_i32_1 : i32, i32, i32, i32
  }
  func.func @transform_1(%arg0: i32) -> (i32, i32, i32) {
    %c0_i32 = arith.constant 0 : i32
    %c0_i32_0 = arith.constant 0 : i32
    %c0_i32_1 = arith.constant 0 : i32
    %c0_i32_2 = arith.constant 0 : i32
    return %c0_i32, %c0_i32_0, %c0_i32_1 : i32, i32, i32
  }
  func.func @transform_2(%arg0: i32) -> (i32, i32, i32) {
    %c0_i32 = arith.constant 0 : i32
    %c0_i32_0 = arith.constant 0 : i32
    %c0_i32_1 = arith.constant 0 : i32
    return %arg0, %c0_i32, %c0_i32_0 : i32, i32, i32
  }
}

module attributes {stable_mosaic.version = 11 : i64} {
  func.func @_conv_lrelu_kernel(%arg0: i32, %arg1: memref<1x2x72x512xbf16, #tpu.memory_space<vmem>>, %arg2: memref<4x512x128xbf16, #tpu.memory_space<vmem>>, %arg3: memref<1x64x128xbf16, #tpu.memory_space<vmem>>, %arg4: memref<64x128xf32, #tpu.memory_space<vmem>>) attributes {dimension_semantics = [#tpu.dimension_semantics<parallel>], iteration_bounds = array<i64: 2>, scalar_prefetch = 0 : i64, scratch_operands = 1 : i64, tpu.core_type = #tpu.core_type<tc>, window_params = [{transform_indices = @transform_0, window_bounds = array<i64: 1, 2, 72, 512>}, {pipeline_mode = #tpu.pipeline_mode<synchronous>, transform_indices = @transform_1, window_bounds = array<i64: 4, 512, 128>}, {transform_indices = @transform_2, window_bounds = array<i64: 1, 64, 128>}]} {
    %cst = arith.constant 0.000000e+00 : f32
    %0 = vector.broadcast %cst : f32 to vector<64x128xf32>
    %c0 = arith.constant 0 : index
    %c0_0 = arith.constant 0 : index
    %1 = vector.load %arg4[%c0, %c0_0] : memref<64x128xf32, #tpu.memory_space<vmem>>, vector<64x128xf32>
    tpu.vector_store %arg4[%c0, %c0_0], %0 {strides = array<i32>} : memref<64x128xf32, #tpu.memory_space<vmem>>, vector<64x128xf32>,
    %c0_1 = arith.constant 0 : index
    %c0_2 = arith.constant 0 : index
    %c0_3 = arith.constant 0 : index
    %c0_4 = arith.constant 0 : index
    %2 = vector.load %arg1[%c0_1, %c0_2, %c0_3, %c0_4] : memref<1x2x72x512xbf16, #tpu.memory_space<vmem>>, vector<1x1x64x512xbf16>
    %3 = vector.shape_cast %2 : vector<1x1x64x512xbf16> to vector<64x512xbf16>
    %c0_5 = arith.constant 0 : index
    %c0_6 = arith.constant 0 : index
    %4 = vector.load %arg4[%c0_5, %c0_6] : memref<64x128xf32, #tpu.memory_space<vmem>>, vector<64x128xf32>
    %c0_7 = arith.constant 0 : index
    %c0_8 = arith.constant 0 : index
    %c0_9 = arith.constant 0 : index
    %5 = vector.load %arg2[%c0_7, %c0_8, %c0_9] : memref<4x512x128xbf16, #tpu.memory_space<vmem>>, vector<1x512x128xbf16>
    %6 = vector.shape_cast %5 : vector<1x512x128xbf16> to vector<512x128xbf16>
    %cst_10 = arith.constant dense<0.000000e+00> : vector<64x128xf32>
    %7 = tpu.matmul %3, %6, %cst_10 {dimension_numbers = #tpu.dot_dimension_numbers<[1], [0], [0], [1], [0, 0, 1, 1], [], []>} : vector<64x512xbf16>, vector<512x128xbf16>, vector<64x128xf32> -> vector<64x128xf32>
    %8 = arith.addf %4, %7 : vector<64x128xf32>
    %c0_11 = arith.constant 0 : index
    %c0_12 = arith.constant 0 : index
    %9 = vector.load %arg4[%c0_11, %c0_12] : memref<64x128xf32, #tpu.memory_space<vmem>>, vector<64x128xf32>
    tpu.vector_store %arg4[%c0_11, %c0_12], %8 {strides = array<i32>} : memref<64x128xf32, #tpu.memory_space<vmem>>, vector<64x128xf32>,
    %c0_13 = arith.constant 0 : index
    %c1 = arith.constant 1 : index
    %c0_14 = arith.constant 0 : index
    %c0_15 = arith.constant 0 : index
    %10 = vector.load %arg1[%c0_13, %c1, %c0_14, %c0_15] : memref<1x2x72x512xbf16, #tpu.memory_space<vmem>>, vector<1x1x64x512xbf16>
    %11 = vector.shape_cast %10 : vector<1x1x64x512xbf16> to vector<64x512xbf16>
    %c0_16 = arith.constant 0 : index
    %c0_17 = arith.constant 0 : index
    %12 = vector.load %arg4[%c0_16, %c0_17] : memref<64x128xf32, #tpu.memory_space<vmem>>, vector<64x128xf32>
    %c1_18 = arith.constant 1 : index
    %c0_19 = arith.constant 0 : index
    %c0_20 = arith.constant 0 : index
    %13 = vector.load %arg2[%c1_18, %c0_19, %c0_20] : memref<4x512x128xbf16, #tpu.memory_space<vmem>>, vector<1x512x128xbf16>
    %14 = vector.shape_cast %13 : vector<1x512x128xbf16> to vector<512x128xbf16>
    %cst_21 = arith.constant dense<0.000000e+00> : vector<64x128xf32>
    %15 = tpu.matmul %11, %14, %cst_21 {dimension_numbers = #tpu.dot_dimension_numbers<[1], [0], [0], [1], [0, 0, 1, 1], [], []>} : vector<64x512xbf16>, vector<512x128xbf16>, vector<64x128xf32> -> vector<64x128xf32>
    %16 = arith.addf %12, %15 : vector<64x128xf32>
    %c0_22 = arith.constant 0 : index
    %c0_23 = arith.constant 0 : index
    %17 = vector.load %arg4[%c0_22, %c0_23] : memref<64x128xf32, #tpu.memory_space<vmem>>, vector<64x128xf32>
    tpu.vector_store %arg4[%c0_22, %c0_23], %16 {strides = array<i32>} : memref<64x128xf32, #tpu.memory_space<vmem>>, vector<64x128xf32>,
    %c0_24 = arith.constant 0 : index
    %c0_25 = arith.constant 0 : index
    %c8 = arith.constant 8 : index
    %c0_26 = arith.constant 0 : index
    %18 = vector.load %arg1[%c0_24, %c0_25, %c8, %c0_26] : memref<1x2x72x512xbf16, #tpu.memory_space<vmem>>, vector<1x1x64x512xbf16>
    %19 = vector.shape_cast %18 : vector<1x1x64x512xbf16> to vector<64x512xbf16>
    %c0_27 = arith.constant 0 : index
    %c0_28 = arith.constant 0 : index
    %20 = vector.load %arg4[%c0_27, %c0_28] : memref<64x128xf32, #tpu.memory_space<vmem>>, vector<64x128xf32>
    %c2 = arith.constant 2 : index
    %c0_29 = arith.constant 0 : index
    %c0_30 = arith.constant 0 : index
    %21 = vector.load %arg2[%c2, %c0_29, %c0_30] : memref<4x512x128xbf16, #tpu.memory_space<vmem>>, vector<1x512x128xbf16>
    %22 = vector.shape_cast %21 : vector<1x512x128xbf16> to vector<512x128xbf16>
    %cst_31 = arith.constant dense<0.000000e+00> : vector<64x128xf32>
    %23 = tpu.matmul %19, %22, %cst_31 {dimension_numbers = #tpu.dot_dimension_numbers<[1], [0], [0], [1], [0, 0, 1, 1], [], []>} : vector<64x512xbf16>, vector<512x128xbf16>, vector<64x128xf32> -> vector<64x128xf32>
    %24 = arith.addf %20, %23 : vector<64x128xf32>
    %c0_32 = arith.constant 0 : index
    %c0_33 = arith.constant 0 : index
    %25 = vector.load %arg4[%c0_32, %c0_33] : memref<64x128xf32, #tpu.memory_space<vmem>>, vector<64x128xf32>
    tpu.vector_store %arg4[%c0_32, %c0_33], %24 {strides = array<i32>} : memref<64x128xf32, #tpu.memory_space<vmem>>, vector<64x128xf32>,
    %c0_34 = arith.constant 0 : index
    %c1_35 = arith.constant 1 : index
    %c8_36 = arith.constant 8 : index
    %c0_37 = arith.constant 0 : index
    %26 = vector.load %arg1[%c0_34, %c1_35, %c8_36, %c0_37] : memref<1x2x72x512xbf16, #tpu.memory_space<vmem>>, vector<1x1x64x512xbf16>
    %27 = vector.shape_cast %26 : vector<1x1x64x512xbf16> to vector<64x512xbf16>
    %c0_38 = arith.constant 0 : index
    %c0_39 = arith.constant 0 : index
    %28 = vector.load %arg4[%c0_38, %c0_39] : memref<64x128xf32, #tpu.memory_space<vmem>>, vector<64x128xf32>
    %c3 = arith.constant 3 : index
    %c0_40 = arith.constant 0 : index
    %c0_41 = arith.constant 0 : index
    %29 = vector.load %arg2[%c3, %c0_40, %c0_41] : memref<4x512x128xbf16, #tpu.memory_space<vmem>>, vector<1x512x128xbf16>
    %30 = vector.shape_cast %29 : vector<1x512x128xbf16> to vector<512x128xbf16>
    %cst_42 = arith.constant dense<0.000000e+00> : vector<64x128xf32>
    %31 = tpu.matmul %27, %30, %cst_42 {dimension_numbers = #tpu.dot_dimension_numbers<[1], [0], [0], [1], [0, 0, 1, 1], [], []>} : vector<64x512xbf16>, vector<512x128xbf16>, vector<64x128xf32> -> vector<64x128xf32>
    %32 = arith.addf %28, %31 : vector<64x128xf32>
    %c0_43 = arith.constant 0 : index
    %c0_44 = arith.constant 0 : index
    %33 = vector.load %arg4[%c0_43, %c0_44] : memref<64x128xf32, #tpu.memory_space<vmem>>, vector<64x128xf32>
    tpu.vector_store %arg4[%c0_43, %c0_44], %32 {strides = array<i32>} : memref<64x128xf32, #tpu.memory_space<vmem>>, vector<64x128xf32>,
    %c0_45 = arith.constant 0 : index
    %c0_46 = arith.constant 0 : index
    %34 = vector.load %arg4[%c0_45, %c0_46] : memref<64x128xf32, #tpu.memory_space<vmem>>, vector<64x128xf32>
    %cst_47 = arith.constant 0.000000e+00 : f32
    %35 = vector.broadcast %cst_47 : f32 to vector<64x128xf32>
    %36 = arith.cmpf ogt, %34, %35 : vector<64x128xf32>
    %cst_48 = arith.constant 2.000000e-01 : f32
    %37 = vector.broadcast %cst_48 : f32 to vector<64x128xf32>
    %38 = arith.mulf %37, %34 : vector<64x128xf32>
    %39 = arith.select %36, %34, %38 : vector<64x128xi1>, vector<64x128xf32>
    %40 = arith.truncf %39 : vector<64x128xf32> to vector<64x128xbf16>
    %c0_49 = arith.constant 0 : index
    %c0_50 = arith.constant 0 : index
    %c0_51 = arith.constant 0 : index
    %41 = vector.load %arg3[%c0_49, %c0_50, %c0_51] : memref<1x64x128xbf16, #tpu.memory_space<vmem>>, vector<1x64x128xbf16>
    %42 = vector.shape_cast %41 : vector<1x64x128xbf16> to vector<64x128xbf16>
    %43 = vector.shape_cast %40 : vector<64x128xbf16> to vector<1x64x128xbf16>
    tpu.vector_store %arg3[%c0_49, %c0_50, %c0_51], %43 {strides = array<i32>} : memref<1x64x128xbf16, #tpu.memory_space<vmem>>, vector<1x64x128xbf16>,
    return
  }
  func.func @transform_0(%arg0: i32) -> (i32, i32, i32, i32) {
    %c0_i32 = arith.constant 0 : i32
    %c0_i32_0 = arith.constant 0 : i32
    %c0_i32_1 = arith.constant 0 : i32
    %c0_i32_2 = arith.constant 0 : i32
    return %arg0, %c0_i32, %c0_i32_0, %c0_i32_1 : i32, i32, i32, i32
  }
  func.func @transform_1(%arg0: i32) -> (i32, i32, i32) {
    %c0_i32 = arith.constant 0 : i32
    %c0_i32_0 = arith.constant 0 : i32
    %c0_i32_1 = arith.constant 0 : i32
    %c0_i32_2 = arith.constant 0 : i32
    return %c0_i32, %c0_i32_0, %c0_i32_1 : i32, i32, i32
  }
  func.func @transform_2(%arg0: i32) -> (i32, i32, i32) {
    %c0_i32 = arith.constant 0 : i32
    %c0_i32_0 = arith.constant 0 : i32
    %c0_i32_1 = arith.constant 0 : i32
    return %arg0, %c0_i32, %c0_i32_0 : i32, i32, i32
  }
}

module attributes {stable_mosaic.version = 11 : i64} {
  func.func @_conv_lrelu_kernel(%arg0: i32, %arg1: memref<1x2x20x512xbf16, #tpu.memory_space<vmem>>, %arg2: memref<4x512x128xbf16, #tpu.memory_space<vmem>>, %arg3: memref<1x16x128xbf16, #tpu.memory_space<vmem>>, %arg4: memref<16x128xf32, #tpu.memory_space<vmem>>) attributes {dimension_semantics = [#tpu.dimension_semantics<parallel>], iteration_bounds = array<i64: 2>, scalar_prefetch = 0 : i64, scratch_operands = 1 : i64, tpu.core_type = #tpu.core_type<tc>, window_params = [{transform_indices = @transform_0, window_bounds = array<i64: 1, 2, 20, 512>}, {pipeline_mode = #tpu.pipeline_mode<synchronous>, transform_indices = @transform_1, window_bounds = array<i64: 4, 512, 128>}, {transform_indices = @transform_2, window_bounds = array<i64: 1, 16, 128>}]} {
    %cst = arith.constant 0.000000e+00 : f32
    %0 = vector.broadcast %cst : f32 to vector<16x128xf32>
    %c0 = arith.constant 0 : index
    %c0_0 = arith.constant 0 : index
    %1 = vector.load %arg4[%c0, %c0_0] : memref<16x128xf32, #tpu.memory_space<vmem>>, vector<16x128xf32>
    tpu.vector_store %arg4[%c0, %c0_0], %0 {strides = array<i32>} : memref<16x128xf32, #tpu.memory_space<vmem>>, vector<16x128xf32>,
    %c0_1 = arith.constant 0 : index
    %c0_2 = arith.constant 0 : index
    %c0_3 = arith.constant 0 : index
    %c0_4 = arith.constant 0 : index
    %2 = vector.load %arg1[%c0_1, %c0_2, %c0_3, %c0_4] : memref<1x2x20x512xbf16, #tpu.memory_space<vmem>>, vector<1x1x16x512xbf16>
    %3 = vector.shape_cast %2 : vector<1x1x16x512xbf16> to vector<16x512xbf16>
    %c0_5 = arith.constant 0 : index
    %c0_6 = arith.constant 0 : index
    %4 = vector.load %arg4[%c0_5, %c0_6] : memref<16x128xf32, #tpu.memory_space<vmem>>, vector<16x128xf32>
    %c0_7 = arith.constant 0 : index
    %c0_8 = arith.constant 0 : index
    %c0_9 = arith.constant 0 : index
    %5 = vector.load %arg2[%c0_7, %c0_8, %c0_9] : memref<4x512x128xbf16, #tpu.memory_space<vmem>>, vector<1x512x128xbf16>
    %6 = vector.shape_cast %5 : vector<1x512x128xbf16> to vector<512x128xbf16>
    %cst_10 = arith.constant dense<0.000000e+00> : vector<16x128xf32>
    %7 = tpu.matmul %3, %6, %cst_10 {dimension_numbers = #tpu.dot_dimension_numbers<[1], [0], [0], [1], [0, 0, 1, 1], [], []>} : vector<16x512xbf16>, vector<512x128xbf16>, vector<16x128xf32> -> vector<16x128xf32>
    %8 = arith.addf %4, %7 : vector<16x128xf32>
    %c0_11 = arith.constant 0 : index
    %c0_12 = arith.constant 0 : index
    %9 = vector.load %arg4[%c0_11, %c0_12] : memref<16x128xf32, #tpu.memory_space<vmem>>, vector<16x128xf32>
    tpu.vector_store %arg4[%c0_11, %c0_12], %8 {strides = array<i32>} : memref<16x128xf32, #tpu.memory_space<vmem>>, vector<16x128xf32>,
    %c0_13 = arith.constant 0 : index
    %c1 = arith.constant 1 : index
    %c0_14 = arith.constant 0 : index
    %c0_15 = arith.constant 0 : index
    %10 = vector.load %arg1[%c0_13, %c1, %c0_14, %c0_15] : memref<1x2x20x512xbf16, #tpu.memory_space<vmem>>, vector<1x1x16x512xbf16>
    %11 = vector.shape_cast %10 : vector<1x1x16x512xbf16> to vector<16x512xbf16>
    %c0_16 = arith.constant 0 : index
    %c0_17 = arith.constant 0 : index
    %12 = vector.load %arg4[%c0_16, %c0_17] : memref<16x128xf32, #tpu.memory_space<vmem>>, vector<16x128xf32>
    %c1_18 = arith.constant 1 : index
    %c0_19 = arith.constant 0 : index
    %c0_20 = arith.constant 0 : index
    %13 = vector.load %arg2[%c1_18, %c0_19, %c0_20] : memref<4x512x128xbf16, #tpu.memory_space<vmem>>, vector<1x512x128xbf16>
    %14 = vector.shape_cast %13 : vector<1x512x128xbf16> to vector<512x128xbf16>
    %cst_21 = arith.constant dense<0.000000e+00> : vector<16x128xf32>
    %15 = tpu.matmul %11, %14, %cst_21 {dimension_numbers = #tpu.dot_dimension_numbers<[1], [0], [0], [1], [0, 0, 1, 1], [], []>} : vector<16x512xbf16>, vector<512x128xbf16>, vector<16x128xf32> -> vector<16x128xf32>
    %16 = arith.addf %12, %15 : vector<16x128xf32>
    %c0_22 = arith.constant 0 : index
    %c0_23 = arith.constant 0 : index
    %17 = vector.load %arg4[%c0_22, %c0_23] : memref<16x128xf32, #tpu.memory_space<vmem>>, vector<16x128xf32>
    tpu.vector_store %arg4[%c0_22, %c0_23], %16 {strides = array<i32>} : memref<16x128xf32, #tpu.memory_space<vmem>>, vector<16x128xf32>,
    %c0_24 = arith.constant 0 : index
    %c0_25 = arith.constant 0 : index
    %c4 = arith.constant 4 : index
    %c0_26 = arith.constant 0 : index
    %18 = vector.load %arg1[%c0_24, %c0_25, %c4, %c0_26] : memref<1x2x20x512xbf16, #tpu.memory_space<vmem>>, vector<1x1x16x512xbf16>
    %19 = vector.shape_cast %18 : vector<1x1x16x512xbf16> to vector<16x512xbf16>
    %c0_27 = arith.constant 0 : index
    %c0_28 = arith.constant 0 : index
    %20 = vector.load %arg4[%c0_27, %c0_28] : memref<16x128xf32, #tpu.memory_space<vmem>>, vector<16x128xf32>
    %c2 = arith.constant 2 : index
    %c0_29 = arith.constant 0 : index
    %c0_30 = arith.constant 0 : index
    %21 = vector.load %arg2[%c2, %c0_29, %c0_30] : memref<4x512x128xbf16, #tpu.memory_space<vmem>>, vector<1x512x128xbf16>
    %22 = vector.shape_cast %21 : vector<1x512x128xbf16> to vector<512x128xbf16>
    %cst_31 = arith.constant dense<0.000000e+00> : vector<16x128xf32>
    %23 = tpu.matmul %19, %22, %cst_31 {dimension_numbers = #tpu.dot_dimension_numbers<[1], [0], [0], [1], [0, 0, 1, 1], [], []>} : vector<16x512xbf16>, vector<512x128xbf16>, vector<16x128xf32> -> vector<16x128xf32>
    %24 = arith.addf %20, %23 : vector<16x128xf32>
    %c0_32 = arith.constant 0 : index
    %c0_33 = arith.constant 0 : index
    %25 = vector.load %arg4[%c0_32, %c0_33] : memref<16x128xf32, #tpu.memory_space<vmem>>, vector<16x128xf32>
    tpu.vector_store %arg4[%c0_32, %c0_33], %24 {strides = array<i32>} : memref<16x128xf32, #tpu.memory_space<vmem>>, vector<16x128xf32>,
    %c0_34 = arith.constant 0 : index
    %c1_35 = arith.constant 1 : index
    %c4_36 = arith.constant 4 : index
    %c0_37 = arith.constant 0 : index
    %26 = vector.load %arg1[%c0_34, %c1_35, %c4_36, %c0_37] : memref<1x2x20x512xbf16, #tpu.memory_space<vmem>>, vector<1x1x16x512xbf16>
    %27 = vector.shape_cast %26 : vector<1x1x16x512xbf16> to vector<16x512xbf16>
    %c0_38 = arith.constant 0 : index
    %c0_39 = arith.constant 0 : index
    %28 = vector.load %arg4[%c0_38, %c0_39] : memref<16x128xf32, #tpu.memory_space<vmem>>, vector<16x128xf32>
    %c3 = arith.constant 3 : index
    %c0_40 = arith.constant 0 : index
    %c0_41 = arith.constant 0 : index
    %29 = vector.load %arg2[%c3, %c0_40, %c0_41] : memref<4x512x128xbf16, #tpu.memory_space<vmem>>, vector<1x512x128xbf16>
    %30 = vector.shape_cast %29 : vector<1x512x128xbf16> to vector<512x128xbf16>
    %cst_42 = arith.constant dense<0.000000e+00> : vector<16x128xf32>
    %31 = tpu.matmul %27, %30, %cst_42 {dimension_numbers = #tpu.dot_dimension_numbers<[1], [0], [0], [1], [0, 0, 1, 1], [], []>} : vector<16x512xbf16>, vector<512x128xbf16>, vector<16x128xf32> -> vector<16x128xf32>
    %32 = arith.addf %28, %31 : vector<16x128xf32>
    %c0_43 = arith.constant 0 : index
    %c0_44 = arith.constant 0 : index
    %33 = vector.load %arg4[%c0_43, %c0_44] : memref<16x128xf32, #tpu.memory_space<vmem>>, vector<16x128xf32>
    tpu.vector_store %arg4[%c0_43, %c0_44], %32 {strides = array<i32>} : memref<16x128xf32, #tpu.memory_space<vmem>>, vector<16x128xf32>,
    %c0_45 = arith.constant 0 : index
    %c0_46 = arith.constant 0 : index
    %34 = vector.load %arg4[%c0_45, %c0_46] : memref<16x128xf32, #tpu.memory_space<vmem>>, vector<16x128xf32>
    %cst_47 = arith.constant 0.000000e+00 : f32
    %35 = vector.broadcast %cst_47 : f32 to vector<16x128xf32>
    %36 = arith.cmpf ogt, %34, %35 : vector<16x128xf32>
    %cst_48 = arith.constant 2.000000e-01 : f32
    %37 = vector.broadcast %cst_48 : f32 to vector<16x128xf32>
    %38 = arith.mulf %37, %34 : vector<16x128xf32>
    %39 = arith.select %36, %34, %38 : vector<16x128xi1>, vector<16x128xf32>
    %40 = arith.truncf %39 : vector<16x128xf32> to vector<16x128xbf16>
    %c0_49 = arith.constant 0 : index
    %c0_50 = arith.constant 0 : index
    %c0_51 = arith.constant 0 : index
    %41 = vector.load %arg3[%c0_49, %c0_50, %c0_51] : memref<1x16x128xbf16, #tpu.memory_space<vmem>>, vector<1x16x128xbf16>
    %42 = vector.shape_cast %41 : vector<1x16x128xbf16> to vector<16x128xbf16>
    %43 = vector.shape_cast %40 : vector<16x128xbf16> to vector<1x16x128xbf16>
    tpu.vector_store %arg3[%c0_49, %c0_50, %c0_51], %43 {strides = array<i32>} : memref<1x16x128xbf16, #tpu.memory_space<vmem>>, vector<1x16x128xbf16>,
    return
  }
  func.func @transform_0(%arg0: i32) -> (i32, i32, i32, i32) {
    %c0_i32 = arith.constant 0 : i32
    %c0_i32_0 = arith.constant 0 : i32
    %c0_i32_1 = arith.constant 0 : i32
    %c0_i32_2 = arith.constant 0 : i32
    return %arg0, %c0_i32, %c0_i32_0, %c0_i32_1 : i32, i32, i32, i32
  }
  func.func @transform_1(%arg0: i32) -> (i32, i32, i32) {
    %c0_i32 = arith.constant 0 : i32
    %c0_i32_0 = arith.constant 0 : i32
    %c0_i32_1 = arith.constant 0 : i32
    %c0_i32_2 = arith.constant 0 : i32
    return %c0_i32, %c0_i32_0, %c0_i32_1 : i32, i32, i32
  }
  func.func @transform_2(%arg0: i32) -> (i32, i32, i32) {
    %c0_i32 = arith.constant 0 : i32
    %c0_i32_0 = arith.constant 0 : i32
    %c0_i32_1 = arith.constant 0 : i32
    return %arg0, %c0_i32, %c0_i32_0 : i32, i32, i32
  }
}

module attributes {stable_mosaic.version = 11 : i64} {
  func.func @_conv_lrelu_kernel(%arg0: i32, %arg1: memref<1x2x6x512xbf16, #tpu.memory_space<vmem>>, %arg2: memref<4x512x128xbf16, #tpu.memory_space<vmem>>, %arg3: memref<1x4x128xbf16, #tpu.memory_space<vmem>>, %arg4: memref<4x128xf32, #tpu.memory_space<vmem>>) attributes {dimension_semantics = [#tpu.dimension_semantics<parallel>], iteration_bounds = array<i64: 2>, scalar_prefetch = 0 : i64, scratch_operands = 1 : i64, tpu.core_type = #tpu.core_type<tc>, window_params = [{transform_indices = @transform_0, window_bounds = array<i64: 1, 2, 6, 512>}, {pipeline_mode = #tpu.pipeline_mode<synchronous>, transform_indices = @transform_1, window_bounds = array<i64: 4, 512, 128>}, {transform_indices = @transform_2, window_bounds = array<i64: 1, 4, 128>}]} {
    %cst = arith.constant 0.000000e+00 : f32
    %0 = vector.broadcast %cst : f32 to vector<4x128xf32>
    %c0 = arith.constant 0 : index
    %c0_0 = arith.constant 0 : index
    %1 = vector.load %arg4[%c0, %c0_0] : memref<4x128xf32, #tpu.memory_space<vmem>>, vector<4x128xf32>
    tpu.vector_store %arg4[%c0, %c0_0], %0 {strides = array<i32>} : memref<4x128xf32, #tpu.memory_space<vmem>>, vector<4x128xf32>,
    %c0_1 = arith.constant 0 : index
    %c0_2 = arith.constant 0 : index
    %c0_3 = arith.constant 0 : index
    %c0_4 = arith.constant 0 : index
    %2 = vector.load %arg1[%c0_1, %c0_2, %c0_3, %c0_4] : memref<1x2x6x512xbf16, #tpu.memory_space<vmem>>, vector<1x1x4x512xbf16>
    %3 = vector.shape_cast %2 : vector<1x1x4x512xbf16> to vector<4x512xbf16>
    %c0_5 = arith.constant 0 : index
    %c0_6 = arith.constant 0 : index
    %4 = vector.load %arg4[%c0_5, %c0_6] : memref<4x128xf32, #tpu.memory_space<vmem>>, vector<4x128xf32>
    %c0_7 = arith.constant 0 : index
    %c0_8 = arith.constant 0 : index
    %c0_9 = arith.constant 0 : index
    %5 = vector.load %arg2[%c0_7, %c0_8, %c0_9] : memref<4x512x128xbf16, #tpu.memory_space<vmem>>, vector<1x512x128xbf16>
    %6 = vector.shape_cast %5 : vector<1x512x128xbf16> to vector<512x128xbf16>
    %cst_10 = arith.constant dense<0.000000e+00> : vector<4x128xf32>
    %7 = tpu.matmul %3, %6, %cst_10 {dimension_numbers = #tpu.dot_dimension_numbers<[1], [0], [0], [1], [0, 0, 1, 1], [], []>} : vector<4x512xbf16>, vector<512x128xbf16>, vector<4x128xf32> -> vector<4x128xf32>
    %8 = arith.addf %4, %7 : vector<4x128xf32>
    %c0_11 = arith.constant 0 : index
    %c0_12 = arith.constant 0 : index
    %9 = vector.load %arg4[%c0_11, %c0_12] : memref<4x128xf32, #tpu.memory_space<vmem>>, vector<4x128xf32>
    tpu.vector_store %arg4[%c0_11, %c0_12], %8 {strides = array<i32>} : memref<4x128xf32, #tpu.memory_space<vmem>>, vector<4x128xf32>,
    %c0_13 = arith.constant 0 : index
    %c1 = arith.constant 1 : index
    %c0_14 = arith.constant 0 : index
    %c0_15 = arith.constant 0 : index
    %10 = vector.load %arg1[%c0_13, %c1, %c0_14, %c0_15] : memref<1x2x6x512xbf16, #tpu.memory_space<vmem>>, vector<1x1x4x512xbf16>
    %11 = vector.shape_cast %10 : vector<1x1x4x512xbf16> to vector<4x512xbf16>
    %c0_16 = arith.constant 0 : index
    %c0_17 = arith.constant 0 : index
    %12 = vector.load %arg4[%c0_16, %c0_17] : memref<4x128xf32, #tpu.memory_space<vmem>>, vector<4x128xf32>
    %c1_18 = arith.constant 1 : index
    %c0_19 = arith.constant 0 : index
    %c0_20 = arith.constant 0 : index
    %13 = vector.load %arg2[%c1_18, %c0_19, %c0_20] : memref<4x512x128xbf16, #tpu.memory_space<vmem>>, vector<1x512x128xbf16>
    %14 = vector.shape_cast %13 : vector<1x512x128xbf16> to vector<512x128xbf16>
    %cst_21 = arith.constant dense<0.000000e+00> : vector<4x128xf32>
    %15 = tpu.matmul %11, %14, %cst_21 {dimension_numbers = #tpu.dot_dimension_numbers<[1], [0], [0], [1], [0, 0, 1, 1], [], []>} : vector<4x512xbf16>, vector<512x128xbf16>, vector<4x128xf32> -> vector<4x128xf32>
    %16 = arith.addf %12, %15 : vector<4x128xf32>
    %c0_22 = arith.constant 0 : index
    %c0_23 = arith.constant 0 : index
    %17 = vector.load %arg4[%c0_22, %c0_23] : memref<4x128xf32, #tpu.memory_space<vmem>>, vector<4x128xf32>
    tpu.vector_store %arg4[%c0_22, %c0_23], %16 {strides = array<i32>} : memref<4x128xf32, #tpu.memory_space<vmem>>, vector<4x128xf32>,
    %c0_24 = arith.constant 0 : index
    %c0_25 = arith.constant 0 : index
    %c2 = arith.constant 2 : index
    %c0_26 = arith.constant 0 : index
    %18 = vector.load %arg1[%c0_24, %c0_25, %c2, %c0_26] : memref<1x2x6x512xbf16, #tpu.memory_space<vmem>>, vector<1x1x4x512xbf16>
    %19 = vector.shape_cast %18 : vector<1x1x4x512xbf16> to vector<4x512xbf16>
    %c0_27 = arith.constant 0 : index
    %c0_28 = arith.constant 0 : index
    %20 = vector.load %arg4[%c0_27, %c0_28] : memref<4x128xf32, #tpu.memory_space<vmem>>, vector<4x128xf32>
    %c2_29 = arith.constant 2 : index
    %c0_30 = arith.constant 0 : index
    %c0_31 = arith.constant 0 : index
    %21 = vector.load %arg2[%c2_29, %c0_30, %c0_31] : memref<4x512x128xbf16, #tpu.memory_space<vmem>>, vector<1x512x128xbf16>
    %22 = vector.shape_cast %21 : vector<1x512x128xbf16> to vector<512x128xbf16>
    %cst_32 = arith.constant dense<0.000000e+00> : vector<4x128xf32>
    %23 = tpu.matmul %19, %22, %cst_32 {dimension_numbers = #tpu.dot_dimension_numbers<[1], [0], [0], [1], [0, 0, 1, 1], [], []>} : vector<4x512xbf16>, vector<512x128xbf16>, vector<4x128xf32> -> vector<4x128xf32>
    %24 = arith.addf %20, %23 : vector<4x128xf32>
    %c0_33 = arith.constant 0 : index
    %c0_34 = arith.constant 0 : index
    %25 = vector.load %arg4[%c0_33, %c0_34] : memref<4x128xf32, #tpu.memory_space<vmem>>, vector<4x128xf32>
    tpu.vector_store %arg4[%c0_33, %c0_34], %24 {strides = array<i32>} : memref<4x128xf32, #tpu.memory_space<vmem>>, vector<4x128xf32>,
    %c0_35 = arith.constant 0 : index
    %c1_36 = arith.constant 1 : index
    %c2_37 = arith.constant 2 : index
    %c0_38 = arith.constant 0 : index
    %26 = vector.load %arg1[%c0_35, %c1_36, %c2_37, %c0_38] : memref<1x2x6x512xbf16, #tpu.memory_space<vmem>>, vector<1x1x4x512xbf16>
    %27 = vector.shape_cast %26 : vector<1x1x4x512xbf16> to vector<4x512xbf16>
    %c0_39 = arith.constant 0 : index
    %c0_40 = arith.constant 0 : index
    %28 = vector.load %arg4[%c0_39, %c0_40] : memref<4x128xf32, #tpu.memory_space<vmem>>, vector<4x128xf32>
    %c3 = arith.constant 3 : index
    %c0_41 = arith.constant 0 : index
    %c0_42 = arith.constant 0 : index
    %29 = vector.load %arg2[%c3, %c0_41, %c0_42] : memref<4x512x128xbf16, #tpu.memory_space<vmem>>, vector<1x512x128xbf16>
    %30 = vector.shape_cast %29 : vector<1x512x128xbf16> to vector<512x128xbf16>
    %cst_43 = arith.constant dense<0.000000e+00> : vector<4x128xf32>
    %31 = tpu.matmul %27, %30, %cst_43 {dimension_numbers = #tpu.dot_dimension_numbers<[1], [0], [0], [1], [0, 0, 1, 1], [], []>} : vector<4x512xbf16>, vector<512x128xbf16>, vector<4x128xf32> -> vector<4x128xf32>
    %32 = arith.addf %28, %31 : vector<4x128xf32>
    %c0_44 = arith.constant 0 : index
    %c0_45 = arith.constant 0 : index
    %33 = vector.load %arg4[%c0_44, %c0_45] : memref<4x128xf32, #tpu.memory_space<vmem>>, vector<4x128xf32>
    tpu.vector_store %arg4[%c0_44, %c0_45], %32 {strides = array<i32>} : memref<4x128xf32, #tpu.memory_space<vmem>>, vector<4x128xf32>,
    %c0_46 = arith.constant 0 : index
    %c0_47 = arith.constant 0 : index
    %34 = vector.load %arg4[%c0_46, %c0_47] : memref<4x128xf32, #tpu.memory_space<vmem>>, vector<4x128xf32>
    %cst_48 = arith.constant 0.000000e+00 : f32
    %35 = vector.broadcast %cst_48 : f32 to vector<4x128xf32>
    %36 = arith.cmpf ogt, %34, %35 : vector<4x128xf32>
    %cst_49 = arith.constant 2.000000e-01 : f32
    %37 = vector.broadcast %cst_49 : f32 to vector<4x128xf32>
    %38 = arith.mulf %37, %34 : vector<4x128xf32>
    %39 = arith.select %36, %34, %38 : vector<4x128xi1>, vector<4x128xf32>
    %40 = arith.truncf %39 : vector<4x128xf32> to vector<4x128xbf16>
    %c0_50 = arith.constant 0 : index
    %c0_51 = arith.constant 0 : index
    %c0_52 = arith.constant 0 : index
    %41 = vector.load %arg3[%c0_50, %c0_51, %c0_52] : memref<1x4x128xbf16, #tpu.memory_space<vmem>>, vector<1x4x128xbf16>
    %42 = vector.shape_cast %41 : vector<1x4x128xbf16> to vector<4x128xbf16>
    %43 = vector.shape_cast %40 : vector<4x128xbf16> to vector<1x4x128xbf16>
    tpu.vector_store %arg3[%c0_50, %c0_51, %c0_52], %43 {strides = array<i32>} : memref<1x4x128xbf16, #tpu.memory_space<vmem>>, vector<1x4x128xbf16>,
    return
  }
  func.func @transform_0(%arg0: i32) -> (i32, i32, i32, i32) {
    %c0_i32 = arith.constant 0 : i32
    %c0_i32_0 = arith.constant 0 : i32
    %c0_i32_1 = arith.constant 0 : i32
    %c0_i32_2 = arith.constant 0 : i32
    return %arg0, %c0_i32, %c0_i32_0, %c0_i32_1 : i32, i32, i32, i32
  }
  func.func @transform_1(%arg0: i32) -> (i32, i32, i32) {
    %c0_i32 = arith.constant 0 : i32
    %c0_i32_0 = arith.constant 0 : i32
    %c0_i32_1 = arith.constant 0 : i32
    %c0_i32_2 = arith.constant 0 : i32
    return %c0_i32, %c0_i32_0, %c0_i32_1 : i32, i32, i32
  }
  func.func @transform_2(%arg0: i32) -> (i32, i32, i32) {
    %c0_i32 = arith.constant 0 : i32
    %c0_i32_0 = arith.constant 0 : i32
    %c0_i32_1 = arith.constant 0 : i32
    return %arg0, %c0_i32, %c0_i32_0 : i32, i32, i32
  }
}

module attributes {stable_mosaic.version = 11 : i64} {
  func.func @_conv_fc_kernel(%arg0: i32, %arg1: memref<1x2x2x512xbf16, #tpu.memory_space<vmem>>, %arg2: memref<4x512x128xbf16, #tpu.memory_space<vmem>>, %arg3: memref<1x128x128xbf16, #tpu.memory_space<vmem>>, %arg4: memref<1xf32, #tpu.memory_space<smem>>, %arg5: memref<1x1x128xf32, #tpu.memory_space<vmem>>) attributes {dimension_semantics = [#tpu.dimension_semantics<parallel>], iteration_bounds = array<i64: 2>, scalar_prefetch = 0 : i64, scratch_operands = 0 : i64, tpu.core_type = #tpu.core_type<tc>, window_params = [{transform_indices = @transform_0, window_bounds = array<i64: 1, 2, 2, 512>}, {pipeline_mode = #tpu.pipeline_mode<synchronous>, transform_indices = @transform_1, window_bounds = array<i64: 4, 512, 128>}, {pipeline_mode = #tpu.pipeline_mode<synchronous>, transform_indices = @transform_2, window_bounds = array<i64: 1, 128, 128>}, {transform_indices = @transform_3, window_bounds = array<i64: 1>}, {transform_indices = @transform_4, window_bounds = array<i64: 1, 1, 128>}]} {
    %cst = arith.constant 0.000000e+00 : f32
    %0 = vector.broadcast %cst : f32 to vector<1x128xf32>
    %c0 = arith.constant 0 : index
    %c0_0 = arith.constant 0 : index
    %c0_1 = arith.constant 0 : index
    %c0_2 = arith.constant 0 : index
    %1 = vector.load %arg1[%c0, %c0_0, %c0_1, %c0_2] : memref<1x2x2x512xbf16, #tpu.memory_space<vmem>>, vector<1x1x1x512xbf16>
    %2 = vector.shape_cast %1 : vector<1x1x1x512xbf16> to vector<1x512xbf16>
    %c0_3 = arith.constant 0 : index
    %c0_4 = arith.constant 0 : index
    %c0_5 = arith.constant 0 : index
    %3 = vector.load %arg2[%c0_3, %c0_4, %c0_5] : memref<4x512x128xbf16, #tpu.memory_space<vmem>>, vector<1x512x128xbf16>
    %4 = vector.shape_cast %3 : vector<1x512x128xbf16> to vector<512x128xbf16>
    %cst_6 = arith.constant dense<0.000000e+00> : vector<1x128xf32>
    %5 = tpu.matmul %2, %4, %cst_6 {dimension_numbers = #tpu.dot_dimension_numbers<[1], [0], [0], [1], [0, 0, 1, 1], [], []>} : vector<1x512xbf16>, vector<512x128xbf16>, vector<1x128xf32> -> vector<1x128xf32>
    %6 = arith.addf %0, %5 : vector<1x128xf32>
    %c0_7 = arith.constant 0 : index
    %c1 = arith.constant 1 : index
    %c0_8 = arith.constant 0 : index
    %c0_9 = arith.constant 0 : index
    %7 = vector.load %arg1[%c0_7, %c1, %c0_8, %c0_9] : memref<1x2x2x512xbf16, #tpu.memory_space<vmem>>, vector<1x1x1x512xbf16>
    %8 = vector.shape_cast %7 : vector<1x1x1x512xbf16> to vector<1x512xbf16>
    %c1_10 = arith.constant 1 : index
    %c0_11 = arith.constant 0 : index
    %c0_12 = arith.constant 0 : index
    %9 = vector.load %arg2[%c1_10, %c0_11, %c0_12] : memref<4x512x128xbf16, #tpu.memory_space<vmem>>, vector<1x512x128xbf16>
    %10 = vector.shape_cast %9 : vector<1x512x128xbf16> to vector<512x128xbf16>
    %cst_13 = arith.constant dense<0.000000e+00> : vector<1x128xf32>
    %11 = tpu.matmul %8, %10, %cst_13 {dimension_numbers = #tpu.dot_dimension_numbers<[1], [0], [0], [1], [0, 0, 1, 1], [], []>} : vector<1x512xbf16>, vector<512x128xbf16>, vector<1x128xf32> -> vector<1x128xf32>
    %12 = arith.addf %6, %11 : vector<1x128xf32>
    %c0_14 = arith.constant 0 : index
    %c0_15 = arith.constant 0 : index
    %c1_16 = arith.constant 1 : index
    %c0_17 = arith.constant 0 : index
    %13 = vector.load %arg1[%c0_14, %c0_15, %c1_16, %c0_17] : memref<1x2x2x512xbf16, #tpu.memory_space<vmem>>, vector<1x1x1x512xbf16>
    %14 = vector.shape_cast %13 : vector<1x1x1x512xbf16> to vector<1x512xbf16>
    %c2 = arith.constant 2 : index
    %c0_18 = arith.constant 0 : index
    %c0_19 = arith.constant 0 : index
    %15 = vector.load %arg2[%c2, %c0_18, %c0_19] : memref<4x512x128xbf16, #tpu.memory_space<vmem>>, vector<1x512x128xbf16>
    %16 = vector.shape_cast %15 : vector<1x512x128xbf16> to vector<512x128xbf16>
    %cst_20 = arith.constant dense<0.000000e+00> : vector<1x128xf32>
    %17 = tpu.matmul %14, %16, %cst_20 {dimension_numbers = #tpu.dot_dimension_numbers<[1], [0], [0], [1], [0, 0, 1, 1], [], []>} : vector<1x512xbf16>, vector<512x128xbf16>, vector<1x128xf32> -> vector<1x128xf32>
    %18 = arith.addf %12, %17 : vector<1x128xf32>
    %c0_21 = arith.constant 0 : index
    %c1_22 = arith.constant 1 : index
    %c1_23 = arith.constant 1 : index
    %c0_24 = arith.constant 0 : index
    %19 = vector.load %arg1[%c0_21, %c1_22, %c1_23, %c0_24] : memref<1x2x2x512xbf16, #tpu.memory_space<vmem>>, vector<1x1x1x512xbf16>
    %20 = vector.shape_cast %19 : vector<1x1x1x512xbf16> to vector<1x512xbf16>
    %c3 = arith.constant 3 : index
    %c0_25 = arith.constant 0 : index
    %c0_26 = arith.constant 0 : index
    %21 = vector.load %arg2[%c3, %c0_25, %c0_26] : memref<4x512x128xbf16, #tpu.memory_space<vmem>>, vector<1x512x128xbf16>
    %22 = vector.shape_cast %21 : vector<1x512x128xbf16> to vector<512x128xbf16>
    %cst_27 = arith.constant dense<0.000000e+00> : vector<1x128xf32>
    %23 = tpu.matmul %20, %22, %cst_27 {dimension_numbers = #tpu.dot_dimension_numbers<[1], [0], [0], [1], [0, 0, 1, 1], [], []>} : vector<1x512xbf16>, vector<512x128xbf16>, vector<1x128xf32> -> vector<1x128xf32>
    %24 = arith.addf %18, %23 : vector<1x128xf32>
    %cst_28 = arith.constant 0.000000e+00 : f32
    %25 = vector.broadcast %cst_28 : f32 to vector<1x128xf32>
    %26 = arith.cmpf ogt, %24, %25 : vector<1x128xf32>
    %cst_29 = arith.constant 2.000000e-01 : f32
    %27 = vector.broadcast %cst_29 : f32 to vector<1x128xf32>
    %28 = arith.mulf %27, %24 : vector<1x128xf32>
    %29 = arith.select %26, %24, %28 : vector<1x128xi1>, vector<1x128xf32>
    %30 = arith.truncf %29 : vector<1x128xf32> to vector<1x128xbf16>
    %cst_30 = arith.constant 0.000000e+00 : f32
    %31 = vector.broadcast %cst_30 : f32 to vector<1x128xf32>
    %c0_31 = arith.constant 0 : index
    %c0_32 = arith.constant 0 : index
    %c0_33 = arith.constant 0 : index
    %32 = vector.load %arg3[%c0_31, %c0_32, %c0_33] : memref<1x128x128xbf16, #tpu.memory_space<vmem>>, vector<1x128x128xbf16>
    %33 = vector.shape_cast %32 : vector<1x128x128xbf16> to vector<128x128xbf16>
    %cst_34 = arith.constant dense<0.000000e+00> : vector<1x128xf32>
    %34 = tpu.matmul %30, %33, %cst_34 {dimension_numbers = #tpu.dot_dimension_numbers<[1], [0], [0], [1], [0, 0, 1, 1], [], []>} : vector<1x128xbf16>, vector<128x128xbf16>, vector<1x128xf32> -> vector<1x128xf32>
    %35 = arith.addf %31, %34 : vector<1x128xf32>
    %c0_35 = arith.constant 0 : index
    %36 = memref.load %arg4[%c0_35] : memref<1xf32, #tpu.memory_space<smem>>
    %37 = vector.broadcast %36 : f32 to vector<1x128xf32>
    %38 = arith.addf %35, %37 : vector<1x128xf32>
    %c0_36 = arith.constant 0 : index
    %c0_37 = arith.constant 0 : index
    %c0_38 = arith.constant 0 : index
    %39 = vector.load %arg5[%c0_36, %c0_37, %c0_38] : memref<1x1x128xf32, #tpu.memory_space<vmem>>, vector<1x1x128xf32>
    %40 = vector.shape_cast %39 : vector<1x1x128xf32> to vector<1x128xf32>
    %41 = vector.shape_cast %38 : vector<1x128xf32> to vector<1x1x128xf32>
    tpu.vector_store %arg5[%c0_36, %c0_37, %c0_38], %41 {strides = array<i32>} : memref<1x1x128xf32, #tpu.memory_space<vmem>>, vector<1x1x128xf32>,
    return
  }
  func.func @transform_0(%arg0: i32) -> (i32, i32, i32, i32) {
    %c0_i32 = arith.constant 0 : i32
    %c0_i32_0 = arith.constant 0 : i32
    %c0_i32_1 = arith.constant 0 : i32
    %c0_i32_2 = arith.constant 0 : i32
    return %arg0, %c0_i32, %c0_i32_0, %c0_i32_1 : i32, i32, i32, i32
  }
  func.func @transform_1(%arg0: i32) -> (i32, i32, i32) {
    %c0_i32 = arith.constant 0 : i32
    %c0_i32_0 = arith.constant 0 : i32
    %c0_i32_1 = arith.constant 0 : i32
    %c0_i32_2 = arith.constant 0 : i32
    return %c0_i32, %c0_i32_0, %c0_i32_1 : i32, i32, i32
  }
  func.func @transform_2(%arg0: i32) -> (i32, i32, i32) {
    %c0_i32 = arith.constant 0 : i32
    %c0_i32_0 = arith.constant 0 : i32
    %c0_i32_1 = arith.constant 0 : i32
    %c0_i32_2 = arith.constant 0 : i32
    return %c0_i32, %c0_i32_0, %c0_i32_1 : i32, i32, i32
  }
  func.func @transform_3(%arg0: i32) -> i32 {
    %c0_i32 = arith.constant 0 : i32
    %c0_i32_0 = arith.constant 0 : i32
    return %c0_i32 : i32
  }
  func.func @transform_4(%arg0: i32) -> (i32, i32, i32) {
    %c0_i32 = arith.constant 0 : i32
    %c0_i32_0 = arith.constant 0 : i32
    %c0_i32_1 = arith.constant 0 : i32
    return %arg0, %c0_i32, %c0_i32_0 : i32, i32, i32
  }
}

</mosaic_0001>

<llo_original>
// kernel: discriminator_forward.5
$region0: #{discriminator_forward.5}
  #allocation0 [shape = 'u32[]', space=smem, size = 0x4, offset = 0x4, fixed_abs, tag = 'smem constant byte address 0x4 - core index']
  #allocation1 [shape = 'u32[144,128]{1,0:T(1,128)}', space=vmem, size = 0x12000, scoped, tag = 'internal scratch']
  #allocation2 [shape = 'f32[256,128]{1,0:T(8,128)}', space=vmem, size = 0x20000, scoped, tag = 'scratch operand']
  %s0 = inlined_call_operand.vmem [shape: bf16[2,2,272,128], index: 0, kind: input, shape index: {}]
  %s1 = inlined_call_operand.vmem [shape: bf16[4,128,128], index: 1, kind: input, shape index: {}]
  %s2 = inlined_call_operand.vmem [shape: bf16[2,256,128], index: 2, kind: output, shape index: {}]
  %s3 = sld [smem:[#allocation0]]
  $region41: #{discriminator_forward.5} parent=0
    _
  %s5 = ssub.s32 1, %s3
  %s6 = scalar_select 0, %s5, %s3
  loop: start=0, step=1, limit=4
  $region2: #{discriminator_forward.5} parent=0 // loop_pre_header
    _
  $region3: #{discriminator_forward.5} parent=0 // loop_header
    %s8 = sphi 0, %s12
    %p9 = scmp.ge.s32.totalorder %s8, 4
    %s18 = sphi 0, %s20
    %s21 = sphi 0, %s18
    %s22 = sphi 0, %s21
    %s38 = sphi 0, %s22
    %s42 = sphi 0, %s42
    %s44 = sphi 0, %s42
    %s45 = sphi 0, %s44
    %s59 = sphi 0, %s45
    %s65 = sphi 0, %s67
    %s68 = sphi 0, %s65
    %s69 = sphi 0, %s68
    %s85 = sphi 0, %s69
  $region4: #{discriminator_forward.5} parent=0 // loop_header_branch
    %11 = sbr.rel (%p9) target = $region8
  $region5: #{discriminator_forward.5} parent=0 // loop_body
    %s13 = ssub.s32 %s8, 1
    %s14 = ssub.s32 %s8, 2
    %s15 = sadd.s32 %s8, 1
    %s16 = ssub.s32 %s8, %s15
    %p17 = scmp.eq.s32.totalorder %s16, 0
    %s19 = sadd.s32 %s18, 1
    %s20 = scalar_select %p17, %s18, %s19
    %p23 = pneg %p17
    %p24 = scmp.eq.s32.totalorder %s8, 1
    %p25 = por %p23, %p24
    %p26 = scmp.ne.s32.totalorder %s18, %s21
    %p27 = scmp.eq.s32.totalorder %s8, 0
    %p28 = por %p26, %p27
    %p29 = scmp.ne.s32.totalorder %s18, %s21
    %p30 = scmp.eq.s32.totalorder %s13, 1
    %p31 = por %p29, %p30
    %p32 = scmp.ne.s32.totalorder %s21, %s22
    %p33 = scmp.eq.s32.totalorder %s13, 0
    %p34 = por %p32, %p33
    %p35 = scmp.ne.s32.totalorder %s21, %s22
    %p36 = scmp.eq.s32.totalorder %s14, 1
    %p37 = por %p35, %p36
    %p39 = scmp.ne.s32.totalorder %s22, %s38
    %p40 = scmp.eq.s32.totalorder %s14, 0
    %p41 = por %p39, %p40
    %s43 = sadd.s32 %s42, 1
    %p46 = scmp.eq.s32.totalorder %s8, 1
    %p47 = scmp.ne.s32.totalorder %s42, %s44
    %p48 = scmp.eq.s32.totalorder %s8, 0
    %p49 = por %p47, %p48
    %p50 = scmp.ne.s32.totalorder %s42, %s44
    %p51 = scmp.eq.s32.totalorder %s13, 1
    %p52 = por %p50, %p51
    %p53 = scmp.ne.s32.totalorder %s44, %s45
    %p54 = scmp.eq.s32.totalorder %s13, 0
    %p55 = por %p53, %p54
    %p56 = scmp.ne.s32.totalorder %s44, %s45
    %p57 = scmp.eq.s32.totalorder %s14, 1
    %p58 = por %p56, %p57
    %p60 = scmp.ne.s32.totalorder %s45, %s59
    %p61 = scmp.eq.s32.totalorder %s14, 0
    %p62 = por %p60, %p61
    %s63 = ssub.s32 %s8, %s15
    %p64 = scmp.eq.s32.totalorder %s63, 0
    %s66 = sadd.s32 %s65, 1
    %s67 = scalar_select %p64, %s65, %s66
    %p70 = pneg %p64
    %p71 = scmp.eq.s32.totalorder %s8, 1
    %p72 = por %p70, %p71
    %p73 = scmp.ne.s32.totalorder %s65, %s68
    %p74 = scmp.eq.s32.totalorder %s8, 0
    %p75 = por %p73, %p74
    %p76 = scmp.ne.s32.totalorder %s65, %s68
    %p77 = scmp.eq.s32.totalorder %s13, 1
    %p78 = por %p76, %p77
    %p79 = scmp.ne.s32.totalorder %s68, %s69
    %p80 = scmp.eq.s32.totalorder %s13, 0
    %p81 = por %p79, %p80
    %p82 = scmp.ne.s32.totalorder %s68, %s69
    %p83 = scmp.eq.s32.totalorder %s14, 1
    %p84 = por %p82, %p83
    %p86 = scmp.ne.s32.totalorder %s69, %s85
    %p87 = scmp.eq.s32.totalorder %s14, 0
    %p88 = por %p86, %p87
    %p89 = scmp.le.s32.totalorder 1, %s8
    %p90 = scmp.lt.s32.totalorder %s8, 3
    %p91 = pnand %p89, %p90
    %p92 = pneg %p91
    // Predicated region
    $region9: #{discriminator_forward.5} parent=5 // pred_check
      _
    $region10: #{discriminator_forward.5} parent=5 // pred_check_branch
      %94 = sbr.rel (%p91) target = $region12
    $region11: #{discriminator_forward.5} parent=5 // pred_region
      %s95 = ssub.s32 %s8, 1
      // Predicated region
      $region13: #{discriminator_forward.5} parent=11 // pred_check
        %p96 = pneg %p55
      $region14: #{discriminator_forward.5} parent=11 // pred_check_branch
        %98 = sbr.rel (%p96) target = $region16
      $region15: #{discriminator_forward.5} parent=11 // pred_region
        _
      $region16: #{discriminator_forward.5} parent=11 // pred_fallthru
        _
    $region12: #{discriminator_forward.5} parent=5 // pred_fallthru
      _
    %p99 = scmp.lt.s32.totalorder %s8, 2
    // Predicated region
    $region17: #{discriminator_forward.5} parent=5 // pred_check
      %p100 = pneg %p99
    $region18: #{discriminator_forward.5} parent=5 // pred_check_branch
      %102 = sbr.rel (%p100) target = $region20
    $region19: #{discriminator_forward.5} parent=5 // pred_region
      // Predicated region
      $region21: #{discriminator_forward.5} parent=19 // pred_check
        %p103 = pneg %p28
      $region22: #{discriminator_forward.5} parent=19 // pred_check_branch
        %105 = sbr.rel (%p103) target = $region24
      $region23: #{discriminator_forward.5} parent=19 // pred_region
        %p106 = scmp.lt.s32.totalorder %s8, 1
        %s107 = scalar_select %p106, %s8, 1
        %s108 = smul.addr %s107, 68
        %s109 = smul.addr %s108, 4
        %s110 = scalar_lea.vmem %s0, %s109
      $region24: #{discriminator_forward.5} parent=19 // pred_fallthru
        _
    $region20: #{discriminator_forward.5} parent=5 // pred_fallthru
      _
    %p111 = scmp.le.s32.totalorder 1, %s8
    %p112 = scmp.lt.s32.totalorder %s8, 3
    %p113 = pnand %p111, %p112
    %p114 = pneg %p113
    // Predicated region
    $region25: #{discriminator_forward.5} parent=5 // pred_check
      _
    $region26: #{discriminator_forward.5} parent=5 // pred_check_branch
      %116 = sbr.rel (%p113) target = $region28
    $region27: #{discriminator_forward.5} parent=5 // pred_region
      %s117 = ssub.s32 %s8, 1
      %p118 = scmp.lt.s32.totalorder %s13, 1
      %s119 = scalar_select %p118, %s13, 1
      %s120 = smul.addr %s119, 68
      %s121 = smul.addr %s120, 4
      %s122 = scalar_lea.vmem %s0, %s121
      %p123 = pneg %p34
      %p124 = pneg %p31
      %p125 = pneg %p55
      %p126 = pneg %p52
      %p127 = pneg %p81
      %p128 = pneg %p78
      %p129 = scmp.lt.s32.totalorder %s13, 1
      %s130 = scalar_select %p129, %s13, 1
      %s131 = smul.addr %s130, 32
      %s132 = smul.addr %s131, 4
      %s133 = scalar_lea.vmem %s2, %s132
      %p134 = scmp.lt.s32.totalorder %s13, 1
      %s135 = scalar_select %p134, %s13, 1
      %s136 = smul.addr %s135, 68
      %s137 = smul.addr %s136, 4
      %s138 = scalar_lea.vmem %s0, %s137
      %p139 = scmp.lt.s32.totalorder %s13, 1
      %s140 = scalar_select %p139, %s13, 1
      %s141 = smul.addr %s140, 32
      %s142 = smul.addr %s141, 4
      %s143 = scalar_lea.vmem %s2, %s142
      %145 = vst [vmem:[#allocation2] sm:$0xff] 0.0
      %146 = vst [vmem:[#allocation2 + $0x8] sm:$0xff] 0.0
      %147 = vst [vmem:[#allocation2 + $0x10] sm:$0xff] 0.0
      %148 = vst [vmem:[#allocation2 + $0x18] sm:$0xff] 0.0
      %149 = vst [vmem:[#allocation2 + $0x20] sm:$0xff] 0.0
      %150 = vst [vmem:[#allocation2 + $0x28] sm:$0xff] 0.0
      %151 = vst [vmem:[#allocation2 + $0x30] sm:$0xff] 0.0
      %152 = vst [vmem:[#allocation2 + $0x38] sm:$0xff] 0.0
      %153 = vst [vmem:[#allocation2 + $0x40] sm:$0xff] 0.0
      %154 = vst [vmem:[#allocation2 + $0x48] sm:$0xff] 0.0
      %155 = vst [vmem:[#allocation2 + $0x50] sm:$0xff] 0.0
      %156 = vst [vmem:[#allocation2 + $0x58] sm:$0xff] 0.0
      %157 = vst [vmem:[#allocation2 + $0x60] sm:$0xff] 0.0
      %158 = vst [vmem:[#allocation2 + $0x68] sm:$0xff] 0.0
      %159 = vst [vmem:[#allocation2 + $0x70] sm:$0xff] 0.0
      %160 = vst [vmem:[#allocation2 + $0x78] sm:$0xff] 0.0
      %161 = vst [vmem:[#allocation2 + $0x80] sm:$0xff] 0.0
      %162 = vst [vmem:[#allocation2 + $0x88] sm:$0xff] 0.0
      %163 = vst [vmem:[#allocation2 + $0x90] sm:$0xff] 0.0
      %164 = vst [vmem:[#allocation2 + $0x98] sm:$0xff] 0.0
      %165 = vst [vmem:[#allocation2 + $0xa0] sm:$0xff] 0.0
      %166 = vst [vmem:[#allocation2 + $0xa8] sm:$0xff] 0.0
      %167 = vst [vmem:[#allocation2 + $0xb0] sm:$0xff] 0.0
      %168 = vst [vmem:[#allocation2 + $0xb8] sm:$0xff] 0.0
      %169 = vst [vmem:[#allocation2 + $0xc0] sm:$0xff] 0.0
      %170 = vst [vmem:[#allocation2 + $0xc8] sm:$0xff] 0.0
      %171 = vst [vmem:[#allocation2 + $0xd0] sm:$0xff] 0.0
      %172 = vst [vmem:[#allocation2 + $0xd8] sm:$0xff] 0.0
      %173 = vst [vmem:[#allocation2 + $0xe0] sm:$0xff] 0.0
      %174 = vst [vmem:[#allocation2 + $0xe8] sm:$0xff] 0.0
      %175 = vst [vmem:[#allocation2 + $0xf0] sm:$0xff] 0.0
      %176 = vst [vmem:[#allocation2 + $0xf8] sm:$0xff] 0.0
      %v177 = vld [vmem:[%s138] sm:$0xf]
      %v178 = vld [vmem:[%s138 + $0x4] sm:$0xf]
      %v179 = vld [vmem:[%s138 + $0x8] sm:$0xf]
      %v180 = vld [vmem:[%s138 + $0xc] sm:$0xf]
      %v181 = vld [vmem:[%s138 + $0x10] sm:$0xf]
      %v182 = vld [vmem:[%s138 + $0x14] sm:$0xf]
      %v183 = vld [vmem:[%s138 + $0x18] sm:$0xf]
      %v184 = vld [vmem:[%s138 + $0x1c] sm:$0xf]
      %v185 = vld [vmem:[%s138 + $0x20] sm:$0xf]
      %v186 = vld [vmem:[%s138 + $0x24] sm:$0xf]
      %v187 = vld [vmem:[%s138 + $0x28] sm:$0xf]
      %v188 = vld [vmem:[%s138 + $0x2c] sm:$0xf]
      %v189 = vld [vmem:[%s138 + $0x30] sm:$0xf]
      %v190 = vld [vmem:[%s138 + $0x34] sm:$0xf]
      %v191 = vld [vmem:[%s138 + $0x38] sm:$0xf]
      %v192 = vld [vmem:[%s138 + $0x3c] sm:$0xf]
      %v193 = vld [vmem:[%s138 + $0x40] sm:$0xf]
      %v194 = vld [vmem:[%s138 + $0x44] sm:$0xf]
      %v195 = vld [vmem:[%s138 + $0x48] sm:$0xf]
      %v196 = vld [vmem:[%s138 + $0x4c] sm:$0xf]
      %v197 = vld [vmem:[%s138 + $0x50] sm:$0xf]
      %v198 = vld [vmem:[%s138 + $0x54] sm:$0xf]
      %v199 = vld [vmem:[%s138 + $0x58] sm:$0xf]
      %v200 = vld [vmem:[%s138 + $0x5c] sm:$0xf]
      %v201 = vld [vmem:[%s138 + $0x60] sm:$0xf]
      %v202 = vld [vmem:[%s138 + $0x64] sm:$0xf]
      %v203 = vld [vmem:[%s138 + $0x68] sm:$0xf]
      %v204 = vld [vmem:[%s138 + $0x6c] sm:$0xf]
      %v205 = vld [vmem:[%s138 + $0x70] sm:$0xf]
      %v206 = vld [vmem:[%s138 + $0x74] sm:$0xf]
      %v207 = vld [vmem:[%s138 + $0x78] sm:$0xf]
      %v208 = vld [vmem:[%s138 + $0x7c] sm:$0xf]
      %v209 = vld [vmem:[#allocation2] sm:$0xff]
      %v210 = vld [vmem:[#allocation2 + $0x8] sm:$0xff]
      %v211 = vld [vmem:[#allocation2 + $0x10] sm:$0xff]
      %v212 = vld [vmem:[#allocation2 + $0x18] sm:$0xff]
      %v213 = vld [vmem:[#allocation2 + $0x20] sm:$0xff]
      %v214 = vld [vmem:[#allocation2 + $0x28] sm:$0xff]
      %v215 = vld [vmem:[#allocation2 + $0x30] sm:$0xff]
      %v216 = vld [vmem:[#allocation2 + $0x38] sm:$0xff]
      %v217 = vld [vmem:[#allocation2 + $0x40] sm:$0xff]
      %v218 = vld [vmem:[#allocation2 + $0x48] sm:$0xff]
      %v219 = vld [vmem:[#allocation2 + $0x50] sm:$0xff]
      %v220 = vld [vmem:[#allocation2 + $0x58] sm:$0xff]
      %v221 = vld [vmem:[#allocation2 + $0x60] sm:$0xff]
      %v222 = vld [vmem:[#allocation2 + $0x68] sm:$0xff]
      %v223 = vld [vmem:[#allocation2 + $0x70] sm:$0xff]
      %v224 = vld [vmem:[#allocation2 + $0x78] sm:$0xff]
      %v225 = vld [vmem:[#allocation2 + $0x80] sm:$0xff]
      %v226 = vld [vmem:[#allocation2 + $0x88] sm:$0xff]
      %v227 = vld [vmem:[#allocation2 + $0x90] sm:$0xff]
      %v228 = vld [vmem:[#allocation2 + $0x98] sm:$0xff]
      %v229 = vld [vmem:[#allocation2 + $0xa0] sm:$0xff]
      %v230 = vld [vmem:[#allocation2 + $0xa8] sm:$0xff]
      %v231 = vld [vmem:[#allocation2 + $0xb0] sm:$0xff]
      %v232 = vld [vmem:[#allocation2 + $0xb8] sm:$0xff]
      %v233 = vld [vmem:[#allocation2 + $0xc0] sm:$0xff]
      %v234 = vld [vmem:[#allocation2 + $0xc8] sm:$0xff]
      %v235 = vld [vmem:[#allocation2 + $0xd0] sm:$0xff]
      %v236 = vld [vmem:[#allocation2 + $0xd8] sm:$0xff]
      %v237 = vld [vmem:[#allocation2 + $0xe0] sm:$0xff]
      %v238 = vld [vmem:[#allocation2 + $0xe8] sm:$0xff]
      %v239 = vld [vmem:[#allocation2 + $0xf0] sm:$0xff]
      %v240 = vld [vmem:[#allocation2 + $0xf8] sm:$0xff]
      %v241 = vld [vmem:[%s1] sm:$0xf]
      %v242 = vld [vmem:[%s1 + $0x4] sm:$0xf]
      %v243 = vld [vmem:[%s1 + $0x8] sm:$0xf]
      %v244 = vld [vmem:[%s1 + $0xc] sm:$0xf]
      %v245 = vld [vmem:[%s1 + $0x10] sm:$0xf]
      %v246 = vld [vmem:[%s1 + $0x14] sm:$0xf]
      %v247 = vld [vmem:[%s1 + $0x18] sm:$0xf]
      %v248 = vld [vmem:[%s1 + $0x1c] sm:$0xf]
      %v249 = vld [vmem:[%s1 + $0x20] sm:$0xf]
      %v250 = vld [vmem:[%s1 + $0x24] sm:$0xf]
      %v251 = vld [vmem:[%s1 + $0x28] sm:$0xf]
      %v252 = vld [vmem:[%s1 + $0x2c] sm:$0xf]
      %v253 = vld [vmem:[%s1 + $0x30] sm:$0xf]
      %v254 = vld [vmem:[%s1 + $0x34] sm:$0xf]
      %v255 = vld [vmem:[%s1 + $0x38] sm:$0xf]
      %v256 = vld [vmem:[%s1 + $0x3c] sm:$0xf]
      %v289 = vunpack.c.l.b16 %v177
      %v290 = vunpack.c.l.b16 %v178
      %v291 = vunpack.c.l.b16 %v179
      %v292 = vunpack.c.l.b16 %v180
      %v293 = vunpack.c.l.b16 %v181
      %v294 = vunpack.c.l.b16 %v182
      %v295 = vunpack.c.l.b16 %v183
      %v296 = vunpack.c.l.b16 %v184
      %v297 = vunpack.c.l.b16 %v185
      %v298 = vunpack.c.l.b16 %v186
      %v299 = vunpack.c.l.b16 %v187
      %v300 = vunpack.c.l.b16 %v188
      %v301 = vunpack.c.l.b16 %v189
      %v302 = vunpack.c.l.b16 %v190
      %v303 = vunpack.c.l.b16 %v191
      %v304 = vunpack.c.l.b16 %v192
      %v305 = vunpack.c.l.b16 %v193
      %v306 = vunpack.c.l.b16 %v194
      %v307 = vunpack.c.l.b16 %v195
      %v308 = vunpack.c.l.b16 %v196
      %v309 = vunpack.c.l.b16 %v197
      %v310 = vunpack.c.l.b16 %v198
      %v311 = vunpack.c.l.b16 %v199
      %v312 = vunpack.c.l.b16 %v200
      %v313 = vunpack.c.l.b16 %v201
      %v314 = vunpack.c.l.b16 %v202
      %v315 = vunpack.c.l.b16 %v203
      %v316 = vunpack.c.l.b16 %v204
      %v317 = vunpack.c.l.b16 %v205
      %v318 = vunpack.c.l.b16 %v206
      %v319 = vunpack.c.l.b16 %v207
      %v320 = vunpack.c.l.b16 %v208
      %v321 = vpack.c.b16 %v290, %v289
      %v322 = vpack.c.b16 %v292, %v291
      %v323 = vpack.c.b16 %v294, %v293
      %v324 = vpack.c.b16 %v296, %v295
      %v325 = vpack.c.b16 %v298, %v297
      %v326 = vpack.c.b16 %v300, %v299
      %v327 = vpack.c.b16 %v302, %v301
      %v328 = vpack.c.b16 %v304, %v303
      %v329 = vpack.c.b16 %v306, %v305
      %v330 = vpack.c.b16 %v308, %v307
      %v331 = vpack.c.b16 %v310, %v309
      %v332 = vpack.c.b16 %v312, %v311
      %v333 = vpack.c.b16 %v314, %v313
      %v334 = vpack.c.b16 %v316, %v315
      %v335 = vpack.c.b16 %v318, %v317
      %v336 = vpack.c.b16 %v320, %v319
      %v369 = vunpack.c.l.b16 %v241
      %v370 = vunpack.c.l.b16 %v242
      %v371 = vunpack.c.l.b16 %v243
      %v372 = vunpack.c.l.b16 %v244
      %v373 = vunpack.c.l.b16 %v245
      %v374 = vunpack.c.l.b16 %v246
      %v375 = vunpack.c.l.b16 %v247
      %v376 = vunpack.c.l.b16 %v248
      %v377 = vunpack.c.l.b16 %v249
      %v378 = vunpack.c.l.b16 %v250
      %v379 = vunpack.c.l.b16 %v251
      %v380 = vunpack.c.l.b16 %v252
      %v381 = vunpack.c.l.b16 %v253
      %v382 = vunpack.c.l.b16 %v254
      %v383 = vunpack.c.l.b16 %v255
      %v384 = vunpack.c.l.b16 %v256
      %v385 = vpack.c.b16 %v370, %v369
      %v386 = vpack.c.b16 %v372, %v371
      %v387 = vpack.c.b16 %v374, %v373
      %v388 = vpack.c.b16 %v376, %v375
      %v389 = vpack.c.b16 %v378, %v377
      %v390 = vpack.c.b16 %v380, %v379
      %v391 = vpack.c.b16 %v382, %v381
      %v392 = vpack.c.b16 %v384, %v383
      %401 = vmatprep.subr.bf16.mxu0 0
      %402 = vmatpush1.bf16.msra.mxu0 %v392
      %403 = vmatprep.subr.bf16.mxu0 0
      %404 = vmatpush1.bf16.msra.mxu0 %v391
      %405 = vmatprep.subr.bf16.mxu0 0
      %406 = vmatpush1.bf16.msra.mxu0 %v390
      %407 = vmatprep.subr.bf16.mxu0 0
      %408 = vmatpush1.bf16.msra.mxu0 %v389
      %409 = vmatprep.subr.bf16.mxu0 0
      %410 = vmatpush1.bf16.msra.mxu0 %v388
      %411 = vmatprep.subr.bf16.mxu0 0
      %412 = vmatpush1.bf16.msra.mxu0 %v387
      %413 = vmatprep.subr.bf16.mxu0 0
      %414 = vmatpush1.bf16.msra.mxu0 %v386
      %415 = vmatprep.subr.bf16.mxu0 0
      %416 = vmatpush1.bf16.msra.mxu0 %v385
      %417 = vmatprep.subr.bf16.mxu0 0
      %418 = vmatpush2.bf16.msra.mxu0 0
      %419 = vmatprep.subr.bf16.mxu0 0
      %420 = vmatpush2.bf16.msra.mxu0 0
      %421 = vmatprep.subr.bf16.mxu0 0
      %422 = vmatpush2.bf16.msra.mxu0 0
      %423 = vmatprep.subr.bf16.mxu0 0
      %424 = vmatpush2.bf16.msra.mxu0 0
      %425 = vmatprep.subr.bf16.mxu0 0
      %426 = vmatpush2.bf16.msra.mxu0 0
      %427 = vmatprep.subr.bf16.mxu0 0
      %428 = vmatpush2.bf16.msra.mxu0 0
      %429 = vmatprep.subr.bf16.mxu0 0
      %430 = vmatpush2.bf16.msra.mxu0 0
      %431 = vmatprep.subr.bf16.mxu0 0
      %432 = vmatpush2.bf16.msra.mxu0 0
      %433 = vmatprep.mubr.bf16.mxu0 0
      %434 = vmatmul.mubr.bf16.gmra.mxu0 %v321
      %v435 = vpop.f32.mrf.mxu0
      %v436 = vadd.f32 0.0, %v435
      %v437 = vpop.f32.mrf.mxu0
      %v438 = vpop.f32.mrf.mxu0
      %v439 = vadd.f32 0.0, %v438
      %v440 = vpop.f32.mrf.mxu0
      %441 = vmatprep.mubr.bf16.mxu0 0
      %442 = vmatmul.mubr.bf16.gmra.mxu0 %v322
      %v443 = vpop.f32.mrf.mxu0
      %v444 = vadd.f32 0.0, %v443
      %v445 = vpop.f32.mrf.mxu0
      %v446 = vpop.f32.mrf.mxu0
      %v447 = vadd.f32 0.0, %v446
      %v448 = vpop.f32.mrf.mxu0
      %449 = vmatprep.mubr.bf16.mxu0 0
      %450 = vmatmul.mubr.bf16.gmra.mxu0 %v323
      %v451 = vpop.f32.mrf.mxu0
      %v452 = vadd.f32 0.0, %v451
      %v453 = vpop.f32.mrf.mxu0
      %v454 = vpop.f32.mrf.mxu0
      %v455 = vadd.f32 0.0, %v454
      %v456 = vpop.f32.mrf.mxu0
      %457 = vmatprep.mubr.bf16.mxu0 0
      %458 = vmatmul.mubr.bf16.gmra.mxu0 %v324
      %v459 = vpop.f32.mrf.mxu0
      %v460 = vadd.f32 0.0, %v459
      %v461 = vpop.f32.mrf.mxu0
      %v462 = vpop.f32.mrf.mxu0
      %v463 = vadd.f32 0.0, %v462
      %v464 = vpop.f32.mrf.mxu0
      %465 = vmatprep.mubr.bf16.mxu0 0
      %466 = vmatmul.mubr.bf16.gmra.mxu0 %v325
      %v467 = vpop.f32.mrf.mxu0
      %v468 = vadd.f32 0.0, %v467
      %v469 = vpop.f32.mrf.mxu0
      %v470 = vpop.f32.mrf.mxu0
      %v471 = vadd.f32 0.0, %v470
      %v472 = vpop.f32.mrf.mxu0
      %473 = vmatprep.mubr.bf16.mxu0 0
      %474 = vmatmul.mubr.bf16.gmra.mxu0 %v326
      %v475 = vpop.f32.mrf.mxu0
      %v476 = vadd.f32 0.0, %v475
      %v477 = vpop.f32.mrf.mxu0
      %v478 = vpop.f32.mrf.mxu0
      %v479 = vadd.f32 0.0, %v478
      %v480 = vpop.f32.mrf.mxu0
      %481 = vmatprep.mubr.bf16.mxu0 0
      %482 = vmatmul.mubr.bf16.gmra.mxu0 %v327
      %v483 = vpop.f32.mrf.mxu0
      %v484 = vadd.f32 0.0, %v483
      %v485 = vpop.f32.mrf.mxu0
      %v486 = vpop.f32.mrf.mxu0
      %v487 = vadd.f32 0.0, %v486
      %v488 = vpop.f32.mrf.mxu0
      %489 = vmatprep.mubr.bf16.mxu0 0
      %490 = vmatmul.mubr.bf16.gmra.mxu0 %v328
      %v491 = vpop.f32.mrf.mxu0
      %v492 = vadd.f32 0.0, %v491
      %v493 = vpop.f32.mrf.mxu0
      %v494 = vpop.f32.mrf.mxu0
      %v495 = vadd.f32 0.0, %v494
      %v496 = vpop.f32.mrf.mxu0
      %497 = vmatprep.mubr.bf16.mxu0 0
      %498 = vmatmul.mubr.bf16.gmra.mxu0 %v329
      %v499 = vpop.f32.mrf.mxu0
      %v500 = vadd.f32 0.0, %v499
      %v501 = vpop.f32.mrf.mxu0
      %v502 = vpop.f32.mrf.mxu0
      %v503 = vadd.f32 0.0, %v502
      %v504 = vpop.f32.mrf.mxu0
      %505 = vmatprep.mubr.bf16.mxu0 0
      %506 = vmatmul.mubr.bf16.gmra.mxu0 %v330
      %v507 = vpop.f32.mrf.mxu0
      %v508 = vadd.f32 0.0, %v507
      %v509 = vpop.f32.mrf.mxu0
      %v510 = vpop.f32.mrf.mxu0
      %v511 = vadd.f32 0.0, %v510
      %v512 = vpop.f32.mrf.mxu0
      %513 = vmatprep.mubr.bf16.mxu0 0
      %514 = vmatmul.mubr.bf16.gmra.mxu0 %v331
      %v515 = vpop.f32.mrf.mxu0
      %v516 = vadd.f32 0.0, %v515
      %v517 = vpop.f32.mrf.mxu0
      %v518 = vpop.f32.mrf.mxu0
      %v519 = vadd.f32 0.0, %v518
      %v520 = vpop.f32.mrf.mxu0
      %521 = vmatprep.mubr.bf16.mxu0 0
      %522 = vmatmul.mubr.bf16.gmra.mxu0 %v332
      %v523 = vpop.f32.mrf.mxu0
      %v524 = vadd.f32 0.0, %v523
      %v525 = vpop.f32.mrf.mxu0
      %v526 = vpop.f32.mrf.mxu0
      %v527 = vadd.f32 0.0, %v526
      %v528 = vpop.f32.mrf.mxu0
      %529 = vmatprep.mubr.bf16.mxu0 0
      %530 = vmatmul.mubr.bf16.gmra.mxu0 %v333
      %v531 = vpop.f32.mrf.mxu0
      %v532 = vadd.f32 0.0, %v531
      %v533 = vpop.f32.mrf.mxu0
      %v534 = vpop.f32.mrf.mxu0
      %v535 = vadd.f32 0.0, %v534
      %v536 = vpop.f32.mrf.mxu0
      %537 = vmatprep.mubr.bf16.mxu0 0
      %538 = vmatmul.mubr.bf16.gmra.mxu0 %v334
      %v539 = vpop.f32.mrf.mxu0
      %v540 = vadd.f32 0.0, %v539
      %v541 = vpop.f32.mrf.mxu0
      %v542 = vpop.f32.mrf.mxu0
      %v543 = vadd.f32 0.0, %v542
      %v544 = vpop.f32.mrf.mxu0
      %545 = vmatprep.mubr.bf16.mxu0 0
      %546 = vmatmul.mubr.bf16.gmra.mxu0 %v335
      %v547 = vpop.f32.mrf.mxu0
      %v548 = vadd.f32 0.0, %v547
      %v549 = vpop.f32.mrf.mxu0
      %v550 = vpop.f32.mrf.mxu0
      %v551 = vadd.f32 0.0, %v550
      %v552 = vpop.f32.mrf.mxu0
      %553 = vmatprep.mubr.bf16.mxu0 0
      %554 = vmatmul.mubr.bf16.gmra.mxu0 %v336
      %v555 = vpop.f32.mrf.mxu0
      %v556 = vadd.f32 0.0, %v555
      %v557 = vpop.f32.mrf.mxu0
      %v558 = vpop.f32.mrf.mxu0
      %v559 = vadd.f32 0.0, %v558
      %v560 = vpop.f32.mrf.mxu0
      %561 = vdwg.mxu0
      %v562 = vadd.f32 %v209, %v436
      %v563 = vadd.f32 %v210, %v439
      %v564 = vadd.f32 %v211, %v444
      %v565 = vadd.f32 %v212, %v447
      %v566 = vadd.f32 %v213, %v452
      %v567 = vadd.f32 %v214, %v455
      %v568 = vadd.f32 %v215, %v460
      %v569 = vadd.f32 %v216, %v463
      %v570 = vadd.f32 %v217, %v468
      %v571 = vadd.f32 %v218, %v471
      %v572 = vadd.f32 %v219, %v476
      %v573 = vadd.f32 %v220, %v479
      %v574 = vadd.f32 %v221, %v484
      %v575 = vadd.f32 %v222, %v487
      %v576 = vadd.f32 %v223, %v492
      %v577 = vadd.f32 %v224, %v495
      %v578 = vadd.f32 %v225, %v500
      %v579 = vadd.f32 %v226, %v503
      %v580 = vadd.f32 %v227, %v508
      %v581 = vadd.f32 %v228, %v511
      %v582 = vadd.f32 %v229, %v516
      %v583 = vadd.f32 %v230, %v519
      %v584 = vadd.f32 %v231, %v524
      %v585 = vadd.f32 %v232, %v527
      %v586 = vadd.f32 %v233, %v532
      %v587 = vadd.f32 %v234, %v535
      %v588 = vadd.f32 %v235, %v540
      %v589 = vadd.f32 %v236, %v543
      %v590 = vadd.f32 %v237, %v548
      %v591 = vadd.f32 %v238, %v551
      %v592 = vadd.f32 %v239, %v556
      %v593 = vadd.f32 %v240, %v559
      %594 = vst [vmem:[#allocation2] sm:$0xff] %v562
      %595 = vst [vmem:[#allocation2 + $0x8] sm:$0xff] %v563
      %596 = vst [vmem:[#allocation2 + $0x10] sm:$0xff] %v564
      %597 = vst [vmem:[#allocation2 + $0x18] sm:$0xff] %v565
      %598 = vst [vmem:[#allocation2 + $0x20] sm:$0xff] %v566
      %599 = vst [vmem:[#allocation2 + $0x28] sm:$0xff] %v567
      %600 = vst [vmem:[#allocation2 + $0x30] sm:$0xff] %v568
      %601 = vst [vmem:[#allocation2 + $0x38] sm:$0xff] %v569
      %602 = vst [vmem:[#allocation2 + $0x40] sm:$0xff] %v570
      %603 = vst [vmem:[#allocation2 + $0x48] sm:$0xff] %v571
      %604 = vst [vmem:[#allocation2 + $0x50] sm:$0xff] %v572
      %605 = vst [vmem:[#allocation2 + $0x58] sm:$0xff] %v573
      %606 = vst [vmem:[#allocation2 + $0x60] sm:$0xff] %v574
      %607 = vst [vmem:[#allocation2 + $0x68] sm:$0xff] %v575
      %608 = vst [vmem:[#allocation2 + $0x70] sm:$0xff] %v576
      %609 = vst [vmem:[#allocation2 + $0x78] sm:$0xff] %v577
      %610 = vst [vmem:[#allocation2 + $0x80] sm:$0xff] %v578
      %611 = vst [vmem:[#allocation2 + $0x88] sm:$0xff] %v579
      %612 = vst [vmem:[#allocation2 + $0x90] sm:$0xff] %v580
      %613 = vst [vmem:[#allocation2 + $0x98] sm:$0xff] %v581
      %614 = vst [vmem:[#allocation2 + $0xa0] sm:$0xff] %v582
      %615 = vst [vmem:[#allocation2 + $0xa8] sm:$0xff] %v583
      %616 = vst [vmem:[#allocation2 + $0xb0] sm:$0xff] %v584
      %617 = vst [vmem:[#allocation2 + $0xb8] sm:$0xff] %v585
      %618 = vst [vmem:[#allocation2 + $0xc0] sm:$0xff] %v586
      %619 = vst [vmem:[#allocation2 + $0xc8] sm:$0xff] %v587
      %620 = vst [vmem:[#allocation2 + $0xd0] sm:$0xff] %v588
      %621 = vst [vmem:[#allocation2 + $0xd8] sm:$0xff] %v589
      %622 = vst [vmem:[#allocation2 + $0xe0] sm:$0xff] %v590
      %623 = vst [vmem:[#allocation2 + $0xe8] sm:$0xff] %v591
      %624 = vst [vmem:[#allocation2 + $0xf0] sm:$0xff] %v592
      %625 = vst [vmem:[#allocation2 + $0xf8] sm:$0xff] %v593
      %s626 = scalar_lea.vmem %s138, 136
      %v627 = vld [vmem:[%s626] sm:$0xf]
      %v628 = vld [vmem:[%s626 + $0x4] sm:$0xf]
      %v629 = vld [vmem:[%s626 + $0x8] sm:$0xf]
      %v630 = vld [vmem:[%s626 + $0xc] sm:$0xf]
      %v631 = vld [vmem:[%s626 + $0x10] sm:$0xf]
      %v632 = vld [vmem:[%s626 + $0x14] sm:$0xf]
      %v633 = vld [vmem:[%s626 + $0x18] sm:$0xf]
      %v634 = vld [vmem:[%s626 + $0x1c] sm:$0xf]
      %v635 = vld [vmem:[%s626 + $0x20] sm:$0xf]
      %v636 = vld [vmem:[%s626 + $0x24] sm:$0xf]
      %v637 = vld [vmem:[%s626 + $0x28] sm:$0xf]
      %v638 = vld [vmem:[%s626 + $0x2c] sm:$0xf]
      %v639 = vld [vmem:[%s626 + $0x30] sm:$0xf]
      %v640 = vld [vmem:[%s626 + $0x34] sm:$0xf]
      %v641 = vld [vmem:[%s626 + $0x38] sm:$0xf]
      %v642 = vld [vmem:[%s626 + $0x3c] sm:$0xf]
      %v643 = vld [vmem:[%s626 + $0x40] sm:$0xf]
      %v644 = vld [vmem:[%s626 + $0x44] sm:$0xf]
      %v645 = vld [vmem:[%s626 + $0x48] sm:$0xf]
      %v646 = vld [vmem:[%s626 + $0x4c] sm:$0xf]
      %v647 = vld [vmem:[%s626 + $0x50] sm:$0xf]
      %v648 = vld [vmem:[%s626 + $0x54] sm:$0xf]
      %v649 = vld [vmem:[%s626 + $0x58] sm:$0xf]
      %v650 = vld [vmem:[%s626 + $0x5c] sm:$0xf]
      %v651 = vld [vmem:[%s626 + $0x60] sm:$0xf]
      %v652 = vld [vmem:[%s626 + $0x64] sm:$0xf]
      %v653 = vld [vmem:[%s626 + $0x68] sm:$0xf]
      %v654 = vld [vmem:[%s626 + $0x6c] sm:$0xf]
      %v655 = vld [vmem:[%s626 + $0x70] sm:$0xf]
      %v656 = vld [vmem:[%s626 + $0x74] sm:$0xf]
      %v657 = vld [vmem:[%s626 + $0x78] sm:$0xf]
      %v658 = vld [vmem:[%s626 + $0x7c] sm:$0xf]
      %v659 = vld [vmem:[#allocation2] sm:$0xff]
      %v660 = vld [vmem:[#allocation2 + $0x8] sm:$0xff]
      %v661 = vld [vmem:[#allocation2 + $0x10] sm:$0xff]
      %v662 = vld [vmem:[#allocation2 + $0x18] sm:$0xff]
      %v663 = vld [vmem:[#allocation2 + $0x20] sm:$0xff]
      %v664 = vld [vmem:[#allocation2 + $0x28] sm:$0xff]
      %v665 = vld [vmem:[#allocation2 + $0x30] sm:$0xff]
      %v666 = vld [vmem:[#allocation2 + $0x38] sm:$0xff]
      %v667 = vld [vmem:[#allocation2 + $0x40] sm:$0xff]
      %v668 = vld [vmem:[#allocation2 + $0x48] sm:$0xff]
      %v669 = vld [vmem:[#allocation2 + $0x50] sm:$0xff]
      %v670 = vld [vmem:[#allocation2 + $0x58] sm:$0xff]
      %v671 = vld [vmem:[#allocation2 + $0x60] sm:$0xff]
      %v672 = vld [vmem:[#allocation2 + $0x68] sm:$0xff]
      %v673 = vld [vmem:[#allocation2 + $0x70] sm:$0xff]
      %v674 = vld [vmem:[#allocation2 + $0x78] sm:$0xff]
      %v675 = vld [vmem:[#allocation2 + $0x80] sm:$0xff]
      %v676 = vld [vmem:[#allocation2 + $0x88] sm:$0xff]
      %v677 = vld [vmem:[#allocation2 + $0x90] sm:$0xff]
      %v678 = vld [vmem:[#allocation2 + $0x98] sm:$0xff]
      %v679 = vld [vmem:[#allocation2 + $0xa0] sm:$0xff]
      %v680 = vld [vmem:[#allocation2 + $0xa8] sm:$0xff]
      %v681 = vld [vmem:[#allocation2 + $0xb0] sm:$0xff]
      %v682 = vld [vmem:[#allocation2 + $0xb8] sm:$0xff]
      %v683 = vld [vmem:[#allocation2 + $0xc0] sm:$0xff]
      %v684 = vld [vmem:[#allocation2 + $0xc8] sm:$0xff]
      %v685 = vld [vmem:[#allocation2 + $0xd0] sm:$0xff]
      %v686 = vld [vmem:[#allocation2 + $0xd8] sm:$0xff]
      %v687 = vld [vmem:[#allocation2 + $0xe0] sm:$0xff]
      %v688 = vld [vmem:[#allocation2 + $0xe8] sm:$0xff]
      %v689 = vld [vmem:[#allocation2 + $0xf0] sm:$0xff]
      %v690 = vld [vmem:[#allocation2 + $0xf8] sm:$0xff]
      %s691 = scalar_lea.vmem %s1, 64
      %v692 = vld [vmem:[%s691] sm:$0xf]
      %v693 = vld [vmem:[%s691 + $0x4] sm:$0xf]
      %v694 = vld [vmem:[%s691 + $0x8] sm:$0xf]
      %v695 = vld [vmem:[%s691 + $0xc] sm:$0xf]
      %v696 = vld [vmem:[%s691 + $0x10] sm:$0xf]
      %v697 = vld [vmem:[%s691 + $0x14] sm:$0xf]
      %v698 = vld [vmem:[%s691 + $0x18] sm:$0xf]
      %v699 = vld [vmem:[%s691 + $0x1c] sm:$0xf]
      %v700 = vld [vmem:[%s691 + $0x20] sm:$0xf]
      %v701 = vld [vmem:[%s691 + $0x24] sm:$0xf]
      %v702 = vld [vmem:[%s691 + $0x28] sm:$0xf]
      %v703 = vld [vmem:[%s691 + $0x2c] sm:$0xf]
      %v704 = vld [vmem:[%s691 + $0x30] sm:$0xf]
      %v705 = vld [vmem:[%s691 + $0x34] sm:$0xf]
      %v706 = vld [vmem:[%s691 + $0x38] sm:$0xf]
      %v707 = vld [vmem:[%s691 + $0x3c] sm:$0xf]
      %v740 = vunpack.c.l.b16 %v627
      %v741 = vunpack.c.l.b16 %v628
      %v742 = vunpack.c.l.b16 %v629
      %v743 = vunpack.c.l.b16 %v630
      %v744 = vunpack.c.l.b16 %v631
      %v745 = vunpack.c.l.b16 %v632
      %v746 = vunpack.c.l.b16 %v633
      %v747 = vunpack.c.l.b16 %v634
      %v748 = vunpack.c.l.b16 %v635
      %v749 = vunpack.c.l.b16 %v636
      %v750 = vunpack.c.l.b16 %v637
      %v751 = vunpack.c.l.b16 %v638
      %v752 = vunpack.c.l.b16 %v639
      %v753 = vunpack.c.l.b16 %v640
      %v754 = vunpack.c.l.b16 %v641
      %v755 = vunpack.c.l.b16 %v642
      %v756 = vunpack.c.l.b16 %v643
      %v757 = vunpack.c.l.b16 %v644
      %v758 = vunpack.c.l.b16 %v645
      %v759 = vunpack.c.l.b16 %v646
      %v760 = vunpack.c.l.b16 %v647
      %v761 = vunpack.c.l.b16 %v648
      %v762 = vunpack.c.l.b16 %v649
      %v763 = vunpack.c.l.b16 %v650
      %v764 = vunpack.c.l.b16 %v651
      %v765 = vunpack.c.l.b16 %v652
      %v766 = vunpack.c.l.b16 %v653
      %v767 = vunpack.c.l.b16 %v654
      %v768 = vunpack.c.l.b16 %v655
      %v769 = vunpack.c.l.b16 %v656
      %v770 = vunpack.c.l.b16 %v657
      %v771 = vunpack.c.l.b16 %v658
      %v772 = vpack.c.b16 %v741, %v740
      %v773 = vpack.c.b16 %v743, %v742
      %v774 = vpack.c.b16 %v745, %v744
      %v775 = vpack.c.b16 %v747, %v746
      %v776 = vpack.c.b16 %v749, %v748
      %v777 = vpack.c.b16 %v751, %v750
      %v778 = vpack.c.b16 %v753, %v752
      %v779 = vpack.c.b16 %v755, %v754
      %v780 = vpack.c.b16 %v757, %v756
      %v781 = vpack.c.b16 %v759, %v758
      %v782 = vpack.c.b16 %v761, %v760
      %v783 = vpack.c.b16 %v763, %v762
      %v784 = vpack.c.b16 %v765, %v764
      %v785 = vpack.c.b16 %v767, %v766
      %v786 = vpack.c.b16 %v769, %v768
      %v787 = vpack.c.b16 %v771, %v770
      %v820 = vunpack.c.l.b16 %v692
      %v821 = vunpack.c.l.b16 %v693
      %v822 = vunpack.c.l.b16 %v694
      %v823 = vunpack.c.l.b16 %v695
      %v824 = vunpack.c.l.b16 %v696
      %v825 = vunpack.c.l.b16 %v697
      %v826 = vunpack.c.l.b16 %v698
      %v827 = vunpack.c.l.b16 %v699
      %v828 = vunpack.c.l.b16 %v700
      %v829 = vunpack.c.l.b16 %v701
      %v830 = vunpack.c.l.b16 %v702
      %v831 = vunpack.c.l.b16 %v703
      %v832 = vunpack.c.l.b16 %v704
      %v833 = vunpack.c.l.b16 %v705
      %v834 = vunpack.c.l.b16 %v706
      %v835 = vunpack.c.l.b16 %v707
      %v836 = vpack.c.b16 %v821, %v820
      %v837 = vpack.c.b16 %v823, %v822
      %v838 = vpack.c.b16 %v825, %v824
      %v839 = vpack.c.b16 %v827, %v826
      %v840 = vpack.c.b16 %v829, %v828
      %v841 = vpack.c.b16 %v831, %v830
      %v842 = vpack.c.b16 %v833, %v832
      %v843 = vpack.c.b16 %v835, %v834
      %852 = vmatprep.subr.bf16.mxu0 0
      %853 = vmatpush1.bf16.msra.mxu0 %v843
      %854 = vmatprep.subr.bf16.mxu0 0
      %855 = vmatpush1.bf16.msra.mxu0 %v842
      %856 = vmatprep.subr.bf16.mxu0 0
      %857 = vmatpush1.bf16.msra.mxu0 %v841
      %858 = vmatprep.subr.bf16.mxu0 0
      %859 = vmatpush1.bf16.msra.mxu0 %v840
      %860 = vmatprep.subr.bf16.mxu0 0
      %861 = vmatpush1.bf16.msra.mxu0 %v839
      %862 = vmatprep.subr.bf16.mxu0 0
      %863 = vmatpush1.bf16.msra.mxu0 %v838
      %864 = vmatprep.subr.bf16.mxu0 0
      %865 = vmatpush1.bf16.msra.mxu0 %v837
      %866 = vmatprep.subr.bf16.mxu0 0
      %867 = vmatpush1.bf16.msra.mxu0 %v836
      %868 = vmatprep.subr.bf16.mxu0 0
      %869 = vmatpush2.bf16.msra.mxu0 0
      %870 = vmatprep.subr.bf16.mxu0 0
      %871 = vmatpush2.bf16.msra.mxu0 0
      %872 = vmatprep.subr.bf16.mxu0 0
      %873 = vmatpush2.bf16.msra.mxu0 0
      %874 = vmatprep.subr.bf16.mxu0 0
      %875 = vmatpush2.bf16.msra.mxu0 0
      %876 = vmatprep.subr.bf16.mxu0 0
      %877 = vmatpush2.bf16.msra.mxu0 0
      %878 = vmatprep.subr.bf16.mxu0 0
      %879 = vmatpush2.bf16.msra.mxu0 0
      %880 = vmatprep.subr.bf16.mxu0 0
      %881 = vmatpush2.bf16.msra.mxu0 0
      %882 = vmatprep.subr.bf16.mxu0 0
      %883 = vmatpush2.bf16.msra.mxu0 0
      %884 = vmatprep.mubr.bf16.mxu0 0
      %885 = vmatmul.mubr.bf16.gmra.mxu0 %v772
      %v886 = vpop.f32.mrf.mxu0
      %v887 = vadd.f32 0.0, %v886
      %v888 = vpop.f32.mrf.mxu0
      %v889 = vpop.f32.mrf.mxu0
      %v890 = vadd.f32 0.0, %v889
      %v891 = vpop.f32.mrf.mxu0
      %892 = vmatprep.mubr.bf16.mxu0 0
      %893 = vmatmul.mubr.bf16.gmra.mxu0 %v773
      %v894 = vpop.f32.mrf.mxu0
      %v895 = vadd.f32 0.0, %v894
      %v896 = vpop.f32.mrf.mxu0
      %v897 = vpop.f32.mrf.mxu0
      %v898 = vadd.f32 0.0, %v897
      %v899 = vpop.f32.mrf.mxu0
      %900 = vmatprep.mubr.bf16.mxu0 0
      %901 = vmatmul.mubr.bf16.gmra.mxu0 %v774
      %v902 = vpop.f32.mrf.mxu0
      %v903 = vadd.f32 0.0, %v902
      %v904 = vpop.f32.mrf.mxu0
      %v905 = vpop.f32.mrf.mxu0
      %v906 = vadd.f32 0.0, %v905
      %v907 = vpop.f32.mrf.mxu0
      %908 = vmatprep.mubr.bf16.mxu0 0
      %909 = vmatmul.mubr.bf16.gmra.mxu0 %v775
      %v910 = vpop.f32.mrf.mxu0
      %v911 = vadd.f32 0.0, %v910
      %v912 = vpop.f32.mrf.mxu0
      %v913 = vpop.f32.mrf.mxu0
      %v914 = vadd.f32 0.0, %v913
      %v915 = vpop.f32.mrf.mxu0
      %916 = vmatprep.mubr.bf16.mxu0 0
      %917 = vmatmul.mubr.bf16.gmra.mxu0 %v776
      %v918 = vpop.f32.mrf.mxu0
      %v919 = vadd.f32 0.0, %v918
      %v920 = vpop.f32.mrf.mxu0
      %v921 = vpop.f32.mrf.mxu0
      %v922 = vadd.f32 0.0, %v921
      %v923 = vpop.f32.mrf.mxu0
      %924 = vmatprep.mubr.bf16.mxu0 0
      %925 = vmatmul.mubr.bf16.gmra.mxu0 %v777
      %v926 = vpop.f32.mrf.mxu0
      %v927 = vadd.f32 0.0, %v926
      %v928 = vpop.f32.mrf.mxu0
      %v929 = vpop.f32.mrf.mxu0
      %v930 = vadd.f32 0.0, %v929
      %v931 = vpop.f32.mrf.mxu0
      %932 = vmatprep.mubr.bf16.mxu0 0
      %933 = vmatmul.mubr.bf16.gmra.mxu0 %v778
      %v934 = vpop.f32.mrf.mxu0
      %v935 = vadd.f32 0.0, %v934
      %v936 = vpop.f32.mrf.mxu0
      %v937 = vpop.f32.mrf.mxu0
      %v938 = vadd.f32 0.0, %v937
      %v939 = vpop.f32.mrf.mxu0
      %940 = vmatprep.mubr.bf16.mxu0 0
      %941 = vmatmul.mubr.bf16.gmra.mxu0 %v779
      %v942 = vpop.f32.mrf.mxu0
      %v943 = vadd.f32 0.0, %v942
      %v944 = vpop.f32.mrf.mxu0
      %v945 = vpop.f32.mrf.mxu0
      %v946 = vadd.f32 0.0, %v945
      %v947 = vpop.f32.mrf.mxu0
      %948 = vmatprep.mubr.bf16.mxu0 0
      %949 = vmatmul.mubr.bf16.gmra.mxu0 %v780
      %v950 = vpop.f32.mrf.mxu0
      %v951 = vadd.f32 0.0, %v950
      %v952 = vpop.f32.mrf.mxu0
      %v953 = vpop.f32.mrf.mxu0
      %v954 = vadd.f32 0.0, %v953
      %v955 = vpop.f32.mrf.mxu0
      %956 = vmatprep.mubr.bf16.mxu0 0
      %957 = vmatmul.mubr.bf16.gmra.mxu0 %v781
      %v958 = vpop.f32.mrf.mxu0
      %v959 = vadd.f32 0.0, %v958
      %v960 = vpop.f32.mrf.mxu0
      %v961 = vpop.f32.mrf.mxu0
      %v962 = vadd.f32 0.0, %v961
      %v963 = vpop.f32.mrf.mxu0
      %964 = vmatprep.mubr.bf16.mxu0 0
      %965 = vmatmul.mubr.bf16.gmra.mxu0 %v782
      %v966 = vpop.f32.mrf.mxu0
      %v967 = vadd.f32 0.0, %v966
      %v968 = vpop.f32.mrf.mxu0
      %v969 = vpop.f32.mrf.mxu0
      %v970 = vadd.f32 0.0, %v969
      %v971 = vpop.f32.mrf.mxu0
      %972 = vmatprep.mubr.bf16.mxu0 0
      %973 = vmatmul.mubr.bf16.gmra.mxu0 %v783
      %v974 = vpop.f32.mrf.mxu0
      %v975 = vadd.f32 0.0, %v974
      %v976 = vpop.f32.mrf.mxu0
      %v977 = vpop.f32.mrf.mxu0
      %v978 = vadd.f32 0.0, %v977
      %v979 = vpop.f32.mrf.mxu0
      %980 = vmatprep.mubr.bf16.mxu0 0
      %981 = vmatmul.mubr.bf16.gmra.mxu0 %v784
      %v982 = vpop.f32.mrf.mxu0
      %v983 = vadd.f32 0.0, %v982
      %v984 = vpop.f32.mrf.mxu0
      %v985 = vpop.f32.mrf.mxu0
      %v986 = vadd.f32 0.0, %v985
      %v987 = vpop.f32.mrf.mxu0
      %988 = vmatprep.mubr.bf16.mxu0 0
      %989 = vmatmul.mubr.bf16.gmra.mxu0 %v785
      %v990 = vpop.f32.mrf.mxu0
      %v991 = vadd.f32 0.0, %v990
      %v992 = vpop.f32.mrf.mxu0
      %v993 = vpop.f32.mrf.mxu0
      %v994 = vadd.f32 0.0, %v993
      %v995 = vpop.f32.mrf.mxu0
      %996 = vmatprep.mubr.bf16.mxu0 0
      %997 = vmatmul.mubr.bf16.gmra.mxu0 %v786
      %v998 = vpop.f32.mrf.mxu0
      %v999 = vadd.f32 0.0, %v998
      %v1000 = vpop.f32.mrf.mxu0
      %v1001 = vpop.f32.mrf.mxu0
      %v1002 = vadd.f32 0.0, %v1001
      %v1003 = vpop.f32.mrf.mxu0
      %1004 = vmatprep.mubr.bf16.mxu0 0
      %1005 = vmatmul.mubr.bf16.gmra.mxu0 %v787
      %v1006 = vpop.f32.mrf.mxu0
      %v1007 = vadd.f32 0.0, %v1006
      %v1008 = vpop.f32.mrf.mxu0
      %v1009 = vpop.f32.mrf.mxu0
      %v1010 = vadd.f32 0.0, %v1009
      %v1011 = vpop.f32.mrf.mxu0
      %1012 = vdwg.mxu0
      %v1013 = vadd.f32 %v659, %v887
      %v1014 = vadd.f32 %v660, %v890
      %v1015 = vadd.f32 %v661, %v895
      %v1016 = vadd.f32 %v662, %v898
      %v1017 = vadd.f32 %v663, %v903
      %v1018 = vadd.f32 %v664, %v906
      %v1019 = vadd.f32 %v665, %v911
      %v1020 = vadd.f32 %v666, %v914
      %v1021 = vadd.f32 %v667, %v919
      %v1022 = vadd.f32 %v668, %v922
      %v1023 = vadd.f32 %v669, %v927
      %v1024 = vadd.f32 %v670, %v930
      %v1025 = vadd.f32 %v671, %v935
      %v1026 = vadd.f32 %v672, %v938
      %v1027 = vadd.f32 %v673, %v943
      %v1028 = vadd.f32 %v674, %v946
      %v1029 = vadd.f32 %v675, %v951
      %v1030 = vadd.f32 %v676, %v954
      %v1031 = vadd.f32 %v677, %v959
      %v1032 = vadd.f32 %v678, %v962
      %v1033 = vadd.f32 %v679, %v967
      %v1034 = vadd.f32 %v680, %v970
      %v1035 = vadd.f32 %v681, %v975
      %v1036 = vadd.f32 %v682, %v978
      %v1037 = vadd.f32 %v683, %v983
      %v1038 = vadd.f32 %v684, %v986
      %v1039 = vadd.f32 %v685, %v991
      %v1040 = vadd.f32 %v686, %v994
      %v1041 = vadd.f32 %v687, %v999
      %v1042 = vadd.f32 %v688, %v1002
      %v1043 = vadd.f32 %v689, %v1007
      %v1044 = vadd.f32 %v690, %v1010
      %1045 = vst [vmem:[#allocation2] sm:$0xff] %v1013
      %1046 = vst [vmem:[#allocation2 + $0x8] sm:$0xff] %v1014
      %1047 = vst [vmem:[#allocation2 + $0x10] sm:$0xff] %v1015
      %1048 = vst [vmem:[#allocation2 + $0x18] sm:$0xff] %v1016
      %1049 = vst [vmem:[#allocation2 + $0x20] sm:$0xff] %v1017
      %1050 = vst [vmem:[#allocation2 + $0x28] sm:$0xff] %v1018
      %1051 = vst [vmem:[#allocation2 + $0x30] sm:$0xff] %v1019
      %1052 = vst [vmem:[#allocation2 + $0x38] sm:$0xff] %v1020
      %1053 = vst [vmem:[#allocation2 + $0x40] sm:$0xff] %v1021
      %1054 = vst [vmem:[#allocation2 + $0x48] sm:$0xff] %v1022
      %1055 = vst [vmem:[#allocation2 + $0x50] sm:$0xff] %v1023
      %1056 = vst [vmem:[#allocation2 + $0x58] sm:$0xff] %v1024
      %1057 = vst [vmem:[#allocation2 + $0x60] sm:$0xff] %v1025
      %1058 = vst [vmem:[#allocation2 + $0x68] sm:$0xff] %v1026
      %1059 = vst [vmem:[#allocation2 + $0x70] sm:$0xff] %v1027
      %1060 = vst [vmem:[#allocation2 + $0x78] sm:$0xff] %v1028
      %1061 = vst [vmem:[#allocation2 + $0x80] sm:$0xff] %v1029
      %1062 = vst [vmem:[#allocation2 + $0x88] sm:$0xff] %v1030
      %1063 = vst [vmem:[#allocation2 + $0x90] sm:$0xff] %v1031
      %1064 = vst [vmem:[#allocation2 + $0x98] sm:$0xff] %v1032
      %1065 = vst [vmem:[#allocation2 + $0xa0] sm:$0xff] %v1033
      %1066 = vst [vmem:[#allocation2 + $0xa8] sm:$0xff] %v1034
      %1067 = vst [vmem:[#allocation2 + $0xb0] sm:$0xff] %v1035
      %1068 = vst [vmem:[#allocation2 + $0xb8] sm:$0xff] %v1036
      %1069 = vst [vmem:[#allocation2 + $0xc0] sm:$0xff] %v1037
      %1070 = vst [vmem:[#allocation2 + $0xc8] sm:$0xff] %v1038
      %1071 = vst [vmem:[#allocation2 + $0xd0] sm:$0xff] %v1039
      %1072 = vst [vmem:[#allocation2 + $0xd8] sm:$0xff] %v1040
      %1073 = vst [vmem:[#allocation2 + $0xe0] sm:$0xff] %v1041
      %1074 = vst [vmem:[#allocation2 + $0xe8] sm:$0xff] %v1042
      %1075 = vst [vmem:[#allocation2 + $0xf0] sm:$0xff] %v1043
      %1076 = vst [vmem:[#allocation2 + $0xf8] sm:$0xff] %v1044
      %v1077 = vld [vmem:[%s138 + $0x8] sm:$0xf]
      %v1078 = vld [vmem:[%s138 + $0xc] sm:$0xf]
      %v1079 = vld [vmem:[%s138 + $0x10] sm:$0xf]
      %v1080 = vld [vmem:[%s138 + $0x14] sm:$0xf]
      %v1081 = vld [vmem:[%s138 + $0x18] sm:$0xf]
      %v1082 = vld [vmem:[%s138 + $0x1c] sm:$0xf]
      %v1083 = vld [vmem:[%s138 + $0x20] sm:$0xf]
      %v1084 = vld [vmem:[%s138 + $0x24] sm:$0xf]
      %v1085 = vld [vmem:[%s138 + $0x28] sm:$0xf]
      %v1086 = vld [vmem:[%s138 + $0x2c] sm:$0xf]
      %v1087 = vld [vmem:[%s138 + $0x30] sm:$0xf]
      %v1088 = vld [vmem:[%s138 + $0x34] sm:$0xf]
      %v1089 = vld [vmem:[%s138 + $0x38] sm:$0xf]
      %v1090 = vld [vmem:[%s138 + $0x3c] sm:$0xf]
      %v1091 = vld [vmem:[%s138 + $0x40] sm:$0xf]
      %v1092 = vld [vmem:[%s138 + $0x44] sm:$0xf]
      %v1093 = vld [vmem:[%s138 + $0x48] sm:$0xf]
      %v1094 = vld [vmem:[%s138 + $0x4c] sm:$0xf]
      %v1095 = vld [vmem:[%s138 + $0x50] sm:$0xf]
      %v1096 = vld [vmem:[%s138 + $0x54] sm:$0xf]
      %v1097 = vld [vmem:[%s138 + $0x58] sm:$0xf]
      %v1098 = vld [vmem:[%s138 + $0x5c] sm:$0xf]
      %v1099 = vld [vmem:[%s138 + $0x60] sm:$0xf]
      %v1100 = vld [vmem:[%s138 + $0x64] sm:$0xf]
      %v1101 = vld [vmem:[%s138 + $0x68] sm:$0xf]
      %v1102 = vld [vmem:[%s138 + $0x6c] sm:$0xf]
      %v1103 = vld [vmem:[%s138 + $0x70] sm:$0xf]
      %v1104 = vld [vmem:[%s138 + $0x74] sm:$0xf]
      %v1105 = vld [vmem:[%s138 + $0x78] sm:$0xf]
      %v1106 = vld [vmem:[%s138 + $0x7c] sm:$0xf]
      %v1107 = vld [vmem:[%s138 + $0x80] sm:$0xf]
      %v1108 = vld [vmem:[%s138 + $0x84] sm:$0xf]
      %v1109 = vld [vmem:[#allocation2] sm:$0xff]
      %v1110 = vld [vmem:[#allocation2 + $0x8] sm:$0xff]
      %v1111 = vld [vmem:[#allocation2 + $0x10] sm:$0xff]
      %v1112 = vld [vmem:[#allocation2 + $0x18] sm:$0xff]
      %v1113 = vld [vmem:[#allocation2 + $0x20] sm:$0xff]
      %v1114 = vld [vmem:[#allocation2 + $0x28] sm:$0xff]
      %v1115 = vld [vmem:[#allocation2 + $0x30] sm:$0xff]
      %v1116 = vld [vmem:[#allocation2 + $0x38] sm:$0xff]
      %v1117 = vld [vmem:[#allocation2 + $0x40] sm:$0xff]
      %v1118 = vld [vmem:[#allocation2 + $0x48] sm:$0xff]
      %v1119 = vld [vmem:[#allocation2 + $0x50] sm:$0xff]
      %v1120 = vld [vmem:[#allocation2 + $0x58] sm:$0xff]
      %v1121 = vld [vmem:[#allocation2 + $0x60] sm:$0xff]
      %v1122 = vld [vmem:[#allocation2 + $0x68] sm:$0xff]
      %v1123 = vld [vmem:[#allocation2 + $0x70] sm:$0xff]
      %v1124 = vld [vmem:[#allocation2 + $0x78] sm:$0xff]
      %v1125 = vld [vmem:[#allocation2 + $0x80] sm:$0xff]
      %v1126 = vld [vmem:[#allocation2 + $0x88] sm:$0xff]
      %v1127 = vld [vmem:[#allocation2 + $0x90] sm:$0xff]
      %v1128 = vld [vmem:[#allocation2 + $0x98] sm:$0xff]
      %v1129 = vld [vmem:[#allocation2 + $0xa0] sm:$0xff]
      %v1130 = vld [vmem:[#allocation2 + $0xa8] sm:$0xff]
      %v1131 = vld [vmem:[#allocation2 + $0xb0] sm:$0xff]
      %v1132 = vld [vmem:[#allocation2 + $0xb8] sm:$0xff]
      %v1133 = vld [vmem:[#allocation2 + $0xc0] sm:$0xff]
      %v1134 = vld [vmem:[#allocation2 + $0xc8] sm:$0xff]
      %v1135 = vld [vmem:[#allocation2 + $0xd0] sm:$0xff]
      %v1136 = vld [vmem:[#allocation2 + $0xd8] sm:$0xff]
      %v1137 = vld [vmem:[#allocation2 + $0xe0] sm:$0xff]
      %v1138 = vld [vmem:[#allocation2 + $0xe8] sm:$0xff]
      %v1139 = vld [vmem:[#allocation2 + $0xf0] sm:$0xff]
      %v1140 = vld [vmem:[#allocation2 + $0xf8] sm:$0xff]
      %s1141 = scalar_lea.vmem %s1, 128
      %v1142 = vld [vmem:[%s1141] sm:$0xf]
      %v1143 = vld [vmem:[%s1141 + $0x4] sm:$0xf]
      %v1144 = vld [vmem:[%s1141 + $0x8] sm:$0xf]
      %v1145 = vld [vmem:[%s1141 + $0xc] sm:$0xf]
      %v1146 = vld [vmem:[%s1141 + $0x10] sm:$0xf]
      %v1147 = vld [vmem:[%s1141 + $0x14] sm:$0xf]
      %v1148 = vld [vmem:[%s1141 + $0x18] sm:$0xf]
      %v1149 = vld [vmem:[%s1141 + $0x1c] sm:$0xf]
      %v1150 = vld [vmem:[%s1141 + $0x20] sm:$0xf]
      %v1151 = vld [vmem:[%s1141 + $0x24] sm:$0xf]
      %v1152 = vld [vmem:[%s1141 + $0x28] sm:$0xf]
      %v1153 = vld [vmem:[%s1141 + $0x2c] sm:$0xf]
      %v1154 = vld [vmem:[%s1141 + $0x30] sm:$0xf]
      %v1155 = vld [vmem:[%s1141 + $0x34] sm:$0xf]
      %v1156 = vld [vmem:[%s1141 + $0x38] sm:$0xf]
      %v1157 = vld [vmem:[%s1141 + $0x3c] sm:$0xf]
      %v1190 = vunpack.c.l.b16 %v1077
      %v1191 = vunpack.c.l.b16 %v1078
      %v1192 = vunpack.c.l.b16 %v1079
      %v1193 = vunpack.c.l.b16 %v1080
      %v1194 = vunpack.c.l.b16 %v1081
      %v1195 = vunpack.c.l.b16 %v1082
      %v1196 = vunpack.c.l.b16 %v1083
      %v1197 = vunpack.c.l.b16 %v1084
      %v1198 = vunpack.c.l.b16 %v1085
      %v1199 = vunpack.c.l.b16 %v1086
      %v1200 = vunpack.c.l.b16 %v1087
      %v1201 = vunpack.c.l.b16 %v1088
      %v1202 = vunpack.c.l.b16 %v1089
      %v1203 = vunpack.c.l.b16 %v1090
      %v1204 = vunpack.c.l.b16 %v1091
      %v1205 = vunpack.c.l.b16 %v1092
      %v1206 = vunpack.c.l.b16 %v1093
      %v1207 = vunpack.c.l.b16 %v1094
      %v1208 = vunpack.c.l.b16 %v1095
      %v1209 = vunpack.c.l.b16 %v1096
      %v1210 = vunpack.c.l.b16 %v1097
      %v1211 = vunpack.c.l.b16 %v1098
      %v1212 = vunpack.c.l.b16 %v1099
      %v1213 = vunpack.c.l.b16 %v1100
      %v1214 = vunpack.c.l.b16 %v1101
      %v1215 = vunpack.c.l.b16 %v1102
      %v1216 = vunpack.c.l.b16 %v1103
      %v1217 = vunpack.c.l.b16 %v1104
      %v1218 = vunpack.c.l.b16 %v1105
      %v1219 = vunpack.c.l.b16 %v1106
      %v1220 = vunpack.c.l.b16 %v1107
      %v1221 = vunpack.c.l.b16 %v1108
      %v1222 = vpack.c.b16 %v1191, %v1190
      %v1223 = vpack.c.b16 %v1193, %v1192
      %v1224 = vpack.c.b16 %v1195, %v1194
      %v1225 = vpack.c.b16 %v1197, %v1196
      %v1226 = vpack.c.b16 %v1199, %v1198
      %v1227 = vpack.c.b16 %v1201, %v1200
      %v1228 = vpack.c.b16 %v1203, %v1202
      %v1229 = vpack.c.b16 %v1205, %v1204
      %v1230 = vpack.c.b16 %v1207, %v1206
      %v1231 = vpack.c.b16 %v1209, %v1208
      %v1232 = vpack.c.b16 %v1211, %v1210
      %v1233 = vpack.c.b16 %v1213, %v1212
      %v1234 = vpack.c.b16 %v1215, %v1214
      %v1235 = vpack.c.b16 %v1217, %v1216
      %v1236 = vpack.c.b16 %v1219, %v1218
      %v1237 = vpack.c.b16 %v1221, %v1220
      %v1270 = vunpack.c.l.b16 %v1142
      %v1271 = vunpack.c.l.b16 %v1143
      %v1272 = vunpack.c.l.b16 %v1144
      %v1273 = vunpack.c.l.b16 %v1145
      %v1274 = vunpack.c.l.b16 %v1146
      %v1275 = vunpack.c.l.b16 %v1147
      %v1276 = vunpack.c.l.b16 %v1148
      %v1277 = vunpack.c.l.b16 %v1149
      %v1278 = vunpack.c.l.b16 %v1150
      %v1279 = vunpack.c.l.b16 %v1151
      %v1280 = vunpack.c.l.b16 %v1152
      %v1281 = vunpack.c.l.b16 %v1153
      %v1282 = vunpack.c.l.b16 %v1154
      %v1283 = vunpack.c.l.b16 %v1155
      %v1284 = vunpack.c.l.b16 %v1156
      %v1285 = vunpack.c.l.b16 %v1157
      %v1286 = vpack.c.b16 %v1271, %v1270
      %v1287 = vpack.c.b16 %v1273, %v1272
      %v1288 = vpack.c.b16 %v1275, %v1274
      %v1289 = vpack.c.b16 %v1277, %v1276
      %v1290 = vpack.c.b16 %v1279, %v1278
      %v1291 = vpack.c.b16 %v1281, %v1280
      %v1292 = vpack.c.b16 %v1283, %v1282
      %v1293 = vpack.c.b16 %v1285, %v1284
      %1302 = vmatprep.subr.bf16.mxu0 0
      %1303 = vmatpush1.bf16.msra.mxu0 %v1293
      %1304 = vmatprep.subr.bf16.mxu0 0
      %1305 = vmatpush1.bf16.msra.mxu0 %v1292
      %1306 = vmatprep.subr.bf16.mxu0 0
      %1307 = vmatpush1.bf16.msra.mxu0 %v1291
      %1308 = vmatprep.subr.bf16.mxu0 0
      %1309 = vmatpush1.bf16.msra.mxu0 %v1290
      %1310 = vmatprep.subr.bf16.mxu0 0
      %1311 = vmatpush1.bf16.msra.mxu0 %v1289
      %1312 = vmatprep.subr.bf16.mxu0 0
      %1313 = vmatpush1.bf16.msra.mxu0 %v1288
      %1314 = vmatprep.subr.bf16.mxu0 0
      %1315 = vmatpush1.bf16.msra.mxu0 %v1287
      %1316 = vmatprep.subr.bf16.mxu0 0
      %1317 = vmatpush1.bf16.msra.mxu0 %v1286
      %1318 = vmatprep.subr.bf16.mxu0 0
      %1319 = vmatpush2.bf16.msra.mxu0 0
      %1320 = vmatprep.subr.bf16.mxu0 0
      %1321 = vmatpush2.bf16.msra.mxu0 0
      %1322 = vmatprep.subr.bf16.mxu0 0
      %1323 = vmatpush2.bf16.msra.mxu0 0
      %1324 = vmatprep.subr.bf16.mxu0 0
      %1325 = vmatpush2.bf16.msra.mxu0 0
      %1326 = vmatprep.subr.bf16.mxu0 0
      %1327 = vmatpush2.bf16.msra.mxu0 0
      %1328 = vmatprep.subr.bf16.mxu0 0
      %1329 = vmatpush2.bf16.msra.mxu0 0
      %1330 = vmatprep.subr.bf16.mxu0 0
      %1331 = vmatpush2.bf16.msra.mxu0 0
      %1332 = vmatprep.subr.bf16.mxu0 0
      %1333 = vmatpush2.bf16.msra.mxu0 0
      %1334 = vmatprep.mubr.bf16.mxu0 0
      %1335 = vmatmul.mubr.bf16.gmra.mxu0 %v1222
      %v1336 = vpop.f32.mrf.mxu0
      %v1337 = vadd.f32 0.0, %v1336
      %v1338 = vpop.f32.mrf.mxu0
      %v1339 = vpop.f32.mrf.mxu0
      %v1340 = vadd.f32 0.0, %v1339
      %v1341 = vpop.f32.mrf.mxu0
      %1342 = vmatprep.mubr.bf16.mxu0 0
      %1343 = vmatmul.mubr.bf16.gmra.mxu0 %v1223
      %v1344 = vpop.f32.mrf.mxu0
      %v1345 = vadd.f32 0.0, %v1344
      %v1346 = vpop.f32.mrf.mxu0
      %v1347 = vpop.f32.mrf.mxu0
      %v1348 = vadd.f32 0.0, %v1347
      %v1349 = vpop.f32.mrf.mxu0
      %1350 = vmatprep.mubr.bf16.mxu0 0
      %1351 = vmatmul.mubr.bf16.gmra.mxu0 %v1224
      %v1352 = vpop.f32.mrf.mxu0
      %v1353 = vadd.f32 0.0, %v1352
      %v1354 = vpop.f32.mrf.mxu0
      %v1355 = vpop.f32.mrf.mxu0
      %v1356 = vadd.f32 0.0, %v1355
      %v1357 = vpop.f32.mrf.mxu0
      %1358 = vmatprep.mubr.bf16.mxu0 0
      %1359 = vmatmul.mubr.bf16.gmra.mxu0 %v1225
      %v1360 = vpop.f32.mrf.mxu0
      %v1361 = vadd.f32 0.0, %v1360
      %v1362 = vpop.f32.mrf.mxu0
      %v1363 = vpop.f32.mrf.mxu0
      %v1364 = vadd.f32 0.0, %v1363
      %v1365 = vpop.f32.mrf.mxu0
      %1366 = vmatprep.mubr.bf16.mxu0 0
      %1367 = vmatmul.mubr.bf16.gmra.mxu0 %v1226
      %v1368 = vpop.f32.mrf.mxu0
      %v1369 = vadd.f32 0.0, %v1368
      %v1370 = vpop.f32.mrf.mxu0
      %v1371 = vpop.f32.mrf.mxu0
      %v1372 = vadd.f32 0.0, %v1371
      %v1373 = vpop.f32.mrf.mxu0
      %1374 = vmatprep.mubr.bf16.mxu0 0
      %1375 = vmatmul.mubr.bf16.gmra.mxu0 %v1227
      %v1376 = vpop.f32.mrf.mxu0
      %v1377 = vadd.f32 0.0, %v1376
      %v1378 = vpop.f32.mrf.mxu0
      %v1379 = vpop.f32.mrf.mxu0
      %v1380 = vadd.f32 0.0, %v1379
      %v1381 = vpop.f32.mrf.mxu0
      %1382 = vmatprep.mubr.bf16.mxu0 0
      %1383 = vmatmul.mubr.bf16.gmra.mxu0 %v1228
      %v1384 = vpop.f32.mrf.mxu0
      %v1385 = vadd.f32 0.0, %v1384
      %v1386 = vpop.f32.mrf.mxu0
      %v1387 = vpop.f32.mrf.mxu0
      %v1388 = vadd.f32 0.0, %v1387
      %v1389 = vpop.f32.mrf.mxu0
      %1390 = vmatprep.mubr.bf16.mxu0 0
      %1391 = vmatmul.mubr.bf16.gmra.mxu0 %v1229
      %v1392 = vpop.f32.mrf.mxu0
      %v1393 = vadd.f32 0.0, %v1392
      %v1394 = vpop.f32.mrf.mxu0
      %v1395 = vpop.f32.mrf.mxu0
      %v1396 = vadd.f32 0.0, %v1395
      %v1397 = vpop.f32.mrf.mxu0
      %1398 = vmatprep.mubr.bf16.mxu0 0
      %1399 = vmatmul.mubr.bf16.gmra.mxu0 %v1230
      %v1400 = vpop.f32.mrf.mxu0
      %v1401 = vadd.f32 0.0, %v1400
      %v1402 = vpop.f32.mrf.mxu0
      %v1403 = vpop.f32.mrf.mxu0
      %v1404 = vadd.f32 0.0, %v1403
      %v1405 = vpop.f32.mrf.mxu0
      %1406 = vmatprep.mubr.bf16.mxu0 0
      %1407 = vmatmul.mubr.bf16.gmra.mxu0 %v1231
      %v1408 = vpop.f32.mrf.mxu0
      %v1409 = vadd.f32 0.0, %v1408
      %v1410 = vpop.f32.mrf.mxu0
      %v1411 = vpop.f32.mrf.mxu0
      %v1412 = vadd.f32 0.0, %v1411
      %v1413 = vpop.f32.mrf.mxu0
      %1414 = vmatprep.mubr.bf16.mxu0 0
      %1415 = vmatmul.mubr.bf16.gmra.mxu0 %v1232
      %v1416 = vpop.f32.mrf.mxu0
      %v1417 = vadd.f32 0.0, %v1416
      %v1418 = vpop.f32.mrf.mxu0
      %v1419 = vpop.f32.mrf.mxu0
      %v1420 = vadd.f32 0.0, %v1419
      %v1421 = vpop.f32.mrf.mxu0
      %1422 = vmatprep.mubr.bf16.mxu0 0
      %1423 = vmatmul.mubr.bf16.gmra.mxu0 %v1233
      %v1424 = vpop.f32.mrf.mxu0
      %v1425 = vadd.f32 0.0, %v1424
      %v1426 = vpop.f32.mrf.mxu0
      %v1427 = vpop.f32.mrf.mxu0
      %v1428 = vadd.f32 0.0, %v1427
      %v1429 = vpop.f32.mrf.mxu0
      %1430 = vmatprep.mubr.bf16.mxu0 0
      %1431 = vmatmul.mubr.bf16.gmra.mxu0 %v1234
      %v1432 = vpop.f32.mrf.mxu0
      %v1433 = vadd.f32 0.0, %v1432
      %v1434 = vpop.f32.mrf.mxu0
      %v1435 = vpop.f32.mrf.mxu0
      %v1436 = vadd.f32 0.0, %v1435
      %v1437 = vpop.f32.mrf.mxu0
      %1438 = vmatprep.mubr.bf16.mxu0 0
      %1439 = vmatmul.mubr.bf16.gmra.mxu0 %v1235
      %v1440 = vpop.f32.mrf.mxu0
      %v1441 = vadd.f32 0.0, %v1440
      %v1442 = vpop.f32.mrf.mxu0
      %v1443 = vpop.f32.mrf.mxu0
      %v1444 = vadd.f32 0.0, %v1443
      %v1445 = vpop.f32.mrf.mxu0
      %1446 = vmatprep.mubr.bf16.mxu0 0
      %1447 = vmatmul.mubr.bf16.gmra.mxu0 %v1236
      %v1448 = vpop.f32.mrf.mxu0
      %v1449 = vadd.f32 0.0, %v1448
      %v1450 = vpop.f32.mrf.mxu0
      %v1451 = vpop.f32.mrf.mxu0
      %v1452 = vadd.f32 0.0, %v1451
      %v1453 = vpop.f32.mrf.mxu0
      %1454 = vmatprep.mubr.bf16.mxu0 0
      %1455 = vmatmul.mubr.bf16.gmra.mxu0 %v1237
      %v1456 = vpop.f32.mrf.mxu0
      %v1457 = vadd.f32 0.0, %v1456
      %v1458 = vpop.f32.mrf.mxu0
      %v1459 = vpop.f32.mrf.mxu0
      %v1460 = vadd.f32 0.0, %v1459
      %v1461 = vpop.f32.mrf.mxu0
      %1462 = vdwg.mxu0
      %v1463 = vadd.f32 %v1109, %v1337
      %v1464 = vadd.f32 %v1110, %v1340
      %v1465 = vadd.f32 %v1111, %v1345
      %v1466 = vadd.f32 %v1112, %v1348
      %v1467 = vadd.f32 %v1113, %v1353
      %v1468 = vadd.f32 %v1114, %v1356
      %v1469 = vadd.f32 %v1115, %v1361
      %v1470 = vadd.f32 %v1116, %v1364
      %v1471 = vadd.f32 %v1117, %v1369
      %v1472 = vadd.f32 %v1118, %v1372
      %v1473 = vadd.f32 %v1119, %v1377
      %v1474 = vadd.f32 %v1120, %v1380
      %v1475 = vadd.f32 %v1121, %v1385
      %v1476 = vadd.f32 %v1122, %v1388
      %v1477 = vadd.f32 %v1123, %v1393
      %v1478 = vadd.f32 %v1124, %v1396
      %v1479 = vadd.f32 %v1125, %v1401
      %v1480 = vadd.f32 %v1126, %v1404
      %v1481 = vadd.f32 %v1127, %v1409
      %v1482 = vadd.f32 %v1128, %v1412
      %v1483 = vadd.f32 %v1129, %v1417
      %v1484 = vadd.f32 %v1130, %v1420
      %v1485 = vadd.f32 %v1131, %v1425
      %v1486 = vadd.f32 %v1132, %v1428
      %v1487 = vadd.f32 %v1133, %v1433
      %v1488 = vadd.f32 %v1134, %v1436
      %v1489 = vadd.f32 %v1135, %v1441
      %v1490 = vadd.f32 %v1136, %v1444
      %v1491 = vadd.f32 %v1137, %v1449
      %v1492 = vadd.f32 %v1138, %v1452
      %v1493 = vadd.f32 %v1139, %v1457
      %v1494 = vadd.f32 %v1140, %v1460
      %1495 = vst [vmem:[#allocation2] sm:$0xff] %v1463
      %1496 = vst [vmem:[#allocation2 + $0x8] sm:$0xff] %v1464
      %1497 = vst [vmem:[#allocation2 + $0x10] sm:$0xff] %v1465
      %1498 = vst [vmem:[#allocation2 + $0x18] sm:$0xff] %v1466
      %1499 = vst [vmem:[#allocation2 + $0x20] sm:$0xff] %v1467
      %1500 = vst [vmem:[#allocation2 + $0x28] sm:$0xff] %v1468
      %1501 = vst [vmem:[#allocation2 + $0x30] sm:$0xff] %v1469
      %1502 = vst [vmem:[#allocation2 + $0x38] sm:$0xff] %v1470
      %1503 = vst [vmem:[#allocation2 + $0x40] sm:$0xff] %v1471
      %1504 = vst [vmem:[#allocation2 + $0x48] sm:$0xff] %v1472
      %1505 = vst [vmem:[#allocation2 + $0x50] sm:$0xff] %v1473
      %1506 = vst [vmem:[#allocation2 + $0x58] sm:$0xff] %v1474
      %1507 = vst [vmem:[#allocation2 + $0x60] sm:$0xff] %v1475
      %1508 = vst [vmem:[#allocation2 + $0x68] sm:$0xff] %v1476
      %1509 = vst [vmem:[#allocation2 + $0x70] sm:$0xff] %v1477
      %1510 = vst [vmem:[#allocation2 + $0x78] sm:$0xff] %v1478
      %1511 = vst [vmem:[#allocation2 + $0x80] sm:$0xff] %v1479
      %1512 = vst [vmem:[#allocation2 + $0x88] sm:$0xff] %v1480
      %1513 = vst [vmem:[#allocation2 + $0x90] sm:$0xff] %v1481
      %1514 = vst [vmem:[#allocation2 + $0x98] sm:$0xff] %v1482
      %1515 = vst [vmem:[#allocation2 + $0xa0] sm:$0xff] %v1483
      %1516 = vst [vmem:[#allocation2 + $0xa8] sm:$0xff] %v1484
      %1517 = vst [vmem:[#allocation2 + $0xb0] sm:$0xff] %v1485
      %1518 = vst [vmem:[#allocation2 + $0xb8] sm:$0xff] %v1486
      %1519 = vst [vmem:[#allocation2 + $0xc0] sm:$0xff] %v1487
      %1520 = vst [vmem:[#allocation2 + $0xc8] sm:$0xff] %v1488
      %1521 = vst [vmem:[#allocation2 + $0xd0] sm:$0xff] %v1489
      %1522 = vst [vmem:[#allocation2 + $0xd8] sm:$0xff] %v1490
      %1523 = vst [vmem:[#allocation2 + $0xe0] sm:$0xff] %v1491
      %1524 = vst [vmem:[#allocation2 + $0xe8] sm:$0xff] %v1492
      %1525 = vst [vmem:[#allocation2 + $0xf0] sm:$0xff] %v1493
      %1526 = vst [vmem:[#allocation2 + $0xf8] sm:$0xff] %v1494
      %v1527 = vld [vmem:[%s626 + $0x8] sm:$0xf]
      %v1528 = vld [vmem:[%s626 + $0xc] sm:$0xf]
      %v1529 = vld [vmem:[%s626 + $0x10] sm:$0xf]
      %v1530 = vld [vmem:[%s626 + $0x14] sm:$0xf]
      %v1531 = vld [vmem:[%s626 + $0x18] sm:$0xf]
      %v1532 = vld [vmem:[%s626 + $0x1c] sm:$0xf]
      %v1533 = vld [vmem:[%s626 + $0x20] sm:$0xf]
      %v1534 = vld [vmem:[%s626 + $0x24] sm:$0xf]
      %v1535 = vld [vmem:[%s626 + $0x28] sm:$0xf]
      %v1536 = vld [vmem:[%s626 + $0x2c] sm:$0xf]
      %v1537 = vld [vmem:[%s626 + $0x30] sm:$0xf]
      %v1538 = vld [vmem:[%s626 + $0x34] sm:$0xf]
      %v1539 = vld [vmem:[%s626 + $0x38] sm:$0xf]
      %v1540 = vld [vmem:[%s626 + $0x3c] sm:$0xf]
      %v1541 = vld [vmem:[%s626 + $0x40] sm:$0xf]
      %v1542 = vld [vmem:[%s626 + $0x44] sm:$0xf]
      %v1543 = vld [vmem:[%s626 + $0x48] sm:$0xf]
      %v1544 = vld [vmem:[%s626 + $0x4c] sm:$0xf]
      %v1545 = vld [vmem:[%s626 + $0x50] sm:$0xf]
      %v1546 = vld [vmem:[%s626 + $0x54] sm:$0xf]
      %v1547 = vld [vmem:[%s626 + $0x58] sm:$0xf]
      %v1548 = vld [vmem:[%s626 + $0x5c] sm:$0xf]
      %v1549 = vld [vmem:[%s626 + $0x60] sm:$0xf]
      %v1550 = vld [vmem:[%s626 + $0x64] sm:$0xf]
      %v1551 = vld [vmem:[%s626 + $0x68] sm:$0xf]
      %v1552 = vld [vmem:[%s626 + $0x6c] sm:$0xf]
      %v1553 = vld [vmem:[%s626 + $0x70] sm:$0xf]
      %v1554 = vld [vmem:[%s626 + $0x74] sm:$0xf]
      %v1555 = vld [vmem:[%s626 + $0x78] sm:$0xf]
      %v1556 = vld [vmem:[%s626 + $0x7c] sm:$0xf]
      %v1557 = vld [vmem:[%s626 + $0x80] sm:$0xf]
      %v1558 = vld [vmem:[%s626 + $0x84] sm:$0xf]
      %v1559 = vld [vmem:[#allocation2] sm:$0xff]
      %v1560 = vld [vmem:[#allocation2 + $0x8] sm:$0xff]
      %v1561 = vld [vmem:[#allocation2 + $0x10] sm:$0xff]
      %v1562 = vld [vmem:[#allocation2 + $0x18] sm:$0xff]
      %v1563 = vld [vmem:[#allocation2 + $0x20] sm:$0xff]
      %v1564 = vld [vmem:[#allocation2 + $0x28] sm:$0xff]
      %v1565 = vld [vmem:[#allocation2 + $0x30] sm:$0xff]
      %v1566 = vld [vmem:[#allocation2 + $0x38] sm:$0xff]
      %v1567 = vld [vmem:[#allocation2 + $0x40] sm:$0xff]
      %v1568 = vld [vmem:[#allocation2 + $0x48] sm:$0xff]
      %v1569 = vld [vmem:[#allocation2 + $0x50] sm:$0xff]
      %v1570 = vld [vmem:[#allocation2 + $0x58] sm:$0xff]
      %v1571 = vld [vmem:[#allocation2 + $0x60] sm:$0xff]
      %v1572 = vld [vmem:[#allocation2 + $0x68] sm:$0xff]
      %v1573 = vld [vmem:[#allocation2 + $0x70] sm:$0xff]
      %v1574 = vld [vmem:[#allocation2 + $0x78] sm:$0xff]
      %v1575 = vld [vmem:[#allocation2 + $0x80] sm:$0xff]
      %v1576 = vld [vmem:[#allocation2 + $0x88] sm:$0xff]
      %v1577 = vld [vmem:[#allocation2 + $0x90] sm:$0xff]
      %v1578 = vld [vmem:[#allocation2 + $0x98] sm:$0xff]
      %v1579 = vld [vmem:[#allocation2 + $0xa0] sm:$0xff]
      %v1580 = vld [vmem:[#allocation2 + $0xa8] sm:$0xff]
      %v1581 = vld [vmem:[#allocation2 + $0xb0] sm:$0xff]
      %v1582 = vld [vmem:[#allocation2 + $0xb8] sm:$0xff]
      %v1583 = vld [vmem:[#allocation2 + $0xc0] sm:$0xff]
      %v1584 = vld [vmem:[#allocation2 + $0xc8] sm:$0xff]
      %v1585 = vld [vmem:[#allocation2 + $0xd0] sm:$0xff]
      %v1586 = vld [vmem:[#allocation2 + $0xd8] sm:$0xff]
      %v1587 = vld [vmem:[#allocation2 + $0xe0] sm:$0xff]
      %v1588 = vld [vmem:[#allocation2 + $0xe8] sm:$0xff]
      %v1589 = vld [vmem:[#allocation2 + $0xf0] sm:$0xff]
      %v1590 = vld [vmem:[#allocation2 + $0xf8] sm:$0xff]
      %s1591 = scalar_lea.vmem %s1, 192
      %v1592 = vld [vmem:[%s1591] sm:$0xf]
      %v1593 = vld [vmem:[%s1591 + $0x4] sm:$0xf]
      %v1594 = vld [vmem:[%s1591 + $0x8] sm:$0xf]
      %v1595 = vld [vmem:[%s1591 + $0xc] sm:$0xf]
      %v1596 = vld [vmem:[%s1591 + $0x10] sm:$0xf]
      %v1597 = vld [vmem:[%s1591 + $0x14] sm:$0xf]
      %v1598 = vld [vmem:[%s1591 + $0x18] sm:$0xf]
      %v1599 = vld [vmem:[%s1591 + $0x1c] sm:$0xf]
      %v1600 = vld [vmem:[%s1591 + $0x20] sm:$0xf]
      %v1601 = vld [vmem:[%s1591 + $0x24] sm:$0xf]
      %v1602 = vld [vmem:[%s1591 + $0x28] sm:$0xf]
      %v1603 = vld [vmem:[%s1591 + $0x2c] sm:$0xf]
      %v1604 = vld [vmem:[%s1591 + $0x30] sm:$0xf]
      %v1605 = vld [vmem:[%s1591 + $0x34] sm:$0xf]
      %v1606 = vld [vmem:[%s1591 + $0x38] sm:$0xf]
      %v1607 = vld [vmem:[%s1591 + $0x3c] sm:$0xf]
      %v1640 = vunpack.c.l.b16 %v1527
      %v1641 = vunpack.c.l.b16 %v1528
      %v1642 = vunpack.c.l.b16 %v1529
      %v1643 = vunpack.c.l.b16 %v1530
      %v1644 = vunpack.c.l.b16 %v1531
      %v1645 = vunpack.c.l.b16 %v1532
      %v1646 = vunpack.c.l.b16 %v1533
      %v1647 = vunpack.c.l.b16 %v1534
      %v1648 = vunpack.c.l.b16 %v1535
      %v1649 = vunpack.c.l.b16 %v1536
      %v1650 = vunpack.c.l.b16 %v1537
      %v1651 = vunpack.c.l.b16 %v1538
      %v1652 = vunpack.c.l.b16 %v1539
      %v1653 = vunpack.c.l.b16 %v1540
      %v1654 = vunpack.c.l.b16 %v1541
      %v1655 = vunpack.c.l.b16 %v1542
      %v1656 = vunpack.c.l.b16 %v1543
      %v1657 = vunpack.c.l.b16 %v1544
      %v1658 = vunpack.c.l.b16 %v1545
      %v1659 = vunpack.c.l.b16 %v1546
      %v1660 = vunpack.c.l.b16 %v1547
      %v1661 = vunpack.c.l.b16 %v1548
      %v1662 = vunpack.c.l.b16 %v1549
      %v1663 = vunpack.c.l.b16 %v1550
      %v1664 = vunpack.c.l.b16 %v1551
      %v1665 = vunpack.c.l.b16 %v1552
      %v1666 = vunpack.c.l.b16 %v1553
      %v1667 = vunpack.c.l.b16 %v1554
      %v1668 = vunpack.c.l.b16 %v1555
      %v1669 = vunpack.c.l.b16 %v1556
      %v1670 = vunpack.c.l.b16 %v1557
      %v1671 = vunpack.c.l.b16 %v1558
      %v1672 = vpack.c.b16 %v1641, %v1640
      %v1673 = vpack.c.b16 %v1643, %v1642
      %v1674 = vpack.c.b16 %v1645, %v1644
      %v1675 = vpack.c.b16 %v1647, %v1646
      %v1676 = vpack.c.b16 %v1649, %v1648
      %v1677 = vpack.c.b16 %v1651, %v1650
      %v1678 = vpack.c.b16 %v1653, %v1652
      %v1679 = vpack.c.b16 %v1655, %v1654
      %v1680 = vpack.c.b16 %v1657, %v1656
      %v1681 = vpack.c.b16 %v1659, %v1658
      %v1682 = vpack.c.b16 %v1661, %v1660
      %v1683 = vpack.c.b16 %v1663, %v1662
      %v1684 = vpack.c.b16 %v1665, %v1664
      %v1685 = vpack.c.b16 %v1667, %v1666
      %v1686 = vpack.c.b16 %v1669, %v1668
      %v1687 = vpack.c.b16 %v1671, %v1670
      %v1720 = vunpack.c.l.b16 %v1592
      %v1721 = vunpack.c.l.b16 %v1593
      %v1722 = vunpack.c.l.b16 %v1594
      %v1723 = vunpack.c.l.b16 %v1595
      %v1724 = vunpack.c.l.b16 %v1596
      %v1725 = vunpack.c.l.b16 %v1597
      %v1726 = vunpack.c.l.b16 %v1598
      %v1727 = vunpack.c.l.b16 %v1599
      %v1728 = vunpack.c.l.b16 %v1600
      %v1729 = vunpack.c.l.b16 %v1601
      %v1730 = vunpack.c.l.b16 %v1602
      %v1731 = vunpack.c.l.b16 %v1603
      %v1732 = vunpack.c.l.b16 %v1604
      %v1733 = vunpack.c.l.b16 %v1605
      %v1734 = vunpack.c.l.b16 %v1606
      %v1735 = vunpack.c.l.b16 %v1607
      %v1736 = vpack.c.b16 %v1721, %v1720
      %v1737 = vpack.c.b16 %v1723, %v1722
      %v1738 = vpack.c.b16 %v1725, %v1724
      %v1739 = vpack.c.b16 %v1727, %v1726
      %v1740 = vpack.c.b16 %v1729, %v1728
      %v1741 = vpack.c.b16 %v1731, %v1730
      %v1742 = vpack.c.b16 %v1733, %v1732
      %v1743 = vpack.c.b16 %v1735, %v1734
      %1752 = vmatprep.subr.bf16.mxu0 0
      %1753 = vmatpush1.bf16.msra.mxu0 %v1743
      %1754 = vmatprep.subr.bf16.mxu0 0
      %1755 = vmatpush1.bf16.msra.mxu0 %v1742
      %1756 = vmatprep.subr.bf16.mxu0 0
      %1757 = vmatpush1.bf16.msra.mxu0 %v1741
      %1758 = vmatprep.subr.bf16.mxu0 0
      %1759 = vmatpush1.bf16.msra.mxu0 %v1740
      %1760 = vmatprep.subr.bf16.mxu0 0
      %1761 = vmatpush1.bf16.msra.mxu0 %v1739
      %1762 = vmatprep.subr.bf16.mxu0 0
      %1763 = vmatpush1.bf16.msra.mxu0 %v1738
      %1764 = vmatprep.subr.bf16.mxu0 0
      %1765 = vmatpush1.bf16.msra.mxu0 %v1737
      %1766 = vmatprep.subr.bf16.mxu0 0
      %1767 = vmatpush1.bf16.msra.mxu0 %v1736
      %1768 = vmatprep.subr.bf16.mxu0 0
      %1769 = vmatpush2.bf16.msra.mxu0 0
      %1770 = vmatprep.subr.bf16.mxu0 0
      %1771 = vmatpush2.bf16.msra.mxu0 0
      %1772 = vmatprep.subr.bf16.mxu0 0
      %1773 = vmatpush2.bf16.msra.mxu0 0
      %1774 = vmatprep.subr.bf16.mxu0 0
      %1775 = vmatpush2.bf16.msra.mxu0 0
      %1776 = vmatprep.subr.bf16.mxu0 0
      %1777 = vmatpush2.bf16.msra.mxu0 0
      %1778 = vmatprep.subr.bf16.mxu0 0
      %1779 = vmatpush2.bf16.msra.mxu0 0
      %1780 = vmatprep.subr.bf16.mxu0 0
      %1781 = vmatpush2.bf16.msra.mxu0 0
      %1782 = vmatprep.subr.bf16.mxu0 0
      %1783 = vmatpush2.bf16.msra.mxu0 0
      %1784 = vmatprep.mubr.bf16.mxu0 0
      %1785 = vmatmul.mubr.bf16.gmra.mxu0 %v1672
      %v1786 = vpop.f32.mrf.mxu0
      %v1787 = vadd.f32 0.0, %v1786
      %v1788 = vpop.f32.mrf.mxu0
      %v1789 = vpop.f32.mrf.mxu0
      %v1790 = vadd.f32 0.0, %v1789
      %v1791 = vpop.f32.mrf.mxu0
      %1792 = vmatprep.mubr.bf16.mxu0 0
      %1793 = vmatmul.mubr.bf16.gmra.mxu0 %v1673
      %v1794 = vpop.f32.mrf.mxu0
      %v1795 = vadd.f32 0.0, %v1794
      %v1796 = vpop.f32.mrf.mxu0
      %v1797 = vpop.f32.mrf.mxu0
      %v1798 = vadd.f32 0.0, %v1797
      %v1799 = vpop.f32.mrf.mxu0
      %1800 = vmatprep.mubr.bf16.mxu0 0
      %1801 = vmatmul.mubr.bf16.gmra.mxu0 %v1674
      %v1802 = vpop.f32.mrf.mxu0
      %v1803 = vadd.f32 0.0, %v1802
      %v1804 = vpop.f32.mrf.mxu0
      %v1805 = vpop.f32.mrf.mxu0
      %v1806 = vadd.f32 0.0, %v1805
      %v1807 = vpop.f32.mrf.mxu0
      %1808 = vmatprep.mubr.bf16.mxu0 0
      %1809 = vmatmul.mubr.bf16.gmra.mxu0 %v1675
      %v1810 = vpop.f32.mrf.mxu0
      %v1811 = vadd.f32 0.0, %v1810
      %v1812 = vpop.f32.mrf.mxu0
      %v1813 = vpop.f32.mrf.mxu0
      %v1814 = vadd.f32 0.0, %v1813
      %v1815 = vpop.f32.mrf.mxu0
      %1816 = vmatprep.mubr.bf16.mxu0 0
      %1817 = vmatmul.mubr.bf16.gmra.mxu0 %v1676
      %v1818 = vpop.f32.mrf.mxu0
      %v1819 = vadd.f32 0.0, %v1818
      %v1820 = vpop.f32.mrf.mxu0
      %v1821 = vpop.f32.mrf.mxu0
      %v1822 = vadd.f32 0.0, %v1821
      %v1823 = vpop.f32.mrf.mxu0
      %1824 = vmatprep.mubr.bf16.mxu0 0
      %1825 = vmatmul.mubr.bf16.gmra.mxu0 %v1677
      %v1826 = vpop.f32.mrf.mxu0
      %v1827 = vadd.f32 0.0, %v1826
      %v1828 = vpop.f32.mrf.mxu0
      %v1829 = vpop.f32.mrf.mxu0
      %v1830 = vadd.f32 0.0, %v1829
      %v1831 = vpop.f32.mrf.mxu0
      %1832 = vmatprep.mubr.bf16.mxu0 0
      %1833 = vmatmul.mubr.bf16.gmra.mxu0 %v1678
      %v1834 = vpop.f32.mrf.mxu0
      %v1835 = vadd.f32 0.0, %v1834
      %v1836 = vpop.f32.mrf.mxu0
      %v1837 = vpop.f32.mrf.mxu0
      %v1838 = vadd.f32 0.0, %v1837
      %v1839 = vpop.f32.mrf.mxu0
      %1840 = vmatprep.mubr.bf16.mxu0 0
      %1841 = vmatmul.mubr.bf16.gmra.mxu0 %v1679
      %v1842 = vpop.f32.mrf.mxu0
      %v1843 = vadd.f32 0.0, %v1842
      %v1844 = vpop.f32.mrf.mxu0
      %v1845 = vpop.f32.mrf.mxu0
      %v1846 = vadd.f32 0.0, %v1845
      %v1847 = vpop.f32.mrf.mxu0
      %1848 = vmatprep.mubr.bf16.mxu0 0
      %1849 = vmatmul.mubr.bf16.gmra.mxu0 %v1680
      %v1850 = vpop.f32.mrf.mxu0
      %v1851 = vadd.f32 0.0, %v1850
      %v1852 = vpop.f32.mrf.mxu0
      %v1853 = vpop.f32.mrf.mxu0
      %v1854 = vadd.f32 0.0, %v1853
      %v1855 = vpop.f32.mrf.mxu0
      %1856 = vmatprep.mubr.bf16.mxu0 0
      %1857 = vmatmul.mubr.bf16.gmra.mxu0 %v1681
      %v1858 = vpop.f32.mrf.mxu0
      %v1859 = vadd.f32 0.0, %v1858
      %v1860 = vpop.f32.mrf.mxu0
      %v1861 = vpop.f32.mrf.mxu0
      %v1862 = vadd.f32 0.0, %v1861
      %v1863 = vpop.f32.mrf.mxu0
      %1864 = vmatprep.mubr.bf16.mxu0 0
      %1865 = vmatmul.mubr.bf16.gmra.mxu0 %v1682
      %v1866 = vpop.f32.mrf.mxu0
      %v1867 = vadd.f32 0.0, %v1866
      %v1868 = vpop.f32.mrf.mxu0
      %v1869 = vpop.f32.mrf.mxu0
      %v1870 = vadd.f32 0.0, %v1869
      %v1871 = vpop.f32.mrf.mxu0
      %1872 = vmatprep.mubr.bf16.mxu0 0
      %1873 = vmatmul.mubr.bf16.gmra.mxu0 %v1683
      %v1874 = vpop.f32.mrf.mxu0
      %v1875 = vadd.f32 0.0, %v1874
      %v1876 = vpop.f32.mrf.mxu0
      %v1877 = vpop.f32.mrf.mxu0
      %v1878 = vadd.f32 0.0, %v1877
      %v1879 = vpop.f32.mrf.mxu0
      %1880 = vmatprep.mubr.bf16.mxu0 0
      %1881 = vmatmul.mubr.bf16.gmra.mxu0 %v1684
      %v1882 = vpop.f32.mrf.mxu0
      %v1883 = vadd.f32 0.0, %v1882
      %v1884 = vpop.f32.mrf.mxu0
      %v1885 = vpop.f32.mrf.mxu0
      %v1886 = vadd.f32 0.0, %v1885
      %v1887 = vpop.f32.mrf.mxu0
      %1888 = vmatprep.mubr.bf16.mxu0 0
      %1889 = vmatmul.mubr.bf16.gmra.mxu0 %v1685
      %v1890 = vpop.f32.mrf.mxu0
      %v1891 = vadd.f32 0.0, %v1890
      %v1892 = vpop.f32.mrf.mxu0
      %v1893 = vpop.f32.mrf.mxu0
      %v1894 = vadd.f32 0.0, %v1893
      %v1895 = vpop.f32.mrf.mxu0
      %1896 = vmatprep.mubr.bf16.mxu0 0
      %1897 = vmatmul.mubr.bf16.gmra.mxu0 %v1686
      %v1898 = vpop.f32.mrf.mxu0
      %v1899 = vadd.f32 0.0, %v1898
      %v1900 = vpop.f32.mrf.mxu0
      %v1901 = vpop.f32.mrf.mxu0
      %v1902 = vadd.f32 0.0, %v1901
      %v1903 = vpop.f32.mrf.mxu0
      %1904 = vmatprep.mubr.bf16.mxu0 0
      %1905 = vmatmul.mubr.bf16.gmra.mxu0 %v1687
      %v1906 = vpop.f32.mrf.mxu0
      %v1907 = vadd.f32 0.0, %v1906
      %v1908 = vpop.f32.mrf.mxu0
      %v1909 = vpop.f32.mrf.mxu0
      %v1910 = vadd.f32 0.0, %v1909
      %v1911 = vpop.f32.mrf.mxu0
      %1912 = vdwg.mxu0
      %v1913 = vadd.f32 %v1559, %v1787
      %v1914 = vadd.f32 %v1560, %v1790
      %v1915 = vadd.f32 %v1561, %v1795
      %v1916 = vadd.f32 %v1562, %v1798
      %v1917 = vadd.f32 %v1563, %v1803
      %v1918 = vadd.f32 %v1564, %v1806
      %v1919 = vadd.f32 %v1565, %v1811
      %v1920 = vadd.f32 %v1566, %v1814
      %v1921 = vadd.f32 %v1567, %v1819
      %v1922 = vadd.f32 %v1568, %v1822
      %v1923 = vadd.f32 %v1569, %v1827
      %v1924 = vadd.f32 %v1570, %v1830
      %v1925 = vadd.f32 %v1571, %v1835
      %v1926 = vadd.f32 %v1572, %v1838
      %v1927 = vadd.f32 %v1573, %v1843
      %v1928 = vadd.f32 %v1574, %v1846
      %v1929 = vadd.f32 %v1575, %v1851
      %v1930 = vadd.f32 %v1576, %v1854
      %v1931 = vadd.f32 %v1577, %v1859
      %v1932 = vadd.f32 %v1578, %v1862
      %v1933 = vadd.f32 %v1579, %v1867
      %v1934 = vadd.f32 %v1580, %v1870
      %v1935 = vadd.f32 %v1581, %v1875
      %v1936 = vadd.f32 %v1582, %v1878
      %v1937 = vadd.f32 %v1583, %v1883
      %v1938 = vadd.f32 %v1584, %v1886
      %v1939 = vadd.f32 %v1585, %v1891
      %v1940 = vadd.f32 %v1586, %v1894
      %v1941 = vadd.f32 %v1587, %v1899
      %v1942 = vadd.f32 %v1588, %v1902
      %v1943 = vadd.f32 %v1589, %v1907
      %v1944 = vadd.f32 %v1590, %v1910
      %1945 = vst [vmem:[#allocation2] sm:$0xff] %v1913
      %1946 = vst [vmem:[#allocation2 + $0x8] sm:$0xff] %v1914
      %1947 = vst [vmem:[#allocation2 + $0x10] sm:$0xff] %v1915
      %1948 = vst [vmem:[#allocation2 + $0x18] sm:$0xff] %v1916
      %1949 = vst [vmem:[#allocation2 + $0x20] sm:$0xff] %v1917
      %1950 = vst [vmem:[#allocation2 + $0x28] sm:$0xff] %v1918
      %1951 = vst [vmem:[#allocation2 + $0x30] sm:$0xff] %v1919
      %1952 = vst [vmem:[#allocation2 + $0x38] sm:$0xff] %v1920
      %1953 = vst [vmem:[#allocation2 + $0x40] sm:$0xff] %v1921
      %1954 = vst [vmem:[#allocation2 + $0x48] sm:$0xff] %v1922
      %1955 = vst [vmem:[#allocation2 + $0x50] sm:$0xff] %v1923
      %1956 = vst [vmem:[#allocation2 + $0x58] sm:$0xff] %v1924
      %1957 = vst [vmem:[#allocation2 + $0x60] sm:$0xff] %v1925
      %1958 = vst [vmem:[#allocation2 + $0x68] sm:$0xff] %v1926
      %1959 = vst [vmem:[#allocation2 + $0x70] sm:$0xff] %v1927
      %1960 = vst [vmem:[#allocation2 + $0x78] sm:$0xff] %v1928
      %1961 = vst [vmem:[#allocation2 + $0x80] sm:$0xff] %v1929
      %1962 = vst [vmem:[#allocation2 + $0x88] sm:$0xff] %v1930
      %1963 = vst [vmem:[#allocation2 + $0x90] sm:$0xff] %v1931
      %1964 = vst [vmem:[#allocation2 + $0x98] sm:$0xff] %v1932
      %1965 = vst [vmem:[#allocation2 + $0xa0] sm:$0xff] %v1933
      %1966 = vst [vmem:[#allocation2 + $0xa8] sm:$0xff] %v1934
      %1967 = vst [vmem:[#allocation2 + $0xb0] sm:$0xff] %v1935
      %1968 = vst [vmem:[#allocation2 + $0xb8] sm:$0xff] %v1936
      %1969 = vst [vmem:[#allocation2 + $0xc0] sm:$0xff] %v1937
      %1970 = vst [vmem:[#allocation2 + $0xc8] sm:$0xff] %v1938
      %1971 = vst [vmem:[#allocation2 + $0xd0] sm:$0xff] %v1939
      %1972 = vst [vmem:[#allocation2 + $0xd8] sm:$0xff] %v1940
      %1973 = vst [vmem:[#allocation2 + $0xe0] sm:$0xff] %v1941
      %1974 = vst [vmem:[#allocation2 + $0xe8] sm:$0xff] %v1942
      %1975 = vst [vmem:[#allocation2 + $0xf0] sm:$0xff] %v1943
      %1976 = vst [vmem:[#allocation2 + $0xf8] sm:$0xff] %v1944
      %v1977 = vld [vmem:[#allocation2] sm:$0xff]
      %v1978 = vld [vmem:[#allocation2 + $0x8] sm:$0xff]
      %v1979 = vld [vmem:[#allocation2 + $0x10] sm:$0xff]
      %v1980 = vld [vmem:[#allocation2 + $0x18] sm:$0xff]
      %v1981 = vld [vmem:[#allocation2 + $0x20] sm:$0xff]
      %v1982 = vld [vmem:[#allocation2 + $0x28] sm:$0xff]
      %v1983 = vld [vmem:[#allocation2 + $0x30] sm:$0xff]
      %v1984 = vld [vmem:[#allocation2 + $0x38] sm:$0xff]
      %v1985 = vld [vmem:[#allocation2 + $0x40] sm:$0xff]
      %v1986 = vld [vmem:[#allocation2 + $0x48] sm:$0xff]
      %v1987 = vld [vmem:[#allocation2 + $0x50] sm:$0xff]
      %v1988 = vld [vmem:[#allocation2 + $0x58] sm:$0xff]
      %v1989 = vld [vmem:[#allocation2 + $0x60] sm:$0xff]
      %v1990 = vld [vmem:[#allocation2 + $0x68] sm:$0xff]
      %v1991 = vld [vmem:[#allocation2 + $0x70] sm:$0xff]
      %v1992 = vld [vmem:[#allocation2 + $0x78] sm:$0xff]
      %v1993 = vld [vmem:[#allocation2 + $0x80] sm:$0xff]
      %v1994 = vld [vmem:[#allocation2 + $0x88] sm:$0xff]
      %v1995 = vld [vmem:[#allocation2 + $0x90] sm:$0xff]
      %v1996 = vld [vmem:[#allocation2 + $0x98] sm:$0xff]
      %v1997 = vld [vmem:[#allocation2 + $0xa0] sm:$0xff]
      %v1998 = vld [vmem:[#allocation2 + $0xa8] sm:$0xff]
      %v1999 = vld [vmem:[#allocation2 + $0xb0] sm:$0xff]
      %v2000 = vld [vmem:[#allocation2 + $0xb8] sm:$0xff]
      %v2001 = vld [vmem:[#allocation2 + $0xc0] sm:$0xff]
      %v2002 = vld [vmem:[#allocation2 + $0xc8] sm:$0xff]
      %v2003 = vld [vmem:[#allocation2 + $0xd0] sm:$0xff]
      %v2004 = vld [vmem:[#allocation2 + $0xd8] sm:$0xff]
      %v2005 = vld [vmem:[#allocation2 + $0xe0] sm:$0xff]
      %v2006 = vld [vmem:[#allocation2 + $0xe8] sm:$0xff]
      %v2007 = vld [vmem:[#allocation2 + $0xf0] sm:$0xff]
      %v2008 = vld [vmem:[#allocation2 + $0xf8] sm:$0xff]
      %vm2009 = vcmp.gt.f32.partialorder %v1977, 0.0
      %vm2010 = vcmp.gt.f32.partialorder %v1978, 0.0
      %vm2011 = vcmp.gt.f32.partialorder %v1979, 0.0
      %vm2012 = vcmp.gt.f32.partialorder %v1980, 0.0
      %vm2013 = vcmp.gt.f32.partialorder %v1981, 0.0
      %vm2014 = vcmp.gt.f32.partialorder %v1982, 0.0
      %vm2015 = vcmp.gt.f32.partialorder %v1983, 0.0
      %vm2016 = vcmp.gt.f32.partialorder %v1984, 0.0
      %vm2017 = vcmp.gt.f32.partialorder %v1985, 0.0
      %vm2018 = vcmp.gt.f32.partialorder %v1986, 0.0
      %vm2019 = vcmp.gt.f32.partialorder %v1987, 0.0
      %vm2020 = vcmp.gt.f32.partialorder %v1988, 0.0
      %vm2021 = vcmp.gt.f32.partialorder %v1989, 0.0
      %vm2022 = vcmp.gt.f32.partialorder %v1990, 0.0
      %vm2023 = vcmp.gt.f32.partialorder %v1991, 0.0
      %vm2024 = vcmp.gt.f32.partialorder %v1992, 0.0
      %vm2025 = vcmp.gt.f32.partialorder %v1993, 0.0
      %vm2026 = vcmp.gt.f32.partialorder %v1994, 0.0
      %vm2027 = vcmp.gt.f32.partialorder %v1995, 0.0
      %vm2028 = vcmp.gt.f32.partialorder %v1996, 0.0
      %vm2029 = vcmp.gt.f32.partialorder %v1997, 0.0
      %vm2030 = vcmp.gt.f32.partialorder %v1998, 0.0
      %vm2031 = vcmp.gt.f32.partialorder %v1999, 0.0
      %vm2032 = vcmp.gt.f32.partialorder %v2000, 0.0
      %vm2033 = vcmp.gt.f32.partialorder %v2001, 0.0
      %vm2034 = vcmp.gt.f32.partialorder %v2002, 0.0
      %vm2035 = vcmp.gt.f32.partialorder %v2003, 0.0
      %vm2036 = vcmp.gt.f32.partialorder %v2004, 0.0
      %vm2037 = vcmp.gt.f32.partialorder %v2005, 0.0
      %vm2038 = vcmp.gt.f32.partialorder %v2006, 0.0
      %vm2039 = vcmp.gt.f32.partialorder %v2007, 0.0
      %vm2040 = vcmp.gt.f32.partialorder %v2008, 0.0
      %v2041 = vmul.f32 %v1977, 0.2
      %v2042 = vmul.f32 %v1978, 0.2
      %v2043 = vmul.f32 %v1979, 0.2
      %v2044 = vmul.f32 %v1980, 0.2
      %v2045 = vmul.f32 %v1981, 0.2
      %v2046 = vmul.f32 %v1982, 0.2
      %v2047 = vmul.f32 %v1983, 0.2
      %v2048 = vmul.f32 %v1984, 0.2
      %v2049 = vmul.f32 %v1985, 0.2
      %v2050 = vmul.f32 %v1986, 0.2
      %v2051 = vmul.f32 %v1987, 0.2
      %v2052 = vmul.f32 %v1988, 0.2
      %v2053 = vmul.f32 %v1989, 0.2
      %v2054 = vmul.f32 %v1990, 0.2
      %v2055 = vmul.f32 %v1991, 0.2
      %v2056 = vmul.f32 %v1992, 0.2
      %v2057 = vmul.f32 %v1993, 0.2
      %v2058 = vmul.f32 %v1994, 0.2
      %v2059 = vmul.f32 %v1995, 0.2
      %v2060 = vmul.f32 %v1996, 0.2
      %v2061 = vmul.f32 %v1997, 0.2
      %v2062 = vmul.f32 %v1998, 0.2
      %v2063 = vmul.f32 %v1999, 0.2
      %v2064 = vmul.f32 %v2000, 0.2
      %v2065 = vmul.f32 %v2001, 0.2
      %v2066 = vmul.f32 %v2002, 0.2
      %v2067 = vmul.f32 %v2003, 0.2
      %v2068 = vmul.f32 %v2004, 0.2
      %v2069 = vmul.f32 %v2005, 0.2
      %v2070 = vmul.f32 %v2006, 0.2
      %v2071 = vmul.f32 %v2007, 0.2
      %v2072 = vmul.f32 %v2008, 0.2
      %v2073 = vsel %vm2009, %v1977, %v2041
      %v2074 = vsel %vm2010, %v1978, %v2042
      %v2075 = vsel %vm2011, %v1979, %v2043
      %v2076 = vsel %vm2012, %v1980, %v2044
      %v2077 = vsel %vm2013, %v1981, %v2045
      %v2078 = vsel %vm2014, %v1982, %v2046
      %v2079 = vsel %vm2015, %v1983, %v2047
      %v2080 = vsel %vm2016, %v1984, %v2048
      %v2081 = vsel %vm2017, %v1985, %v2049
      %v2082 = vsel %vm2018, %v1986, %v2050
      %v2083 = vsel %vm2019, %v1987, %v2051
      %v2084 = vsel %vm2020, %v1988, %v2052
      %v2085 = vsel %vm2021, %v1989, %v2053
      %v2086 = vsel %vm2022, %v1990, %v2054
      %v2087 = vsel %vm2023, %v1991, %v2055
      %v2088 = vsel %vm2024, %v1992, %v2056
      %v2089 = vsel %vm2025, %v1993, %v2057
      %v2090 = vsel %vm2026, %v1994, %v2058
      %v2091 = vsel %vm2027, %v1995, %v2059
      %v2092 = vsel %vm2028, %v1996, %v2060
      %v2093 = vsel %vm2029, %v1997, %v2061
      %v2094 = vsel %vm2030, %v1998, %v2062
      %v2095 = vsel %vm2031, %v1999, %v2063
      %v2096 = vsel %vm2032, %v2000, %v2064
      %v2097 = vsel %vm2033, %v2001, %v2065
      %v2098 = vsel %vm2034, %v2002, %v2066
      %v2099 = vsel %vm2035, %v2003, %v2067
      %v2100 = vsel %vm2036, %v2004, %v2068
      %v2101 = vsel %vm2037, %v2005, %v2069
      %v2102 = vsel %vm2038, %v2006, %v2070
      %v2103 = vsel %vm2039, %v2007, %v2071
      %v2104 = vsel %vm2040, %v2008, %v2072
      %v2105 = vpack.c.bf16 %v2074, %v2073
      %v2106 = vpack.c.bf16 %v2076, %v2075
      %v2107 = vpack.c.bf16 %v2078, %v2077
      %v2108 = vpack.c.bf16 %v2080, %v2079
      %v2109 = vpack.c.bf16 %v2082, %v2081
      %v2110 = vpack.c.bf16 %v2084, %v2083
      %v2111 = vpack.c.bf16 %v2086, %v2085
      %v2112 = vpack.c.bf16 %v2088, %v2087
      %v2113 = vpack.c.bf16 %v2090, %v2089
      %v2114 = vpack.c.bf16 %v2092, %v2091
      %v2115 = vpack.c.bf16 %v2094, %v2093
      %v2116 = vpack.c.bf16 %v2096, %v2095
      %v2117 = vpack.c.bf16 %v2098, %v2097
      %v2118 = vpack.c.bf16 %v2100, %v2099
      %v2119 = vpack.c.bf16 %v2102, %v2101
      %v2120 = vpack.c.bf16 %v2104, %v2103
      %v2137 = vunpack.c.l.b16 %v2105
      %v2138 = vunpack.c.h.b16 %v2105
      %v2139 = vunpack.c.l.b16 %v2106
      %v2140 = vunpack.c.h.b16 %v2106
      %v2141 = vunpack.c.l.b16 %v2107
      %v2142 = vunpack.c.h.b16 %v2107
      %v2143 = vunpack.c.l.b16 %v2108
      %v2144 = vunpack.c.h.b16 %v2108
      %v2145 = vunpack.c.l.b16 %v2109
      %v2146 = vunpack.c.h.b16 %v2109
      %v2147 = vunpack.c.l.b16 %v2110
      %v2148 = vunpack.c.h.b16 %v2110
      %v2149 = vunpack.c.l.b16 %v2111
      %v2150 = vunpack.c.h.b16 %v2111
      %v2151 = vunpack.c.l.b16 %v2112
      %v2152 = vunpack.c.h.b16 %v2112
      %v2153 = vunpack.c.l.b16 %v2113
      %v2154 = vunpack.c.h.b16 %v2113
      %v2155 = vunpack.c.l.b16 %v2114
      %v2156 = vunpack.c.h.b16 %v2114
      %v2157 = vunpack.c.l.b16 %v2115
      %v2158 = vunpack.c.h.b16 %v2115
      %v2159 = vunpack.c.l.b16 %v2116
      %v2160 = vunpack.c.h.b16 %v2116
      %v2161 = vunpack.c.l.b16 %v2117
      %v2162 = vunpack.c.h.b16 %v2117
      %v2163 = vunpack.c.l.b16 %v2118
      %v2164 = vunpack.c.h.b16 %v2118
      %v2165 = vunpack.c.l.b16 %v2119
      %v2166 = vunpack.c.h.b16 %v2119
      %v2167 = vunpack.c.l.b16 %v2120
      %v2168 = vunpack.c.h.b16 %v2120
      %v2169 = vpack.c.b16 %v2137, %v2137
      %v2170 = vpack.c.b16 %v2138, %v2138
      %v2171 = vpack.c.b16 %v2139, %v2139
      %v2172 = vpack.c.b16 %v2140, %v2140
      %v2173 = vpack.c.b16 %v2141, %v2141
      %v2174 = vpack.c.b16 %v2142, %v2142
      %v2175 = vpack.c.b16 %v2143, %v2143
      %v2176 = vpack.c.b16 %v2144, %v2144
      %v2177 = vpack.c.b16 %v2145, %v2145
      %v2178 = vpack.c.b16 %v2146, %v2146
      %v2179 = vpack.c.b16 %v2147, %v2147
      %v2180 = vpack.c.b16 %v2148, %v2148
      %v2181 = vpack.c.b16 %v2149, %v2149
      %v2182 = vpack.c.b16 %v2150, %v2150
      %v2183 = vpack.c.b16 %v2151, %v2151
      %v2184 = vpack.c.b16 %v2152, %v2152
      %v2185 = vpack.c.b16 %v2153, %v2153
      %v2186 = vpack.c.b16 %v2154, %v2154
      %v2187 = vpack.c.b16 %v2155, %v2155
      %v2188 = vpack.c.b16 %v2156, %v2156
      %v2189 = vpack.c.b16 %v2157, %v2157
      %v2190 = vpack.c.b16 %v2158, %v2158
      %v2191 = vpack.c.b16 %v2159, %v2159
      %v2192 = vpack.c.b16 %v2160, %v2160
      %v2193 = vpack.c.b16 %v2161, %v2161
      %v2194 = vpack.c.b16 %v2162, %v2162
      %v2195 = vpack.c.b16 %v2163, %v2163
      %v2196 = vpack.c.b16 %v2164, %v2164
      %v2197 = vpack.c.b16 %v2165, %v2165
      %v2198 = vpack.c.b16 %v2166, %v2166
      %v2199 = vpack.c.b16 %v2167, %v2167
      %v2200 = vpack.c.b16 %v2168, %v2168
      %2233 = vst [vmem:[%s143] sm:$0xf] %v2169
      %2234 = vst [vmem:[%s143 + $0x4] sm:$0xf] %v2170
      %2235 = vst [vmem:[%s143 + $0x8] sm:$0xf] %v2171
      %2236 = vst [vmem:[%s143 + $0xc] sm:$0xf] %v2172
      %2237 = vst [vmem:[%s143 + $0x10] sm:$0xf] %v2173
      %2238 = vst [vmem:[%s143 + $0x14] sm:$0xf] %v2174
      %2239 = vst [vmem:[%s143 + $0x18] sm:$0xf] %v2175
      %2240 = vst [vmem:[%s143 + $0x1c] sm:$0xf] %v2176
      %2241 = vst [vmem:[%s143 + $0x20] sm:$0xf] %v2177
      %2242 = vst [vmem:[%s143 + $0x24] sm:$0xf] %v2178
      %2243 = vst [vmem:[%s143 + $0x28] sm:$0xf] %v2179
      %2244 = vst [vmem:[%s143 + $0x2c] sm:$0xf] %v2180
      %2245 = vst [vmem:[%s143 + $0x30] sm:$0xf] %v2181
      %2246 = vst [vmem:[%s143 + $0x34] sm:$0xf] %v2182
      %2247 = vst [vmem:[%s143 + $0x38] sm:$0xf] %v2183
      %2248 = vst [vmem:[%s143 + $0x3c] sm:$0xf] %v2184
      %2249 = vst [vmem:[%s143 + $0x40] sm:$0xf] %v2185
      %2250 = vst [vmem:[%s143 + $0x44] sm:$0xf] %v2186
      %2251 = vst [vmem:[%s143 + $0x48] sm:$0xf] %v2187
      %2252 = vst [vmem:[%s143 + $0x4c] sm:$0xf] %v2188
      %2253 = vst [vmem:[%s143 + $0x50] sm:$0xf] %v2189
      %2254 = vst [vmem:[%s143 + $0x54] sm:$0xf] %v2190
      %2255 = vst [vmem:[%s143 + $0x58] sm:$0xf] %v2191
      %2256 = vst [vmem:[%s143 + $0x5c] sm:$0xf] %v2192
      %2257 = vst [vmem:[%s143 + $0x60] sm:$0xf] %v2193
      %2258 = vst [vmem:[%s143 + $0x64] sm:$0xf] %v2194
      %2259 = vst [vmem:[%s143 + $0x68] sm:$0xf] %v2195
      %2260 = vst [vmem:[%s143 + $0x6c] sm:$0xf] %v2196
      %2261 = vst [vmem:[%s143 + $0x70] sm:$0xf] %v2197
      %2262 = vst [vmem:[%s143 + $0x74] sm:$0xf] %v2198
      %2263 = vst [vmem:[%s143 + $0x78] sm:$0xf] %v2199
      %2264 = vst [vmem:[%s143 + $0x7c] sm:$0xf] %v2200
      %p2265 = scmp.lt.s32.totalorder %s13, 1
      %s2266 = scalar_select %p2265, %s13, 1
      %s2267 = smul.addr %s2266, 32
      %s2268 = smul.addr %s2267, 4
      %s2269 = scalar_lea.vmem %s2, %s2268
      // Predicated region
      $region29: #{discriminator_forward.5} parent=27 // pred_check
        %p2270 = pneg %p78
      $region30: #{discriminator_forward.5} parent=27 // pred_check_branch
        %2272 = sbr.rel (%p2270) target = $region32
      $region31: #{discriminator_forward.5} parent=27 // pred_region
        _
      $region32: #{discriminator_forward.5} parent=27 // pred_fallthru
        _
    $region28: #{discriminator_forward.5} parent=5 // pred_fallthru
      _
    %p2273 = scmp.le.s32.totalorder 2, %s8
    // Predicated region
    $region33: #{discriminator_forward.5} parent=5 // pred_check
      %p2274 = pneg %p2273
    $region34: #{discriminator_forward.5} parent=5 // pred_check_branch
      %2276 = sbr.rel (%p2274) target = $region36
    $region35: #{discriminator_forward.5} parent=5 // pred_region
      %s2277 = ssub.s32 %s8, 2
      // Predicated region
      $region37: #{discriminator_forward.5} parent=35 // pred_check
        %p2278 = pneg %p84
      $region38: #{discriminator_forward.5} parent=35 // pred_check_branch
        %2280 = sbr.rel (%p2278) target = $region40
      $region39: #{discriminator_forward.5} parent=35 // pred_region
        %p2281 = scmp.lt.s32.totalorder %s14, 1
        %s2282 = scalar_select %p2281, %s14, 1
        %s2283 = smul.addr %s2282, 32
        %s2284 = smul.addr %s2283, 4
        %s2285 = scalar_lea.vmem %s2, %s2284
      $region40: #{discriminator_forward.5} parent=35 // pred_fallthru
        _
    $region36: #{discriminator_forward.5} parent=5 // pred_fallthru
      _
  $region6: #{discriminator_forward.5} parent=0 // loop_footer
    %s12 = sadd.s32 1, %s8
  $region7: #{discriminator_forward.5} parent=0 // loop_footer_branch
    %7 = sbr.rel target = $region3
  $region8: #{discriminator_forward.5} parent=0 // loop_exit
    _

// kernel: discriminator_forward.6
$region0: #{discriminator_forward.6}
  #allocation0 [shape = 'u32[]', space=smem, size = 0x4, offset = 0x4, fixed_abs, tag = 'smem constant byte address 0x4 - core index']
  #allocation1 [shape = 'u32[144,128]{1,0:T(1,128)}', space=vmem, size = 0x12000, scoped, tag = 'internal scratch']
  #allocation2 [shape = 'f32[64,128]{1,0:T(8,128)}', space=vmem, size = 0x8000, scoped, tag = 'scratch operand']
  %s0 = inlined_call_operand.vmem [shape: bf16[2,2,72,512], index: 0, kind: input, shape index: {}]
  %s1 = inlined_call_operand.vmem [shape: bf16[4,512,128], index: 1, kind: input, shape index: {}]
  %s2 = inlined_call_operand.vmem [shape: bf16[2,64,128], index: 2, kind: output, shape index: {}]
  %s3 = sld [smem:[#allocation0]]
  $region41: #{discriminator_forward.6} parent=0
    _
  %s5 = ssub.s32 1, %s3
  %s6 = scalar_select 0, %s5, %s3
  loop: start=0, step=1, limit=4
  $region2: #{discriminator_forward.6} parent=0 // loop_pre_header
    _
  $region3: #{discriminator_forward.6} parent=0 // loop_header
    %s8 = sphi 0, %s12
    %p9 = scmp.ge.s32.totalorder %s8, 4
    %s18 = sphi 0, %s20
    %s21 = sphi 0, %s18
    %s22 = sphi 0, %s21
    %s38 = sphi 0, %s22
    %s42 = sphi 0, %s42
    %s44 = sphi 0, %s42
    %s45 = sphi 0, %s44
    %s59 = sphi 0, %s45
    %s65 = sphi 0, %s67
    %s68 = sphi 0, %s65
    %s69 = sphi 0, %s68
    %s85 = sphi 0, %s69
  $region4: #{discriminator_forward.6} parent=0 // loop_header_branch
    %11 = sbr.rel (%p9) target = $region8
  $region5: #{discriminator_forward.6} parent=0 // loop_body
    %s13 = ssub.s32 %s8, 1
    %s14 = ssub.s32 %s8, 2
    %s15 = sadd.s32 %s8, 1
    %s16 = ssub.s32 %s8, %s15
    %p17 = scmp.eq.s32.totalorder %s16, 0
    %s19 = sadd.s32 %s18, 1
    %s20 = scalar_select %p17, %s18, %s19
    %p23 = pneg %p17
    %p24 = scmp.eq.s32.totalorder %s8, 1
    %p25 = por %p23, %p24
    %p26 = scmp.ne.s32.totalorder %s18, %s21
    %p27 = scmp.eq.s32.totalorder %s8, 0
    %p28 = por %p26, %p27
    %p29 = scmp.ne.s32.totalorder %s18, %s21
    %p30 = scmp.eq.s32.totalorder %s13, 1
    %p31 = por %p29, %p30
    %p32 = scmp.ne.s32.totalorder %s21, %s22
    %p33 = scmp.eq.s32.totalorder %s13, 0
    %p34 = por %p32, %p33
    %p35 = scmp.ne.s32.totalorder %s21, %s22
    %p36 = scmp.eq.s32.totalorder %s14, 1
    %p37 = por %p35, %p36
    %p39 = scmp.ne.s32.totalorder %s22, %s38
    %p40 = scmp.eq.s32.totalorder %s14, 0
    %p41 = por %p39, %p40
    %s43 = sadd.s32 %s42, 1
    %p46 = scmp.eq.s32.totalorder %s8, 1
    %p47 = scmp.ne.s32.totalorder %s42, %s44
    %p48 = scmp.eq.s32.totalorder %s8, 0
    %p49 = por %p47, %p48
    %p50 = scmp.ne.s32.totalorder %s42, %s44
    %p51 = scmp.eq.s32.totalorder %s13, 1
    %p52 = por %p50, %p51
    %p53 = scmp.ne.s32.totalorder %s44, %s45
    %p54 = scmp.eq.s32.totalorder %s13, 0
    %p55 = por %p53, %p54
    %p56 = scmp.ne.s32.totalorder %s44, %s45
    %p57 = scmp.eq.s32.totalorder %s14, 1
    %p58 = por %p56, %p57
    %p60 = scmp.ne.s32.totalorder %s45, %s59
    %p61 = scmp.eq.s32.totalorder %s14, 0
    %p62 = por %p60, %p61
    %s63 = ssub.s32 %s8, %s15
    %p64 = scmp.eq.s32.totalorder %s63, 0
    %s66 = sadd.s32 %s65, 1
    %s67 = scalar_select %p64, %s65, %s66
    %p70 = pneg %p64
    %p71 = scmp.eq.s32.totalorder %s8, 1
    %p72 = por %p70, %p71
    %p73 = scmp.ne.s32.totalorder %s65, %s68
    %p74 = scmp.eq.s32.totalorder %s8, 0
    %p75 = por %p73, %p74
    %p76 = scmp.ne.s32.totalorder %s65, %s68
    %p77 = scmp.eq.s32.totalorder %s13, 1
    %p78 = por %p76, %p77
    %p79 = scmp.ne.s32.totalorder %s68, %s69
    %p80 = scmp.eq.s32.totalorder %s13, 0
    %p81 = por %p79, %p80
    %p82 = scmp.ne.s32.totalorder %s68, %s69
    %p83 = scmp.eq.s32.totalorder %s14, 1
    %p84 = por %p82, %p83
    %p86 = scmp.ne.s32.totalorder %s69, %s85
    %p87 = scmp.eq.s32.totalorder %s14, 0
    %p88 = por %p86, %p87
    %p89 = scmp.le.s32.totalorder 1, %s8
    %p90 = scmp.lt.s32.totalorder %s8, 3
    %p91 = pnand %p89, %p90
    %p92 = pneg %p91
    // Predicated region
    $region9: #{discriminator_forward.6} parent=5 // pred_check
      _
    $region10: #{discriminator_forward.6} parent=5 // pred_check_branch
      %94 = sbr.rel (%p91) target = $region12
    $region11: #{discriminator_forward.6} parent=5 // pred_region
      %s95 = ssub.s32 %s8, 1
      // Predicated region
      $region13: #{discriminator_forward.6} parent=11 // pred_check
        %p96 = pneg %p55
      $region14: #{discriminator_forward.6} parent=11 // pred_check_branch
        %98 = sbr.rel (%p96) target = $region16
      $region15: #{discriminator_forward.6} parent=11 // pred_region
        _
      $region16: #{discriminator_forward.6} parent=11 // pred_fallthru
        _
    $region12: #{discriminator_forward.6} parent=5 // pred_fallthru
      _
    %p99 = scmp.lt.s32.totalorder %s8, 2
    // Predicated region
    $region17: #{discriminator_forward.6} parent=5 // pred_check
      %p100 = pneg %p99
    $region18: #{discriminator_forward.6} parent=5 // pred_check_branch
      %102 = sbr.rel (%p100) target = $region20
    $region19: #{discriminator_forward.6} parent=5 // pred_region
      // Predicated region
      $region21: #{discriminator_forward.6} parent=19 // pred_check
        %p103 = pneg %p28
      $region22: #{discriminator_forward.6} parent=19 // pred_check_branch
        %105 = sbr.rel (%p103) target = $region24
      $region23: #{discriminator_forward.6} parent=19 // pred_region
        %p106 = scmp.lt.s32.totalorder %s8, 1
        %s107 = scalar_select %p106, %s8, 1
        %s108 = smul.addr %s107, 72
        %s109 = smul.addr %s108, 4
        %s110 = scalar_lea.vmem %s0, %s109
      $region24: #{discriminator_forward.6} parent=19 // pred_fallthru
        _
    $region20: #{discriminator_forward.6} parent=5 // pred_fallthru
      _
    %p111 = scmp.le.s32.totalorder 1, %s8
    %p112 = scmp.lt.s32.totalorder %s8, 3
    %p113 = pnand %p111, %p112
    %p114 = pneg %p113
    // Predicated region
    $region25: #{discriminator_forward.6} parent=5 // pred_check
      _
    $region26: #{discriminator_forward.6} parent=5 // pred_check_branch
      %116 = sbr.rel (%p113) target = $region28
    $region27: #{discriminator_forward.6} parent=5 // pred_region
      %s117 = ssub.s32 %s8, 1
      %p118 = scmp.lt.s32.totalorder %s13, 1
      %s119 = scalar_select %p118, %s13, 1
      %s120 = smul.addr %s119, 72
      %s121 = smul.addr %s120, 4
      %s122 = scalar_lea.vmem %s0, %s121
      %p123 = pneg %p34
      %p124 = pneg %p31
      %p125 = pneg %p55
      %p126 = pneg %p52
      %p127 = pneg %p81
      %p128 = pneg %p78
      %p129 = scmp.lt.s32.totalorder %s13, 1
      %s130 = scalar_select %p129, %s13, 1
      %s131 = smul.addr %s130, 8
      %s132 = smul.addr %s131, 4
      %s133 = scalar_lea.vmem %s2, %s132
      %p134 = scmp.lt.s32.totalorder %s13, 1
      %s135 = scalar_select %p134, %s13, 1
      %s136 = smul.addr %s135, 72
      %s137 = smul.addr %s136, 4
      %s138 = scalar_lea.vmem %s0, %s137
      %p139 = scmp.lt.s32.totalorder %s13, 1
      %s140 = scalar_select %p139, %s13, 1
      %s141 = smul.addr %s140, 8
      %s142 = smul.addr %s141, 4
      %s143 = scalar_lea.vmem %s2, %s142
      %145 = vst [vmem:[#allocation2] sm:$0xff] 0.0
      %146 = vst [vmem:[#allocation2 + $0x8] sm:$0xff] 0.0
      %147 = vst [vmem:[#allocation2 + $0x10] sm:$0xff] 0.0
      %148 = vst [vmem:[#allocation2 + $0x18] sm:$0xff] 0.0
      %149 = vst [vmem:[#allocation2 + $0x20] sm:$0xff] 0.0
      %150 = vst [vmem:[#allocation2 + $0x28] sm:$0xff] 0.0
      %151 = vst [vmem:[#allocation2 + $0x30] sm:$0xff] 0.0
      %152 = vst [vmem:[#allocation2 + $0x38] sm:$0xff] 0.0
      %v153 = vld [vmem:[%s138] sm:$0xff]
      %v154 = vld [vmem:[%s138 + $0x8] sm:$0xff]
      %v155 = vld [vmem:[%s138 + $0x10] sm:$0xff]
      %v156 = vld [vmem:[%s138 + $0x18] sm:$0xff]
      %v157 = vld [vmem:[%s138 + $0x20] sm:$0xff]
      %v158 = vld [vmem:[%s138 + $0x28] sm:$0xff]
      %v159 = vld [vmem:[%s138 + $0x30] sm:$0xff]
      %v160 = vld [vmem:[%s138 + $0x38] sm:$0xff]
      %v161 = vld [vmem:[%s138 + $0x40] sm:$0xff]
      %v162 = vld [vmem:[%s138 + $0x48] sm:$0xff]
      %v163 = vld [vmem:[%s138 + $0x50] sm:$0xff]
      %v164 = vld [vmem:[%s138 + $0x58] sm:$0xff]
      %v165 = vld [vmem:[%s138 + $0x60] sm:$0xff]
      %v166 = vld [vmem:[%s138 + $0x68] sm:$0xff]
      %v167 = vld [vmem:[%s138 + $0x70] sm:$0xff]
      %v168 = vld [vmem:[%s138 + $0x78] sm:$0xff]
      %v169 = vld [vmem:[#allocation2] sm:$0xff]
      %v170 = vld [vmem:[#allocation2 + $0x8] sm:$0xff]
      %v171 = vld [vmem:[#allocation2 + $0x10] sm:$0xff]
      %v172 = vld [vmem:[#allocation2 + $0x18] sm:$0xff]
      %v173 = vld [vmem:[#allocation2 + $0x20] sm:$0xff]
      %v174 = vld [vmem:[#allocation2 + $0x28] sm:$0xff]
      %v175 = vld [vmem:[#allocation2 + $0x30] sm:$0xff]
      %v176 = vld [vmem:[#allocation2 + $0x38] sm:$0xff]
      %v177 = vld [vmem:[%s1] sm:$0xf]
      %v178 = vld [vmem:[%s1 + $0x4] sm:$0xf]
      %v179 = vld [vmem:[%s1 + $0x8] sm:$0xf]
      %v180 = vld [vmem:[%s1 + $0xc] sm:$0xf]
      %v181 = vld [vmem:[%s1 + $0x10] sm:$0xf]
      %v182 = vld [vmem:[%s1 + $0x14] sm:$0xf]
      %v183 = vld [vmem:[%s1 + $0x18] sm:$0xf]
      %v184 = vld [vmem:[%s1 + $0x1c] sm:$0xf]
      %v185 = vld [vmem:[%s1 + $0x20] sm:$0xf]
      %v186 = vld [vmem:[%s1 + $0x24] sm:$0xf]
      %v187 = vld [vmem:[%s1 + $0x28] sm:$0xf]
      %v188 = vld [vmem:[%s1 + $0x2c] sm:$0xf]
      %v189 = vld [vmem:[%s1 + $0x30] sm:$0xf]
      %v190 = vld [vmem:[%s1 + $0x34] sm:$0xf]
      %v191 = vld [vmem:[%s1 + $0x38] sm:$0xf]
      %v192 = vld [vmem:[%s1 + $0x3c] sm:$0xf]
      %v193 = vld [vmem:[%s1 + $0x40] sm:$0xf]
      %v194 = vld [vmem:[%s1 + $0x44] sm:$0xf]
      %v195 = vld [vmem:[%s1 + $0x48] sm:$0xf]
      %v196 = vld [vmem:[%s1 + $0x4c] sm:$0xf]
      %v197 = vld [vmem:[%s1 + $0x50] sm:$0xf]
      %v198 = vld [vmem:[%s1 + $0x54] sm:$0xf]
      %v199 = vld [vmem:[%s1 + $0x58] sm:$0xf]
      %v200 = vld [vmem:[%s1 + $0x5c] sm:$0xf]
      %v201 = vld [vmem:[%s1 + $0x60] sm:$0xf]
      %v202 = vld [vmem:[%s1 + $0x64] sm:$0xf]
      %v203 = vld [vmem:[%s1 + $0x68] sm:$0xf]
      %v204 = vld [vmem:[%s1 + $0x6c] sm:$0xf]
      %v205 = vld [vmem:[%s1 + $0x70] sm:$0xf]
      %v206 = vld [vmem:[%s1 + $0x74] sm:$0xf]
      %v207 = vld [vmem:[%s1 + $0x78] sm:$0xf]
      %v208 = vld [vmem:[%s1 + $0x7c] sm:$0xf]
      %v209 = vld [vmem:[%s1 + $0x80] sm:$0xf]
      %v210 = vld [vmem:[%s1 + $0x84] sm:$0xf]
      %v211 = vld [vmem:[%s1 + $0x88] sm:$0xf]
      %v212 = vld [vmem:[%s1 + $0x8c] sm:$0xf]
      %v213 = vld [vmem:[%s1 + $0x90] sm:$0xf]
      %v214 = vld [vmem:[%s1 + $0x94] sm:$0xf]
      %v215 = vld [vmem:[%s1 + $0x98] sm:$0xf]
      %v216 = vld [vmem:[%s1 + $0x9c] sm:$0xf]
      %v217 = vld [vmem:[%s1 + $0xa0] sm:$0xf]
      %v218 = vld [vmem:[%s1 + $0xa4] sm:$0xf]
      %v219 = vld [vmem:[%s1 + $0xa8] sm:$0xf]
      %v220 = vld [vmem:[%s1 + $0xac] sm:$0xf]
      %v221 = vld [vmem:[%s1 + $0xb0] sm:$0xf]
      %v222 = vld [vmem:[%s1 + $0xb4] sm:$0xf]
      %v223 = vld [vmem:[%s1 + $0xb8] sm:$0xf]
      %v224 = vld [vmem:[%s1 + $0xbc] sm:$0xf]
      %v225 = vld [vmem:[%s1 + $0xc0] sm:$0xf]
      %v226 = vld [vmem:[%s1 + $0xc4] sm:$0xf]
      %v227 = vld [vmem:[%s1 + $0xc8] sm:$0xf]
      %v228 = vld [vmem:[%s1 + $0xcc] sm:$0xf]
      %v229 = vld [vmem:[%s1 + $0xd0] sm:$0xf]
      %v230 = vld [vmem:[%s1 + $0xd4] sm:$0xf]
      %v231 = vld [vmem:[%s1 + $0xd8] sm:$0xf]
      %v232 = vld [vmem:[%s1 + $0xdc] sm:$0xf]
      %v233 = vld [vmem:[%s1 + $0xe0] sm:$0xf]
      %v234 = vld [vmem:[%s1 + $0xe4] sm:$0xf]
      %v235 = vld [vmem:[%s1 + $0xe8] sm:$0xf]
      %v236 = vld [vmem:[%s1 + $0xec] sm:$0xf]
      %v237 = vld [vmem:[%s1 + $0xf0] sm:$0xf]
      %v238 = vld [vmem:[%s1 + $0xf4] sm:$0xf]
      %v239 = vld [vmem:[%s1 + $0xf8] sm:$0xf]
      %v240 = vld [vmem:[%s1 + $0xfc] sm:$0xf]
      %v257 = vunpack.c.l.b16 %v153
      %v258 = vunpack.c.h.b16 %v153
      %v259 = vunpack.c.l.b16 %v154
      %v260 = vunpack.c.h.b16 %v154
      %v261 = vunpack.c.l.b16 %v155
      %v262 = vunpack.c.h.b16 %v155
      %v263 = vunpack.c.l.b16 %v156
      %v264 = vunpack.c.h.b16 %v156
      %v265 = vunpack.c.l.b16 %v157
      %v266 = vunpack.c.h.b16 %v157
      %v267 = vunpack.c.l.b16 %v158
      %v268 = vunpack.c.h.b16 %v158
      %v269 = vunpack.c.l.b16 %v159
      %v270 = vunpack.c.h.b16 %v159
      %v271 = vunpack.c.l.b16 %v160
      %v272 = vunpack.c.h.b16 %v160
      %v273 = vunpack.c.l.b16 %v161
      %v274 = vunpack.c.h.b16 %v161
      %v275 = vunpack.c.l.b16 %v162
      %v276 = vunpack.c.h.b16 %v162
      %v277 = vunpack.c.l.b16 %v163
      %v278 = vunpack.c.h.b16 %v163
      %v279 = vunpack.c.l.b16 %v164
      %v280 = vunpack.c.h.b16 %v164
      %v281 = vunpack.c.l.b16 %v165
      %v282 = vunpack.c.h.b16 %v165
      %v283 = vunpack.c.l.b16 %v166
      %v284 = vunpack.c.h.b16 %v166
      %v285 = vunpack.c.l.b16 %v167
      %v286 = vunpack.c.h.b16 %v167
      %v287 = vunpack.c.l.b16 %v168
      %v288 = vunpack.c.h.b16 %v168
      %v289 = vpack.c.b16 %v261, %v257
      %v290 = vpack.c.b16 %v262, %v258
      %v291 = vpack.c.b16 %v263, %v259
      %v292 = vpack.c.b16 %v264, %v260
      %v293 = vpack.c.b16 %v269, %v265
      %v294 = vpack.c.b16 %v270, %v266
      %v295 = vpack.c.b16 %v271, %v267
      %v296 = vpack.c.b16 %v272, %v268
      %v297 = vpack.c.b16 %v277, %v273
      %v298 = vpack.c.b16 %v278, %v274
      %v299 = vpack.c.b16 %v279, %v275
      %v300 = vpack.c.b16 %v280, %v276
      %v301 = vpack.c.b16 %v285, %v281
      %v302 = vpack.c.b16 %v286, %v282
      %v303 = vpack.c.b16 %v287, %v283
      %v304 = vpack.c.b16 %v288, %v284
      %v385 = vunpack.c.l.b16 %v177
      %v386 = vunpack.c.l.b16 %v178
      %v387 = vunpack.c.l.b16 %v179
      %v388 = vunpack.c.l.b16 %v180
      %v389 = vunpack.c.l.b16 %v181
      %v390 = vunpack.c.l.b16 %v182
      %v391 = vunpack.c.l.b16 %v183
      %v392 = vunpack.c.l.b16 %v184
      %v393 = vunpack.c.l.b16 %v185
      %v394 = vunpack.c.l.b16 %v186
      %v395 = vunpack.c.l.b16 %v187
      %v396 = vunpack.c.l.b16 %v188
      %v397 = vunpack.c.l.b16 %v189
      %v398 = vunpack.c.l.b16 %v190
      %v399 = vunpack.c.l.b16 %v191
      %v400 = vunpack.c.l.b16 %v192
      %v401 = vunpack.c.l.b16 %v193
      %v402 = vunpack.c.l.b16 %v194
      %v403 = vunpack.c.l.b16 %v195
      %v404 = vunpack.c.l.b16 %v196
      %v405 = vunpack.c.l.b16 %v197
      %v406 = vunpack.c.l.b16 %v198
      %v407 = vunpack.c.l.b16 %v199
      %v408 = vunpack.c.l.b16 %v200
      %v409 = vunpack.c.l.b16 %v201
      %v410 = vunpack.c.l.b16 %v202
      %v411 = vunpack.c.l.b16 %v203
      %v412 = vunpack.c.l.b16 %v204
      %v413 = vunpack.c.l.b16 %v205
      %v414 = vunpack.c.l.b16 %v206
      %v415 = vunpack.c.l.b16 %v207
      %v416 = vunpack.c.l.b16 %v208
      %v417 = vunpack.c.l.b16 %v209
      %v418 = vunpack.c.l.b16 %v210
      %v419 = vunpack.c.l.b16 %v211
      %v420 = vunpack.c.l.b16 %v212
      %v421 = vunpack.c.l.b16 %v213
      %v422 = vunpack.c.l.b16 %v214
      %v423 = vunpack.c.l.b16 %v215
      %v424 = vunpack.c.l.b16 %v216
      %v425 = vunpack.c.l.b16 %v217
      %v426 = vunpack.c.l.b16 %v218
      %v427 = vunpack.c.l.b16 %v219
      %v428 = vunpack.c.l.b16 %v220
      %v429 = vunpack.c.l.b16 %v221
      %v430 = vunpack.c.l.b16 %v222
      %v431 = vunpack.c.l.b16 %v223
      %v432 = vunpack.c.l.b16 %v224
      %v433 = vunpack.c.l.b16 %v225
      %v434 = vunpack.c.l.b16 %v226
      %v435 = vunpack.c.l.b16 %v227
      %v436 = vunpack.c.l.b16 %v228
      %v437 = vunpack.c.l.b16 %v229
      %v438 = vunpack.c.l.b16 %v230
      %v439 = vunpack.c.l.b16 %v231
      %v440 = vunpack.c.l.b16 %v232
      %v441 = vunpack.c.l.b16 %v233
      %v442 = vunpack.c.l.b16 %v234
      %v443 = vunpack.c.l.b16 %v235
      %v444 = vunpack.c.l.b16 %v236
      %v445 = vunpack.c.l.b16 %v237
      %v446 = vunpack.c.l.b16 %v238
      %v447 = vunpack.c.l.b16 %v239
      %v448 = vunpack.c.l.b16 %v240
      %v449 = vpack.c.b16 %v386, %v385
      %v450 = vpack.c.b16 %v388, %v387
      %v451 = vpack.c.b16 %v390, %v389
      %v452 = vpack.c.b16 %v392, %v391
      %v453 = vpack.c.b16 %v394, %v393
      %v454 = vpack.c.b16 %v396, %v395
      %v455 = vpack.c.b16 %v398, %v397
      %v456 = vpack.c.b16 %v400, %v399
      %v457 = vpack.c.b16 %v402, %v401
      %v458 = vpack.c.b16 %v404, %v403
      %v459 = vpack.c.b16 %v406, %v405
      %v460 = vpack.c.b16 %v408, %v407
      %v461 = vpack.c.b16 %v410, %v409
      %v462 = vpack.c.b16 %v412, %v411
      %v463 = vpack.c.b16 %v414, %v413
      %v464 = vpack.c.b16 %v416, %v415
      %v465 = vpack.c.b16 %v418, %v417
      %v466 = vpack.c.b16 %v420, %v419
      %v467 = vpack.c.b16 %v422, %v421
      %v468 = vpack.c.b16 %v424, %v423
      %v469 = vpack.c.b16 %v426, %v425
      %v470 = vpack.c.b16 %v428, %v427
      %v471 = vpack.c.b16 %v430, %v429
      %v472 = vpack.c.b16 %v432, %v431
      %v473 = vpack.c.b16 %v434, %v433
      %v474 = vpack.c.b16 %v436, %v435
      %v475 = vpack.c.b16 %v438, %v437
      %v476 = vpack.c.b16 %v440, %v439
      %v477 = vpack.c.b16 %v442, %v441
      %v478 = vpack.c.b16 %v444, %v443
      %v479 = vpack.c.b16 %v446, %v445
      %v480 = vpack.c.b16 %v448, %v447
      %513 = vmatprep.subr.bf16.mxu0 0
      %514 = vmatpush1.bf16.msra.mxu0 %v456
      %515 = vmatprep.subr.bf16.mxu0 0
      %516 = vmatpush1.bf16.msra.mxu0 %v455
      %517 = vmatprep.subr.bf16.mxu0 0
      %518 = vmatpush1.bf16.msra.mxu0 %v454
      %519 = vmatprep.subr.bf16.mxu0 0
      %520 = vmatpush1.bf16.msra.mxu0 %v453
      %521 = vmatprep.subr.bf16.mxu0 0
      %522 = vmatpush1.bf16.msra.mxu0 %v452
      %523 = vmatprep.subr.bf16.mxu0 0
      %524 = vmatpush1.bf16.msra.mxu0 %v451
      %525 = vmatprep.subr.bf16.mxu0 0
      %526 = vmatpush1.bf16.msra.mxu0 %v450
      %527 = vmatprep.subr.bf16.mxu0 0
      %528 = vmatpush1.bf16.msra.mxu0 %v449
      %529 = vmatprep.subr.bf16.mxu0 0
      %530 = vmatpush2.bf16.msra.mxu0 %v464
      %531 = vmatprep.subr.bf16.mxu0 0
      %532 = vmatpush2.bf16.msra.mxu0 %v463
      %533 = vmatprep.subr.bf16.mxu0 0
      %534 = vmatpush2.bf16.msra.mxu0 %v462
      %535 = vmatprep.subr.bf16.mxu0 0
      %536 = vmatpush2.bf16.msra.mxu0 %v461
      %537 = vmatprep.subr.bf16.mxu0 0
      %538 = vmatpush2.bf16.msra.mxu0 %v460
      %539 = vmatprep.subr.bf16.mxu0 0
      %540 = vmatpush2.bf16.msra.mxu0 %v459
      %541 = vmatprep.subr.bf16.mxu0 0
      %542 = vmatpush2.bf16.msra.mxu0 %v458
      %543 = vmatprep.subr.bf16.mxu0 0
      %544 = vmatpush2.bf16.msra.mxu0 %v457
      %545 = vmatprep.mubr.bf16.mxu0 %v290
      %546 = vmatmul.mubr.bf16.gmra.mxu0 %v289
      %v547 = vpop.f32.mrf.mxu0
      %v548 = vadd.f32 0.0, %v547
      %v549 = vpop.f32.mrf.mxu0
      %v550 = vpop.f32.mrf.mxu0
      %v551 = vadd.f32 0.0, %v550
      %v552 = vpop.f32.mrf.mxu0
      %553 = vmatprep.mubr.bf16.mxu0 %v294
      %554 = vmatmul.mubr.bf16.gmra.mxu0 %v293
      %v555 = vpop.f32.mrf.mxu0
      %v556 = vadd.f32 0.0, %v555
      %v557 = vpop.f32.mrf.mxu0
      %v558 = vpop.f32.mrf.mxu0
      %v559 = vadd.f32 0.0, %v558
      %v560 = vpop.f32.mrf.mxu0
      %561 = vmatprep.mubr.bf16.mxu0 %v298
      %562 = vmatmul.mubr.bf16.gmra.mxu0 %v297
      %v563 = vpop.f32.mrf.mxu0
      %v564 = vadd.f32 0.0, %v563
      %v565 = vpop.f32.mrf.mxu0
      %v566 = vpop.f32.mrf.mxu0
      %v567 = vadd.f32 0.0, %v566
      %v568 = vpop.f32.mrf.mxu0
      %569 = vmatprep.mubr.bf16.mxu0 %v302
      %570 = vmatmul.mubr.bf16.gmra.mxu0 %v301
      %v571 = vpop.f32.mrf.mxu0
      %v572 = vadd.f32 0.0, %v571
      %v573 = vpop.f32.mrf.mxu0
      %v574 = vpop.f32.mrf.mxu0
      %v575 = vadd.f32 0.0, %v574
      %v576 = vpop.f32.mrf.mxu0
      %577 = vdwg.mxu0
      %578 = vmatprep.subr.bf16.mxu0 0
      %579 = vmatpush1.bf16.msra.mxu0 %v472
      %580 = vmatprep.subr.bf16.mxu0 0
      %581 = vmatpush1.bf16.msra.mxu0 %v471
      %582 = vmatprep.subr.bf16.mxu0 0
      %583 = vmatpush1.bf16.msra.mxu0 %v470
      %584 = vmatprep.subr.bf16.mxu0 0
      %585 = vmatpush1.bf16.msra.mxu0 %v469
      %586 = vmatprep.subr.bf16.mxu0 0
      %587 = vmatpush1.bf16.msra.mxu0 %v468
      %588 = vmatprep.subr.bf16.mxu0 0
      %589 = vmatpush1.bf16.msra.mxu0 %v467
      %590 = vmatprep.subr.bf16.mxu0 0
      %591 = vmatpush1.bf16.msra.mxu0 %v466
      %592 = vmatprep.subr.bf16.mxu0 0
      %593 = vmatpush1.bf16.msra.mxu0 %v465
      %594 = vmatprep.subr.bf16.mxu0 0
      %595 = vmatpush2.bf16.msra.mxu0 %v480
      %596 = vmatprep.subr.bf16.mxu0 0
      %597 = vmatpush2.bf16.msra.mxu0 %v479
      %598 = vmatprep.subr.bf16.mxu0 0
      %599 = vmatpush2.bf16.msra.mxu0 %v478
      %600 = vmatprep.subr.bf16.mxu0 0
      %601 = vmatpush2.bf16.msra.mxu0 %v477
      %602 = vmatprep.subr.bf16.mxu0 0
      %603 = vmatpush2.bf16.msra.mxu0 %v476
      %604 = vmatprep.subr.bf16.mxu0 0
      %605 = vmatpush2.bf16.msra.mxu0 %v475
      %606 = vmatprep.subr.bf16.mxu0 0
      %607 = vmatpush2.bf16.msra.mxu0 %v474
      %608 = vmatprep.subr.bf16.mxu0 0
      %609 = vmatpush2.bf16.msra.mxu0 %v473
      %610 = vmatprep.mubr.bf16.mxu0 %v292
      %611 = vmatmul.mubr.bf16.gmra.mxu0 %v291
      %v612 = vpop.f32.mrf.mxu0
      %v613 = vadd.f32 %v548, %v612
      %v614 = vpop.f32.mrf.mxu0
      %v615 = vpop.f32.mrf.mxu0
      %v616 = vadd.f32 %v551, %v615
      %v617 = vpop.f32.mrf.mxu0
      %618 = vmatprep.mubr.bf16.mxu0 %v296
      %619 = vmatmul.mubr.bf16.gmra.mxu0 %v295
      %v620 = vpop.f32.mrf.mxu0
      %v621 = vadd.f32 %v556, %v620
      %v622 = vpop.f32.mrf.mxu0
      %v623 = vpop.f32.mrf.mxu0
      %v624 = vadd.f32 %v559, %v623
      %v625 = vpop.f32.mrf.mxu0
      %626 = vmatprep.mubr.bf16.mxu0 %v300
      %627 = vmatmul.mubr.bf16.gmra.mxu0 %v299
      %v628 = vpop.f32.mrf.mxu0
      %v629 = vadd.f32 %v564, %v628
      %v630 = vpop.f32.mrf.mxu0
      %v631 = vpop.f32.mrf.mxu0
      %v632 = vadd.f32 %v567, %v631
      %v633 = vpop.f32.mrf.mxu0
      %634 = vmatprep.mubr.bf16.mxu0 %v304
      %635 = vmatmul.mubr.bf16.gmra.mxu0 %v303
      %v636 = vpop.f32.mrf.mxu0
      %v637 = vadd.f32 %v572, %v636
      %v638 = vpop.f32.mrf.mxu0
      %v639 = vpop.f32.mrf.mxu0
      %v640 = vadd.f32 %v575, %v639
      %v641 = vpop.f32.mrf.mxu0
      %642 = vdwg.mxu0
      %v643 = vadd.f32 %v169, %v613
      %v644 = vadd.f32 %v170, %v616
      %v645 = vadd.f32 %v171, %v621
      %v646 = vadd.f32 %v172, %v624
      %v647 = vadd.f32 %v173, %v629
      %v648 = vadd.f32 %v174, %v632
      %v649 = vadd.f32 %v175, %v637
      %v650 = vadd.f32 %v176, %v640
      %651 = vst [vmem:[#allocation2] sm:$0xff] %v643
      %652 = vst [vmem:[#allocation2 + $0x8] sm:$0xff] %v644
      %653 = vst [vmem:[#allocation2 + $0x10] sm:$0xff] %v645
      %654 = vst [vmem:[#allocation2 + $0x18] sm:$0xff] %v646
      %655 = vst [vmem:[#allocation2 + $0x20] sm:$0xff] %v647
      %656 = vst [vmem:[#allocation2 + $0x28] sm:$0xff] %v648
      %657 = vst [vmem:[#allocation2 + $0x30] sm:$0xff] %v649
      %658 = vst [vmem:[#allocation2 + $0x38] sm:$0xff] %v650
      %s659 = scalar_lea.vmem %s138, 144
      %v660 = vld [vmem:[%s659] sm:$0xff]
      %v661 = vld [vmem:[%s659 + $0x8] sm:$0xff]
      %v662 = vld [vmem:[%s659 + $0x10] sm:$0xff]
      %v663 = vld [vmem:[%s659 + $0x18] sm:$0xff]
      %v664 = vld [vmem:[%s659 + $0x20] sm:$0xff]
      %v665 = vld [vmem:[%s659 + $0x28] sm:$0xff]
      %v666 = vld [vmem:[%s659 + $0x30] sm:$0xff]
      %v667 = vld [vmem:[%s659 + $0x38] sm:$0xff]
      %v668 = vld [vmem:[%s659 + $0x40] sm:$0xff]
      %v669 = vld [vmem:[%s659 + $0x48] sm:$0xff]
      %v670 = vld [vmem:[%s659 + $0x50] sm:$0xff]
      %v671 = vld [vmem:[%s659 + $0x58] sm:$0xff]
      %v672 = vld [vmem:[%s659 + $0x60] sm:$0xff]
      %v673 = vld [vmem:[%s659 + $0x68] sm:$0xff]
      %v674 = vld [vmem:[%s659 + $0x70] sm:$0xff]
      %v675 = vld [vmem:[%s659 + $0x78] sm:$0xff]
      %v676 = vld [vmem:[#allocation2] sm:$0xff]
      %v677 = vld [vmem:[#allocation2 + $0x8] sm:$0xff]
      %v678 = vld [vmem:[#allocation2 + $0x10] sm:$0xff]
      %v679 = vld [vmem:[#allocation2 + $0x18] sm:$0xff]
      %v680 = vld [vmem:[#allocation2 + $0x20] sm:$0xff]
      %v681 = vld [vmem:[#allocation2 + $0x28] sm:$0xff]
      %v682 = vld [vmem:[#allocation2 + $0x30] sm:$0xff]
      %v683 = vld [vmem:[#allocation2 + $0x38] sm:$0xff]
      %s684 = scalar_lea.vmem %s1, 256
      %v685 = vld [vmem:[%s684] sm:$0xf]
      %v686 = vld [vmem:[%s684 + $0x4] sm:$0xf]
      %v687 = vld [vmem:[%s684 + $0x8] sm:$0xf]
      %v688 = vld [vmem:[%s684 + $0xc] sm:$0xf]
      %v689 = vld [vmem:[%s684 + $0x10] sm:$0xf]
      %v690 = vld [vmem:[%s684 + $0x14] sm:$0xf]
      %v691 = vld [vmem:[%s684 + $0x18] sm:$0xf]
      %v692 = vld [vmem:[%s684 + $0x1c] sm:$0xf]
      %v693 = vld [vmem:[%s684 + $0x20] sm:$0xf]
      %v694 = vld [vmem:[%s684 + $0x24] sm:$0xf]
      %v695 = vld [vmem:[%s684 + $0x28] sm:$0xf]
      %v696 = vld [vmem:[%s684 + $0x2c] sm:$0xf]
      %v697 = vld [vmem:[%s684 + $0x30] sm:$0xf]
      %v698 = vld [vmem:[%s684 + $0x34] sm:$0xf]
      %v699 = vld [vmem:[%s684 + $0x38] sm:$0xf]
      %v700 = vld [vmem:[%s684 + $0x3c] sm:$0xf]
      %v701 = vld [vmem:[%s684 + $0x40] sm:$0xf]
      %v702 = vld [vmem:[%s684 + $0x44] sm:$0xf]
      %v703 = vld [vmem:[%s684 + $0x48] sm:$0xf]
      %v704 = vld [vmem:[%s684 + $0x4c] sm:$0xf]
      %v705 = vld [vmem:[%s684 + $0x50] sm:$0xf]
      %v706 = vld [vmem:[%s684 + $0x54] sm:$0xf]
      %v707 = vld [vmem:[%s684 + $0x58] sm:$0xf]
      %v708 = vld [vmem:[%s684 + $0x5c] sm:$0xf]
      %v709 = vld [vmem:[%s684 + $0x60] sm:$0xf]
      %v710 = vld [vmem:[%s684 + $0x64] sm:$0xf]
      %v711 = vld [vmem:[%s684 + $0x68] sm:$0xf]
      %v712 = vld [vmem:[%s684 + $0x6c] sm:$0xf]
      %v713 = vld [vmem:[%s684 + $0x70] sm:$0xf]
      %v714 = vld [vmem:[%s684 + $0x74] sm:$0xf]
      %v715 = vld [vmem:[%s684 + $0x78] sm:$0xf]
      %v716 = vld [vmem:[%s684 + $0x7c] sm:$0xf]
      %v717 = vld [vmem:[%s684 + $0x80] sm:$0xf]
      %v718 = vld [vmem:[%s684 + $0x84] sm:$0xf]
      %v719 = vld [vmem:[%s684 + $0x88] sm:$0xf]
      %v720 = vld [vmem:[%s684 + $0x8c] sm:$0xf]
      %v721 = vld [vmem:[%s684 + $0x90] sm:$0xf]
      %v722 = vld [vmem:[%s684 + $0x94] sm:$0xf]
      %v723 = vld [vmem:[%s684 + $0x98] sm:$0xf]
      %v724 = vld [vmem:[%s684 + $0x9c] sm:$0xf]
      %v725 = vld [vmem:[%s684 + $0xa0] sm:$0xf]
      %v726 = vld [vmem:[%s684 + $0xa4] sm:$0xf]
      %v727 = vld [vmem:[%s684 + $0xa8] sm:$0xf]
      %v728 = vld [vmem:[%s684 + $0xac] sm:$0xf]
      %v729 = vld [vmem:[%s684 + $0xb0] sm:$0xf]
      %v730 = vld [vmem:[%s684 + $0xb4] sm:$0xf]
      %v731 = vld [vmem:[%s684 + $0xb8] sm:$0xf]
      %v732 = vld [vmem:[%s684 + $0xbc] sm:$0xf]
      %v733 = vld [vmem:[%s684 + $0xc0] sm:$0xf]
      %v734 = vld [vmem:[%s684 + $0xc4] sm:$0xf]
      %v735 = vld [vmem:[%s684 + $0xc8] sm:$0xf]
      %v736 = vld [vmem:[%s684 + $0xcc] sm:$0xf]
      %v737 = vld [vmem:[%s684 + $0xd0] sm:$0xf]
      %v738 = vld [vmem:[%s684 + $0xd4] sm:$0xf]
      %v739 = vld [vmem:[%s684 + $0xd8] sm:$0xf]
      %v740 = vld [vmem:[%s684 + $0xdc] sm:$0xf]
      %v741 = vld [vmem:[%s684 + $0xe0] sm:$0xf]
      %v742 = vld [vmem:[%s684 + $0xe4] sm:$0xf]
      %v743 = vld [vmem:[%s684 + $0xe8] sm:$0xf]
      %v744 = vld [vmem:[%s684 + $0xec] sm:$0xf]
      %v745 = vld [vmem:[%s684 + $0xf0] sm:$0xf]
      %v746 = vld [vmem:[%s684 + $0xf4] sm:$0xf]
      %v747 = vld [vmem:[%s684 + $0xf8] sm:$0xf]
      %v748 = vld [vmem:[%s684 + $0xfc] sm:$0xf]
      %v765 = vunpack.c.l.b16 %v660
      %v766 = vunpack.c.h.b16 %v660
      %v767 = vunpack.c.l.b16 %v661
      %v768 = vunpack.c.h.b16 %v661
      %v769 = vunpack.c.l.b16 %v662
      %v770 = vunpack.c.h.b16 %v662
      %v771 = vunpack.c.l.b16 %v663
      %v772 = vunpack.c.h.b16 %v663
      %v773 = vunpack.c.l.b16 %v664
      %v774 = vunpack.c.h.b16 %v664
      %v775 = vunpack.c.l.b16 %v665
      %v776 = vunpack.c.h.b16 %v665
      %v777 = vunpack.c.l.b16 %v666
      %v778 = vunpack.c.h.b16 %v666
      %v779 = vunpack.c.l.b16 %v667
      %v780 = vunpack.c.h.b16 %v667
      %v781 = vunpack.c.l.b16 %v668
      %v782 = vunpack.c.h.b16 %v668
      %v783 = vunpack.c.l.b16 %v669
      %v784 = vunpack.c.h.b16 %v669
      %v785 = vunpack.c.l.b16 %v670
      %v786 = vunpack.c.h.b16 %v670
      %v787 = vunpack.c.l.b16 %v671
      %v788 = vunpack.c.h.b16 %v671
      %v789 = vunpack.c.l.b16 %v672
      %v790 = vunpack.c.h.b16 %v672
      %v791 = vunpack.c.l.b16 %v673
      %v792 = vunpack.c.h.b16 %v673
      %v793 = vunpack.c.l.b16 %v674
      %v794 = vunpack.c.h.b16 %v674
      %v795 = vunpack.c.l.b16 %v675
      %v796 = vunpack.c.h.b16 %v675
      %v797 = vpack.c.b16 %v769, %v765
      %v798 = vpack.c.b16 %v770, %v766
      %v799 = vpack.c.b16 %v771, %v767
      %v800 = vpack.c.b16 %v772, %v768
      %v801 = vpack.c.b16 %v777, %v773
      %v802 = vpack.c.b16 %v778, %v774
      %v803 = vpack.c.b16 %v779, %v775
      %v804 = vpack.c.b16 %v780, %v776
      %v805 = vpack.c.b16 %v785, %v781
      %v806 = vpack.c.b16 %v786, %v782
      %v807 = vpack.c.b16 %v787, %v783
      %v808 = vpack.c.b16 %v788, %v784
      %v809 = vpack.c.b16 %v793, %v789
      %v810 = vpack.c.b16 %v794, %v790
      %v811 = vpack.c.b16 %v795, %v791
      %v812 = vpack.c.b16 %v796, %v792
      %v893 = vunpack.c.l.b16 %v685
      %v894 = vunpack.c.l.b16 %v686
      %v895 = vunpack.c.l.b16 %v687
      %v896 = vunpack.c.l.b16 %v688
      %v897 = vunpack.c.l.b16 %v689
      %v898 = vunpack.c.l.b16 %v690
      %v899 = vunpack.c.l.b16 %v691
      %v900 = vunpack.c.l.b16 %v692
      %v901 = vunpack.c.l.b16 %v693
      %v902 = vunpack.c.l.b16 %v694
      %v903 = vunpack.c.l.b16 %v695
      %v904 = vunpack.c.l.b16 %v696
      %v905 = vunpack.c.l.b16 %v697
      %v906 = vunpack.c.l.b16 %v698
      %v907 = vunpack.c.l.b16 %v699
      %v908 = vunpack.c.l.b16 %v700
      %v909 = vunpack.c.l.b16 %v701
      %v910 = vunpack.c.l.b16 %v702
      %v911 = vunpack.c.l.b16 %v703
      %v912 = vunpack.c.l.b16 %v704
      %v913 = vunpack.c.l.b16 %v705
      %v914 = vunpack.c.l.b16 %v706
      %v915 = vunpack.c.l.b16 %v707
      %v916 = vunpack.c.l.b16 %v708
      %v917 = vunpack.c.l.b16 %v709
      %v918 = vunpack.c.l.b16 %v710
      %v919 = vunpack.c.l.b16 %v711
      %v920 = vunpack.c.l.b16 %v712
      %v921 = vunpack.c.l.b16 %v713
      %v922 = vunpack.c.l.b16 %v714
      %v923 = vunpack.c.l.b16 %v715
      %v924 = vunpack.c.l.b16 %v716
      %v925 = vunpack.c.l.b16 %v717
      %v926 = vunpack.c.l.b16 %v718
      %v927 = vunpack.c.l.b16 %v719
      %v928 = vunpack.c.l.b16 %v720
      %v929 = vunpack.c.l.b16 %v721
      %v930 = vunpack.c.l.b16 %v722
      %v931 = vunpack.c.l.b16 %v723
      %v932 = vunpack.c.l.b16 %v724
      %v933 = vunpack.c.l.b16 %v725
      %v934 = vunpack.c.l.b16 %v726
      %v935 = vunpack.c.l.b16 %v727
      %v936 = vunpack.c.l.b16 %v728
      %v937 = vunpack.c.l.b16 %v729
      %v938 = vunpack.c.l.b16 %v730
      %v939 = vunpack.c.l.b16 %v731
      %v940 = vunpack.c.l.b16 %v732
      %v941 = vunpack.c.l.b16 %v733
      %v942 = vunpack.c.l.b16 %v734
      %v943 = vunpack.c.l.b16 %v735
      %v944 = vunpack.c.l.b16 %v736
      %v945 = vunpack.c.l.b16 %v737
      %v946 = vunpack.c.l.b16 %v738
      %v947 = vunpack.c.l.b16 %v739
      %v948 = vunpack.c.l.b16 %v740
      %v949 = vunpack.c.l.b16 %v741
      %v950 = vunpack.c.l.b16 %v742
      %v951 = vunpack.c.l.b16 %v743
      %v952 = vunpack.c.l.b16 %v744
      %v953 = vunpack.c.l.b16 %v745
      %v954 = vunpack.c.l.b16 %v746
      %v955 = vunpack.c.l.b16 %v747
      %v956 = vunpack.c.l.b16 %v748
      %v957 = vpack.c.b16 %v894, %v893
      %v958 = vpack.c.b16 %v896, %v895
      %v959 = vpack.c.b16 %v898, %v897
      %v960 = vpack.c.b16 %v900, %v899
      %v961 = vpack.c.b16 %v902, %v901
      %v962 = vpack.c.b16 %v904, %v903
      %v963 = vpack.c.b16 %v906, %v905
      %v964 = vpack.c.b16 %v908, %v907
      %v965 = vpack.c.b16 %v910, %v909
      %v966 = vpack.c.b16 %v912, %v911
      %v967 = vpack.c.b16 %v914, %v913
      %v968 = vpack.c.b16 %v916, %v915
      %v969 = vpack.c.b16 %v918, %v917
      %v970 = vpack.c.b16 %v920, %v919
      %v971 = vpack.c.b16 %v922, %v921
      %v972 = vpack.c.b16 %v924, %v923
      %v973 = vpack.c.b16 %v926, %v925
      %v974 = vpack.c.b16 %v928, %v927
      %v975 = vpack.c.b16 %v930, %v929
      %v976 = vpack.c.b16 %v932, %v931
      %v977 = vpack.c.b16 %v934, %v933
      %v978 = vpack.c.b16 %v936, %v935
      %v979 = vpack.c.b16 %v938, %v937
      %v980 = vpack.c.b16 %v940, %v939
      %v981 = vpack.c.b16 %v942, %v941
      %v982 = vpack.c.b16 %v944, %v943
      %v983 = vpack.c.b16 %v946, %v945
      %v984 = vpack.c.b16 %v948, %v947
      %v985 = vpack.c.b16 %v950, %v949
      %v986 = vpack.c.b16 %v952, %v951
      %v987 = vpack.c.b16 %v954, %v953
      %v988 = vpack.c.b16 %v956, %v955
      %1021 = vmatprep.subr.bf16.mxu0 0
      %1022 = vmatpush1.bf16.msra.mxu0 %v964
      %1023 = vmatprep.subr.bf16.mxu0 0
      %1024 = vmatpush1.bf16.msra.mxu0 %v963
      %1025 = vmatprep.subr.bf16.mxu0 0
      %1026 = vmatpush1.bf16.msra.mxu0 %v962
      %1027 = vmatprep.subr.bf16.mxu0 0
      %1028 = vmatpush1.bf16.msra.mxu0 %v961
      %1029 = vmatprep.subr.bf16.mxu0 0
      %1030 = vmatpush1.bf16.msra.mxu0 %v960
      %1031 = vmatprep.subr.bf16.mxu0 0
      %1032 = vmatpush1.bf16.msra.mxu0 %v959
      %1033 = vmatprep.subr.bf16.mxu0 0
      %1034 = vmatpush1.bf16.msra.mxu0 %v958
      %1035 = vmatprep.subr.bf16.mxu0 0
      %1036 = vmatpush1.bf16.msra.mxu0 %v957
      %1037 = vmatprep.subr.bf16.mxu0 0
      %1038 = vmatpush2.bf16.msra.mxu0 %v972
      %1039 = vmatprep.subr.bf16.mxu0 0
      %1040 = vmatpush2.bf16.msra.mxu0 %v971
      %1041 = vmatprep.subr.bf16.mxu0 0
      %1042 = vmatpush2.bf16.msra.mxu0 %v970
      %1043 = vmatprep.subr.bf16.mxu0 0
      %1044 = vmatpush2.bf16.msra.mxu0 %v969
      %1045 = vmatprep.subr.bf16.mxu0 0
      %1046 = vmatpush2.bf16.msra.mxu0 %v968
      %1047 = vmatprep.subr.bf16.mxu0 0
      %1048 = vmatpush2.bf16.msra.mxu0 %v967
      %1049 = vmatprep.subr.bf16.mxu0 0
      %1050 = vmatpush2.bf16.msra.mxu0 %v966
      %1051 = vmatprep.subr.bf16.mxu0 0
      %1052 = vmatpush2.bf16.msra.mxu0 %v965
      %1053 = vmatprep.mubr.bf16.mxu0 %v798
      %1054 = vmatmul.mubr.bf16.gmra.mxu0 %v797
      %v1055 = vpop.f32.mrf.mxu0
      %v1056 = vadd.f32 0.0, %v1055
      %v1057 = vpop.f32.mrf.mxu0
      %v1058 = vpop.f32.mrf.mxu0
      %v1059 = vadd.f32 0.0, %v1058
      %v1060 = vpop.f32.mrf.mxu0
      %1061 = vmatprep.mubr.bf16.mxu0 %v802
      %1062 = vmatmul.mubr.bf16.gmra.mxu0 %v801
      %v1063 = vpop.f32.mrf.mxu0
      %v1064 = vadd.f32 0.0, %v1063
      %v1065 = vpop.f32.mrf.mxu0
      %v1066 = vpop.f32.mrf.mxu0
      %v1067 = vadd.f32 0.0, %v1066
      %v1068 = vpop.f32.mrf.mxu0
      %1069 = vmatprep.mubr.bf16.mxu0 %v806
      %1070 = vmatmul.mubr.bf16.gmra.mxu0 %v805
      %v1071 = vpop.f32.mrf.mxu0
      %v1072 = vadd.f32 0.0, %v1071
      %v1073 = vpop.f32.mrf.mxu0
      %v1074 = vpop.f32.mrf.mxu0
      %v1075 = vadd.f32 0.0, %v1074
      %v1076 = vpop.f32.mrf.mxu0
      %1077 = vmatprep.mubr.bf16.mxu0 %v810
      %1078 = vmatmul.mubr.bf16.gmra.mxu0 %v809
      %v1079 = vpop.f32.mrf.mxu0
      %v1080 = vadd.f32 0.0, %v1079
      %v1081 = vpop.f32.mrf.mxu0
      %v1082 = vpop.f32.mrf.mxu0
      %v1083 = vadd.f32 0.0, %v1082
      %v1084 = vpop.f32.mrf.mxu0
      %1085 = vdwg.mxu0
      %1086 = vmatprep.subr.bf16.mxu0 0
      %1087 = vmatpush1.bf16.msra.mxu0 %v980
      %1088 = vmatprep.subr.bf16.mxu0 0
      %1089 = vmatpush1.bf16.msra.mxu0 %v979
      %1090 = vmatprep.subr.bf16.mxu0 0
      %1091 = vmatpush1.bf16.msra.mxu0 %v978
      %1092 = vmatprep.subr.bf16.mxu0 0
      %1093 = vmatpush1.bf16.msra.mxu0 %v977
      %1094 = vmatprep.subr.bf16.mxu0 0
      %1095 = vmatpush1.bf16.msra.mxu0 %v976
      %1096 = vmatprep.subr.bf16.mxu0 0
      %1097 = vmatpush1.bf16.msra.mxu0 %v975
      %1098 = vmatprep.subr.bf16.mxu0 0
      %1099 = vmatpush1.bf16.msra.mxu0 %v974
      %1100 = vmatprep.subr.bf16.mxu0 0
      %1101 = vmatpush1.bf16.msra.mxu0 %v973
      %1102 = vmatprep.subr.bf16.mxu0 0
      %1103 = vmatpush2.bf16.msra.mxu0 %v988
      %1104 = vmatprep.subr.bf16.mxu0 0
      %1105 = vmatpush2.bf16.msra.mxu0 %v987
      %1106 = vmatprep.subr.bf16.mxu0 0
      %1107 = vmatpush2.bf16.msra.mxu0 %v986
      %1108 = vmatprep.subr.bf16.mxu0 0
      %1109 = vmatpush2.bf16.msra.mxu0 %v985
      %1110 = vmatprep.subr.bf16.mxu0 0
      %1111 = vmatpush2.bf16.msra.mxu0 %v984
      %1112 = vmatprep.subr.bf16.mxu0 0
      %1113 = vmatpush2.bf16.msra.mxu0 %v983
      %1114 = vmatprep.subr.bf16.mxu0 0
      %1115 = vmatpush2.bf16.msra.mxu0 %v982
      %1116 = vmatprep.subr.bf16.mxu0 0
      %1117 = vmatpush2.bf16.msra.mxu0 %v981
      %1118 = vmatprep.mubr.bf16.mxu0 %v800
      %1119 = vmatmul.mubr.bf16.gmra.mxu0 %v799
      %v1120 = vpop.f32.mrf.mxu0
      %v1121 = vadd.f32 %v1056, %v1120
      %v1122 = vpop.f32.mrf.mxu0
      %v1123 = vpop.f32.mrf.mxu0
      %v1124 = vadd.f32 %v1059, %v1123
      %v1125 = vpop.f32.mrf.mxu0
      %1126 = vmatprep.mubr.bf16.mxu0 %v804
      %1127 = vmatmul.mubr.bf16.gmra.mxu0 %v803
      %v1128 = vpop.f32.mrf.mxu0
      %v1129 = vadd.f32 %v1064, %v1128
      %v1130 = vpop.f32.mrf.mxu0
      %v1131 = vpop.f32.mrf.mxu0
      %v1132 = vadd.f32 %v1067, %v1131
      %v1133 = vpop.f32.mrf.mxu0
      %1134 = vmatprep.mubr.bf16.mxu0 %v808
      %1135 = vmatmul.mubr.bf16.gmra.mxu0 %v807
      %v1136 = vpop.f32.mrf.mxu0
      %v1137 = vadd.f32 %v1072, %v1136
      %v1138 = vpop.f32.mrf.mxu0
      %v1139 = vpop.f32.mrf.mxu0
      %v1140 = vadd.f32 %v1075, %v1139
      %v1141 = vpop.f32.mrf.mxu0
      %1142 = vmatprep.mubr.bf16.mxu0 %v812
      %1143 = vmatmul.mubr.bf16.gmra.mxu0 %v811
      %v1144 = vpop.f32.mrf.mxu0
      %v1145 = vadd.f32 %v1080, %v1144
      %v1146 = vpop.f32.mrf.mxu0
      %v1147 = vpop.f32.mrf.mxu0
      %v1148 = vadd.f32 %v1083, %v1147
      %v1149 = vpop.f32.mrf.mxu0
      %1150 = vdwg.mxu0
      %v1151 = vadd.f32 %v676, %v1121
      %v1152 = vadd.f32 %v677, %v1124
      %v1153 = vadd.f32 %v678, %v1129
      %v1154 = vadd.f32 %v679, %v1132
      %v1155 = vadd.f32 %v680, %v1137
      %v1156 = vadd.f32 %v681, %v1140
      %v1157 = vadd.f32 %v682, %v1145
      %v1158 = vadd.f32 %v683, %v1148
      %1159 = vst [vmem:[#allocation2] sm:$0xff] %v1151
      %1160 = vst [vmem:[#allocation2 + $0x8] sm:$0xff] %v1152
      %1161 = vst [vmem:[#allocation2 + $0x10] sm:$0xff] %v1153
      %1162 = vst [vmem:[#allocation2 + $0x18] sm:$0xff] %v1154
      %1163 = vst [vmem:[#allocation2 + $0x20] sm:$0xff] %v1155
      %1164 = vst [vmem:[#allocation2 + $0x28] sm:$0xff] %v1156
      %1165 = vst [vmem:[#allocation2 + $0x30] sm:$0xff] %v1157
      %1166 = vst [vmem:[#allocation2 + $0x38] sm:$0xff] %v1158
      %v1167 = vld [vmem:[%s138 + $0x10] sm:$0xff]
      %v1168 = vld [vmem:[%s138 + $0x18] sm:$0xff]
      %v1169 = vld [vmem:[%s138 + $0x20] sm:$0xff]
      %v1170 = vld [vmem:[%s138 + $0x28] sm:$0xff]
      %v1171 = vld [vmem:[%s138 + $0x30] sm:$0xff]
      %v1172 = vld [vmem:[%s138 + $0x38] sm:$0xff]
      %v1173 = vld [vmem:[%s138 + $0x40] sm:$0xff]
      %v1174 = vld [vmem:[%s138 + $0x48] sm:$0xff]
      %v1175 = vld [vmem:[%s138 + $0x50] sm:$0xff]
      %v1176 = vld [vmem:[%s138 + $0x58] sm:$0xff]
      %v1177 = vld [vmem:[%s138 + $0x60] sm:$0xff]
      %v1178 = vld [vmem:[%s138 + $0x68] sm:$0xff]
      %v1179 = vld [vmem:[%s138 + $0x70] sm:$0xff]
      %v1180 = vld [vmem:[%s138 + $0x78] sm:$0xff]
      %v1181 = vld [vmem:[%s138 + $0x80] sm:$0xff]
      %v1182 = vld [vmem:[%s138 + $0x88] sm:$0xff]
      %v1183 = vld [vmem:[#allocation2] sm:$0xff]
      %v1184 = vld [vmem:[#allocation2 + $0x8] sm:$0xff]
      %v1185 = vld [vmem:[#allocation2 + $0x10] sm:$0xff]
      %v1186 = vld [vmem:[#allocation2 + $0x18] sm:$0xff]
      %v1187 = vld [vmem:[#allocation2 + $0x20] sm:$0xff]
      %v1188 = vld [vmem:[#allocation2 + $0x28] sm:$0xff]
      %v1189 = vld [vmem:[#allocation2 + $0x30] sm:$0xff]
      %v1190 = vld [vmem:[#allocation2 + $0x38] sm:$0xff]
      %s1191 = scalar_lea.vmem %s1, 512
      %v1192 = vld [vmem:[%s1191] sm:$0xf]
      %v1193 = vld [vmem:[%s1191 + $0x4] sm:$0xf]
      %v1194 = vld [vmem:[%s1191 + $0x8] sm:$0xf]
      %v1195 = vld [vmem:[%s1191 + $0xc] sm:$0xf]
      %v1196 = vld [vmem:[%s1191 + $0x10] sm:$0xf]
      %v1197 = vld [vmem:[%s1191 + $0x14] sm:$0xf]
      %v1198 = vld [vmem:[%s1191 + $0x18] sm:$0xf]
      %v1199 = vld [vmem:[%s1191 + $0x1c] sm:$0xf]
      %v1200 = vld [vmem:[%s1191 + $0x20] sm:$0xf]
      %v1201 = vld [vmem:[%s1191 + $0x24] sm:$0xf]
      %v1202 = vld [vmem:[%s1191 + $0x28] sm:$0xf]
      %v1203 = vld [vmem:[%s1191 + $0x2c] sm:$0xf]
      %v1204 = vld [vmem:[%s1191 + $0x30] sm:$0xf]
      %v1205 = vld [vmem:[%s1191 + $0x34] sm:$0xf]
      %v1206 = vld [vmem:[%s1191 + $0x38] sm:$0xf]
      %v1207 = vld [vmem:[%s1191 + $0x3c] sm:$0xf]
      %v1208 = vld [vmem:[%s1191 + $0x40] sm:$0xf]
      %v1209 = vld [vmem:[%s1191 + $0x44] sm:$0xf]
      %v1210 = vld [vmem:[%s1191 + $0x48] sm:$0xf]
      %v1211 = vld [vmem:[%s1191 + $0x4c] sm:$0xf]
      %v1212 = vld [vmem:[%s1191 + $0x50] sm:$0xf]
      %v1213 = vld [vmem:[%s1191 + $0x54] sm:$0xf]
      %v1214 = vld [vmem:[%s1191 + $0x58] sm:$0xf]
      %v1215 = vld [vmem:[%s1191 + $0x5c] sm:$0xf]
      %v1216 = vld [vmem:[%s1191 + $0x60] sm:$0xf]
      %v1217 = vld [vmem:[%s1191 + $0x64] sm:$0xf]
      %v1218 = vld [vmem:[%s1191 + $0x68] sm:$0xf]
      %v1219 = vld [vmem:[%s1191 + $0x6c] sm:$0xf]
      %v1220 = vld [vmem:[%s1191 + $0x70] sm:$0xf]
      %v1221 = vld [vmem:[%s1191 + $0x74] sm:$0xf]
      %v1222 = vld [vmem:[%s1191 + $0x78] sm:$0xf]
      %v1223 = vld [vmem:[%s1191 + $0x7c] sm:$0xf]
      %v1224 = vld [vmem:[%s1191 + $0x80] sm:$0xf]
      %v1225 = vld [vmem:[%s1191 + $0x84] sm:$0xf]
      %v1226 = vld [vmem:[%s1191 + $0x88] sm:$0xf]
      %v1227 = vld [vmem:[%s1191 + $0x8c] sm:$0xf]
      %v1228 = vld [vmem:[%s1191 + $0x90] sm:$0xf]
      %v1229 = vld [vmem:[%s1191 + $0x94] sm:$0xf]
      %v1230 = vld [vmem:[%s1191 + $0x98] sm:$0xf]
      %v1231 = vld [vmem:[%s1191 + $0x9c] sm:$0xf]
      %v1232 = vld [vmem:[%s1191 + $0xa0] sm:$0xf]
      %v1233 = vld [vmem:[%s1191 + $0xa4] sm:$0xf]
      %v1234 = vld [vmem:[%s1191 + $0xa8] sm:$0xf]
      %v1235 = vld [vmem:[%s1191 + $0xac] sm:$0xf]
      %v1236 = vld [vmem:[%s1191 + $0xb0] sm:$0xf]
      %v1237 = vld [vmem:[%s1191 + $0xb4] sm:$0xf]
      %v1238 = vld [vmem:[%s1191 + $0xb8] sm:$0xf]
      %v1239 = vld [vmem:[%s1191 + $0xbc] sm:$0xf]
      %v1240 = vld [vmem:[%s1191 + $0xc0] sm:$0xf]
      %v1241 = vld [vmem:[%s1191 + $0xc4] sm:$0xf]
      %v1242 = vld [vmem:[%s1191 + $0xc8] sm:$0xf]
      %v1243 = vld [vmem:[%s1191 + $0xcc] sm:$0xf]
      %v1244 = vld [vmem:[%s1191 + $0xd0] sm:$0xf]
      %v1245 = vld [vmem:[%s1191 + $0xd4] sm:$0xf]
      %v1246 = vld [vmem:[%s1191 + $0xd8] sm:$0xf]
      %v1247 = vld [vmem:[%s1191 + $0xdc] sm:$0xf]
      %v1248 = vld [vmem:[%s1191 + $0xe0] sm:$0xf]
      %v1249 = vld [vmem:[%s1191 + $0xe4] sm:$0xf]
      %v1250 = vld [vmem:[%s1191 + $0xe8] sm:$0xf]
      %v1251 = vld [vmem:[%s1191 + $0xec] sm:$0xf]
      %v1252 = vld [vmem:[%s1191 + $0xf0] sm:$0xf]
      %v1253 = vld [vmem:[%s1191 + $0xf4] sm:$0xf]
      %v1254 = vld [vmem:[%s1191 + $0xf8] sm:$0xf]
      %v1255 = vld [vmem:[%s1191 + $0xfc] sm:$0xf]
      %v1272 = vunpack.c.l.b16 %v1167
      %v1273 = vunpack.c.h.b16 %v1167
      %v1274 = vunpack.c.l.b16 %v1168
      %v1275 = vunpack.c.h.b16 %v1168
      %v1276 = vunpack.c.l.b16 %v1169
      %v1277 = vunpack.c.h.b16 %v1169
      %v1278 = vunpack.c.l.b16 %v1170
      %v1279 = vunpack.c.h.b16 %v1170
      %v1280 = vunpack.c.l.b16 %v1171
      %v1281 = vunpack.c.h.b16 %v1171
      %v1282 = vunpack.c.l.b16 %v1172
      %v1283 = vunpack.c.h.b16 %v1172
      %v1284 = vunpack.c.l.b16 %v1173
      %v1285 = vunpack.c.h.b16 %v1173
      %v1286 = vunpack.c.l.b16 %v1174
      %v1287 = vunpack.c.h.b16 %v1174
      %v1288 = vunpack.c.l.b16 %v1175
      %v1289 = vunpack.c.h.b16 %v1175
      %v1290 = vunpack.c.l.b16 %v1176
      %v1291 = vunpack.c.h.b16 %v1176
      %v1292 = vunpack.c.l.b16 %v1177
      %v1293 = vunpack.c.h.b16 %v1177
      %v1294 = vunpack.c.l.b16 %v1178
      %v1295 = vunpack.c.h.b16 %v1178
      %v1296 = vunpack.c.l.b16 %v1179
      %v1297 = vunpack.c.h.b16 %v1179
      %v1298 = vunpack.c.l.b16 %v1180
      %v1299 = vunpack.c.h.b16 %v1180
      %v1300 = vunpack.c.l.b16 %v1181
      %v1301 = vunpack.c.h.b16 %v1181
      %v1302 = vunpack.c.l.b16 %v1182
      %v1303 = vunpack.c.h.b16 %v1182
      %v1304 = vpack.c.b16 %v1276, %v1272
      %v1305 = vpack.c.b16 %v1277, %v1273
      %v1306 = vpack.c.b16 %v1278, %v1274
      %v1307 = vpack.c.b16 %v1279, %v1275
      %v1308 = vpack.c.b16 %v1284, %v1280
      %v1309 = vpack.c.b16 %v1285, %v1281
      %v1310 = vpack.c.b16 %v1286, %v1282
      %v1311 = vpack.c.b16 %v1287, %v1283
      %v1312 = vpack.c.b16 %v1292, %v1288
      %v1313 = vpack.c.b16 %v1293, %v1289
      %v1314 = vpack.c.b16 %v1294, %v1290
      %v1315 = vpack.c.b16 %v1295, %v1291
      %v1316 = vpack.c.b16 %v1300, %v1296
      %v1317 = vpack.c.b16 %v1301, %v1297
      %v1318 = vpack.c.b16 %v1302, %v1298
      %v1319 = vpack.c.b16 %v1303, %v1299
      %v1400 = vunpack.c.l.b16 %v1192
      %v1401 = vunpack.c.l.b16 %v1193
      %v1402 = vunpack.c.l.b16 %v1194
      %v1403 = vunpack.c.l.b16 %v1195
      %v1404 = vunpack.c.l.b16 %v1196
      %v1405 = vunpack.c.l.b16 %v1197
      %v1406 = vunpack.c.l.b16 %v1198
      %v1407 = vunpack.c.l.b16 %v1199
      %v1408 = vunpack.c.l.b16 %v1200
      %v1409 = vunpack.c.l.b16 %v1201
      %v1410 = vunpack.c.l.b16 %v1202
      %v1411 = vunpack.c.l.b16 %v1203
      %v1412 = vunpack.c.l.b16 %v1204
      %v1413 = vunpack.c.l.b16 %v1205
      %v1414 = vunpack.c.l.b16 %v1206
      %v1415 = vunpack.c.l.b16 %v1207
      %v1416 = vunpack.c.l.b16 %v1208
      %v1417 = vunpack.c.l.b16 %v1209
      %v1418 = vunpack.c.l.b16 %v1210
      %v1419 = vunpack.c.l.b16 %v1211
      %v1420 = vunpack.c.l.b16 %v1212
      %v1421 = vunpack.c.l.b16 %v1213
      %v1422 = vunpack.c.l.b16 %v1214
      %v1423 = vunpack.c.l.b16 %v1215
      %v1424 = vunpack.c.l.b16 %v1216
      %v1425 = vunpack.c.l.b16 %v1217
      %v1426 = vunpack.c.l.b16 %v1218
      %v1427 = vunpack.c.l.b16 %v1219
      %v1428 = vunpack.c.l.b16 %v1220
      %v1429 = vunpack.c.l.b16 %v1221
      %v1430 = vunpack.c.l.b16 %v1222
      %v1431 = vunpack.c.l.b16 %v1223
      %v1432 = vunpack.c.l.b16 %v1224
      %v1433 = vunpack.c.l.b16 %v1225
      %v1434 = vunpack.c.l.b16 %v1226
      %v1435 = vunpack.c.l.b16 %v1227
      %v1436 = vunpack.c.l.b16 %v1228
      %v1437 = vunpack.c.l.b16 %v1229
      %v1438 = vunpack.c.l.b16 %v1230
      %v1439 = vunpack.c.l.b16 %v1231
      %v1440 = vunpack.c.l.b16 %v1232
      %v1441 = vunpack.c.l.b16 %v1233
      %v1442 = vunpack.c.l.b16 %v1234
      %v1443 = vunpack.c.l.b16 %v1235
      %v1444 = vunpack.c.l.b16 %v1236
      %v1445 = vunpack.c.l.b16 %v1237
      %v1446 = vunpack.c.l.b16 %v1238
      %v1447 = vunpack.c.l.b16 %v1239
      %v1448 = vunpack.c.l.b16 %v1240
      %v1449 = vunpack.c.l.b16 %v1241
      %v1450 = vunpack.c.l.b16 %v1242
      %v1451 = vunpack.c.l.b16 %v1243
      %v1452 = vunpack.c.l.b16 %v1244
      %v1453 = vunpack.c.l.b16 %v1245
      %v1454 = vunpack.c.l.b16 %v1246
      %v1455 = vunpack.c.l.b16 %v1247
      %v1456 = vunpack.c.l.b16 %v1248
      %v1457 = vunpack.c.l.b16 %v1249
      %v1458 = vunpack.c.l.b16 %v1250
      %v1459 = vunpack.c.l.b16 %v1251
      %v1460 = vunpack.c.l.b16 %v1252
      %v1461 = vunpack.c.l.b16 %v1253
      %v1462 = vunpack.c.l.b16 %v1254
      %v1463 = vunpack.c.l.b16 %v1255
      %v1464 = vpack.c.b16 %v1401, %v1400
      %v1465 = vpack.c.b16 %v1403, %v1402
      %v1466 = vpack.c.b16 %v1405, %v1404
      %v1467 = vpack.c.b16 %v1407, %v1406
      %v1468 = vpack.c.b16 %v1409, %v1408
      %v1469 = vpack.c.b16 %v1411, %v1410
      %v1470 = vpack.c.b16 %v1413, %v1412
      %v1471 = vpack.c.b16 %v1415, %v1414
      %v1472 = vpack.c.b16 %v1417, %v1416
      %v1473 = vpack.c.b16 %v1419, %v1418
      %v1474 = vpack.c.b16 %v1421, %v1420
      %v1475 = vpack.c.b16 %v1423, %v1422
      %v1476 = vpack.c.b16 %v1425, %v1424
      %v1477 = vpack.c.b16 %v1427, %v1426
      %v1478 = vpack.c.b16 %v1429, %v1428
      %v1479 = vpack.c.b16 %v1431, %v1430
      %v1480 = vpack.c.b16 %v1433, %v1432
      %v1481 = vpack.c.b16 %v1435, %v1434
      %v1482 = vpack.c.b16 %v1437, %v1436
      %v1483 = vpack.c.b16 %v1439, %v1438
      %v1484 = vpack.c.b16 %v1441, %v1440
      %v1485 = vpack.c.b16 %v1443, %v1442
      %v1486 = vpack.c.b16 %v1445, %v1444
      %v1487 = vpack.c.b16 %v1447, %v1446
      %v1488 = vpack.c.b16 %v1449, %v1448
      %v1489 = vpack.c.b16 %v1451, %v1450
      %v1490 = vpack.c.b16 %v1453, %v1452
      %v1491 = vpack.c.b16 %v1455, %v1454
      %v1492 = vpack.c.b16 %v1457, %v1456
      %v1493 = vpack.c.b16 %v1459, %v1458
      %v1494 = vpack.c.b16 %v1461, %v1460
      %v1495 = vpack.c.b16 %v1463, %v1462
      %1528 = vmatprep.subr.bf16.mxu0 0
      %1529 = vmatpush1.bf16.msra.mxu0 %v1471
      %1530 = vmatprep.subr.bf16.mxu0 0
      %1531 = vmatpush1.bf16.msra.mxu0 %v1470
      %1532 = vmatprep.subr.bf16.mxu0 0
      %1533 = vmatpush1.bf16.msra.mxu0 %v1469
      %1534 = vmatprep.subr.bf16.mxu0 0
      %1535 = vmatpush1.bf16.msra.mxu0 %v1468
      %1536 = vmatprep.subr.bf16.mxu0 0
      %1537 = vmatpush1.bf16.msra.mxu0 %v1467
      %1538 = vmatprep.subr.bf16.mxu0 0
      %1539 = vmatpush1.bf16.msra.mxu0 %v1466
      %1540 = vmatprep.subr.bf16.mxu0 0
      %1541 = vmatpush1.bf16.msra.mxu0 %v1465
      %1542 = vmatprep.subr.bf16.mxu0 0
      %1543 = vmatpush1.bf16.msra.mxu0 %v1464
      %1544 = vmatprep.subr.bf16.mxu0 0
      %1545 = vmatpush2.bf16.msra.mxu0 %v1479
      %1546 = vmatprep.subr.bf16.mxu0 0
      %1547 = vmatpush2.bf16.msra.mxu0 %v1478
      %1548 = vmatprep.subr.bf16.mxu0 0
      %1549 = vmatpush2.bf16.msra.mxu0 %v1477
      %1550 = vmatprep.subr.bf16.mxu0 0
      %1551 = vmatpush2.bf16.msra.mxu0 %v1476
      %1552 = vmatprep.subr.bf16.mxu0 0
      %1553 = vmatpush2.bf16.msra.mxu0 %v1475
      %1554 = vmatprep.subr.bf16.mxu0 0
      %1555 = vmatpush2.bf16.msra.mxu0 %v1474
      %1556 = vmatprep.subr.bf16.mxu0 0
      %1557 = vmatpush2.bf16.msra.mxu0 %v1473
      %1558 = vmatprep.subr.bf16.mxu0 0
      %1559 = vmatpush2.bf16.msra.mxu0 %v1472
      %1560 = vmatprep.mubr.bf16.mxu0 %v1305
      %1561 = vmatmul.mubr.bf16.gmra.mxu0 %v1304
      %v1562 = vpop.f32.mrf.mxu0
      %v1563 = vadd.f32 0.0, %v1562
      %v1564 = vpop.f32.mrf.mxu0
      %v1565 = vpop.f32.mrf.mxu0
      %v1566 = vadd.f32 0.0, %v1565
      %v1567 = vpop.f32.mrf.mxu0
      %1568 = vmatprep.mubr.bf16.mxu0 %v1309
      %1569 = vmatmul.mubr.bf16.gmra.mxu0 %v1308
      %v1570 = vpop.f32.mrf.mxu0
      %v1571 = vadd.f32 0.0, %v1570
      %v1572 = vpop.f32.mrf.mxu0
      %v1573 = vpop.f32.mrf.mxu0
      %v1574 = vadd.f32 0.0, %v1573
      %v1575 = vpop.f32.mrf.mxu0
      %1576 = vmatprep.mubr.bf16.mxu0 %v1313
      %1577 = vmatmul.mubr.bf16.gmra.mxu0 %v1312
      %v1578 = vpop.f32.mrf.mxu0
      %v1579 = vadd.f32 0.0, %v1578
      %v1580 = vpop.f32.mrf.mxu0
      %v1581 = vpop.f32.mrf.mxu0
      %v1582 = vadd.f32 0.0, %v1581
      %v1583 = vpop.f32.mrf.mxu0
      %1584 = vmatprep.mubr.bf16.mxu0 %v1317
      %1585 = vmatmul.mubr.bf16.gmra.mxu0 %v1316
      %v1586 = vpop.f32.mrf.mxu0
      %v1587 = vadd.f32 0.0, %v1586
      %v1588 = vpop.f32.mrf.mxu0
      %v1589 = vpop.f32.mrf.mxu0
      %v1590 = vadd.f32 0.0, %v1589
      %v1591 = vpop.f32.mrf.mxu0
      %1592 = vdwg.mxu0
      %1593 = vmatprep.subr.bf16.mxu0 0
      %1594 = vmatpush1.bf16.msra.mxu0 %v1487
      %1595 = vmatprep.subr.bf16.mxu0 0
      %1596 = vmatpush1.bf16.msra.mxu0 %v1486
      %1597 = vmatprep.subr.bf16.mxu0 0
      %1598 = vmatpush1.bf16.msra.mxu0 %v1485
      %1599 = vmatprep.subr.bf16.mxu0 0
      %1600 = vmatpush1.bf16.msra.mxu0 %v1484
      %1601 = vmatprep.subr.bf16.mxu0 0
      %1602 = vmatpush1.bf16.msra.mxu0 %v1483
      %1603 = vmatprep.subr.bf16.mxu0 0
      %1604 = vmatpush1.bf16.msra.mxu0 %v1482
      %1605 = vmatprep.subr.bf16.mxu0 0
      %1606 = vmatpush1.bf16.msra.mxu0 %v1481
      %1607 = vmatprep.subr.bf16.mxu0 0
      %1608 = vmatpush1.bf16.msra.mxu0 %v1480
      %1609 = vmatprep.subr.bf16.mxu0 0
      %1610 = vmatpush2.bf16.msra.mxu0 %v1495
      %1611 = vmatprep.subr.bf16.mxu0 0
      %1612 = vmatpush2.bf16.msra.mxu0 %v1494
      %1613 = vmatprep.subr.bf16.mxu0 0
      %1614 = vmatpush2.bf16.msra.mxu0 %v1493
      %1615 = vmatprep.subr.bf16.mxu0 0
      %1616 = vmatpush2.bf16.msra.mxu0 %v1492
      %1617 = vmatprep.subr.bf16.mxu0 0
      %1618 = vmatpush2.bf16.msra.mxu0 %v1491
      %1619 = vmatprep.subr.bf16.mxu0 0
      %1620 = vmatpush2.bf16.msra.mxu0 %v1490
      %1621 = vmatprep.subr.bf16.mxu0 0
      %1622 = vmatpush2.bf16.msra.mxu0 %v1489
      %1623 = vmatprep.subr.bf16.mxu0 0
      %1624 = vmatpush2.bf16.msra.mxu0 %v1488
      %1625 = vmatprep.mubr.bf16.mxu0 %v1307
      %1626 = vmatmul.mubr.bf16.gmra.mxu0 %v1306
      %v1627 = vpop.f32.mrf.mxu0
      %v1628 = vadd.f32 %v1563, %v1627
      %v1629 = vpop.f32.mrf.mxu0
      %v1630 = vpop.f32.mrf.mxu0
      %v1631 = vadd.f32 %v1566, %v1630
      %v1632 = vpop.f32.mrf.mxu0
      %1633 = vmatprep.mubr.bf16.mxu0 %v1311
      %1634 = vmatmul.mubr.bf16.gmra.mxu0 %v1310
      %v1635 = vpop.f32.mrf.mxu0
      %v1636 = vadd.f32 %v1571, %v1635
      %v1637 = vpop.f32.mrf.mxu0
      %v1638 = vpop.f32.mrf.mxu0
      %v1639 = vadd.f32 %v1574, %v1638
      %v1640 = vpop.f32.mrf.mxu0
      %1641 = vmatprep.mubr.bf16.mxu0 %v1315
      %1642 = vmatmul.mubr.bf16.gmra.mxu0 %v1314
      %v1643 = vpop.f32.mrf.mxu0
      %v1644 = vadd.f32 %v1579, %v1643
      %v1645 = vpop.f32.mrf.mxu0
      %v1646 = vpop.f32.mrf.mxu0
      %v1647 = vadd.f32 %v1582, %v1646
      %v1648 = vpop.f32.mrf.mxu0
      %1649 = vmatprep.mubr.bf16.mxu0 %v1319
      %1650 = vmatmul.mubr.bf16.gmra.mxu0 %v1318
      %v1651 = vpop.f32.mrf.mxu0
      %v1652 = vadd.f32 %v1587, %v1651
      %v1653 = vpop.f32.mrf.mxu0
      %v1654 = vpop.f32.mrf.mxu0
      %v1655 = vadd.f32 %v1590, %v1654
      %v1656 = vpop.f32.mrf.mxu0
      %1657 = vdwg.mxu0
      %v1658 = vadd.f32 %v1183, %v1628
      %v1659 = vadd.f32 %v1184, %v1631
      %v1660 = vadd.f32 %v1185, %v1636
      %v1661 = vadd.f32 %v1186, %v1639
      %v1662 = vadd.f32 %v1187, %v1644
      %v1663 = vadd.f32 %v1188, %v1647
      %v1664 = vadd.f32 %v1189, %v1652
      %v1665 = vadd.f32 %v1190, %v1655
      %1666 = vst [vmem:[#allocation2] sm:$0xff] %v1658
      %1667 = vst [vmem:[#allocation2 + $0x8] sm:$0xff] %v1659
      %1668 = vst [vmem:[#allocation2 + $0x10] sm:$0xff] %v1660
      %1669 = vst [vmem:[#allocation2 + $0x18] sm:$0xff] %v1661
      %1670 = vst [vmem:[#allocation2 + $0x20] sm:$0xff] %v1662
      %1671 = vst [vmem:[#allocation2 + $0x28] sm:$0xff] %v1663
      %1672 = vst [vmem:[#allocation2 + $0x30] sm:$0xff] %v1664
      %1673 = vst [vmem:[#allocation2 + $0x38] sm:$0xff] %v1665
      %v1674 = vld [vmem:[%s659 + $0x10] sm:$0xff]
      %v1675 = vld [vmem:[%s659 + $0x18] sm:$0xff]
      %v1676 = vld [vmem:[%s659 + $0x20] sm:$0xff]
      %v1677 = vld [vmem:[%s659 + $0x28] sm:$0xff]
      %v1678 = vld [vmem:[%s659 + $0x30] sm:$0xff]
      %v1679 = vld [vmem:[%s659 + $0x38] sm:$0xff]
      %v1680 = vld [vmem:[%s659 + $0x40] sm:$0xff]
      %v1681 = vld [vmem:[%s659 + $0x48] sm:$0xff]
      %v1682 = vld [vmem:[%s659 + $0x50] sm:$0xff]
      %v1683 = vld [vmem:[%s659 + $0x58] sm:$0xff]
      %v1684 = vld [vmem:[%s659 + $0x60] sm:$0xff]
      %v1685 = vld [vmem:[%s659 + $0x68] sm:$0xff]
      %v1686 = vld [vmem:[%s659 + $0x70] sm:$0xff]
      %v1687 = vld [vmem:[%s659 + $0x78] sm:$0xff]
      %v1688 = vld [vmem:[%s659 + $0x80] sm:$0xff]
      %v1689 = vld [vmem:[%s659 + $0x88] sm:$0xff]
      %v1690 = vld [vmem:[#allocation2] sm:$0xff]
      %v1691 = vld [vmem:[#allocation2 + $0x8] sm:$0xff]
      %v1692 = vld [vmem:[#allocation2 + $0x10] sm:$0xff]
      %v1693 = vld [vmem:[#allocation2 + $0x18] sm:$0xff]
      %v1694 = vld [vmem:[#allocation2 + $0x20] sm:$0xff]
      %v1695 = vld [vmem:[#allocation2 + $0x28] sm:$0xff]
      %v1696 = vld [vmem:[#allocation2 + $0x30] sm:$0xff]
      %v1697 = vld [vmem:[#allocation2 + $0x38] sm:$0xff]
      %s1698 = scalar_lea.vmem %s1, 768
      %v1699 = vld [vmem:[%s1698] sm:$0xf]
      %v1700 = vld [vmem:[%s1698 + $0x4] sm:$0xf]
      %v1701 = vld [vmem:[%s1698 + $0x8] sm:$0xf]
      %v1702 = vld [vmem:[%s1698 + $0xc] sm:$0xf]
      %v1703 = vld [vmem:[%s1698 + $0x10] sm:$0xf]
      %v1704 = vld [vmem:[%s1698 + $0x14] sm:$0xf]
      %v1705 = vld [vmem:[%s1698 + $0x18] sm:$0xf]
      %v1706 = vld [vmem:[%s1698 + $0x1c] sm:$0xf]
      %v1707 = vld [vmem:[%s1698 + $0x20] sm:$0xf]
      %v1708 = vld [vmem:[%s1698 + $0x24] sm:$0xf]
      %v1709 = vld [vmem:[%s1698 + $0x28] sm:$0xf]
      %v1710 = vld [vmem:[%s1698 + $0x2c] sm:$0xf]
      %v1711 = vld [vmem:[%s1698 + $0x30] sm:$0xf]
      %v1712 = vld [vmem:[%s1698 + $0x34] sm:$0xf]
      %v1713 = vld [vmem:[%s1698 + $0x38] sm:$0xf]
      %v1714 = vld [vmem:[%s1698 + $0x3c] sm:$0xf]
      %v1715 = vld [vmem:[%s1698 + $0x40] sm:$0xf]
      %v1716 = vld [vmem:[%s1698 + $0x44] sm:$0xf]
      %v1717 = vld [vmem:[%s1698 + $0x48] sm:$0xf]
      %v1718 = vld [vmem:[%s1698 + $0x4c] sm:$0xf]
      %v1719 = vld [vmem:[%s1698 + $0x50] sm:$0xf]
      %v1720 = vld [vmem:[%s1698 + $0x54] sm:$0xf]
      %v1721 = vld [vmem:[%s1698 + $0x58] sm:$0xf]
      %v1722 = vld [vmem:[%s1698 + $0x5c] sm:$0xf]
      %v1723 = vld [vmem:[%s1698 + $0x60] sm:$0xf]
      %v1724 = vld [vmem:[%s1698 + $0x64] sm:$0xf]
      %v1725 = vld [vmem:[%s1698 + $0x68] sm:$0xf]
      %v1726 = vld [vmem:[%s1698 + $0x6c] sm:$0xf]
      %v1727 = vld [vmem:[%s1698 + $0x70] sm:$0xf]
      %v1728 = vld [vmem:[%s1698 + $0x74] sm:$0xf]
      %v1729 = vld [vmem:[%s1698 + $0x78] sm:$0xf]
      %v1730 = vld [vmem:[%s1698 + $0x7c] sm:$0xf]
      %v1731 = vld [vmem:[%s1698 + $0x80] sm:$0xf]
      %v1732 = vld [vmem:[%s1698 + $0x84] sm:$0xf]
      %v1733 = vld [vmem:[%s1698 + $0x88] sm:$0xf]
      %v1734 = vld [vmem:[%s1698 + $0x8c] sm:$0xf]
      %v1735 = vld [vmem:[%s1698 + $0x90] sm:$0xf]
      %v1736 = vld [vmem:[%s1698 + $0x94] sm:$0xf]
      %v1737 = vld [vmem:[%s1698 + $0x98] sm:$0xf]
      %v1738 = vld [vmem:[%s1698 + $0x9c] sm:$0xf]
      %v1739 = vld [vmem:[%s1698 + $0xa0] sm:$0xf]
      %v1740 = vld [vmem:[%s1698 + $0xa4] sm:$0xf]
      %v1741 = vld [vmem:[%s1698 + $0xa8] sm:$0xf]
      %v1742 = vld [vmem:[%s1698 + $0xac] sm:$0xf]
      %v1743 = vld [vmem:[%s1698 + $0xb0] sm:$0xf]
      %v1744 = vld [vmem:[%s1698 + $0xb4] sm:$0xf]
      %v1745 = vld [vmem:[%s1698 + $0xb8] sm:$0xf]
      %v1746 = vld [vmem:[%s1698 + $0xbc] sm:$0xf]
      %v1747 = vld [vmem:[%s1698 + $0xc0] sm:$0xf]
      %v1748 = vld [vmem:[%s1698 + $0xc4] sm:$0xf]
      %v1749 = vld [vmem:[%s1698 + $0xc8] sm:$0xf]
      %v1750 = vld [vmem:[%s1698 + $0xcc] sm:$0xf]
      %v1751 = vld [vmem:[%s1698 + $0xd0] sm:$0xf]
      %v1752 = vld [vmem:[%s1698 + $0xd4] sm:$0xf]
      %v1753 = vld [vmem:[%s1698 + $0xd8] sm:$0xf]
      %v1754 = vld [vmem:[%s1698 + $0xdc] sm:$0xf]
      %v1755 = vld [vmem:[%s1698 + $0xe0] sm:$0xf]
      %v1756 = vld [vmem:[%s1698 + $0xe4] sm:$0xf]
      %v1757 = vld [vmem:[%s1698 + $0xe8] sm:$0xf]
      %v1758 = vld [vmem:[%s1698 + $0xec] sm:$0xf]
      %v1759 = vld [vmem:[%s1698 + $0xf0] sm:$0xf]
      %v1760 = vld [vmem:[%s1698 + $0xf4] sm:$0xf]
      %v1761 = vld [vmem:[%s1698 + $0xf8] sm:$0xf]
      %v1762 = vld [vmem:[%s1698 + $0xfc] sm:$0xf]
      %v1779 = vunpack.c.l.b16 %v1674
      %v1780 = vunpack.c.h.b16 %v1674
      %v1781 = vunpack.c.l.b16 %v1675
      %v1782 = vunpack.c.h.b16 %v1675
      %v1783 = vunpack.c.l.b16 %v1676
      %v1784 = vunpack.c.h.b16 %v1676
      %v1785 = vunpack.c.l.b16 %v1677
      %v1786 = vunpack.c.h.b16 %v1677
      %v1787 = vunpack.c.l.b16 %v1678
      %v1788 = vunpack.c.h.b16 %v1678
      %v1789 = vunpack.c.l.b16 %v1679
      %v1790 = vunpack.c.h.b16 %v1679
      %v1791 = vunpack.c.l.b16 %v1680
      %v1792 = vunpack.c.h.b16 %v1680
      %v1793 = vunpack.c.l.b16 %v1681
      %v1794 = vunpack.c.h.b16 %v1681
      %v1795 = vunpack.c.l.b16 %v1682
      %v1796 = vunpack.c.h.b16 %v1682
      %v1797 = vunpack.c.l.b16 %v1683
      %v1798 = vunpack.c.h.b16 %v1683
      %v1799 = vunpack.c.l.b16 %v1684
      %v1800 = vunpack.c.h.b16 %v1684
      %v1801 = vunpack.c.l.b16 %v1685
      %v1802 = vunpack.c.h.b16 %v1685
      %v1803 = vunpack.c.l.b16 %v1686
      %v1804 = vunpack.c.h.b16 %v1686
      %v1805 = vunpack.c.l.b16 %v1687
      %v1806 = vunpack.c.h.b16 %v1687
      %v1807 = vunpack.c.l.b16 %v1688
      %v1808 = vunpack.c.h.b16 %v1688
      %v1809 = vunpack.c.l.b16 %v1689
      %v1810 = vunpack.c.h.b16 %v1689
      %v1811 = vpack.c.b16 %v1783, %v1779
      %v1812 = vpack.c.b16 %v1784, %v1780
      %v1813 = vpack.c.b16 %v1785, %v1781
      %v1814 = vpack.c.b16 %v1786, %v1782
      %v1815 = vpack.c.b16 %v1791, %v1787
      %v1816 = vpack.c.b16 %v1792, %v1788
      %v1817 = vpack.c.b16 %v1793, %v1789
      %v1818 = vpack.c.b16 %v1794, %v1790
      %v1819 = vpack.c.b16 %v1799, %v1795
      %v1820 = vpack.c.b16 %v1800, %v1796
      %v1821 = vpack.c.b16 %v1801, %v1797
      %v1822 = vpack.c.b16 %v1802, %v1798
      %v1823 = vpack.c.b16 %v1807, %v1803
      %v1824 = vpack.c.b16 %v1808, %v1804
      %v1825 = vpack.c.b16 %v1809, %v1805
      %v1826 = vpack.c.b16 %v1810, %v1806
      %v1907 = vunpack.c.l.b16 %v1699
      %v1908 = vunpack.c.l.b16 %v1700
      %v1909 = vunpack.c.l.b16 %v1701
      %v1910 = vunpack.c.l.b16 %v1702
      %v1911 = vunpack.c.l.b16 %v1703
      %v1912 = vunpack.c.l.b16 %v1704
      %v1913 = vunpack.c.l.b16 %v1705
      %v1914 = vunpack.c.l.b16 %v1706
      %v1915 = vunpack.c.l.b16 %v1707
      %v1916 = vunpack.c.l.b16 %v1708
      %v1917 = vunpack.c.l.b16 %v1709
      %v1918 = vunpack.c.l.b16 %v1710
      %v1919 = vunpack.c.l.b16 %v1711
      %v1920 = vunpack.c.l.b16 %v1712
      %v1921 = vunpack.c.l.b16 %v1713
      %v1922 = vunpack.c.l.b16 %v1714
      %v1923 = vunpack.c.l.b16 %v1715
      %v1924 = vunpack.c.l.b16 %v1716
      %v1925 = vunpack.c.l.b16 %v1717
      %v1926 = vunpack.c.l.b16 %v1718
      %v1927 = vunpack.c.l.b16 %v1719
      %v1928 = vunpack.c.l.b16 %v1720
      %v1929 = vunpack.c.l.b16 %v1721
      %v1930 = vunpack.c.l.b16 %v1722
      %v1931 = vunpack.c.l.b16 %v1723
      %v1932 = vunpack.c.l.b16 %v1724
      %v1933 = vunpack.c.l.b16 %v1725
      %v1934 = vunpack.c.l.b16 %v1726
      %v1935 = vunpack.c.l.b16 %v1727
      %v1936 = vunpack.c.l.b16 %v1728
      %v1937 = vunpack.c.l.b16 %v1729
      %v1938 = vunpack.c.l.b16 %v1730
      %v1939 = vunpack.c.l.b16 %v1731
      %v1940 = vunpack.c.l.b16 %v1732
      %v1941 = vunpack.c.l.b16 %v1733
      %v1942 = vunpack.c.l.b16 %v1734
      %v1943 = vunpack.c.l.b16 %v1735
      %v1944 = vunpack.c.l.b16 %v1736
      %v1945 = vunpack.c.l.b16 %v1737
      %v1946 = vunpack.c.l.b16 %v1738
      %v1947 = vunpack.c.l.b16 %v1739
      %v1948 = vunpack.c.l.b16 %v1740
      %v1949 = vunpack.c.l.b16 %v1741
      %v1950 = vunpack.c.l.b16 %v1742
      %v1951 = vunpack.c.l.b16 %v1743
      %v1952 = vunpack.c.l.b16 %v1744
      %v1953 = vunpack.c.l.b16 %v1745
      %v1954 = vunpack.c.l.b16 %v1746
      %v1955 = vunpack.c.l.b16 %v1747
      %v1956 = vunpack.c.l.b16 %v1748
      %v1957 = vunpack.c.l.b16 %v1749
      %v1958 = vunpack.c.l.b16 %v1750
      %v1959 = vunpack.c.l.b16 %v1751
      %v1960 = vunpack.c.l.b16 %v1752
      %v1961 = vunpack.c.l.b16 %v1753
      %v1962 = vunpack.c.l.b16 %v1754
      %v1963 = vunpack.c.l.b16 %v1755
      %v1964 = vunpack.c.l.b16 %v1756
      %v1965 = vunpack.c.l.b16 %v1757
      %v1966 = vunpack.c.l.b16 %v1758
      %v1967 = vunpack.c.l.b16 %v1759
      %v1968 = vunpack.c.l.b16 %v1760
      %v1969 = vunpack.c.l.b16 %v1761
      %v1970 = vunpack.c.l.b16 %v1762
      %v1971 = vpack.c.b16 %v1908, %v1907
      %v1972 = vpack.c.b16 %v1910, %v1909
      %v1973 = vpack.c.b16 %v1912, %v1911
      %v1974 = vpack.c.b16 %v1914, %v1913
      %v1975 = vpack.c.b16 %v1916, %v1915
      %v1976 = vpack.c.b16 %v1918, %v1917
      %v1977 = vpack.c.b16 %v1920, %v1919
      %v1978 = vpack.c.b16 %v1922, %v1921
      %v1979 = vpack.c.b16 %v1924, %v1923
      %v1980 = vpack.c.b16 %v1926, %v1925
      %v1981 = vpack.c.b16 %v1928, %v1927
      %v1982 = vpack.c.b16 %v1930, %v1929
      %v1983 = vpack.c.b16 %v1932, %v1931
      %v1984 = vpack.c.b16 %v1934, %v1933
      %v1985 = vpack.c.b16 %v1936, %v1935
      %v1986 = vpack.c.b16 %v1938, %v1937
      %v1987 = vpack.c.b16 %v1940, %v1939
      %v1988 = vpack.c.b16 %v1942, %v1941
      %v1989 = vpack.c.b16 %v1944, %v1943
      %v1990 = vpack.c.b16 %v1946, %v1945
      %v1991 = vpack.c.b16 %v1948, %v1947
      %v1992 = vpack.c.b16 %v1950, %v1949
      %v1993 = vpack.c.b16 %v1952, %v1951
      %v1994 = vpack.c.b16 %v1954, %v1953
      %v1995 = vpack.c.b16 %v1956, %v1955
      %v1996 = vpack.c.b16 %v1958, %v1957
      %v1997 = vpack.c.b16 %v1960, %v1959
      %v1998 = vpack.c.b16 %v1962, %v1961
      %v1999 = vpack.c.b16 %v1964, %v1963
      %v2000 = vpack.c.b16 %v1966, %v1965
      %v2001 = vpack.c.b16 %v1968, %v1967
      %v2002 = vpack.c.b16 %v1970, %v1969
      %2035 = vmatprep.subr.bf16.mxu0 0
      %2036 = vmatpush1.bf16.msra.mxu0 %v1978
      %2037 = vmatprep.subr.bf16.mxu0 0
      %2038 = vmatpush1.bf16.msra.mxu0 %v1977
      %2039 = vmatprep.subr.bf16.mxu0 0
      %2040 = vmatpush1.bf16.msra.mxu0 %v1976
      %2041 = vmatprep.subr.bf16.mxu0 0
      %2042 = vmatpush1.bf16.msra.mxu0 %v1975
      %2043 = vmatprep.subr.bf16.mxu0 0
      %2044 = vmatpush1.bf16.msra.mxu0 %v1974
      %2045 = vmatprep.subr.bf16.mxu0 0
      %2046 = vmatpush1.bf16.msra.mxu0 %v1973
      %2047 = vmatprep.subr.bf16.mxu0 0
      %2048 = vmatpush1.bf16.msra.mxu0 %v1972
      %2049 = vmatprep.subr.bf16.mxu0 0
      %2050 = vmatpush1.bf16.msra.mxu0 %v1971
      %2051 = vmatprep.subr.bf16.mxu0 0
      %2052 = vmatpush2.bf16.msra.mxu0 %v1986
      %2053 = vmatprep.subr.bf16.mxu0 0
      %2054 = vmatpush2.bf16.msra.mxu0 %v1985
      %2055 = vmatprep.subr.bf16.mxu0 0
      %2056 = vmatpush2.bf16.msra.mxu0 %v1984
      %2057 = vmatprep.subr.bf16.mxu0 0
      %2058 = vmatpush2.bf16.msra.mxu0 %v1983
      %2059 = vmatprep.subr.bf16.mxu0 0
      %2060 = vmatpush2.bf16.msra.mxu0 %v1982
      %2061 = vmatprep.subr.bf16.mxu0 0
      %2062 = vmatpush2.bf16.msra.mxu0 %v1981
      %2063 = vmatprep.subr.bf16.mxu0 0
      %2064 = vmatpush2.bf16.msra.mxu0 %v1980
      %2065 = vmatprep.subr.bf16.mxu0 0
      %2066 = vmatpush2.bf16.msra.mxu0 %v1979
      %2067 = vmatprep.mubr.bf16.mxu0 %v1812
      %2068 = vmatmul.mubr.bf16.gmra.mxu0 %v1811
      %v2069 = vpop.f32.mrf.mxu0
      %v2070 = vadd.f32 0.0, %v2069
      %v2071 = vpop.f32.mrf.mxu0
      %v2072 = vpop.f32.mrf.mxu0
      %v2073 = vadd.f32 0.0, %v2072
      %v2074 = vpop.f32.mrf.mxu0
      %2075 = vmatprep.mubr.bf16.mxu0 %v1816
      %2076 = vmatmul.mubr.bf16.gmra.mxu0 %v1815
      %v2077 = vpop.f32.mrf.mxu0
      %v2078 = vadd.f32 0.0, %v2077
      %v2079 = vpop.f32.mrf.mxu0
      %v2080 = vpop.f32.mrf.mxu0
      %v2081 = vadd.f32 0.0, %v2080
      %v2082 = vpop.f32.mrf.mxu0
      %2083 = vmatprep.mubr.bf16.mxu0 %v1820
      %2084 = vmatmul.mubr.bf16.gmra.mxu0 %v1819
      %v2085 = vpop.f32.mrf.mxu0
      %v2086 = vadd.f32 0.0, %v2085
      %v2087 = vpop.f32.mrf.mxu0
      %v2088 = vpop.f32.mrf.mxu0
      %v2089 = vadd.f32 0.0, %v2088
      %v2090 = vpop.f32.mrf.mxu0
      %2091 = vmatprep.mubr.bf16.mxu0 %v1824
      %2092 = vmatmul.mubr.bf16.gmra.mxu0 %v1823
      %v2093 = vpop.f32.mrf.mxu0
      %v2094 = vadd.f32 0.0, %v2093
      %v2095 = vpop.f32.mrf.mxu0
      %v2096 = vpop.f32.mrf.mxu0
      %v2097 = vadd.f32 0.0, %v2096
      %v2098 = vpop.f32.mrf.mxu0
      %2099 = vdwg.mxu0
      %2100 = vmatprep.subr.bf16.mxu0 0
      %2101 = vmatpush1.bf16.msra.mxu0 %v1994
      %2102 = vmatprep.subr.bf16.mxu0 0
      %2103 = vmatpush1.bf16.msra.mxu0 %v1993
      %2104 = vmatprep.subr.bf16.mxu0 0
      %2105 = vmatpush1.bf16.msra.mxu0 %v1992
      %2106 = vmatprep.subr.bf16.mxu0 0
      %2107 = vmatpush1.bf16.msra.mxu0 %v1991
      %2108 = vmatprep.subr.bf16.mxu0 0
      %2109 = vmatpush1.bf16.msra.mxu0 %v1990
      %2110 = vmatprep.subr.bf16.mxu0 0
      %2111 = vmatpush1.bf16.msra.mxu0 %v1989
      %2112 = vmatprep.subr.bf16.mxu0 0
      %2113 = vmatpush1.bf16.msra.mxu0 %v1988
      %2114 = vmatprep.subr.bf16.mxu0 0
      %2115 = vmatpush1.bf16.msra.mxu0 %v1987
      %2116 = vmatprep.subr.bf16.mxu0 0
      %2117 = vmatpush2.bf16.msra.mxu0 %v2002
      %2118 = vmatprep.subr.bf16.mxu0 0
      %2119 = vmatpush2.bf16.msra.mxu0 %v2001
      %2120 = vmatprep.subr.bf16.mxu0 0
      %2121 = vmatpush2.bf16.msra.mxu0 %v2000
      %2122 = vmatprep.subr.bf16.mxu0 0
      %2123 = vmatpush2.bf16.msra.mxu0 %v1999
      %2124 = vmatprep.subr.bf16.mxu0 0
      %2125 = vmatpush2.bf16.msra.mxu0 %v1998
      %2126 = vmatprep.subr.bf16.mxu0 0
      %2127 = vmatpush2.bf16.msra.mxu0 %v1997
      %2128 = vmatprep.subr.bf16.mxu0 0
      %2129 = vmatpush2.bf16.msra.mxu0 %v1996
      %2130 = vmatprep.subr.bf16.mxu0 0
      %2131 = vmatpush2.bf16.msra.mxu0 %v1995
      %2132 = vmatprep.mubr.bf16.mxu0 %v1814
      %2133 = vmatmul.mubr.bf16.gmra.mxu0 %v1813
      %v2134 = vpop.f32.mrf.mxu0
      %v2135 = vadd.f32 %v2070, %v2134
      %v2136 = vpop.f32.mrf.mxu0
      %v2137 = vpop.f32.mrf.mxu0
      %v2138 = vadd.f32 %v2073, %v2137
      %v2139 = vpop.f32.mrf.mxu0
      %2140 = vmatprep.mubr.bf16.mxu0 %v1818
      %2141 = vmatmul.mubr.bf16.gmra.mxu0 %v1817
      %v2142 = vpop.f32.mrf.mxu0
      %v2143 = vadd.f32 %v2078, %v2142
      %v2144 = vpop.f32.mrf.mxu0
      %v2145 = vpop.f32.mrf.mxu0
      %v2146 = vadd.f32 %v2081, %v2145
      %v2147 = vpop.f32.mrf.mxu0
      %2148 = vmatprep.mubr.bf16.mxu0 %v1822
      %2149 = vmatmul.mubr.bf16.gmra.mxu0 %v1821
      %v2150 = vpop.f32.mrf.mxu0
      %v2151 = vadd.f32 %v2086, %v2150
      %v2152 = vpop.f32.mrf.mxu0
      %v2153 = vpop.f32.mrf.mxu0
      %v2154 = vadd.f32 %v2089, %v2153
      %v2155 = vpop.f32.mrf.mxu0
      %2156 = vmatprep.mubr.bf16.mxu0 %v1826
      %2157 = vmatmul.mubr.bf16.gmra.mxu0 %v1825
      %v2158 = vpop.f32.mrf.mxu0
      %v2159 = vadd.f32 %v2094, %v2158
      %v2160 = vpop.f32.mrf.mxu0
      %v2161 = vpop.f32.mrf.mxu0
      %v2162 = vadd.f32 %v2097, %v2161
      %v2163 = vpop.f32.mrf.mxu0
      %2164 = vdwg.mxu0
      %v2165 = vadd.f32 %v1690, %v2135
      %v2166 = vadd.f32 %v1691, %v2138
      %v2167 = vadd.f32 %v1692, %v2143
      %v2168 = vadd.f32 %v1693, %v2146
      %v2169 = vadd.f32 %v1694, %v2151
      %v2170 = vadd.f32 %v1695, %v2154
      %v2171 = vadd.f32 %v1696, %v2159
      %v2172 = vadd.f32 %v1697, %v2162
      %2173 = vst [vmem:[#allocation2] sm:$0xff] %v2165
      %2174 = vst [vmem:[#allocation2 + $0x8] sm:$0xff] %v2166
      %2175 = vst [vmem:[#allocation2 + $0x10] sm:$0xff] %v2167
      %2176 = vst [vmem:[#allocation2 + $0x18] sm:$0xff] %v2168
      %2177 = vst [vmem:[#allocation2 + $0x20] sm:$0xff] %v2169
      %2178 = vst [vmem:[#allocation2 + $0x28] sm:$0xff] %v2170
      %2179 = vst [vmem:[#allocation2 + $0x30] sm:$0xff] %v2171
      %2180 = vst [vmem:[#allocation2 + $0x38] sm:$0xff] %v2172
      %v2181 = vld [vmem:[#allocation2] sm:$0xff]
      %v2182 = vld [vmem:[#allocation2 + $0x8] sm:$0xff]
      %v2183 = vld [vmem:[#allocation2 + $0x10] sm:$0xff]
      %v2184 = vld [vmem:[#allocation2 + $0x18] sm:$0xff]
      %v2185 = vld [vmem:[#allocation2 + $0x20] sm:$0xff]
      %v2186 = vld [vmem:[#allocation2 + $0x28] sm:$0xff]
      %v2187 = vld [vmem:[#allocation2 + $0x30] sm:$0xff]
      %v2188 = vld [vmem:[#allocation2 + $0x38] sm:$0xff]
      %vm2189 = vcmp.gt.f32.partialorder %v2181, 0.0
      %vm2190 = vcmp.gt.f32.partialorder %v2182, 0.0
      %vm2191 = vcmp.gt.f32.partialorder %v2183, 0.0
      %vm2192 = vcmp.gt.f32.partialorder %v2184, 0.0
      %vm2193 = vcmp.gt.f32.partialorder %v2185, 0.0
      %vm2194 = vcmp.gt.f32.partialorder %v2186, 0.0
      %vm2195 = vcmp.gt.f32.partialorder %v2187, 0.0
      %vm2196 = vcmp.gt.f32.partialorder %v2188, 0.0
      %v2197 = vmul.f32 %v2181, 0.2
      %v2198 = vmul.f32 %v2182, 0.2
      %v2199 = vmul.f32 %v2183, 0.2
      %v2200 = vmul.f32 %v2184, 0.2
      %v2201 = vmul.f32 %v2185, 0.2
      %v2202 = vmul.f32 %v2186, 0.2
      %v2203 = vmul.f32 %v2187, 0.2
      %v2204 = vmul.f32 %v2188, 0.2
      %v2205 = vsel %vm2189, %v2181, %v2197
      %v2206 = vsel %vm2190, %v2182, %v2198
      %v2207 = vsel %vm2191, %v2183, %v2199
      %v2208 = vsel %vm2192, %v2184, %v2200
      %v2209 = vsel %vm2193, %v2185, %v2201
      %v2210 = vsel %vm2194, %v2186, %v2202
      %v2211 = vsel %vm2195, %v2187, %v2203
      %v2212 = vsel %vm2196, %v2188, %v2204
      %v2213 = vpack.c.bf16 %v2206, %v2205
      %v2214 = vpack.c.bf16 %v2208, %v2207
      %v2215 = vpack.c.bf16 %v2210, %v2209
      %v2216 = vpack.c.bf16 %v2212, %v2211
      %v2221 = vunpack.c.l.b16 %v2213
      %v2222 = vunpack.c.h.b16 %v2213
      %v2223 = vunpack.c.l.b16 %v2214
      %v2224 = vunpack.c.h.b16 %v2214
      %v2225 = vunpack.c.l.b16 %v2215
      %v2226 = vunpack.c.h.b16 %v2215
      %v2227 = vunpack.c.l.b16 %v2216
      %v2228 = vunpack.c.h.b16 %v2216
      %v2229 = vpack.c.b16 %v2221, %v2221
      %v2230 = vpack.c.b16 %v2222, %v2222
      %v2231 = vpack.c.b16 %v2223, %v2223
      %v2232 = vpack.c.b16 %v2224, %v2224
      %v2233 = vpack.c.b16 %v2225, %v2225
      %v2234 = vpack.c.b16 %v2226, %v2226
      %v2235 = vpack.c.b16 %v2227, %v2227
      %v2236 = vpack.c.b16 %v2228, %v2228
      %2245 = vst [vmem:[%s143] sm:$0xf] %v2229
      %2246 = vst [vmem:[%s143 + $0x4] sm:$0xf] %v2230
      %2247 = vst [vmem:[%s143 + $0x8] sm:$0xf] %v2231
      %2248 = vst [vmem:[%s143 + $0xc] sm:$0xf] %v2232
      %2249 = vst [vmem:[%s143 + $0x10] sm:$0xf] %v2233
      %2250 = vst [vmem:[%s143 + $0x14] sm:$0xf] %v2234
      %2251 = vst [vmem:[%s143 + $0x18] sm:$0xf] %v2235
      %2252 = vst [vmem:[%s143 + $0x1c] sm:$0xf] %v2236
      %p2253 = scmp.lt.s32.totalorder %s13, 1
      %s2254 = scalar_select %p2253, %s13, 1
      %s2255 = smul.addr %s2254, 8
      %s2256 = smul.addr %s2255, 4
      %s2257 = scalar_lea.vmem %s2, %s2256
      // Predicated region
      $region29: #{discriminator_forward.6} parent=27 // pred_check
        %p2258 = pneg %p78
      $region30: #{discriminator_forward.6} parent=27 // pred_check_branch
        %2260 = sbr.rel (%p2258) target = $region32
      $region31: #{discriminator_forward.6} parent=27 // pred_region
        _
      $region32: #{discriminator_forward.6} parent=27 // pred_fallthru
        _
    $region28: #{discriminator_forward.6} parent=5 // pred_fallthru
      _
    %p2261 = scmp.le.s32.totalorder 2, %s8
    // Predicated region
    $region33: #{discriminator_forward.6} parent=5 // pred_check
      %p2262 = pneg %p2261
    $region34: #{discriminator_forward.6} parent=5 // pred_check_branch
      %2264 = sbr.rel (%p2262) target = $region36
    $region35: #{discriminator_forward.6} parent=5 // pred_region
      %s2265 = ssub.s32 %s8, 2
      // Predicated region
      $region37: #{discriminator_forward.6} parent=35 // pred_check
        %p2266 = pneg %p84
      $region38: #{discriminator_forward.6} parent=35 // pred_check_branch
        %2268 = sbr.rel (%p2266) target = $region40
      $region39: #{discriminator_forward.6} parent=35 // pred_region
        %p2269 = scmp.lt.s32.totalorder %s14, 1
        %s2270 = scalar_select %p2269, %s14, 1
        %s2271 = smul.addr %s2270, 8
        %s2272 = smul.addr %s2271, 4
        %s2273 = scalar_lea.vmem %s2, %s2272
      $region40: #{discriminator_forward.6} parent=35 // pred_fallthru
        _
    $region36: #{discriminator_forward.6} parent=5 // pred_fallthru
      _
  $region6: #{discriminator_forward.6} parent=0 // loop_footer
    %s12 = sadd.s32 1, %s8
  $region7: #{discriminator_forward.6} parent=0 // loop_footer_branch
    %7 = sbr.rel target = $region3
  $region8: #{discriminator_forward.6} parent=0 // loop_exit
    _

// kernel: discriminator_forward.7
$region0: #{discriminator_forward.7}
  #allocation0 [shape = 'u32[]', space=smem, size = 0x4, offset = 0x4, fixed_abs, tag = 'smem constant byte address 0x4 - core index']
  #allocation1 [shape = 'u32[144,128]{1,0:T(1,128)}', space=vmem, size = 0x12000, scoped, tag = 'internal scratch']
  #allocation2 [shape = 'f32[16,128]{1,0:T(8,128)}', space=vmem, size = 0x2000, scoped, tag = 'scratch operand']
  %s0 = inlined_call_operand.vmem [shape: bf16[2,2,20,512], index: 0, kind: input, shape index: {}]
  %s1 = inlined_call_operand.vmem [shape: bf16[4,512,128], index: 1, kind: input, shape index: {}]
  %s2 = inlined_call_operand.vmem [shape: bf16[2,16,128], index: 2, kind: output, shape index: {}]
  %s3 = sld [smem:[#allocation0]]
  $region41: #{discriminator_forward.7} parent=0
    _
  %s5 = ssub.s32 1, %s3
  %s6 = scalar_select 0, %s5, %s3
  loop: start=0, step=1, limit=4
  $region2: #{discriminator_forward.7} parent=0 // loop_pre_header
    _
  $region3: #{discriminator_forward.7} parent=0 // loop_header
    %s8 = sphi 0, %s12
    %p9 = scmp.ge.s32.totalorder %s8, 4
    %s18 = sphi 0, %s20
    %s21 = sphi 0, %s18
    %s22 = sphi 0, %s21
    %s38 = sphi 0, %s22
    %s42 = sphi 0, %s42
    %s44 = sphi 0, %s42
    %s45 = sphi 0, %s44
    %s59 = sphi 0, %s45
    %s65 = sphi 0, %s67
    %s68 = sphi 0, %s65
    %s69 = sphi 0, %s68
    %s85 = sphi 0, %s69
  $region4: #{discriminator_forward.7} parent=0 // loop_header_branch
    %11 = sbr.rel (%p9) target = $region8
  $region5: #{discriminator_forward.7} parent=0 // loop_body
    %s13 = ssub.s32 %s8, 1
    %s14 = ssub.s32 %s8, 2
    %s15 = sadd.s32 %s8, 1
    %s16 = ssub.s32 %s8, %s15
    %p17 = scmp.eq.s32.totalorder %s16, 0
    %s19 = sadd.s32 %s18, 1
    %s20 = scalar_select %p17, %s18, %s19
    %p23 = pneg %p17
    %p24 = scmp.eq.s32.totalorder %s8, 1
    %p25 = por %p23, %p24
    %p26 = scmp.ne.s32.totalorder %s18, %s21
    %p27 = scmp.eq.s32.totalorder %s8, 0
    %p28 = por %p26, %p27
    %p29 = scmp.ne.s32.totalorder %s18, %s21
    %p30 = scmp.eq.s32.totalorder %s13, 1
    %p31 = por %p29, %p30
    %p32 = scmp.ne.s32.totalorder %s21, %s22
    %p33 = scmp.eq.s32.totalorder %s13, 0
    %p34 = por %p32, %p33
    %p35 = scmp.ne.s32.totalorder %s21, %s22
    %p36 = scmp.eq.s32.totalorder %s14, 1
    %p37 = por %p35, %p36
    %p39 = scmp.ne.s32.totalorder %s22, %s38
    %p40 = scmp.eq.s32.totalorder %s14, 0
    %p41 = por %p39, %p40
    %s43 = sadd.s32 %s42, 1
    %p46 = scmp.eq.s32.totalorder %s8, 1
    %p47 = scmp.ne.s32.totalorder %s42, %s44
    %p48 = scmp.eq.s32.totalorder %s8, 0
    %p49 = por %p47, %p48
    %p50 = scmp.ne.s32.totalorder %s42, %s44
    %p51 = scmp.eq.s32.totalorder %s13, 1
    %p52 = por %p50, %p51
    %p53 = scmp.ne.s32.totalorder %s44, %s45
    %p54 = scmp.eq.s32.totalorder %s13, 0
    %p55 = por %p53, %p54
    %p56 = scmp.ne.s32.totalorder %s44, %s45
    %p57 = scmp.eq.s32.totalorder %s14, 1
    %p58 = por %p56, %p57
    %p60 = scmp.ne.s32.totalorder %s45, %s59
    %p61 = scmp.eq.s32.totalorder %s14, 0
    %p62 = por %p60, %p61
    %s63 = ssub.s32 %s8, %s15
    %p64 = scmp.eq.s32.totalorder %s63, 0
    %s66 = sadd.s32 %s65, 1
    %s67 = scalar_select %p64, %s65, %s66
    %p70 = pneg %p64
    %p71 = scmp.eq.s32.totalorder %s8, 1
    %p72 = por %p70, %p71
    %p73 = scmp.ne.s32.totalorder %s65, %s68
    %p74 = scmp.eq.s32.totalorder %s8, 0
    %p75 = por %p73, %p74
    %p76 = scmp.ne.s32.totalorder %s65, %s68
    %p77 = scmp.eq.s32.totalorder %s13, 1
    %p78 = por %p76, %p77
    %p79 = scmp.ne.s32.totalorder %s68, %s69
    %p80 = scmp.eq.s32.totalorder %s13, 0
    %p81 = por %p79, %p80
    %p82 = scmp.ne.s32.totalorder %s68, %s69
    %p83 = scmp.eq.s32.totalorder %s14, 1
    %p84 = por %p82, %p83
    %p86 = scmp.ne.s32.totalorder %s69, %s85
    %p87 = scmp.eq.s32.totalorder %s14, 0
    %p88 = por %p86, %p87
    %p89 = scmp.le.s32.totalorder 1, %s8
    %p90 = scmp.lt.s32.totalorder %s8, 3
    %p91 = pnand %p89, %p90
    %p92 = pneg %p91
    // Predicated region
    $region9: #{discriminator_forward.7} parent=5 // pred_check
      _
    $region10: #{discriminator_forward.7} parent=5 // pred_check_branch
      %94 = sbr.rel (%p91) target = $region12
    $region11: #{discriminator_forward.7} parent=5 // pred_region
      %s95 = ssub.s32 %s8, 1
      // Predicated region
      $region13: #{discriminator_forward.7} parent=11 // pred_check
        %p96 = pneg %p55
      $region14: #{discriminator_forward.7} parent=11 // pred_check_branch
        %98 = sbr.rel (%p96) target = $region16
      $region15: #{discriminator_forward.7} parent=11 // pred_region
        _
      $region16: #{discriminator_forward.7} parent=11 // pred_fallthru
        _
    $region12: #{discriminator_forward.7} parent=5 // pred_fallthru
      _
    %p99 = scmp.lt.s32.totalorder %s8, 2
    // Predicated region
    $region17: #{discriminator_forward.7} parent=5 // pred_check
      %p100 = pneg %p99
    $region18: #{discriminator_forward.7} parent=5 // pred_check_branch
      %102 = sbr.rel (%p100) target = $region20
    $region19: #{discriminator_forward.7} parent=5 // pred_region
      // Predicated region
      $region21: #{discriminator_forward.7} parent=19 // pred_check
        %p103 = pneg %p28
      $region22: #{discriminator_forward.7} parent=19 // pred_check_branch
        %105 = sbr.rel (%p103) target = $region24
      $region23: #{discriminator_forward.7} parent=19 // pred_region
        %p106 = scmp.lt.s32.totalorder %s8, 1
        %s107 = scalar_select %p106, %s8, 1
        %s108 = smul.addr %s107, 24
        %s109 = smul.addr %s108, 4
        %s110 = scalar_lea.vmem %s0, %s109
      $region24: #{discriminator_forward.7} parent=19 // pred_fallthru
        _
    $region20: #{discriminator_forward.7} parent=5 // pred_fallthru
      _
    %p111 = scmp.le.s32.totalorder 1, %s8
    %p112 = scmp.lt.s32.totalorder %s8, 3
    %p113 = pnand %p111, %p112
    %p114 = pneg %p113
    // Predicated region
    $region25: #{discriminator_forward.7} parent=5 // pred_check
      _
    $region26: #{discriminator_forward.7} parent=5 // pred_check_branch
      %116 = sbr.rel (%p113) target = $region28
    $region27: #{discriminator_forward.7} parent=5 // pred_region
      %s117 = ssub.s32 %s8, 1
      %p118 = scmp.lt.s32.totalorder %s13, 1
      %s119 = scalar_select %p118, %s13, 1
      %s120 = smul.addr %s119, 24
      %s121 = smul.addr %s120, 4
      %s122 = scalar_lea.vmem %s0, %s121
      %p123 = pneg %p34
      %p124 = pneg %p31
      %p125 = pneg %p55
      %p126 = pneg %p52
      %p127 = pneg %p81
      %p128 = pneg %p78
      %p129 = scmp.lt.s32.totalorder %s13, 1
      %s130 = scalar_select %p129, %s13, 1
      %s131 = smul.addr %s130, 2
      %s132 = smul.addr %s131, 4
      %s133 = scalar_lea.vmem %s2, %s132
      %p134 = scmp.lt.s32.totalorder %s13, 1
      %s135 = scalar_select %p134, %s13, 1
      %s136 = smul.addr %s135, 24
      %s137 = smul.addr %s136, 4
      %s138 = scalar_lea.vmem %s0, %s137
      %p139 = scmp.lt.s32.totalorder %s13, 1
      %s140 = scalar_select %p139, %s13, 1
      %s141 = smul.addr %s140, 2
      %s142 = smul.addr %s141, 4
      %s143 = scalar_lea.vmem %s2, %s142
      %145 = vst [vmem:[#allocation2] sm:$0xff] 0.0
      %146 = vst [vmem:[#allocation2 + $0x8] sm:$0xff] 0.0
      %v147 = vld [vmem:[%s138] sm:$0xff]
      %v148 = vld [vmem:[%s138 + $0x8] sm:$0xff]
      %v149 = vld [vmem:[%s138 + $0x10] sm:$0xff]
      %v150 = vld [vmem:[%s138 + $0x18] sm:$0xff]
      %v151 = vld [vmem:[#allocation2] sm:$0xff]
      %v152 = vld [vmem:[#allocation2 + $0x8] sm:$0xff]
      %v153 = vld [vmem:[%s1] sm:$0xf]
      %v154 = vld [vmem:[%s1 + $0x4] sm:$0xf]
      %v155 = vld [vmem:[%s1 + $0x8] sm:$0xf]
      %v156 = vld [vmem:[%s1 + $0xc] sm:$0xf]
      %v157 = vld [vmem:[%s1 + $0x10] sm:$0xf]
      %v158 = vld [vmem:[%s1 + $0x14] sm:$0xf]
      %v159 = vld [vmem:[%s1 + $0x18] sm:$0xf]
      %v160 = vld [vmem:[%s1 + $0x1c] sm:$0xf]
      %v161 = vld [vmem:[%s1 + $0x20] sm:$0xf]
      %v162 = vld [vmem:[%s1 + $0x24] sm:$0xf]
      %v163 = vld [vmem:[%s1 + $0x28] sm:$0xf]
      %v164 = vld [vmem:[%s1 + $0x2c] sm:$0xf]
      %v165 = vld [vmem:[%s1 + $0x30] sm:$0xf]
      %v166 = vld [vmem:[%s1 + $0x34] sm:$0xf]
      %v167 = vld [vmem:[%s1 + $0x38] sm:$0xf]
      %v168 = vld [vmem:[%s1 + $0x3c] sm:$0xf]
      %v169 = vld [vmem:[%s1 + $0x40] sm:$0xf]
      %v170 = vld [vmem:[%s1 + $0x44] sm:$0xf]
      %v171 = vld [vmem:[%s1 + $0x48] sm:$0xf]
      %v172 = vld [vmem:[%s1 + $0x4c] sm:$0xf]
      %v173 = vld [vmem:[%s1 + $0x50] sm:$0xf]
      %v174 = vld [vmem:[%s1 + $0x54] sm:$0xf]
      %v175 = vld [vmem:[%s1 + $0x58] sm:$0xf]
      %v176 = vld [vmem:[%s1 + $0x5c] sm:$0xf]
      %v177 = vld [vmem:[%s1 + $0x60] sm:$0xf]
      %v178 = vld [vmem:[%s1 + $0x64] sm:$0xf]
      %v179 = vld [vmem:[%s1 + $0x68] sm:$0xf]
      %v180 = vld [vmem:[%s1 + $0x6c] sm:$0xf]
      %v181 = vld [vmem:[%s1 + $0x70] sm:$0xf]
      %v182 = vld [vmem:[%s1 + $0x74] sm:$0xf]
      %v183 = vld [vmem:[%s1 + $0x78] sm:$0xf]
      %v184 = vld [vmem:[%s1 + $0x7c] sm:$0xf]
      %v185 = vld [vmem:[%s1 + $0x80] sm:$0xf]
      %v186 = vld [vmem:[%s1 + $0x84] sm:$0xf]
      %v187 = vld [vmem:[%s1 + $0x88] sm:$0xf]
      %v188 = vld [vmem:[%s1 + $0x8c] sm:$0xf]
      %v189 = vld [vmem:[%s1 + $0x90] sm:$0xf]
      %v190 = vld [vmem:[%s1 + $0x94] sm:$0xf]
      %v191 = vld [vmem:[%s1 + $0x98] sm:$0xf]
      %v192 = vld [vmem:[%s1 + $0x9c] sm:$0xf]
      %v193 = vld [vmem:[%s1 + $0xa0] sm:$0xf]
      %v194 = vld [vmem:[%s1 + $0xa4] sm:$0xf]
      %v195 = vld [vmem:[%s1 + $0xa8] sm:$0xf]
      %v196 = vld [vmem:[%s1 + $0xac] sm:$0xf]
      %v197 = vld [vmem:[%s1 + $0xb0] sm:$0xf]
      %v198 = vld [vmem:[%s1 + $0xb4] sm:$0xf]
      %v199 = vld [vmem:[%s1 + $0xb8] sm:$0xf]
      %v200 = vld [vmem:[%s1 + $0xbc] sm:$0xf]
      %v201 = vld [vmem:[%s1 + $0xc0] sm:$0xf]
      %v202 = vld [vmem:[%s1 + $0xc4] sm:$0xf]
      %v203 = vld [vmem:[%s1 + $0xc8] sm:$0xf]
      %v204 = vld [vmem:[%s1 + $0xcc] sm:$0xf]
      %v205 = vld [vmem:[%s1 + $0xd0] sm:$0xf]
      %v206 = vld [vmem:[%s1 + $0xd4] sm:$0xf]
      %v207 = vld [vmem:[%s1 + $0xd8] sm:$0xf]
      %v208 = vld [vmem:[%s1 + $0xdc] sm:$0xf]
      %v209 = vld [vmem:[%s1 + $0xe0] sm:$0xf]
      %v210 = vld [vmem:[%s1 + $0xe4] sm:$0xf]
      %v211 = vld [vmem:[%s1 + $0xe8] sm:$0xf]
      %v212 = vld [vmem:[%s1 + $0xec] sm:$0xf]
      %v213 = vld [vmem:[%s1 + $0xf0] sm:$0xf]
      %v214 = vld [vmem:[%s1 + $0xf4] sm:$0xf]
      %v215 = vld [vmem:[%s1 + $0xf8] sm:$0xf]
      %v216 = vld [vmem:[%s1 + $0xfc] sm:$0xf]
      %v221 = vunpack.c.l.b16 %v147
      %v222 = vunpack.c.h.b16 %v147
      %v223 = vunpack.c.l.b16 %v148
      %v224 = vunpack.c.h.b16 %v148
      %v225 = vunpack.c.l.b16 %v149
      %v226 = vunpack.c.h.b16 %v149
      %v227 = vunpack.c.l.b16 %v150
      %v228 = vunpack.c.h.b16 %v150
      %v229 = vpack.c.b16 %v225, %v221
      %v230 = vpack.c.b16 %v226, %v222
      %v231 = vpack.c.b16 %v227, %v223
      %v232 = vpack.c.b16 %v228, %v224
      %v301 = vunpack.c.l.b16 %v153
      %v302 = vunpack.c.l.b16 %v154
      %v303 = vunpack.c.l.b16 %v155
      %v304 = vunpack.c.l.b16 %v156
      %v305 = vunpack.c.l.b16 %v157
      %v306 = vunpack.c.l.b16 %v158
      %v307 = vunpack.c.l.b16 %v159
      %v308 = vunpack.c.l.b16 %v160
      %v309 = vunpack.c.l.b16 %v161
      %v310 = vunpack.c.l.b16 %v162
      %v311 = vunpack.c.l.b16 %v163
      %v312 = vunpack.c.l.b16 %v164
      %v313 = vunpack.c.l.b16 %v165
      %v314 = vunpack.c.l.b16 %v166
      %v315 = vunpack.c.l.b16 %v167
      %v316 = vunpack.c.l.b16 %v168
      %v317 = vunpack.c.l.b16 %v169
      %v318 = vunpack.c.l.b16 %v170
      %v319 = vunpack.c.l.b16 %v171
      %v320 = vunpack.c.l.b16 %v172
      %v321 = vunpack.c.l.b16 %v173
      %v322 = vunpack.c.l.b16 %v174
      %v323 = vunpack.c.l.b16 %v175
      %v324 = vunpack.c.l.b16 %v176
      %v325 = vunpack.c.l.b16 %v177
      %v326 = vunpack.c.l.b16 %v178
      %v327 = vunpack.c.l.b16 %v179
      %v328 = vunpack.c.l.b16 %v180
      %v329 = vunpack.c.l.b16 %v181
      %v330 = vunpack.c.l.b16 %v182
      %v331 = vunpack.c.l.b16 %v183
      %v332 = vunpack.c.l.b16 %v184
      %v333 = vunpack.c.l.b16 %v185
      %v334 = vunpack.c.l.b16 %v186
      %v335 = vunpack.c.l.b16 %v187
      %v336 = vunpack.c.l.b16 %v188
      %v337 = vunpack.c.l.b16 %v189
      %v338 = vunpack.c.l.b16 %v190
      %v339 = vunpack.c.l.b16 %v191
      %v340 = vunpack.c.l.b16 %v192
      %v341 = vunpack.c.l.b16 %v193
      %v342 = vunpack.c.l.b16 %v194
      %v343 = vunpack.c.l.b16 %v195
      %v344 = vunpack.c.l.b16 %v196
      %v345 = vunpack.c.l.b16 %v197
      %v346 = vunpack.c.l.b16 %v198
      %v347 = vunpack.c.l.b16 %v199
      %v348 = vunpack.c.l.b16 %v200
      %v349 = vunpack.c.l.b16 %v201
      %v350 = vunpack.c.l.b16 %v202
      %v351 = vunpack.c.l.b16 %v203
      %v352 = vunpack.c.l.b16 %v204
      %v353 = vunpack.c.l.b16 %v205
      %v354 = vunpack.c.l.b16 %v206
      %v355 = vunpack.c.l.b16 %v207
      %v356 = vunpack.c.l.b16 %v208
      %v357 = vunpack.c.l.b16 %v209
      %v358 = vunpack.c.l.b16 %v210
      %v359 = vunpack.c.l.b16 %v211
      %v360 = vunpack.c.l.b16 %v212
      %v361 = vunpack.c.l.b16 %v213
      %v362 = vunpack.c.l.b16 %v214
      %v363 = vunpack.c.l.b16 %v215
      %v364 = vunpack.c.l.b16 %v216
      %v365 = vpack.c.b16 %v302, %v301
      %v366 = vpack.c.b16 %v304, %v303
      %v367 = vpack.c.b16 %v306, %v305
      %v368 = vpack.c.b16 %v308, %v307
      %v369 = vpack.c.b16 %v310, %v309
      %v370 = vpack.c.b16 %v312, %v311
      %v371 = vpack.c.b16 %v314, %v313
      %v372 = vpack.c.b16 %v316, %v315
      %v373 = vpack.c.b16 %v318, %v317
      %v374 = vpack.c.b16 %v320, %v319
      %v375 = vpack.c.b16 %v322, %v321
      %v376 = vpack.c.b16 %v324, %v323
      %v377 = vpack.c.b16 %v326, %v325
      %v378 = vpack.c.b16 %v328, %v327
      %v379 = vpack.c.b16 %v330, %v329
      %v380 = vpack.c.b16 %v332, %v331
      %v381 = vpack.c.b16 %v334, %v333
      %v382 = vpack.c.b16 %v336, %v335
      %v383 = vpack.c.b16 %v338, %v337
      %v384 = vpack.c.b16 %v340, %v339
      %v385 = vpack.c.b16 %v342, %v341
      %v386 = vpack.c.b16 %v344, %v343
      %v387 = vpack.c.b16 %v346, %v345
      %v388 = vpack.c.b16 %v348, %v347
      %v389 = vpack.c.b16 %v350, %v349
      %v390 = vpack.c.b16 %v352, %v351
      %v391 = vpack.c.b16 %v354, %v353
      %v392 = vpack.c.b16 %v356, %v355
      %v393 = vpack.c.b16 %v358, %v357
      %v394 = vpack.c.b16 %v360, %v359
      %v395 = vpack.c.b16 %v362, %v361
      %v396 = vpack.c.b16 %v364, %v363
      %429 = vmatprep.subr.bf16.mxu0 0
      %430 = vmatpush1.bf16.msra.mxu0 %v372
      %431 = vmatprep.subr.bf16.mxu0 0
      %432 = vmatpush1.bf16.msra.mxu0 %v371
      %433 = vmatprep.subr.bf16.mxu0 0
      %434 = vmatpush1.bf16.msra.mxu0 %v370
      %435 = vmatprep.subr.bf16.mxu0 0
      %436 = vmatpush1.bf16.msra.mxu0 %v369
      %437 = vmatprep.subr.bf16.mxu0 0
      %438 = vmatpush1.bf16.msra.mxu0 %v368
      %439 = vmatprep.subr.bf16.mxu0 0
      %440 = vmatpush1.bf16.msra.mxu0 %v367
      %441 = vmatprep.subr.bf16.mxu0 0
      %442 = vmatpush1.bf16.msra.mxu0 %v366
      %443 = vmatprep.subr.bf16.mxu0 0
      %444 = vmatpush1.bf16.msra.mxu0 %v365
      %445 = vmatprep.subr.bf16.mxu0 0
      %446 = vmatpush2.bf16.msra.mxu0 %v380
      %447 = vmatprep.subr.bf16.mxu0 0
      %448 = vmatpush2.bf16.msra.mxu0 %v379
      %449 = vmatprep.subr.bf16.mxu0 0
      %450 = vmatpush2.bf16.msra.mxu0 %v378
      %451 = vmatprep.subr.bf16.mxu0 0
      %452 = vmatpush2.bf16.msra.mxu0 %v377
      %453 = vmatprep.subr.bf16.mxu0 0
      %454 = vmatpush2.bf16.msra.mxu0 %v376
      %455 = vmatprep.subr.bf16.mxu0 0
      %456 = vmatpush2.bf16.msra.mxu0 %v375
      %457 = vmatprep.subr.bf16.mxu0 0
      %458 = vmatpush2.bf16.msra.mxu0 %v374
      %459 = vmatprep.subr.bf16.mxu0 0
      %460 = vmatpush2.bf16.msra.mxu0 %v373
      %461 = vmatprep.mubr.bf16.mxu0 %v230
      %462 = vmatmul.mubr.bf16.gmra.mxu0 %v229
      %v463 = vpop.f32.mrf.mxu0
      %v464 = vadd.f32 0.0, %v463
      %v465 = vpop.f32.mrf.mxu0
      %v466 = vpop.f32.mrf.mxu0
      %v467 = vadd.f32 0.0, %v466
      %v468 = vpop.f32.mrf.mxu0
      %469 = vdwg.mxu0
      %470 = vmatprep.subr.bf16.mxu0 0
      %471 = vmatpush1.bf16.msra.mxu0 %v388
      %472 = vmatprep.subr.bf16.mxu0 0
      %473 = vmatpush1.bf16.msra.mxu0 %v387
      %474 = vmatprep.subr.bf16.mxu0 0
      %475 = vmatpush1.bf16.msra.mxu0 %v386
      %476 = vmatprep.subr.bf16.mxu0 0
      %477 = vmatpush1.bf16.msra.mxu0 %v385
      %478 = vmatprep.subr.bf16.mxu0 0
      %479 = vmatpush1.bf16.msra.mxu0 %v384
      %480 = vmatprep.subr.bf16.mxu0 0
      %481 = vmatpush1.bf16.msra.mxu0 %v383
      %482 = vmatprep.subr.bf16.mxu0 0
      %483 = vmatpush1.bf16.msra.mxu0 %v382
      %484 = vmatprep.subr.bf16.mxu0 0
      %485 = vmatpush1.bf16.msra.mxu0 %v381
      %486 = vmatprep.subr.bf16.mxu0 0
      %487 = vmatpush2.bf16.msra.mxu0 %v396
      %488 = vmatprep.subr.bf16.mxu0 0
      %489 = vmatpush2.bf16.msra.mxu0 %v395
      %490 = vmatprep.subr.bf16.mxu0 0
      %491 = vmatpush2.bf16.msra.mxu0 %v394
      %492 = vmatprep.subr.bf16.mxu0 0
      %493 = vmatpush2.bf16.msra.mxu0 %v393
      %494 = vmatprep.subr.bf16.mxu0 0
      %495 = vmatpush2.bf16.msra.mxu0 %v392
      %496 = vmatprep.subr.bf16.mxu0 0
      %497 = vmatpush2.bf16.msra.mxu0 %v391
      %498 = vmatprep.subr.bf16.mxu0 0
      %499 = vmatpush2.bf16.msra.mxu0 %v390
      %500 = vmatprep.subr.bf16.mxu0 0
      %501 = vmatpush2.bf16.msra.mxu0 %v389
      %502 = vmatprep.mubr.bf16.mxu0 %v232
      %503 = vmatmul.mubr.bf16.gmra.mxu0 %v231
      %v504 = vpop.f32.mrf.mxu0
      %v505 = vadd.f32 %v464, %v504
      %v506 = vpop.f32.mrf.mxu0
      %v507 = vpop.f32.mrf.mxu0
      %v508 = vadd.f32 %v467, %v507
      %v509 = vpop.f32.mrf.mxu0
      %510 = vdwg.mxu0
      %v511 = vadd.f32 %v151, %v505
      %v512 = vadd.f32 %v152, %v508
      %513 = vst [vmem:[#allocation2] sm:$0xff] %v511
      %514 = vst [vmem:[#allocation2 + $0x8] sm:$0xff] %v512
      %s515 = scalar_lea.vmem %s138, 48
      %v516 = vld [vmem:[%s515] sm:$0xff]
      %v517 = vld [vmem:[%s515 + $0x8] sm:$0xff]
      %v518 = vld [vmem:[%s515 + $0x10] sm:$0xff]
      %v519 = vld [vmem:[%s515 + $0x18] sm:$0xff]
      %v520 = vld [vmem:[#allocation2] sm:$0xff]
      %v521 = vld [vmem:[#allocation2 + $0x8] sm:$0xff]
      %s522 = scalar_lea.vmem %s1, 256
      %v523 = vld [vmem:[%s522] sm:$0xf]
      %v524 = vld [vmem:[%s522 + $0x4] sm:$0xf]
      %v525 = vld [vmem:[%s522 + $0x8] sm:$0xf]
      %v526 = vld [vmem:[%s522 + $0xc] sm:$0xf]
      %v527 = vld [vmem:[%s522 + $0x10] sm:$0xf]
      %v528 = vld [vmem:[%s522 + $0x14] sm:$0xf]
      %v529 = vld [vmem:[%s522 + $0x18] sm:$0xf]
      %v530 = vld [vmem:[%s522 + $0x1c] sm:$0xf]
      %v531 = vld [vmem:[%s522 + $0x20] sm:$0xf]
      %v532 = vld [vmem:[%s522 + $0x24] sm:$0xf]
      %v533 = vld [vmem:[%s522 + $0x28] sm:$0xf]
      %v534 = vld [vmem:[%s522 + $0x2c] sm:$0xf]
      %v535 = vld [vmem:[%s522 + $0x30] sm:$0xf]
      %v536 = vld [vmem:[%s522 + $0x34] sm:$0xf]
      %v537 = vld [vmem:[%s522 + $0x38] sm:$0xf]
      %v538 = vld [vmem:[%s522 + $0x3c] sm:$0xf]
      %v539 = vld [vmem:[%s522 + $0x40] sm:$0xf]
      %v540 = vld [vmem:[%s522 + $0x44] sm:$0xf]
      %v541 = vld [vmem:[%s522 + $0x48] sm:$0xf]
      %v542 = vld [vmem:[%s522 + $0x4c] sm:$0xf]
      %v543 = vld [vmem:[%s522 + $0x50] sm:$0xf]
      %v544 = vld [vmem:[%s522 + $0x54] sm:$0xf]
      %v545 = vld [vmem:[%s522 + $0x58] sm:$0xf]
      %v546 = vld [vmem:[%s522 + $0x5c] sm:$0xf]
      %v547 = vld [vmem:[%s522 + $0x60] sm:$0xf]
      %v548 = vld [vmem:[%s522 + $0x64] sm:$0xf]
      %v549 = vld [vmem:[%s522 + $0x68] sm:$0xf]
      %v550 = vld [vmem:[%s522 + $0x6c] sm:$0xf]
      %v551 = vld [vmem:[%s522 + $0x70] sm:$0xf]
      %v552 = vld [vmem:[%s522 + $0x74] sm:$0xf]
      %v553 = vld [vmem:[%s522 + $0x78] sm:$0xf]
      %v554 = vld [vmem:[%s522 + $0x7c] sm:$0xf]
      %v555 = vld [vmem:[%s522 + $0x80] sm:$0xf]
      %v556 = vld [vmem:[%s522 + $0x84] sm:$0xf]
      %v557 = vld [vmem:[%s522 + $0x88] sm:$0xf]
      %v558 = vld [vmem:[%s522 + $0x8c] sm:$0xf]
      %v559 = vld [vmem:[%s522 + $0x90] sm:$0xf]
      %v560 = vld [vmem:[%s522 + $0x94] sm:$0xf]
      %v561 = vld [vmem:[%s522 + $0x98] sm:$0xf]
      %v562 = vld [vmem:[%s522 + $0x9c] sm:$0xf]
      %v563 = vld [vmem:[%s522 + $0xa0] sm:$0xf]
      %v564 = vld [vmem:[%s522 + $0xa4] sm:$0xf]
      %v565 = vld [vmem:[%s522 + $0xa8] sm:$0xf]
      %v566 = vld [vmem:[%s522 + $0xac] sm:$0xf]
      %v567 = vld [vmem:[%s522 + $0xb0] sm:$0xf]
      %v568 = vld [vmem:[%s522 + $0xb4] sm:$0xf]
      %v569 = vld [vmem:[%s522 + $0xb8] sm:$0xf]
      %v570 = vld [vmem:[%s522 + $0xbc] sm:$0xf]
      %v571 = vld [vmem:[%s522 + $0xc0] sm:$0xf]
      %v572 = vld [vmem:[%s522 + $0xc4] sm:$0xf]
      %v573 = vld [vmem:[%s522 + $0xc8] sm:$0xf]
      %v574 = vld [vmem:[%s522 + $0xcc] sm:$0xf]
      %v575 = vld [vmem:[%s522 + $0xd0] sm:$0xf]
      %v576 = vld [vmem:[%s522 + $0xd4] sm:$0xf]
      %v577 = vld [vmem:[%s522 + $0xd8] sm:$0xf]
      %v578 = vld [vmem:[%s522 + $0xdc] sm:$0xf]
      %v579 = vld [vmem:[%s522 + $0xe0] sm:$0xf]
      %v580 = vld [vmem:[%s522 + $0xe4] sm:$0xf]
      %v581 = vld [vmem:[%s522 + $0xe8] sm:$0xf]
      %v582 = vld [vmem:[%s522 + $0xec] sm:$0xf]
      %v583 = vld [vmem:[%s522 + $0xf0] sm:$0xf]
      %v584 = vld [vmem:[%s522 + $0xf4] sm:$0xf]
      %v585 = vld [vmem:[%s522 + $0xf8] sm:$0xf]
      %v586 = vld [vmem:[%s522 + $0xfc] sm:$0xf]
      %v591 = vunpack.c.l.b16 %v516
      %v592 = vunpack.c.h.b16 %v516
      %v593 = vunpack.c.l.b16 %v517
      %v594 = vunpack.c.h.b16 %v517
      %v595 = vunpack.c.l.b16 %v518
      %v596 = vunpack.c.h.b16 %v518
      %v597 = vunpack.c.l.b16 %v519
      %v598 = vunpack.c.h.b16 %v519
      %v599 = vpack.c.b16 %v595, %v591
      %v600 = vpack.c.b16 %v596, %v592
      %v601 = vpack.c.b16 %v597, %v593
      %v602 = vpack.c.b16 %v598, %v594
      %v671 = vunpack.c.l.b16 %v523
      %v672 = vunpack.c.l.b16 %v524
      %v673 = vunpack.c.l.b16 %v525
      %v674 = vunpack.c.l.b16 %v526
      %v675 = vunpack.c.l.b16 %v527
      %v676 = vunpack.c.l.b16 %v528
      %v677 = vunpack.c.l.b16 %v529
      %v678 = vunpack.c.l.b16 %v530
      %v679 = vunpack.c.l.b16 %v531
      %v680 = vunpack.c.l.b16 %v532
      %v681 = vunpack.c.l.b16 %v533
      %v682 = vunpack.c.l.b16 %v534
      %v683 = vunpack.c.l.b16 %v535
      %v684 = vunpack.c.l.b16 %v536
      %v685 = vunpack.c.l.b16 %v537
      %v686 = vunpack.c.l.b16 %v538
      %v687 = vunpack.c.l.b16 %v539
      %v688 = vunpack.c.l.b16 %v540
      %v689 = vunpack.c.l.b16 %v541
      %v690 = vunpack.c.l.b16 %v542
      %v691 = vunpack.c.l.b16 %v543
      %v692 = vunpack.c.l.b16 %v544
      %v693 = vunpack.c.l.b16 %v545
      %v694 = vunpack.c.l.b16 %v546
      %v695 = vunpack.c.l.b16 %v547
      %v696 = vunpack.c.l.b16 %v548
      %v697 = vunpack.c.l.b16 %v549
      %v698 = vunpack.c.l.b16 %v550
      %v699 = vunpack.c.l.b16 %v551
      %v700 = vunpack.c.l.b16 %v552
      %v701 = vunpack.c.l.b16 %v553
      %v702 = vunpack.c.l.b16 %v554
      %v703 = vunpack.c.l.b16 %v555
      %v704 = vunpack.c.l.b16 %v556
      %v705 = vunpack.c.l.b16 %v557
      %v706 = vunpack.c.l.b16 %v558
      %v707 = vunpack.c.l.b16 %v559
      %v708 = vunpack.c.l.b16 %v560
      %v709 = vunpack.c.l.b16 %v561
      %v710 = vunpack.c.l.b16 %v562
      %v711 = vunpack.c.l.b16 %v563
      %v712 = vunpack.c.l.b16 %v564
      %v713 = vunpack.c.l.b16 %v565
      %v714 = vunpack.c.l.b16 %v566
      %v715 = vunpack.c.l.b16 %v567
      %v716 = vunpack.c.l.b16 %v568
      %v717 = vunpack.c.l.b16 %v569
      %v718 = vunpack.c.l.b16 %v570
      %v719 = vunpack.c.l.b16 %v571
      %v720 = vunpack.c.l.b16 %v572
      %v721 = vunpack.c.l.b16 %v573
      %v722 = vunpack.c.l.b16 %v574
      %v723 = vunpack.c.l.b16 %v575
      %v724 = vunpack.c.l.b16 %v576
      %v725 = vunpack.c.l.b16 %v577
      %v726 = vunpack.c.l.b16 %v578
      %v727 = vunpack.c.l.b16 %v579
      %v728 = vunpack.c.l.b16 %v580
      %v729 = vunpack.c.l.b16 %v581
      %v730 = vunpack.c.l.b16 %v582
      %v731 = vunpack.c.l.b16 %v583
      %v732 = vunpack.c.l.b16 %v584
      %v733 = vunpack.c.l.b16 %v585
      %v734 = vunpack.c.l.b16 %v586
      %v735 = vpack.c.b16 %v672, %v671
      %v736 = vpack.c.b16 %v674, %v673
      %v737 = vpack.c.b16 %v676, %v675
      %v738 = vpack.c.b16 %v678, %v677
      %v739 = vpack.c.b16 %v680, %v679
      %v740 = vpack.c.b16 %v682, %v681
      %v741 = vpack.c.b16 %v684, %v683
      %v742 = vpack.c.b16 %v686, %v685
      %v743 = vpack.c.b16 %v688, %v687
      %v744 = vpack.c.b16 %v690, %v689
      %v745 = vpack.c.b16 %v692, %v691
      %v746 = vpack.c.b16 %v694, %v693
      %v747 = vpack.c.b16 %v696, %v695
      %v748 = vpack.c.b16 %v698, %v697
      %v749 = vpack.c.b16 %v700, %v699
      %v750 = vpack.c.b16 %v702, %v701
      %v751 = vpack.c.b16 %v704, %v703
      %v752 = vpack.c.b16 %v706, %v705
      %v753 = vpack.c.b16 %v708, %v707
      %v754 = vpack.c.b16 %v710, %v709
      %v755 = vpack.c.b16 %v712, %v711
      %v756 = vpack.c.b16 %v714, %v713
      %v757 = vpack.c.b16 %v716, %v715
      %v758 = vpack.c.b16 %v718, %v717
      %v759 = vpack.c.b16 %v720, %v719
      %v760 = vpack.c.b16 %v722, %v721
      %v761 = vpack.c.b16 %v724, %v723
      %v762 = vpack.c.b16 %v726, %v725
      %v763 = vpack.c.b16 %v728, %v727
      %v764 = vpack.c.b16 %v730, %v729
      %v765 = vpack.c.b16 %v732, %v731
      %v766 = vpack.c.b16 %v734, %v733
      %799 = vmatprep.subr.bf16.mxu0 0
      %800 = vmatpush1.bf16.msra.mxu0 %v742
      %801 = vmatprep.subr.bf16.mxu0 0
      %802 = vmatpush1.bf16.msra.mxu0 %v741
      %803 = vmatprep.subr.bf16.mxu0 0
      %804 = vmatpush1.bf16.msra.mxu0 %v740
      %805 = vmatprep.subr.bf16.mxu0 0
      %806 = vmatpush1.bf16.msra.mxu0 %v739
      %807 = vmatprep.subr.bf16.mxu0 0
      %808 = vmatpush1.bf16.msra.mxu0 %v738
      %809 = vmatprep.subr.bf16.mxu0 0
      %810 = vmatpush1.bf16.msra.mxu0 %v737
      %811 = vmatprep.subr.bf16.mxu0 0
      %812 = vmatpush1.bf16.msra.mxu0 %v736
      %813 = vmatprep.subr.bf16.mxu0 0
      %814 = vmatpush1.bf16.msra.mxu0 %v735
      %815 = vmatprep.subr.bf16.mxu0 0
      %816 = vmatpush2.bf16.msra.mxu0 %v750
      %817 = vmatprep.subr.bf16.mxu0 0
      %818 = vmatpush2.bf16.msra.mxu0 %v749
      %819 = vmatprep.subr.bf16.mxu0 0
      %820 = vmatpush2.bf16.msra.mxu0 %v748
      %821 = vmatprep.subr.bf16.mxu0 0
      %822 = vmatpush2.bf16.msra.mxu0 %v747
      %823 = vmatprep.subr.bf16.mxu0 0
      %824 = vmatpush2.bf16.msra.mxu0 %v746
      %825 = vmatprep.subr.bf16.mxu0 0
      %826 = vmatpush2.bf16.msra.mxu0 %v745
      %827 = vmatprep.subr.bf16.mxu0 0
      %828 = vmatpush2.bf16.msra.mxu0 %v744
      %829 = vmatprep.subr.bf16.mxu0 0
      %830 = vmatpush2.bf16.msra.mxu0 %v743
      %831 = vmatprep.mubr.bf16.mxu0 %v600
      %832 = vmatmul.mubr.bf16.gmra.mxu0 %v599
      %v833 = vpop.f32.mrf.mxu0
      %v834 = vadd.f32 0.0, %v833
      %v835 = vpop.f32.mrf.mxu0
      %v836 = vpop.f32.mrf.mxu0
      %v837 = vadd.f32 0.0, %v836
      %v838 = vpop.f32.mrf.mxu0
      %839 = vdwg.mxu0
      %840 = vmatprep.subr.bf16.mxu0 0
      %841 = vmatpush1.bf16.msra.mxu0 %v758
      %842 = vmatprep.subr.bf16.mxu0 0
      %843 = vmatpush1.bf16.msra.mxu0 %v757
      %844 = vmatprep.subr.bf16.mxu0 0
      %845 = vmatpush1.bf16.msra.mxu0 %v756
      %846 = vmatprep.subr.bf16.mxu0 0
      %847 = vmatpush1.bf16.msra.mxu0 %v755
      %848 = vmatprep.subr.bf16.mxu0 0
      %849 = vmatpush1.bf16.msra.mxu0 %v754
      %850 = vmatprep.subr.bf16.mxu0 0
      %851 = vmatpush1.bf16.msra.mxu0 %v753
      %852 = vmatprep.subr.bf16.mxu0 0
      %853 = vmatpush1.bf16.msra.mxu0 %v752
      %854 = vmatprep.subr.bf16.mxu0 0
      %855 = vmatpush1.bf16.msra.mxu0 %v751
      %856 = vmatprep.subr.bf16.mxu0 0
      %857 = vmatpush2.bf16.msra.mxu0 %v766
      %858 = vmatprep.subr.bf16.mxu0 0
      %859 = vmatpush2.bf16.msra.mxu0 %v765
      %860 = vmatprep.subr.bf16.mxu0 0
      %861 = vmatpush2.bf16.msra.mxu0 %v764
      %862 = vmatprep.subr.bf16.mxu0 0
      %863 = vmatpush2.bf16.msra.mxu0 %v763
      %864 = vmatprep.subr.bf16.mxu0 0
      %865 = vmatpush2.bf16.msra.mxu0 %v762
      %866 = vmatprep.subr.bf16.mxu0 0
      %867 = vmatpush2.bf16.msra.mxu0 %v761
      %868 = vmatprep.subr.bf16.mxu0 0
      %869 = vmatpush2.bf16.msra.mxu0 %v760
      %870 = vmatprep.subr.bf16.mxu0 0
      %871 = vmatpush2.bf16.msra.mxu0 %v759
      %872 = vmatprep.mubr.bf16.mxu0 %v602
      %873 = vmatmul.mubr.bf16.gmra.mxu0 %v601
      %v874 = vpop.f32.mrf.mxu0
      %v875 = vadd.f32 %v834, %v874
      %v876 = vpop.f32.mrf.mxu0
      %v877 = vpop.f32.mrf.mxu0
      %v878 = vadd.f32 %v837, %v877
      %v879 = vpop.f32.mrf.mxu0
      %880 = vdwg.mxu0
      %v881 = vadd.f32 %v520, %v875
      %v882 = vadd.f32 %v521, %v878
      %883 = vst [vmem:[#allocation2] sm:$0xff] %v881
      %884 = vst [vmem:[#allocation2 + $0x8] sm:$0xff] %v882
      %v885 = vld [vmem:[%s138] sm:$0xcc]
      %v886 = vld [vmem:[%s138 + $0x8] sm:$0xcc]
      %v887 = vld [vmem:[%s138 + $0x10] sm:$0xff]
      %v888 = vld [vmem:[%s138 + $0x18] sm:$0xff]
      %v889 = vld [vmem:[%s138 + $0x20] sm:$0x33]
      %v890 = vld [vmem:[%s138 + $0x28] sm:$0x33]
      %v891 = vld [vmem:[#allocation2] sm:$0xff]
      %v892 = vld [vmem:[#allocation2 + $0x8] sm:$0xff]
      %s893 = scalar_lea.vmem %s1, 512
      %v894 = vld [vmem:[%s893] sm:$0xf]
      %v895 = vld [vmem:[%s893 + $0x4] sm:$0xf]
      %v896 = vld [vmem:[%s893 + $0x8] sm:$0xf]
      %v897 = vld [vmem:[%s893 + $0xc] sm:$0xf]
      %v898 = vld [vmem:[%s893 + $0x10] sm:$0xf]
      %v899 = vld [vmem:[%s893 + $0x14] sm:$0xf]
      %v900 = vld [vmem:[%s893 + $0x18] sm:$0xf]
      %v901 = vld [vmem:[%s893 + $0x1c] sm:$0xf]
      %v902 = vld [vmem:[%s893 + $0x20] sm:$0xf]
      %v903 = vld [vmem:[%s893 + $0x24] sm:$0xf]
      %v904 = vld [vmem:[%s893 + $0x28] sm:$0xf]
      %v905 = vld [vmem:[%s893 + $0x2c] sm:$0xf]
      %v906 = vld [vmem:[%s893 + $0x30] sm:$0xf]
      %v907 = vld [vmem:[%s893 + $0x34] sm:$0xf]
      %v908 = vld [vmem:[%s893 + $0x38] sm:$0xf]
      %v909 = vld [vmem:[%s893 + $0x3c] sm:$0xf]
      %v910 = vld [vmem:[%s893 + $0x40] sm:$0xf]
      %v911 = vld [vmem:[%s893 + $0x44] sm:$0xf]
      %v912 = vld [vmem:[%s893 + $0x48] sm:$0xf]
      %v913 = vld [vmem:[%s893 + $0x4c] sm:$0xf]
      %v914 = vld [vmem:[%s893 + $0x50] sm:$0xf]
      %v915 = vld [vmem:[%s893 + $0x54] sm:$0xf]
      %v916 = vld [vmem:[%s893 + $0x58] sm:$0xf]
      %v917 = vld [vmem:[%s893 + $0x5c] sm:$0xf]
      %v918 = vld [vmem:[%s893 + $0x60] sm:$0xf]
      %v919 = vld [vmem:[%s893 + $0x64] sm:$0xf]
      %v920 = vld [vmem:[%s893 + $0x68] sm:$0xf]
      %v921 = vld [vmem:[%s893 + $0x6c] sm:$0xf]
      %v922 = vld [vmem:[%s893 + $0x70] sm:$0xf]
      %v923 = vld [vmem:[%s893 + $0x74] sm:$0xf]
      %v924 = vld [vmem:[%s893 + $0x78] sm:$0xf]
      %v925 = vld [vmem:[%s893 + $0x7c] sm:$0xf]
      %v926 = vld [vmem:[%s893 + $0x80] sm:$0xf]
      %v927 = vld [vmem:[%s893 + $0x84] sm:$0xf]
      %v928 = vld [vmem:[%s893 + $0x88] sm:$0xf]
      %v929 = vld [vmem:[%s893 + $0x8c] sm:$0xf]
      %v930 = vld [vmem:[%s893 + $0x90] sm:$0xf]
      %v931 = vld [vmem:[%s893 + $0x94] sm:$0xf]
      %v932 = vld [vmem:[%s893 + $0x98] sm:$0xf]
      %v933 = vld [vmem:[%s893 + $0x9c] sm:$0xf]
      %v934 = vld [vmem:[%s893 + $0xa0] sm:$0xf]
      %v935 = vld [vmem:[%s893 + $0xa4] sm:$0xf]
      %v936 = vld [vmem:[%s893 + $0xa8] sm:$0xf]
      %v937 = vld [vmem:[%s893 + $0xac] sm:$0xf]
      %v938 = vld [vmem:[%s893 + $0xb0] sm:$0xf]
      %v939 = vld [vmem:[%s893 + $0xb4] sm:$0xf]
      %v940 = vld [vmem:[%s893 + $0xb8] sm:$0xf]
      %v941 = vld [vmem:[%s893 + $0xbc] sm:$0xf]
      %v942 = vld [vmem:[%s893 + $0xc0] sm:$0xf]
      %v943 = vld [vmem:[%s893 + $0xc4] sm:$0xf]
      %v944 = vld [vmem:[%s893 + $0xc8] sm:$0xf]
      %v945 = vld [vmem:[%s893 + $0xcc] sm:$0xf]
      %v946 = vld [vmem:[%s893 + $0xd0] sm:$0xf]
      %v947 = vld [vmem:[%s893 + $0xd4] sm:$0xf]
      %v948 = vld [vmem:[%s893 + $0xd8] sm:$0xf]
      %v949 = vld [vmem:[%s893 + $0xdc] sm:$0xf]
      %v950 = vld [vmem:[%s893 + $0xe0] sm:$0xf]
      %v951 = vld [vmem:[%s893 + $0xe4] sm:$0xf]
      %v952 = vld [vmem:[%s893 + $0xe8] sm:$0xf]
      %v953 = vld [vmem:[%s893 + $0xec] sm:$0xf]
      %v954 = vld [vmem:[%s893 + $0xf0] sm:$0xf]
      %v955 = vld [vmem:[%s893 + $0xf4] sm:$0xf]
      %v956 = vld [vmem:[%s893 + $0xf8] sm:$0xf]
      %v957 = vld [vmem:[%s893 + $0xfc] sm:$0xf]
      %v964 = vunpack.c.l.b16 %v885
      %v965 = vunpack.c.h.b16 %v885
      %v966 = vunpack.c.l.b16 %v886
      %v967 = vunpack.c.h.b16 %v886
      %v968 = vunpack.c.l.b16 %v887
      %v969 = vunpack.c.h.b16 %v887
      %v970 = vunpack.c.l.b16 %v888
      %v971 = vunpack.c.h.b16 %v888
      %v972 = vunpack.c.l.b16 %v889
      %v973 = vunpack.c.h.b16 %v889
      %v974 = vunpack.c.l.b16 %v890
      %v975 = vunpack.c.h.b16 %v890
      %v976 = vpack.c.b16 %v968, %v964
      %v977 = vpack.c.b16 %v969, %v965
      %v978 = vpack.c.b16 %v970, %v966
      %v979 = vpack.c.b16 %v971, %v967
      %v980 = vpack.c.b16 %v972, %v972
      %v981 = vpack.c.b16 %v973, %v973
      %v982 = vpack.c.b16 %v974, %v974
      %v983 = vpack.c.b16 %v975, %v975
      %vm984 = vcmask 1045504
      %v985 = vrot.slane %v976, 2
      %v986 = vrot.slane %v980, 2
      %v987 = vsel %vm984, %v985, %v986
      %v988 = vrot.slane %v977, 2
      %v989 = vrot.slane %v981, 2
      %v990 = vsel %vm984, %v988, %v989
      %v991 = vrot.slane %v978, 2
      %v992 = vrot.slane %v982, 2
      %v993 = vsel %vm984, %v991, %v992
      %v994 = vrot.slane %v979, 2
      %v995 = vrot.slane %v983, 2
      %v996 = vsel %vm984, %v994, %v995
      %v1065 = vunpack.c.l.b16 %v894
      %v1066 = vunpack.c.l.b16 %v895
      %v1067 = vunpack.c.l.b16 %v896
      %v1068 = vunpack.c.l.b16 %v897
      %v1069 = vunpack.c.l.b16 %v898
      %v1070 = vunpack.c.l.b16 %v899
      %v1071 = vunpack.c.l.b16 %v900
      %v1072 = vunpack.c.l.b16 %v901
      %v1073 = vunpack.c.l.b16 %v902
      %v1074 = vunpack.c.l.b16 %v903
      %v1075 = vunpack.c.l.b16 %v904
      %v1076 = vunpack.c.l.b16 %v905
      %v1077 = vunpack.c.l.b16 %v906
      %v1078 = vunpack.c.l.b16 %v907
      %v1079 = vunpack.c.l.b16 %v908
      %v1080 = vunpack.c.l.b16 %v909
      %v1081 = vunpack.c.l.b16 %v910
      %v1082 = vunpack.c.l.b16 %v911
      %v1083 = vunpack.c.l.b16 %v912
      %v1084 = vunpack.c.l.b16 %v913
      %v1085 = vunpack.c.l.b16 %v914
      %v1086 = vunpack.c.l.b16 %v915
      %v1087 = vunpack.c.l.b16 %v916
      %v1088 = vunpack.c.l.b16 %v917
      %v1089 = vunpack.c.l.b16 %v918
      %v1090 = vunpack.c.l.b16 %v919
      %v1091 = vunpack.c.l.b16 %v920
      %v1092 = vunpack.c.l.b16 %v921
      %v1093 = vunpack.c.l.b16 %v922
      %v1094 = vunpack.c.l.b16 %v923
      %v1095 = vunpack.c.l.b16 %v924
      %v1096 = vunpack.c.l.b16 %v925
      %v1097 = vunpack.c.l.b16 %v926
      %v1098 = vunpack.c.l.b16 %v927
      %v1099 = vunpack.c.l.b16 %v928
      %v1100 = vunpack.c.l.b16 %v929
      %v1101 = vunpack.c.l.b16 %v930
      %v1102 = vunpack.c.l.b16 %v931
      %v1103 = vunpack.c.l.b16 %v932
      %v1104 = vunpack.c.l.b16 %v933
      %v1105 = vunpack.c.l.b16 %v934
      %v1106 = vunpack.c.l.b16 %v935
      %v1107 = vunpack.c.l.b16 %v936
      %v1108 = vunpack.c.l.b16 %v937
      %v1109 = vunpack.c.l.b16 %v938
      %v1110 = vunpack.c.l.b16 %v939
      %v1111 = vunpack.c.l.b16 %v940
      %v1112 = vunpack.c.l.b16 %v941
      %v1113 = vunpack.c.l.b16 %v942
      %v1114 = vunpack.c.l.b16 %v943
      %v1115 = vunpack.c.l.b16 %v944
      %v1116 = vunpack.c.l.b16 %v945
      %v1117 = vunpack.c.l.b16 %v946
      %v1118 = vunpack.c.l.b16 %v947
      %v1119 = vunpack.c.l.b16 %v948
      %v1120 = vunpack.c.l.b16 %v949
      %v1121 = vunpack.c.l.b16 %v950
      %v1122 = vunpack.c.l.b16 %v951
      %v1123 = vunpack.c.l.b16 %v952
      %v1124 = vunpack.c.l.b16 %v953
      %v1125 = vunpack.c.l.b16 %v954
      %v1126 = vunpack.c.l.b16 %v955
      %v1127 = vunpack.c.l.b16 %v956
      %v1128 = vunpack.c.l.b16 %v957
      %v1129 = vpack.c.b16 %v1066, %v1065
      %v1130 = vpack.c.b16 %v1068, %v1067
      %v1131 = vpack.c.b16 %v1070, %v1069
      %v1132 = vpack.c.b16 %v1072, %v1071
      %v1133 = vpack.c.b16 %v1074, %v1073
      %v1134 = vpack.c.b16 %v1076, %v1075
      %v1135 = vpack.c.b16 %v1078, %v1077
      %v1136 = vpack.c.b16 %v1080, %v1079
      %v1137 = vpack.c.b16 %v1082, %v1081
      %v1138 = vpack.c.b16 %v1084, %v1083
      %v1139 = vpack.c.b16 %v1086, %v1085
      %v1140 = vpack.c.b16 %v1088, %v1087
      %v1141 = vpack.c.b16 %v1090, %v1089
      %v1142 = vpack.c.b16 %v1092, %v1091
      %v1143 = vpack.c.b16 %v1094, %v1093
      %v1144 = vpack.c.b16 %v1096, %v1095
      %v1145 = vpack.c.b16 %v1098, %v1097
      %v1146 = vpack.c.b16 %v1100, %v1099
      %v1147 = vpack.c.b16 %v1102, %v1101
      %v1148 = vpack.c.b16 %v1104, %v1103
      %v1149 = vpack.c.b16 %v1106, %v1105
      %v1150 = vpack.c.b16 %v1108, %v1107
      %v1151 = vpack.c.b16 %v1110, %v1109
      %v1152 = vpack.c.b16 %v1112, %v1111
      %v1153 = vpack.c.b16 %v1114, %v1113
      %v1154 = vpack.c.b16 %v1116, %v1115
      %v1155 = vpack.c.b16 %v1118, %v1117
      %v1156 = vpack.c.b16 %v1120, %v1119
      %v1157 = vpack.c.b16 %v1122, %v1121
      %v1158 = vpack.c.b16 %v1124, %v1123
      %v1159 = vpack.c.b16 %v1126, %v1125
      %v1160 = vpack.c.b16 %v1128, %v1127
      %1193 = vmatprep.subr.bf16.mxu0 0
      %1194 = vmatpush1.bf16.msra.mxu0 %v1136
      %1195 = vmatprep.subr.bf16.mxu0 0
      %1196 = vmatpush1.bf16.msra.mxu0 %v1135
      %1197 = vmatprep.subr.bf16.mxu0 0
      %1198 = vmatpush1.bf16.msra.mxu0 %v1134
      %1199 = vmatprep.subr.bf16.mxu0 0
      %1200 = vmatpush1.bf16.msra.mxu0 %v1133
      %1201 = vmatprep.subr.bf16.mxu0 0
      %1202 = vmatpush1.bf16.msra.mxu0 %v1132
      %1203 = vmatprep.subr.bf16.mxu0 0
      %1204 = vmatpush1.bf16.msra.mxu0 %v1131
      %1205 = vmatprep.subr.bf16.mxu0 0
      %1206 = vmatpush1.bf16.msra.mxu0 %v1130
      %1207 = vmatprep.subr.bf16.mxu0 0
      %1208 = vmatpush1.bf16.msra.mxu0 %v1129
      %1209 = vmatprep.subr.bf16.mxu0 0
      %1210 = vmatpush2.bf16.msra.mxu0 %v1144
      %1211 = vmatprep.subr.bf16.mxu0 0
      %1212 = vmatpush2.bf16.msra.mxu0 %v1143
      %1213 = vmatprep.subr.bf16.mxu0 0
      %1214 = vmatpush2.bf16.msra.mxu0 %v1142
      %1215 = vmatprep.subr.bf16.mxu0 0
      %1216 = vmatpush2.bf16.msra.mxu0 %v1141
      %1217 = vmatprep.subr.bf16.mxu0 0
      %1218 = vmatpush2.bf16.msra.mxu0 %v1140
      %1219 = vmatprep.subr.bf16.mxu0 0
      %1220 = vmatpush2.bf16.msra.mxu0 %v1139
      %1221 = vmatprep.subr.bf16.mxu0 0
      %1222 = vmatpush2.bf16.msra.mxu0 %v1138
      %1223 = vmatprep.subr.bf16.mxu0 0
      %1224 = vmatpush2.bf16.msra.mxu0 %v1137
      %1225 = vmatprep.mubr.bf16.mxu0 %v990
      %1226 = vmatmul.mubr.bf16.gmra.mxu0 %v987
      %v1227 = vpop.f32.mrf.mxu0
      %v1228 = vadd.f32 0.0, %v1227
      %v1229 = vpop.f32.mrf.mxu0
      %v1230 = vpop.f32.mrf.mxu0
      %v1231 = vadd.f32 0.0, %v1230
      %v1232 = vpop.f32.mrf.mxu0
      %1233 = vdwg.mxu0
      %1234 = vmatprep.subr.bf16.mxu0 0
      %1235 = vmatpush1.bf16.msra.mxu0 %v1152
      %1236 = vmatprep.subr.bf16.mxu0 0
      %1237 = vmatpush1.bf16.msra.mxu0 %v1151
      %1238 = vmatprep.subr.bf16.mxu0 0
      %1239 = vmatpush1.bf16.msra.mxu0 %v1150
      %1240 = vmatprep.subr.bf16.mxu0 0
      %1241 = vmatpush1.bf16.msra.mxu0 %v1149
      %1242 = vmatprep.subr.bf16.mxu0 0
      %1243 = vmatpush1.bf16.msra.mxu0 %v1148
      %1244 = vmatprep.subr.bf16.mxu0 0
      %1245 = vmatpush1.bf16.msra.mxu0 %v1147
      %1246 = vmatprep.subr.bf16.mxu0 0
      %1247 = vmatpush1.bf16.msra.mxu0 %v1146
      %1248 = vmatprep.subr.bf16.mxu0 0
      %1249 = vmatpush1.bf16.msra.mxu0 %v1145
      %1250 = vmatprep.subr.bf16.mxu0 0
      %1251 = vmatpush2.bf16.msra.mxu0 %v1160
      %1252 = vmatprep.subr.bf16.mxu0 0
      %1253 = vmatpush2.bf16.msra.mxu0 %v1159
      %1254 = vmatprep.subr.bf16.mxu0 0
      %1255 = vmatpush2.bf16.msra.mxu0 %v1158
      %1256 = vmatprep.subr.bf16.mxu0 0
      %1257 = vmatpush2.bf16.msra.mxu0 %v1157
      %1258 = vmatprep.subr.bf16.mxu0 0
      %1259 = vmatpush2.bf16.msra.mxu0 %v1156
      %1260 = vmatprep.subr.bf16.mxu0 0
      %1261 = vmatpush2.bf16.msra.mxu0 %v1155
      %1262 = vmatprep.subr.bf16.mxu0 0
      %1263 = vmatpush2.bf16.msra.mxu0 %v1154
      %1264 = vmatprep.subr.bf16.mxu0 0
      %1265 = vmatpush2.bf16.msra.mxu0 %v1153
      %1266 = vmatprep.mubr.bf16.mxu0 %v996
      %1267 = vmatmul.mubr.bf16.gmra.mxu0 %v993
      %v1268 = vpop.f32.mrf.mxu0
      %v1269 = vadd.f32 %v1228, %v1268
      %v1270 = vpop.f32.mrf.mxu0
      %v1271 = vpop.f32.mrf.mxu0
      %v1272 = vadd.f32 %v1231, %v1271
      %v1273 = vpop.f32.mrf.mxu0
      %1274 = vdwg.mxu0
      %v1275 = vadd.f32 %v891, %v1269
      %v1276 = vadd.f32 %v892, %v1272
      %1277 = vst [vmem:[#allocation2] sm:$0xff] %v1275
      %1278 = vst [vmem:[#allocation2 + $0x8] sm:$0xff] %v1276
      %v1279 = vld [vmem:[%s515] sm:$0xcc]
      %v1280 = vld [vmem:[%s515 + $0x8] sm:$0xcc]
      %v1281 = vld [vmem:[%s515 + $0x10] sm:$0xff]
      %v1282 = vld [vmem:[%s515 + $0x18] sm:$0xff]
      %v1283 = vld [vmem:[%s515 + $0x20] sm:$0x33]
      %v1284 = vld [vmem:[%s515 + $0x28] sm:$0x33]
      %v1285 = vld [vmem:[#allocation2] sm:$0xff]
      %v1286 = vld [vmem:[#allocation2 + $0x8] sm:$0xff]
      %s1287 = scalar_lea.vmem %s1, 768
      %v1288 = vld [vmem:[%s1287] sm:$0xf]
      %v1289 = vld [vmem:[%s1287 + $0x4] sm:$0xf]
      %v1290 = vld [vmem:[%s1287 + $0x8] sm:$0xf]
      %v1291 = vld [vmem:[%s1287 + $0xc] sm:$0xf]
      %v1292 = vld [vmem:[%s1287 + $0x10] sm:$0xf]
      %v1293 = vld [vmem:[%s1287 + $0x14] sm:$0xf]
      %v1294 = vld [vmem:[%s1287 + $0x18] sm:$0xf]
      %v1295 = vld [vmem:[%s1287 + $0x1c] sm:$0xf]
      %v1296 = vld [vmem:[%s1287 + $0x20] sm:$0xf]
      %v1297 = vld [vmem:[%s1287 + $0x24] sm:$0xf]
      %v1298 = vld [vmem:[%s1287 + $0x28] sm:$0xf]
      %v1299 = vld [vmem:[%s1287 + $0x2c] sm:$0xf]
      %v1300 = vld [vmem:[%s1287 + $0x30] sm:$0xf]
      %v1301 = vld [vmem:[%s1287 + $0x34] sm:$0xf]
      %v1302 = vld [vmem:[%s1287 + $0x38] sm:$0xf]
      %v1303 = vld [vmem:[%s1287 + $0x3c] sm:$0xf]
      %v1304 = vld [vmem:[%s1287 + $0x40] sm:$0xf]
      %v1305 = vld [vmem:[%s1287 + $0x44] sm:$0xf]
      %v1306 = vld [vmem:[%s1287 + $0x48] sm:$0xf]
      %v1307 = vld [vmem:[%s1287 + $0x4c] sm:$0xf]
      %v1308 = vld [vmem:[%s1287 + $0x50] sm:$0xf]
      %v1309 = vld [vmem:[%s1287 + $0x54] sm:$0xf]
      %v1310 = vld [vmem:[%s1287 + $0x58] sm:$0xf]
      %v1311 = vld [vmem:[%s1287 + $0x5c] sm:$0xf]
      %v1312 = vld [vmem:[%s1287 + $0x60] sm:$0xf]
      %v1313 = vld [vmem:[%s1287 + $0x64] sm:$0xf]
      %v1314 = vld [vmem:[%s1287 + $0x68] sm:$0xf]
      %v1315 = vld [vmem:[%s1287 + $0x6c] sm:$0xf]
      %v1316 = vld [vmem:[%s1287 + $0x70] sm:$0xf]
      %v1317 = vld [vmem:[%s1287 + $0x74] sm:$0xf]
      %v1318 = vld [vmem:[%s1287 + $0x78] sm:$0xf]
      %v1319 = vld [vmem:[%s1287 + $0x7c] sm:$0xf]
      %v1320 = vld [vmem:[%s1287 + $0x80] sm:$0xf]
      %v1321 = vld [vmem:[%s1287 + $0x84] sm:$0xf]
      %v1322 = vld [vmem:[%s1287 + $0x88] sm:$0xf]
      %v1323 = vld [vmem:[%s1287 + $0x8c] sm:$0xf]
      %v1324 = vld [vmem:[%s1287 + $0x90] sm:$0xf]
      %v1325 = vld [vmem:[%s1287 + $0x94] sm:$0xf]
      %v1326 = vld [vmem:[%s1287 + $0x98] sm:$0xf]
      %v1327 = vld [vmem:[%s1287 + $0x9c] sm:$0xf]
      %v1328 = vld [vmem:[%s1287 + $0xa0] sm:$0xf]
      %v1329 = vld [vmem:[%s1287 + $0xa4] sm:$0xf]
      %v1330 = vld [vmem:[%s1287 + $0xa8] sm:$0xf]
      %v1331 = vld [vmem:[%s1287 + $0xac] sm:$0xf]
      %v1332 = vld [vmem:[%s1287 + $0xb0] sm:$0xf]
      %v1333 = vld [vmem:[%s1287 + $0xb4] sm:$0xf]
      %v1334 = vld [vmem:[%s1287 + $0xb8] sm:$0xf]
      %v1335 = vld [vmem:[%s1287 + $0xbc] sm:$0xf]
      %v1336 = vld [vmem:[%s1287 + $0xc0] sm:$0xf]
      %v1337 = vld [vmem:[%s1287 + $0xc4] sm:$0xf]
      %v1338 = vld [vmem:[%s1287 + $0xc8] sm:$0xf]
      %v1339 = vld [vmem:[%s1287 + $0xcc] sm:$0xf]
      %v1340 = vld [vmem:[%s1287 + $0xd0] sm:$0xf]
      %v1341 = vld [vmem:[%s1287 + $0xd4] sm:$0xf]
      %v1342 = vld [vmem:[%s1287 + $0xd8] sm:$0xf]
      %v1343 = vld [vmem:[%s1287 + $0xdc] sm:$0xf]
      %v1344 = vld [vmem:[%s1287 + $0xe0] sm:$0xf]
      %v1345 = vld [vmem:[%s1287 + $0xe4] sm:$0xf]
      %v1346 = vld [vmem:[%s1287 + $0xe8] sm:$0xf]
      %v1347 = vld [vmem:[%s1287 + $0xec] sm:$0xf]
      %v1348 = vld [vmem:[%s1287 + $0xf0] sm:$0xf]
      %v1349 = vld [vmem:[%s1287 + $0xf4] sm:$0xf]
      %v1350 = vld [vmem:[%s1287 + $0xf8] sm:$0xf]
      %v1351 = vld [vmem:[%s1287 + $0xfc] sm:$0xf]
      %v1358 = vunpack.c.l.b16 %v1279
      %v1359 = vunpack.c.h.b16 %v1279
      %v1360 = vunpack.c.l.b16 %v1280
      %v1361 = vunpack.c.h.b16 %v1280
      %v1362 = vunpack.c.l.b16 %v1281
      %v1363 = vunpack.c.h.b16 %v1281
      %v1364 = vunpack.c.l.b16 %v1282
      %v1365 = vunpack.c.h.b16 %v1282
      %v1366 = vunpack.c.l.b16 %v1283
      %v1367 = vunpack.c.h.b16 %v1283
      %v1368 = vunpack.c.l.b16 %v1284
      %v1369 = vunpack.c.h.b16 %v1284
      %v1370 = vpack.c.b16 %v1362, %v1358
      %v1371 = vpack.c.b16 %v1363, %v1359
      %v1372 = vpack.c.b16 %v1364, %v1360
      %v1373 = vpack.c.b16 %v1365, %v1361
      %v1374 = vpack.c.b16 %v1366, %v1366
      %v1375 = vpack.c.b16 %v1367, %v1367
      %v1376 = vpack.c.b16 %v1368, %v1368
      %v1377 = vpack.c.b16 %v1369, %v1369
      %v1378 = vrot.slane %v1370, 2
      %v1379 = vrot.slane %v1374, 2
      %v1380 = vsel %vm984, %v1378, %v1379
      %v1381 = vrot.slane %v1371, 2
      %v1382 = vrot.slane %v1375, 2
      %v1383 = vsel %vm984, %v1381, %v1382
      %v1384 = vrot.slane %v1372, 2
      %v1385 = vrot.slane %v1376, 2
      %v1386 = vsel %vm984, %v1384, %v1385
      %v1387 = vrot.slane %v1373, 2
      %v1388 = vrot.slane %v1377, 2
      %v1389 = vsel %vm984, %v1387, %v1388
      %v1458 = vunpack.c.l.b16 %v1288
      %v1459 = vunpack.c.l.b16 %v1289
      %v1460 = vunpack.c.l.b16 %v1290
      %v1461 = vunpack.c.l.b16 %v1291
      %v1462 = vunpack.c.l.b16 %v1292
      %v1463 = vunpack.c.l.b16 %v1293
      %v1464 = vunpack.c.l.b16 %v1294
      %v1465 = vunpack.c.l.b16 %v1295
      %v1466 = vunpack.c.l.b16 %v1296
      %v1467 = vunpack.c.l.b16 %v1297
      %v1468 = vunpack.c.l.b16 %v1298
      %v1469 = vunpack.c.l.b16 %v1299
      %v1470 = vunpack.c.l.b16 %v1300
      %v1471 = vunpack.c.l.b16 %v1301
      %v1472 = vunpack.c.l.b16 %v1302
      %v1473 = vunpack.c.l.b16 %v1303
      %v1474 = vunpack.c.l.b16 %v1304
      %v1475 = vunpack.c.l.b16 %v1305
      %v1476 = vunpack.c.l.b16 %v1306
      %v1477 = vunpack.c.l.b16 %v1307
      %v1478 = vunpack.c.l.b16 %v1308
      %v1479 = vunpack.c.l.b16 %v1309
      %v1480 = vunpack.c.l.b16 %v1310
      %v1481 = vunpack.c.l.b16 %v1311
      %v1482 = vunpack.c.l.b16 %v1312
      %v1483 = vunpack.c.l.b16 %v1313
      %v1484 = vunpack.c.l.b16 %v1314
      %v1485 = vunpack.c.l.b16 %v1315
      %v1486 = vunpack.c.l.b16 %v1316
      %v1487 = vunpack.c.l.b16 %v1317
      %v1488 = vunpack.c.l.b16 %v1318
      %v1489 = vunpack.c.l.b16 %v1319
      %v1490 = vunpack.c.l.b16 %v1320
      %v1491 = vunpack.c.l.b16 %v1321
      %v1492 = vunpack.c.l.b16 %v1322
      %v1493 = vunpack.c.l.b16 %v1323
      %v1494 = vunpack.c.l.b16 %v1324
      %v1495 = vunpack.c.l.b16 %v1325
      %v1496 = vunpack.c.l.b16 %v1326
      %v1497 = vunpack.c.l.b16 %v1327
      %v1498 = vunpack.c.l.b16 %v1328
      %v1499 = vunpack.c.l.b16 %v1329
      %v1500 = vunpack.c.l.b16 %v1330
      %v1501 = vunpack.c.l.b16 %v1331
      %v1502 = vunpack.c.l.b16 %v1332
      %v1503 = vunpack.c.l.b16 %v1333
      %v1504 = vunpack.c.l.b16 %v1334
      %v1505 = vunpack.c.l.b16 %v1335
      %v1506 = vunpack.c.l.b16 %v1336
      %v1507 = vunpack.c.l.b16 %v1337
      %v1508 = vunpack.c.l.b16 %v1338
      %v1509 = vunpack.c.l.b16 %v1339
      %v1510 = vunpack.c.l.b16 %v1340
      %v1511 = vunpack.c.l.b16 %v1341
      %v1512 = vunpack.c.l.b16 %v1342
      %v1513 = vunpack.c.l.b16 %v1343
      %v1514 = vunpack.c.l.b16 %v1344
      %v1515 = vunpack.c.l.b16 %v1345
      %v1516 = vunpack.c.l.b16 %v1346
      %v1517 = vunpack.c.l.b16 %v1347
      %v1518 = vunpack.c.l.b16 %v1348
      %v1519 = vunpack.c.l.b16 %v1349
      %v1520 = vunpack.c.l.b16 %v1350
      %v1521 = vunpack.c.l.b16 %v1351
      %v1522 = vpack.c.b16 %v1459, %v1458
      %v1523 = vpack.c.b16 %v1461, %v1460
      %v1524 = vpack.c.b16 %v1463, %v1462
      %v1525 = vpack.c.b16 %v1465, %v1464
      %v1526 = vpack.c.b16 %v1467, %v1466
      %v1527 = vpack.c.b16 %v1469, %v1468
      %v1528 = vpack.c.b16 %v1471, %v1470
      %v1529 = vpack.c.b16 %v1473, %v1472
      %v1530 = vpack.c.b16 %v1475, %v1474
      %v1531 = vpack.c.b16 %v1477, %v1476
      %v1532 = vpack.c.b16 %v1479, %v1478
      %v1533 = vpack.c.b16 %v1481, %v1480
      %v1534 = vpack.c.b16 %v1483, %v1482
      %v1535 = vpack.c.b16 %v1485, %v1484
      %v1536 = vpack.c.b16 %v1487, %v1486
      %v1537 = vpack.c.b16 %v1489, %v1488
      %v1538 = vpack.c.b16 %v1491, %v1490
      %v1539 = vpack.c.b16 %v1493, %v1492
      %v1540 = vpack.c.b16 %v1495, %v1494
      %v1541 = vpack.c.b16 %v1497, %v1496
      %v1542 = vpack.c.b16 %v1499, %v1498
      %v1543 = vpack.c.b16 %v1501, %v1500
      %v1544 = vpack.c.b16 %v1503, %v1502
      %v1545 = vpack.c.b16 %v1505, %v1504
      %v1546 = vpack.c.b16 %v1507, %v1506
      %v1547 = vpack.c.b16 %v1509, %v1508
      %v1548 = vpack.c.b16 %v1511, %v1510
      %v1549 = vpack.c.b16 %v1513, %v1512
      %v1550 = vpack.c.b16 %v1515, %v1514
      %v1551 = vpack.c.b16 %v1517, %v1516
      %v1552 = vpack.c.b16 %v1519, %v1518
      %v1553 = vpack.c.b16 %v1521, %v1520
      %1586 = vmatprep.subr.bf16.mxu0 0
      %1587 = vmatpush1.bf16.msra.mxu0 %v1529
      %1588 = vmatprep.subr.bf16.mxu0 0
      %1589 = vmatpush1.bf16.msra.mxu0 %v1528
      %1590 = vmatprep.subr.bf16.mxu0 0
      %1591 = vmatpush1.bf16.msra.mxu0 %v1527
      %1592 = vmatprep.subr.bf16.mxu0 0
      %1593 = vmatpush1.bf16.msra.mxu0 %v1526
      %1594 = vmatprep.subr.bf16.mxu0 0
      %1595 = vmatpush1.bf16.msra.mxu0 %v1525
      %1596 = vmatprep.subr.bf16.mxu0 0
      %1597 = vmatpush1.bf16.msra.mxu0 %v1524
      %1598 = vmatprep.subr.bf16.mxu0 0
      %1599 = vmatpush1.bf16.msra.mxu0 %v1523
      %1600 = vmatprep.subr.bf16.mxu0 0
      %1601 = vmatpush1.bf16.msra.mxu0 %v1522
      %1602 = vmatprep.subr.bf16.mxu0 0
      %1603 = vmatpush2.bf16.msra.mxu0 %v1537
      %1604 = vmatprep.subr.bf16.mxu0 0
      %1605 = vmatpush2.bf16.msra.mxu0 %v1536
      %1606 = vmatprep.subr.bf16.mxu0 0
      %1607 = vmatpush2.bf16.msra.mxu0 %v1535
      %1608 = vmatprep.subr.bf16.mxu0 0
      %1609 = vmatpush2.bf16.msra.mxu0 %v1534
      %1610 = vmatprep.subr.bf16.mxu0 0
      %1611 = vmatpush2.bf16.msra.mxu0 %v1533
      %1612 = vmatprep.subr.bf16.mxu0 0
      %1613 = vmatpush2.bf16.msra.mxu0 %v1532
      %1614 = vmatprep.subr.bf16.mxu0 0
      %1615 = vmatpush2.bf16.msra.mxu0 %v1531
      %1616 = vmatprep.subr.bf16.mxu0 0
      %1617 = vmatpush2.bf16.msra.mxu0 %v1530
      %1618 = vmatprep.mubr.bf16.mxu0 %v1383
      %1619 = vmatmul.mubr.bf16.gmra.mxu0 %v1380
      %v1620 = vpop.f32.mrf.mxu0
      %v1621 = vadd.f32 0.0, %v1620
      %v1622 = vpop.f32.mrf.mxu0
      %v1623 = vpop.f32.mrf.mxu0
      %v1624 = vadd.f32 0.0, %v1623
      %v1625 = vpop.f32.mrf.mxu0
      %1626 = vdwg.mxu0
      %1627 = vmatprep.subr.bf16.mxu0 0
      %1628 = vmatpush1.bf16.msra.mxu0 %v1545
      %1629 = vmatprep.subr.bf16.mxu0 0
      %1630 = vmatpush1.bf16.msra.mxu0 %v1544
      %1631 = vmatprep.subr.bf16.mxu0 0
      %1632 = vmatpush1.bf16.msra.mxu0 %v1543
      %1633 = vmatprep.subr.bf16.mxu0 0
      %1634 = vmatpush1.bf16.msra.mxu0 %v1542
      %1635 = vmatprep.subr.bf16.mxu0 0
      %1636 = vmatpush1.bf16.msra.mxu0 %v1541
      %1637 = vmatprep.subr.bf16.mxu0 0
      %1638 = vmatpush1.bf16.msra.mxu0 %v1540
      %1639 = vmatprep.subr.bf16.mxu0 0
      %1640 = vmatpush1.bf16.msra.mxu0 %v1539
      %1641 = vmatprep.subr.bf16.mxu0 0
      %1642 = vmatpush1.bf16.msra.mxu0 %v1538
      %1643 = vmatprep.subr.bf16.mxu0 0
      %1644 = vmatpush2.bf16.msra.mxu0 %v1553
      %1645 = vmatprep.subr.bf16.mxu0 0
      %1646 = vmatpush2.bf16.msra.mxu0 %v1552
      %1647 = vmatprep.subr.bf16.mxu0 0
      %1648 = vmatpush2.bf16.msra.mxu0 %v1551
      %1649 = vmatprep.subr.bf16.mxu0 0
      %1650 = vmatpush2.bf16.msra.mxu0 %v1550
      %1651 = vmatprep.subr.bf16.mxu0 0
      %1652 = vmatpush2.bf16.msra.mxu0 %v1549
      %1653 = vmatprep.subr.bf16.mxu0 0
      %1654 = vmatpush2.bf16.msra.mxu0 %v1548
      %1655 = vmatprep.subr.bf16.mxu0 0
      %1656 = vmatpush2.bf16.msra.mxu0 %v1547
      %1657 = vmatprep.subr.bf16.mxu0 0
      %1658 = vmatpush2.bf16.msra.mxu0 %v1546
      %1659 = vmatprep.mubr.bf16.mxu0 %v1389
      %1660 = vmatmul.mubr.bf16.gmra.mxu0 %v1386
      %v1661 = vpop.f32.mrf.mxu0
      %v1662 = vadd.f32 %v1621, %v1661
      %v1663 = vpop.f32.mrf.mxu0
      %v1664 = vpop.f32.mrf.mxu0
      %v1665 = vadd.f32 %v1624, %v1664
      %v1666 = vpop.f32.mrf.mxu0
      %1667 = vdwg.mxu0
      %v1668 = vadd.f32 %v1285, %v1662
      %v1669 = vadd.f32 %v1286, %v1665
      %1670 = vst [vmem:[#allocation2] sm:$0xff] %v1668
      %1671 = vst [vmem:[#allocation2 + $0x8] sm:$0xff] %v1669
      %v1672 = vld [vmem:[#allocation2] sm:$0xff]
      %v1673 = vld [vmem:[#allocation2 + $0x8] sm:$0xff]
      %vm1674 = vcmp.gt.f32.partialorder %v1672, 0.0
      %vm1675 = vcmp.gt.f32.partialorder %v1673, 0.0
      %v1676 = vmul.f32 %v1672, 0.2
      %v1677 = vmul.f32 %v1673, 0.2
      %v1678 = vsel %vm1674, %v1672, %v1676
      %v1679 = vsel %vm1675, %v1673, %v1677
      %v1680 = vpack.c.bf16 %v1679, %v1678
      %v1682 = vunpack.c.l.b16 %v1680
      %v1683 = vunpack.c.h.b16 %v1680
      %v1684 = vpack.c.b16 %v1682, %v1682
      %v1685 = vpack.c.b16 %v1683, %v1683
      %1688 = vst [vmem:[%s143] sm:$0xf] %v1684
      %1689 = vst [vmem:[%s143 + $0x4] sm:$0xf] %v1685
      %p1690 = scmp.lt.s32.totalorder %s13, 1
      %s1691 = scalar_select %p1690, %s13, 1
      %s1692 = smul.addr %s1691, 2
      %s1693 = smul.addr %s1692, 4
      %s1694 = scalar_lea.vmem %s2, %s1693
      // Predicated region
      $region29: #{discriminator_forward.7} parent=27 // pred_check
        %p1695 = pneg %p78
      $region30: #{discriminator_forward.7} parent=27 // pred_check_branch
        %1697 = sbr.rel (%p1695) target = $region32
      $region31: #{discriminator_forward.7} parent=27 // pred_region
        _
      $region32: #{discriminator_forward.7} parent=27 // pred_fallthru
        _
    $region28: #{discriminator_forward.7} parent=5 // pred_fallthru
      _
    %p1698 = scmp.le.s32.totalorder 2, %s8
    // Predicated region
    $region33: #{discriminator_forward.7} parent=5 // pred_check
      %p1699 = pneg %p1698
    $region34: #{discriminator_forward.7} parent=5 // pred_check_branch
      %1701 = sbr.rel (%p1699) target = $region36
    $region35: #{discriminator_forward.7} parent=5 // pred_region
      %s1702 = ssub.s32 %s8, 2
      // Predicated region
      $region37: #{discriminator_forward.7} parent=35 // pred_check
        %p1703 = pneg %p84
      $region38: #{discriminator_forward.7} parent=35 // pred_check_branch
        %1705 = sbr.rel (%p1703) target = $region40
      $region39: #{discriminator_forward.7} parent=35 // pred_region
        %p1706 = scmp.lt.s32.totalorder %s14, 1
        %s1707 = scalar_select %p1706, %s14, 1
        %s1708 = smul.addr %s1707, 2
        %s1709 = smul.addr %s1708, 4
        %s1710 = scalar_lea.vmem %s2, %s1709
      $region40: #{discriminator_forward.7} parent=35 // pred_fallthru
        _
    $region36: #{discriminator_forward.7} parent=5 // pred_fallthru
      _
  $region6: #{discriminator_forward.7} parent=0 // loop_footer
    %s12 = sadd.s32 1, %s8
  $region7: #{discriminator_forward.7} parent=0 // loop_footer_branch
    %7 = sbr.rel target = $region3
  $region8: #{discriminator_forward.7} parent=0 // loop_exit
    _

// kernel: discriminator_forward.8
$region0: #{discriminator_forward.8}
  #allocation0 [shape = 'u32[]', space=smem, size = 0x4, offset = 0x4, fixed_abs, tag = 'smem constant byte address 0x4 - core index']
  #allocation1 [shape = 'u32[144,128]{1,0:T(1,128)}', space=vmem, size = 0x12000, scoped, tag = 'internal scratch']
  #allocation2 [shape = 'f32[4,128]{1,0:T(4,128)}', space=vmem, size = 0x800, scoped, tag = 'scratch operand']
  %s0 = inlined_call_operand.vmem [shape: bf16[2,2,6,512], index: 0, kind: input, shape index: {}]
  %s1 = inlined_call_operand.vmem [shape: bf16[4,512,128], index: 1, kind: input, shape index: {}]
  %s2 = inlined_call_operand.vmem [shape: bf16[2,4,128], index: 2, kind: output, shape index: {}]
  %s3 = sld [smem:[#allocation0]]
  $region41: #{discriminator_forward.8} parent=0
    _
  %s5 = ssub.s32 1, %s3
  %s6 = scalar_select 0, %s5, %s3
  loop: start=0, step=1, limit=4
  $region2: #{discriminator_forward.8} parent=0 // loop_pre_header
    _
  $region3: #{discriminator_forward.8} parent=0 // loop_header
    %s8 = sphi 0, %s12
    %p9 = scmp.ge.s32.totalorder %s8, 4
    %s18 = sphi 0, %s20
    %s21 = sphi 0, %s18
    %s22 = sphi 0, %s21
    %s38 = sphi 0, %s22
    %s42 = sphi 0, %s42
    %s44 = sphi 0, %s42
    %s45 = sphi 0, %s44
    %s59 = sphi 0, %s45
    %s65 = sphi 0, %s67
    %s68 = sphi 0, %s65
    %s69 = sphi 0, %s68
    %s85 = sphi 0, %s69
  $region4: #{discriminator_forward.8} parent=0 // loop_header_branch
    %11 = sbr.rel (%p9) target = $region8
  $region5: #{discriminator_forward.8} parent=0 // loop_body
    %s13 = ssub.s32 %s8, 1
    %s14 = ssub.s32 %s8, 2
    %s15 = sadd.s32 %s8, 1
    %s16 = ssub.s32 %s8, %s15
    %p17 = scmp.eq.s32.totalorder %s16, 0
    %s19 = sadd.s32 %s18, 1
    %s20 = scalar_select %p17, %s18, %s19
    %p23 = pneg %p17
    %p24 = scmp.eq.s32.totalorder %s8, 1
    %p25 = por %p23, %p24
    %p26 = scmp.ne.s32.totalorder %s18, %s21
    %p27 = scmp.eq.s32.totalorder %s8, 0
    %p28 = por %p26, %p27
    %p29 = scmp.ne.s32.totalorder %s18, %s21
    %p30 = scmp.eq.s32.totalorder %s13, 1
    %p31 = por %p29, %p30
    %p32 = scmp.ne.s32.totalorder %s21, %s22
    %p33 = scmp.eq.s32.totalorder %s13, 0
    %p34 = por %p32, %p33
    %p35 = scmp.ne.s32.totalorder %s21, %s22
    %p36 = scmp.eq.s32.totalorder %s14, 1
    %p37 = por %p35, %p36
    %p39 = scmp.ne.s32.totalorder %s22, %s38
    %p40 = scmp.eq.s32.totalorder %s14, 0
    %p41 = por %p39, %p40
    %s43 = sadd.s32 %s42, 1
    %p46 = scmp.eq.s32.totalorder %s8, 1
    %p47 = scmp.ne.s32.totalorder %s42, %s44
    %p48 = scmp.eq.s32.totalorder %s8, 0
    %p49 = por %p47, %p48
    %p50 = scmp.ne.s32.totalorder %s42, %s44
    %p51 = scmp.eq.s32.totalorder %s13, 1
    %p52 = por %p50, %p51
    %p53 = scmp.ne.s32.totalorder %s44, %s45
    %p54 = scmp.eq.s32.totalorder %s13, 0
    %p55 = por %p53, %p54
    %p56 = scmp.ne.s32.totalorder %s44, %s45
    %p57 = scmp.eq.s32.totalorder %s14, 1
    %p58 = por %p56, %p57
    %p60 = scmp.ne.s32.totalorder %s45, %s59
    %p61 = scmp.eq.s32.totalorder %s14, 0
    %p62 = por %p60, %p61
    %s63 = ssub.s32 %s8, %s15
    %p64 = scmp.eq.s32.totalorder %s63, 0
    %s66 = sadd.s32 %s65, 1
    %s67 = scalar_select %p64, %s65, %s66
    %p70 = pneg %p64
    %p71 = scmp.eq.s32.totalorder %s8, 1
    %p72 = por %p70, %p71
    %p73 = scmp.ne.s32.totalorder %s65, %s68
    %p74 = scmp.eq.s32.totalorder %s8, 0
    %p75 = por %p73, %p74
    %p76 = scmp.ne.s32.totalorder %s65, %s68
    %p77 = scmp.eq.s32.totalorder %s13, 1
    %p78 = por %p76, %p77
    %p79 = scmp.ne.s32.totalorder %s68, %s69
    %p80 = scmp.eq.s32.totalorder %s13, 0
    %p81 = por %p79, %p80
    %p82 = scmp.ne.s32.totalorder %s68, %s69
    %p83 = scmp.eq.s32.totalorder %s14, 1
    %p84 = por %p82, %p83
    %p86 = scmp.ne.s32.totalorder %s69, %s85
    %p87 = scmp.eq.s32.totalorder %s14, 0
    %p88 = por %p86, %p87
    %p89 = scmp.le.s32.totalorder 1, %s8
    %p90 = scmp.lt.s32.totalorder %s8, 3
    %p91 = pnand %p89, %p90
    %p92 = pneg %p91
    // Predicated region
    $region9: #{discriminator_forward.8} parent=5 // pred_check
      _
    $region10: #{discriminator_forward.8} parent=5 // pred_check_branch
      %94 = sbr.rel (%p91) target = $region12
    $region11: #{discriminator_forward.8} parent=5 // pred_region
      %s95 = ssub.s32 %s8, 1
      // Predicated region
      $region13: #{discriminator_forward.8} parent=11 // pred_check
        %p96 = pneg %p55
      $region14: #{discriminator_forward.8} parent=11 // pred_check_branch
        %98 = sbr.rel (%p96) target = $region16
      $region15: #{discriminator_forward.8} parent=11 // pred_region
        _
      $region16: #{discriminator_forward.8} parent=11 // pred_fallthru
        _
    $region12: #{discriminator_forward.8} parent=5 // pred_fallthru
      _
    %p99 = scmp.lt.s32.totalorder %s8, 2
    // Predicated region
    $region17: #{discriminator_forward.8} parent=5 // pred_check
      %p100 = pneg %p99
    $region18: #{discriminator_forward.8} parent=5 // pred_check_branch
      %102 = sbr.rel (%p100) target = $region20
    $region19: #{discriminator_forward.8} parent=5 // pred_region
      // Predicated region
      $region21: #{discriminator_forward.8} parent=19 // pred_check
        %p103 = pneg %p28
      $region22: #{discriminator_forward.8} parent=19 // pred_check_branch
        %105 = sbr.rel (%p103) target = $region24
      $region23: #{discriminator_forward.8} parent=19 // pred_region
        %p106 = scmp.lt.s32.totalorder %s8, 1
        %s107 = scalar_select %p106, %s8, 1
        %s108 = smul.addr %s107, 8
        %s109 = smul.addr %s108, 4
        %s110 = scalar_lea.vmem %s0, %s109
      $region24: #{discriminator_forward.8} parent=19 // pred_fallthru
        _
    $region20: #{discriminator_forward.8} parent=5 // pred_fallthru
      _
    %p111 = scmp.le.s32.totalorder 1, %s8
    %p112 = scmp.lt.s32.totalorder %s8, 3
    %p113 = pnand %p111, %p112
    %p114 = pneg %p113
    // Predicated region
    $region25: #{discriminator_forward.8} parent=5 // pred_check
      _
    $region26: #{discriminator_forward.8} parent=5 // pred_check_branch
      %116 = sbr.rel (%p113) target = $region28
    $region27: #{discriminator_forward.8} parent=5 // pred_region
      %s117 = ssub.s32 %s8, 1
      %p118 = scmp.lt.s32.totalorder %s13, 1
      %s119 = scalar_select %p118, %s13, 1
      %s120 = smul.addr %s119, 8
      %s121 = smul.addr %s120, 4
      %s122 = scalar_lea.vmem %s0, %s121
      %p123 = pneg %p34
      %p124 = pneg %p31
      %p125 = pneg %p55
      %p126 = pneg %p52
      %p127 = pneg %p81
      %p128 = pneg %p78
      %p129 = scmp.lt.s32.totalorder %s13, 1
      %s130 = scalar_select %p129, %s13, 1
      %s131 = smul.addr %s130, 2
      %s132 = scalar_lea.vmem %s2, %s131
      %p133 = scmp.lt.s32.totalorder %s13, 1
      %s134 = scalar_select %p133, %s13, 1
      %s135 = smul.addr %s134, 8
      %s136 = smul.addr %s135, 4
      %s137 = scalar_lea.vmem %s0, %s136
      %p138 = scmp.lt.s32.totalorder %s13, 1
      %s139 = scalar_select %p138, %s13, 1
      %s140 = smul.addr %s139, 2
      %s141 = scalar_lea.vmem %s2, %s140
      %143 = vst [vmem:[#allocation2] sm:$0xf] 0.0
      %v144 = vld [vmem:[%s137] sm:$0x33]
      %v145 = vld [vmem:[%s137 + $0x8] sm:$0x33]
      %v146 = vld [vmem:[#allocation2] sm:$0xf]
      %v147 = vld [vmem:[%s1] sm:$0xf]
      %v148 = vld [vmem:[%s1 + $0x4] sm:$0xf]
      %v149 = vld [vmem:[%s1 + $0x8] sm:$0xf]
      %v150 = vld [vmem:[%s1 + $0xc] sm:$0xf]
      %v151 = vld [vmem:[%s1 + $0x10] sm:$0xf]
      %v152 = vld [vmem:[%s1 + $0x14] sm:$0xf]
      %v153 = vld [vmem:[%s1 + $0x18] sm:$0xf]
      %v154 = vld [vmem:[%s1 + $0x1c] sm:$0xf]
      %v155 = vld [vmem:[%s1 + $0x20] sm:$0xf]
      %v156 = vld [vmem:[%s1 + $0x24] sm:$0xf]
      %v157 = vld [vmem:[%s1 + $0x28] sm:$0xf]
      %v158 = vld [vmem:[%s1 + $0x2c] sm:$0xf]
      %v159 = vld [vmem:[%s1 + $0x30] sm:$0xf]
      %v160 = vld [vmem:[%s1 + $0x34] sm:$0xf]
      %v161 = vld [vmem:[%s1 + $0x38] sm:$0xf]
      %v162 = vld [vmem:[%s1 + $0x3c] sm:$0xf]
      %v163 = vld [vmem:[%s1 + $0x40] sm:$0xf]
      %v164 = vld [vmem:[%s1 + $0x44] sm:$0xf]
      %v165 = vld [vmem:[%s1 + $0x48] sm:$0xf]
      %v166 = vld [vmem:[%s1 + $0x4c] sm:$0xf]
      %v167 = vld [vmem:[%s1 + $0x50] sm:$0xf]
      %v168 = vld [vmem:[%s1 + $0x54] sm:$0xf]
      %v169 = vld [vmem:[%s1 + $0x58] sm:$0xf]
      %v170 = vld [vmem:[%s1 + $0x5c] sm:$0xf]
      %v171 = vld [vmem:[%s1 + $0x60] sm:$0xf]
      %v172 = vld [vmem:[%s1 + $0x64] sm:$0xf]
      %v173 = vld [vmem:[%s1 + $0x68] sm:$0xf]
      %v174 = vld [vmem:[%s1 + $0x6c] sm:$0xf]
      %v175 = vld [vmem:[%s1 + $0x70] sm:$0xf]
      %v176 = vld [vmem:[%s1 + $0x74] sm:$0xf]
      %v177 = vld [vmem:[%s1 + $0x78] sm:$0xf]
      %v178 = vld [vmem:[%s1 + $0x7c] sm:$0xf]
      %v179 = vld [vmem:[%s1 + $0x80] sm:$0xf]
      %v180 = vld [vmem:[%s1 + $0x84] sm:$0xf]
      %v181 = vld [vmem:[%s1 + $0x88] sm:$0xf]
      %v182 = vld [vmem:[%s1 + $0x8c] sm:$0xf]
      %v183 = vld [vmem:[%s1 + $0x90] sm:$0xf]
      %v184 = vld [vmem:[%s1 + $0x94] sm:$0xf]
      %v185 = vld [vmem:[%s1 + $0x98] sm:$0xf]
      %v186 = vld [vmem:[%s1 + $0x9c] sm:$0xf]
      %v187 = vld [vmem:[%s1 + $0xa0] sm:$0xf]
      %v188 = vld [vmem:[%s1 + $0xa4] sm:$0xf]
      %v189 = vld [vmem:[%s1 + $0xa8] sm:$0xf]
      %v190 = vld [vmem:[%s1 + $0xac] sm:$0xf]
      %v191 = vld [vmem:[%s1 + $0xb0] sm:$0xf]
      %v192 = vld [vmem:[%s1 + $0xb4] sm:$0xf]
      %v193 = vld [vmem:[%s1 + $0xb8] sm:$0xf]
      %v194 = vld [vmem:[%s1 + $0xbc] sm:$0xf]
      %v195 = vld [vmem:[%s1 + $0xc0] sm:$0xf]
      %v196 = vld [vmem:[%s1 + $0xc4] sm:$0xf]
      %v197 = vld [vmem:[%s1 + $0xc8] sm:$0xf]
      %v198 = vld [vmem:[%s1 + $0xcc] sm:$0xf]
      %v199 = vld [vmem:[%s1 + $0xd0] sm:$0xf]
      %v200 = vld [vmem:[%s1 + $0xd4] sm:$0xf]
      %v201 = vld [vmem:[%s1 + $0xd8] sm:$0xf]
      %v202 = vld [vmem:[%s1 + $0xdc] sm:$0xf]
      %v203 = vld [vmem:[%s1 + $0xe0] sm:$0xf]
      %v204 = vld [vmem:[%s1 + $0xe4] sm:$0xf]
      %v205 = vld [vmem:[%s1 + $0xe8] sm:$0xf]
      %v206 = vld [vmem:[%s1 + $0xec] sm:$0xf]
      %v207 = vld [vmem:[%s1 + $0xf0] sm:$0xf]
      %v208 = vld [vmem:[%s1 + $0xf4] sm:$0xf]
      %v209 = vld [vmem:[%s1 + $0xf8] sm:$0xf]
      %v210 = vld [vmem:[%s1 + $0xfc] sm:$0xf]
      %v213 = vunpack.c.l.b16 %v144
      %v214 = vunpack.c.h.b16 %v144
      %v215 = vunpack.c.l.b16 %v145
      %v216 = vunpack.c.h.b16 %v145
      %v217 = vpack.c.b16 %v213, %v213
      %v218 = vpack.c.b16 %v214, %v214
      %v219 = vpack.c.b16 %v215, %v215
      %v220 = vpack.c.b16 %v216, %v216
      %v289 = vunpack.c.l.b16 %v147
      %v290 = vunpack.c.l.b16 %v148
      %v291 = vunpack.c.l.b16 %v149
      %v292 = vunpack.c.l.b16 %v150
      %v293 = vunpack.c.l.b16 %v151
      %v294 = vunpack.c.l.b16 %v152
      %v295 = vunpack.c.l.b16 %v153
      %v296 = vunpack.c.l.b16 %v154
      %v297 = vunpack.c.l.b16 %v155
      %v298 = vunpack.c.l.b16 %v156
      %v299 = vunpack.c.l.b16 %v157
      %v300 = vunpack.c.l.b16 %v158
      %v301 = vunpack.c.l.b16 %v159
      %v302 = vunpack.c.l.b16 %v160
      %v303 = vunpack.c.l.b16 %v161
      %v304 = vunpack.c.l.b16 %v162
      %v305 = vunpack.c.l.b16 %v163
      %v306 = vunpack.c.l.b16 %v164
      %v307 = vunpack.c.l.b16 %v165
      %v308 = vunpack.c.l.b16 %v166
      %v309 = vunpack.c.l.b16 %v167
      %v310 = vunpack.c.l.b16 %v168
      %v311 = vunpack.c.l.b16 %v169
      %v312 = vunpack.c.l.b16 %v170
      %v313 = vunpack.c.l.b16 %v171
      %v314 = vunpack.c.l.b16 %v172
      %v315 = vunpack.c.l.b16 %v173
      %v316 = vunpack.c.l.b16 %v174
      %v317 = vunpack.c.l.b16 %v175
      %v318 = vunpack.c.l.b16 %v176
      %v319 = vunpack.c.l.b16 %v177
      %v320 = vunpack.c.l.b16 %v178
      %v321 = vunpack.c.l.b16 %v179
      %v322 = vunpack.c.l.b16 %v180
      %v323 = vunpack.c.l.b16 %v181
      %v324 = vunpack.c.l.b16 %v182
      %v325 = vunpack.c.l.b16 %v183
      %v326 = vunpack.c.l.b16 %v184
      %v327 = vunpack.c.l.b16 %v185
      %v328 = vunpack.c.l.b16 %v186
      %v329 = vunpack.c.l.b16 %v187
      %v330 = vunpack.c.l.b16 %v188
      %v331 = vunpack.c.l.b16 %v189
      %v332 = vunpack.c.l.b16 %v190
      %v333 = vunpack.c.l.b16 %v191
      %v334 = vunpack.c.l.b16 %v192
      %v335 = vunpack.c.l.b16 %v193
      %v336 = vunpack.c.l.b16 %v194
      %v337 = vunpack.c.l.b16 %v195
      %v338 = vunpack.c.l.b16 %v196
      %v339 = vunpack.c.l.b16 %v197
      %v340 = vunpack.c.l.b16 %v198
      %v341 = vunpack.c.l.b16 %v199
      %v342 = vunpack.c.l.b16 %v200
      %v343 = vunpack.c.l.b16 %v201
      %v344 = vunpack.c.l.b16 %v202
      %v345 = vunpack.c.l.b16 %v203
      %v346 = vunpack.c.l.b16 %v204
      %v347 = vunpack.c.l.b16 %v205
      %v348 = vunpack.c.l.b16 %v206
      %v349 = vunpack.c.l.b16 %v207
      %v350 = vunpack.c.l.b16 %v208
      %v351 = vunpack.c.l.b16 %v209
      %v352 = vunpack.c.l.b16 %v210
      %v353 = vpack.c.b16 %v290, %v289
      %v354 = vpack.c.b16 %v292, %v291
      %v355 = vpack.c.b16 %v294, %v293
      %v356 = vpack.c.b16 %v296, %v295
      %v357 = vpack.c.b16 %v298, %v297
      %v358 = vpack.c.b16 %v300, %v299
      %v359 = vpack.c.b16 %v302, %v301
      %v360 = vpack.c.b16 %v304, %v303
      %v361 = vpack.c.b16 %v306, %v305
      %v362 = vpack.c.b16 %v308, %v307
      %v363 = vpack.c.b16 %v310, %v309
      %v364 = vpack.c.b16 %v312, %v311
      %v365 = vpack.c.b16 %v314, %v313
      %v366 = vpack.c.b16 %v316, %v315
      %v367 = vpack.c.b16 %v318, %v317
      %v368 = vpack.c.b16 %v320, %v319
      %v369 = vpack.c.b16 %v322, %v321
      %v370 = vpack.c.b16 %v324, %v323
      %v371 = vpack.c.b16 %v326, %v325
      %v372 = vpack.c.b16 %v328, %v327
      %v373 = vpack.c.b16 %v330, %v329
      %v374 = vpack.c.b16 %v332, %v331
      %v375 = vpack.c.b16 %v334, %v333
      %v376 = vpack.c.b16 %v336, %v335
      %v377 = vpack.c.b16 %v338, %v337
      %v378 = vpack.c.b16 %v340, %v339
      %v379 = vpack.c.b16 %v342, %v341
      %v380 = vpack.c.b16 %v344, %v343
      %v381 = vpack.c.b16 %v346, %v345
      %v382 = vpack.c.b16 %v348, %v347
      %v383 = vpack.c.b16 %v350, %v349
      %v384 = vpack.c.b16 %v352, %v351
      %417 = vmatprep.subr.bf16.mxu0 0
      %418 = vmatpush1.bf16.msra.mxu0 %v360
      %419 = vmatprep.subr.bf16.mxu0 0
      %420 = vmatpush1.bf16.msra.mxu0 %v359
      %421 = vmatprep.subr.bf16.mxu0 0
      %422 = vmatpush1.bf16.msra.mxu0 %v358
      %423 = vmatprep.subr.bf16.mxu0 0
      %424 = vmatpush1.bf16.msra.mxu0 %v357
      %425 = vmatprep.subr.bf16.mxu0 0
      %426 = vmatpush1.bf16.msra.mxu0 %v356
      %427 = vmatprep.subr.bf16.mxu0 0
      %428 = vmatpush1.bf16.msra.mxu0 %v355
      %429 = vmatprep.subr.bf16.mxu0 0
      %430 = vmatpush1.bf16.msra.mxu0 %v354
      %431 = vmatprep.subr.bf16.mxu0 0
      %432 = vmatpush1.bf16.msra.mxu0 %v353
      %433 = vmatprep.subr.bf16.mxu0 0
      %434 = vmatpush2.bf16.msra.mxu0 %v368
      %435 = vmatprep.subr.bf16.mxu0 0
      %436 = vmatpush2.bf16.msra.mxu0 %v367
      %437 = vmatprep.subr.bf16.mxu0 0
      %438 = vmatpush2.bf16.msra.mxu0 %v366
      %439 = vmatprep.subr.bf16.mxu0 0
      %440 = vmatpush2.bf16.msra.mxu0 %v365
      %441 = vmatprep.subr.bf16.mxu0 0
      %442 = vmatpush2.bf16.msra.mxu0 %v364
      %443 = vmatprep.subr.bf16.mxu0 0
      %444 = vmatpush2.bf16.msra.mxu0 %v363
      %445 = vmatprep.subr.bf16.mxu0 0
      %446 = vmatpush2.bf16.msra.mxu0 %v362
      %447 = vmatprep.subr.bf16.mxu0 0
      %448 = vmatpush2.bf16.msra.mxu0 %v361
      %449 = vmatprep.mubr.bf16.mxu0 %v218
      %450 = vmatmul.mubr.bf16.gmra.mxu0 %v217
      %v451 = vpop.f32.mrf.mxu0
      %v452 = vadd.f32 0.0, %v451
      %v453 = vpop.f32.mrf.mxu0
      %v454 = vpop.f32.mrf.mxu0
      %v455 = vpop.f32.mrf.mxu0
      %456 = vdwg.mxu0
      %457 = vmatprep.subr.bf16.mxu0 0
      %458 = vmatpush1.bf16.msra.mxu0 %v376
      %459 = vmatprep.subr.bf16.mxu0 0
      %460 = vmatpush1.bf16.msra.mxu0 %v375
      %461 = vmatprep.subr.bf16.mxu0 0
      %462 = vmatpush1.bf16.msra.mxu0 %v374
      %463 = vmatprep.subr.bf16.mxu0 0
      %464 = vmatpush1.bf16.msra.mxu0 %v373
      %465 = vmatprep.subr.bf16.mxu0 0
      %466 = vmatpush1.bf16.msra.mxu0 %v372
      %467 = vmatprep.subr.bf16.mxu0 0
      %468 = vmatpush1.bf16.msra.mxu0 %v371
      %469 = vmatprep.subr.bf16.mxu0 0
      %470 = vmatpush1.bf16.msra.mxu0 %v370
      %471 = vmatprep.subr.bf16.mxu0 0
      %472 = vmatpush1.bf16.msra.mxu0 %v369
      %473 = vmatprep.subr.bf16.mxu0 0
      %474 = vmatpush2.bf16.msra.mxu0 %v384
      %475 = vmatprep.subr.bf16.mxu0 0
      %476 = vmatpush2.bf16.msra.mxu0 %v383
      %477 = vmatprep.subr.bf16.mxu0 0
      %478 = vmatpush2.bf16.msra.mxu0 %v382
      %479 = vmatprep.subr.bf16.mxu0 0
      %480 = vmatpush2.bf16.msra.mxu0 %v381
      %481 = vmatprep.subr.bf16.mxu0 0
      %482 = vmatpush2.bf16.msra.mxu0 %v380
      %483 = vmatprep.subr.bf16.mxu0 0
      %484 = vmatpush2.bf16.msra.mxu0 %v379
      %485 = vmatprep.subr.bf16.mxu0 0
      %486 = vmatpush2.bf16.msra.mxu0 %v378
      %487 = vmatprep.subr.bf16.mxu0 0
      %488 = vmatpush2.bf16.msra.mxu0 %v377
      %489 = vmatprep.mubr.bf16.mxu0 %v220
      %490 = vmatmul.mubr.bf16.gmra.mxu0 %v219
      %v491 = vpop.f32.mrf.mxu0
      %v492 = vadd.f32 %v452, %v491
      %v493 = vpop.f32.mrf.mxu0
      %v494 = vpop.f32.mrf.mxu0
      %v495 = vpop.f32.mrf.mxu0
      %496 = vdwg.mxu0
      %v497 = vadd.f32 %v146, %v492
      %498 = vst [vmem:[#allocation2] sm:$0xf] %v497
      %s499 = scalar_lea.vmem %s137, 16
      %v500 = vld [vmem:[%s499] sm:$0x33]
      %v501 = vld [vmem:[%s499 + $0x8] sm:$0x33]
      %v502 = vld [vmem:[#allocation2] sm:$0xf]
      %s503 = scalar_lea.vmem %s1, 256
      %v504 = vld [vmem:[%s503] sm:$0xf]
      %v505 = vld [vmem:[%s503 + $0x4] sm:$0xf]
      %v506 = vld [vmem:[%s503 + $0x8] sm:$0xf]
      %v507 = vld [vmem:[%s503 + $0xc] sm:$0xf]
      %v508 = vld [vmem:[%s503 + $0x10] sm:$0xf]
      %v509 = vld [vmem:[%s503 + $0x14] sm:$0xf]
      %v510 = vld [vmem:[%s503 + $0x18] sm:$0xf]
      %v511 = vld [vmem:[%s503 + $0x1c] sm:$0xf]
      %v512 = vld [vmem:[%s503 + $0x20] sm:$0xf]
      %v513 = vld [vmem:[%s503 + $0x24] sm:$0xf]
      %v514 = vld [vmem:[%s503 + $0x28] sm:$0xf]
      %v515 = vld [vmem:[%s503 + $0x2c] sm:$0xf]
      %v516 = vld [vmem:[%s503 + $0x30] sm:$0xf]
      %v517 = vld [vmem:[%s503 + $0x34] sm:$0xf]
      %v518 = vld [vmem:[%s503 + $0x38] sm:$0xf]
      %v519 = vld [vmem:[%s503 + $0x3c] sm:$0xf]
      %v520 = vld [vmem:[%s503 + $0x40] sm:$0xf]
      %v521 = vld [vmem:[%s503 + $0x44] sm:$0xf]
      %v522 = vld [vmem:[%s503 + $0x48] sm:$0xf]
      %v523 = vld [vmem:[%s503 + $0x4c] sm:$0xf]
      %v524 = vld [vmem:[%s503 + $0x50] sm:$0xf]
      %v525 = vld [vmem:[%s503 + $0x54] sm:$0xf]
      %v526 = vld [vmem:[%s503 + $0x58] sm:$0xf]
      %v527 = vld [vmem:[%s503 + $0x5c] sm:$0xf]
      %v528 = vld [vmem:[%s503 + $0x60] sm:$0xf]
      %v529 = vld [vmem:[%s503 + $0x64] sm:$0xf]
      %v530 = vld [vmem:[%s503 + $0x68] sm:$0xf]
      %v531 = vld [vmem:[%s503 + $0x6c] sm:$0xf]
      %v532 = vld [vmem:[%s503 + $0x70] sm:$0xf]
      %v533 = vld [vmem:[%s503 + $0x74] sm:$0xf]
      %v534 = vld [vmem:[%s503 + $0x78] sm:$0xf]
      %v535 = vld [vmem:[%s503 + $0x7c] sm:$0xf]
      %v536 = vld [vmem:[%s503 + $0x80] sm:$0xf]
      %v537 = vld [vmem:[%s503 + $0x84] sm:$0xf]
      %v538 = vld [vmem:[%s503 + $0x88] sm:$0xf]
      %v539 = vld [vmem:[%s503 + $0x8c] sm:$0xf]
      %v540 = vld [vmem:[%s503 + $0x90] sm:$0xf]
      %v541 = vld [vmem:[%s503 + $0x94] sm:$0xf]
      %v542 = vld [vmem:[%s503 + $0x98] sm:$0xf]
      %v543 = vld [vmem:[%s503 + $0x9c] sm:$0xf]
      %v544 = vld [vmem:[%s503 + $0xa0] sm:$0xf]
      %v545 = vld [vmem:[%s503 + $0xa4] sm:$0xf]
      %v546 = vld [vmem:[%s503 + $0xa8] sm:$0xf]
      %v547 = vld [vmem:[%s503 + $0xac] sm:$0xf]
      %v548 = vld [vmem:[%s503 + $0xb0] sm:$0xf]
      %v549 = vld [vmem:[%s503 + $0xb4] sm:$0xf]
      %v550 = vld [vmem:[%s503 + $0xb8] sm:$0xf]
      %v551 = vld [vmem:[%s503 + $0xbc] sm:$0xf]
      %v552 = vld [vmem:[%s503 + $0xc0] sm:$0xf]
      %v553 = vld [vmem:[%s503 + $0xc4] sm:$0xf]
      %v554 = vld [vmem:[%s503 + $0xc8] sm:$0xf]
      %v555 = vld [vmem:[%s503 + $0xcc] sm:$0xf]
      %v556 = vld [vmem:[%s503 + $0xd0] sm:$0xf]
      %v557 = vld [vmem:[%s503 + $0xd4] sm:$0xf]
      %v558 = vld [vmem:[%s503 + $0xd8] sm:$0xf]
      %v559 = vld [vmem:[%s503 + $0xdc] sm:$0xf]
      %v560 = vld [vmem:[%s503 + $0xe0] sm:$0xf]
      %v561 = vld [vmem:[%s503 + $0xe4] sm:$0xf]
      %v562 = vld [vmem:[%s503 + $0xe8] sm:$0xf]
      %v563 = vld [vmem:[%s503 + $0xec] sm:$0xf]
      %v564 = vld [vmem:[%s503 + $0xf0] sm:$0xf]
      %v565 = vld [vmem:[%s503 + $0xf4] sm:$0xf]
      %v566 = vld [vmem:[%s503 + $0xf8] sm:$0xf]
      %v567 = vld [vmem:[%s503 + $0xfc] sm:$0xf]
      %v570 = vunpack.c.l.b16 %v500
      %v571 = vunpack.c.h.b16 %v500
      %v572 = vunpack.c.l.b16 %v501
      %v573 = vunpack.c.h.b16 %v501
      %v574 = vpack.c.b16 %v570, %v570
      %v575 = vpack.c.b16 %v571, %v571
      %v576 = vpack.c.b16 %v572, %v572
      %v577 = vpack.c.b16 %v573, %v573
      %v646 = vunpack.c.l.b16 %v504
      %v647 = vunpack.c.l.b16 %v505
      %v648 = vunpack.c.l.b16 %v506
      %v649 = vunpack.c.l.b16 %v507
      %v650 = vunpack.c.l.b16 %v508
      %v651 = vunpack.c.l.b16 %v509
      %v652 = vunpack.c.l.b16 %v510
      %v653 = vunpack.c.l.b16 %v511
      %v654 = vunpack.c.l.b16 %v512
      %v655 = vunpack.c.l.b16 %v513
      %v656 = vunpack.c.l.b16 %v514
      %v657 = vunpack.c.l.b16 %v515
      %v658 = vunpack.c.l.b16 %v516
      %v659 = vunpack.c.l.b16 %v517
      %v660 = vunpack.c.l.b16 %v518
      %v661 = vunpack.c.l.b16 %v519
      %v662 = vunpack.c.l.b16 %v520
      %v663 = vunpack.c.l.b16 %v521
      %v664 = vunpack.c.l.b16 %v522
      %v665 = vunpack.c.l.b16 %v523
      %v666 = vunpack.c.l.b16 %v524
      %v667 = vunpack.c.l.b16 %v525
      %v668 = vunpack.c.l.b16 %v526
      %v669 = vunpack.c.l.b16 %v527
      %v670 = vunpack.c.l.b16 %v528
      %v671 = vunpack.c.l.b16 %v529
      %v672 = vunpack.c.l.b16 %v530
      %v673 = vunpack.c.l.b16 %v531
      %v674 = vunpack.c.l.b16 %v532
      %v675 = vunpack.c.l.b16 %v533
      %v676 = vunpack.c.l.b16 %v534
      %v677 = vunpack.c.l.b16 %v535
      %v678 = vunpack.c.l.b16 %v536
      %v679 = vunpack.c.l.b16 %v537
      %v680 = vunpack.c.l.b16 %v538
      %v681 = vunpack.c.l.b16 %v539
      %v682 = vunpack.c.l.b16 %v540
      %v683 = vunpack.c.l.b16 %v541
      %v684 = vunpack.c.l.b16 %v542
      %v685 = vunpack.c.l.b16 %v543
      %v686 = vunpack.c.l.b16 %v544
      %v687 = vunpack.c.l.b16 %v545
      %v688 = vunpack.c.l.b16 %v546
      %v689 = vunpack.c.l.b16 %v547
      %v690 = vunpack.c.l.b16 %v548
      %v691 = vunpack.c.l.b16 %v549
      %v692 = vunpack.c.l.b16 %v550
      %v693 = vunpack.c.l.b16 %v551
      %v694 = vunpack.c.l.b16 %v552
      %v695 = vunpack.c.l.b16 %v553
      %v696 = vunpack.c.l.b16 %v554
      %v697 = vunpack.c.l.b16 %v555
      %v698 = vunpack.c.l.b16 %v556
      %v699 = vunpack.c.l.b16 %v557
      %v700 = vunpack.c.l.b16 %v558
      %v701 = vunpack.c.l.b16 %v559
      %v702 = vunpack.c.l.b16 %v560
      %v703 = vunpack.c.l.b16 %v561
      %v704 = vunpack.c.l.b16 %v562
      %v705 = vunpack.c.l.b16 %v563
      %v706 = vunpack.c.l.b16 %v564
      %v707 = vunpack.c.l.b16 %v565
      %v708 = vunpack.c.l.b16 %v566
      %v709 = vunpack.c.l.b16 %v567
      %v710 = vpack.c.b16 %v647, %v646
      %v711 = vpack.c.b16 %v649, %v648
      %v712 = vpack.c.b16 %v651, %v650
      %v713 = vpack.c.b16 %v653, %v652
      %v714 = vpack.c.b16 %v655, %v654
      %v715 = vpack.c.b16 %v657, %v656
      %v716 = vpack.c.b16 %v659, %v658
      %v717 = vpack.c.b16 %v661, %v660
      %v718 = vpack.c.b16 %v663, %v662
      %v719 = vpack.c.b16 %v665, %v664
      %v720 = vpack.c.b16 %v667, %v666
      %v721 = vpack.c.b16 %v669, %v668
      %v722 = vpack.c.b16 %v671, %v670
      %v723 = vpack.c.b16 %v673, %v672
      %v724 = vpack.c.b16 %v675, %v674
      %v725 = vpack.c.b16 %v677, %v676
      %v726 = vpack.c.b16 %v679, %v678
      %v727 = vpack.c.b16 %v681, %v680
      %v728 = vpack.c.b16 %v683, %v682
      %v729 = vpack.c.b16 %v685, %v684
      %v730 = vpack.c.b16 %v687, %v686
      %v731 = vpack.c.b16 %v689, %v688
      %v732 = vpack.c.b16 %v691, %v690
      %v733 = vpack.c.b16 %v693, %v692
      %v734 = vpack.c.b16 %v695, %v694
      %v735 = vpack.c.b16 %v697, %v696
      %v736 = vpack.c.b16 %v699, %v698
      %v737 = vpack.c.b16 %v701, %v700
      %v738 = vpack.c.b16 %v703, %v702
      %v739 = vpack.c.b16 %v705, %v704
      %v740 = vpack.c.b16 %v707, %v706
      %v741 = vpack.c.b16 %v709, %v708
      %774 = vmatprep.subr.bf16.mxu0 0
      %775 = vmatpush1.bf16.msra.mxu0 %v717
      %776 = vmatprep.subr.bf16.mxu0 0
      %777 = vmatpush1.bf16.msra.mxu0 %v716
      %778 = vmatprep.subr.bf16.mxu0 0
      %779 = vmatpush1.bf16.msra.mxu0 %v715
      %780 = vmatprep.subr.bf16.mxu0 0
      %781 = vmatpush1.bf16.msra.mxu0 %v714
      %782 = vmatprep.subr.bf16.mxu0 0
      %783 = vmatpush1.bf16.msra.mxu0 %v713
      %784 = vmatprep.subr.bf16.mxu0 0
      %785 = vmatpush1.bf16.msra.mxu0 %v712
      %786 = vmatprep.subr.bf16.mxu0 0
      %787 = vmatpush1.bf16.msra.mxu0 %v711
      %788 = vmatprep.subr.bf16.mxu0 0
      %789 = vmatpush1.bf16.msra.mxu0 %v710
      %790 = vmatprep.subr.bf16.mxu0 0
      %791 = vmatpush2.bf16.msra.mxu0 %v725
      %792 = vmatprep.subr.bf16.mxu0 0
      %793 = vmatpush2.bf16.msra.mxu0 %v724
      %794 = vmatprep.subr.bf16.mxu0 0
      %795 = vmatpush2.bf16.msra.mxu0 %v723
      %796 = vmatprep.subr.bf16.mxu0 0
      %797 = vmatpush2.bf16.msra.mxu0 %v722
      %798 = vmatprep.subr.bf16.mxu0 0
      %799 = vmatpush2.bf16.msra.mxu0 %v721
      %800 = vmatprep.subr.bf16.mxu0 0
      %801 = vmatpush2.bf16.msra.mxu0 %v720
      %802 = vmatprep.subr.bf16.mxu0 0
      %803 = vmatpush2.bf16.msra.mxu0 %v719
      %804 = vmatprep.subr.bf16.mxu0 0
      %805 = vmatpush2.bf16.msra.mxu0 %v718
      %806 = vmatprep.mubr.bf16.mxu0 %v575
      %807 = vmatmul.mubr.bf16.gmra.mxu0 %v574
      %v808 = vpop.f32.mrf.mxu0
      %v809 = vadd.f32 0.0, %v808
      %v810 = vpop.f32.mrf.mxu0
      %v811 = vpop.f32.mrf.mxu0
      %v812 = vpop.f32.mrf.mxu0
      %813 = vdwg.mxu0
      %814 = vmatprep.subr.bf16.mxu0 0
      %815 = vmatpush1.bf16.msra.mxu0 %v733
      %816 = vmatprep.subr.bf16.mxu0 0
      %817 = vmatpush1.bf16.msra.mxu0 %v732
      %818 = vmatprep.subr.bf16.mxu0 0
      %819 = vmatpush1.bf16.msra.mxu0 %v731
      %820 = vmatprep.subr.bf16.mxu0 0
      %821 = vmatpush1.bf16.msra.mxu0 %v730
      %822 = vmatprep.subr.bf16.mxu0 0
      %823 = vmatpush1.bf16.msra.mxu0 %v729
      %824 = vmatprep.subr.bf16.mxu0 0
      %825 = vmatpush1.bf16.msra.mxu0 %v728
      %826 = vmatprep.subr.bf16.mxu0 0
      %827 = vmatpush1.bf16.msra.mxu0 %v727
      %828 = vmatprep.subr.bf16.mxu0 0
      %829 = vmatpush1.bf16.msra.mxu0 %v726
      %830 = vmatprep.subr.bf16.mxu0 0
      %831 = vmatpush2.bf16.msra.mxu0 %v741
      %832 = vmatprep.subr.bf16.mxu0 0
      %833 = vmatpush2.bf16.msra.mxu0 %v740
      %834 = vmatprep.subr.bf16.mxu0 0
      %835 = vmatpush2.bf16.msra.mxu0 %v739
      %836 = vmatprep.subr.bf16.mxu0 0
      %837 = vmatpush2.bf16.msra.mxu0 %v738
      %838 = vmatprep.subr.bf16.mxu0 0
      %839 = vmatpush2.bf16.msra.mxu0 %v737
      %840 = vmatprep.subr.bf16.mxu0 0
      %841 = vmatpush2.bf16.msra.mxu0 %v736
      %842 = vmatprep.subr.bf16.mxu0 0
      %843 = vmatpush2.bf16.msra.mxu0 %v735
      %844 = vmatprep.subr.bf16.mxu0 0
      %845 = vmatpush2.bf16.msra.mxu0 %v734
      %846 = vmatprep.mubr.bf16.mxu0 %v577
      %847 = vmatmul.mubr.bf16.gmra.mxu0 %v576
      %v848 = vpop.f32.mrf.mxu0
      %v849 = vadd.f32 %v809, %v848
      %v850 = vpop.f32.mrf.mxu0
      %v851 = vpop.f32.mrf.mxu0
      %v852 = vpop.f32.mrf.mxu0
      %853 = vdwg.mxu0
      %v854 = vadd.f32 %v502, %v849
      %855 = vst [vmem:[#allocation2] sm:$0xf] %v854
      %v856 = vld [vmem:[%s137] sm:$0x66]
      %v857 = vld [vmem:[%s137 + $0x8] sm:$0x66]
      %v858 = vld [vmem:[#allocation2] sm:$0xf]
      %s859 = scalar_lea.vmem %s1, 512
      %v860 = vld [vmem:[%s859] sm:$0xf]
      %v861 = vld [vmem:[%s859 + $0x4] sm:$0xf]
      %v862 = vld [vmem:[%s859 + $0x8] sm:$0xf]
      %v863 = vld [vmem:[%s859 + $0xc] sm:$0xf]
      %v864 = vld [vmem:[%s859 + $0x10] sm:$0xf]
      %v865 = vld [vmem:[%s859 + $0x14] sm:$0xf]
      %v866 = vld [vmem:[%s859 + $0x18] sm:$0xf]
      %v867 = vld [vmem:[%s859 + $0x1c] sm:$0xf]
      %v868 = vld [vmem:[%s859 + $0x20] sm:$0xf]
      %v869 = vld [vmem:[%s859 + $0x24] sm:$0xf]
      %v870 = vld [vmem:[%s859 + $0x28] sm:$0xf]
      %v871 = vld [vmem:[%s859 + $0x2c] sm:$0xf]
      %v872 = vld [vmem:[%s859 + $0x30] sm:$0xf]
      %v873 = vld [vmem:[%s859 + $0x34] sm:$0xf]
      %v874 = vld [vmem:[%s859 + $0x38] sm:$0xf]
      %v875 = vld [vmem:[%s859 + $0x3c] sm:$0xf]
      %v876 = vld [vmem:[%s859 + $0x40] sm:$0xf]
      %v877 = vld [vmem:[%s859 + $0x44] sm:$0xf]
      %v878 = vld [vmem:[%s859 + $0x48] sm:$0xf]
      %v879 = vld [vmem:[%s859 + $0x4c] sm:$0xf]
      %v880 = vld [vmem:[%s859 + $0x50] sm:$0xf]
      %v881 = vld [vmem:[%s859 + $0x54] sm:$0xf]
      %v882 = vld [vmem:[%s859 + $0x58] sm:$0xf]
      %v883 = vld [vmem:[%s859 + $0x5c] sm:$0xf]
      %v884 = vld [vmem:[%s859 + $0x60] sm:$0xf]
      %v885 = vld [vmem:[%s859 + $0x64] sm:$0xf]
      %v886 = vld [vmem:[%s859 + $0x68] sm:$0xf]
      %v887 = vld [vmem:[%s859 + $0x6c] sm:$0xf]
      %v888 = vld [vmem:[%s859 + $0x70] sm:$0xf]
      %v889 = vld [vmem:[%s859 + $0x74] sm:$0xf]
      %v890 = vld [vmem:[%s859 + $0x78] sm:$0xf]
      %v891 = vld [vmem:[%s859 + $0x7c] sm:$0xf]
      %v892 = vld [vmem:[%s859 + $0x80] sm:$0xf]
      %v893 = vld [vmem:[%s859 + $0x84] sm:$0xf]
      %v894 = vld [vmem:[%s859 + $0x88] sm:$0xf]
      %v895 = vld [vmem:[%s859 + $0x8c] sm:$0xf]
      %v896 = vld [vmem:[%s859 + $0x90] sm:$0xf]
      %v897 = vld [vmem:[%s859 + $0x94] sm:$0xf]
      %v898 = vld [vmem:[%s859 + $0x98] sm:$0xf]
      %v899 = vld [vmem:[%s859 + $0x9c] sm:$0xf]
      %v900 = vld [vmem:[%s859 + $0xa0] sm:$0xf]
      %v901 = vld [vmem:[%s859 + $0xa4] sm:$0xf]
      %v902 = vld [vmem:[%s859 + $0xa8] sm:$0xf]
      %v903 = vld [vmem:[%s859 + $0xac] sm:$0xf]
      %v904 = vld [vmem:[%s859 + $0xb0] sm:$0xf]
      %v905 = vld [vmem:[%s859 + $0xb4] sm:$0xf]
      %v906 = vld [vmem:[%s859 + $0xb8] sm:$0xf]
      %v907 = vld [vmem:[%s859 + $0xbc] sm:$0xf]
      %v908 = vld [vmem:[%s859 + $0xc0] sm:$0xf]
      %v909 = vld [vmem:[%s859 + $0xc4] sm:$0xf]
      %v910 = vld [vmem:[%s859 + $0xc8] sm:$0xf]
      %v911 = vld [vmem:[%s859 + $0xcc] sm:$0xf]
      %v912 = vld [vmem:[%s859 + $0xd0] sm:$0xf]
      %v913 = vld [vmem:[%s859 + $0xd4] sm:$0xf]
      %v914 = vld [vmem:[%s859 + $0xd8] sm:$0xf]
      %v915 = vld [vmem:[%s859 + $0xdc] sm:$0xf]
      %v916 = vld [vmem:[%s859 + $0xe0] sm:$0xf]
      %v917 = vld [vmem:[%s859 + $0xe4] sm:$0xf]
      %v918 = vld [vmem:[%s859 + $0xe8] sm:$0xf]
      %v919 = vld [vmem:[%s859 + $0xec] sm:$0xf]
      %v920 = vld [vmem:[%s859 + $0xf0] sm:$0xf]
      %v921 = vld [vmem:[%s859 + $0xf4] sm:$0xf]
      %v922 = vld [vmem:[%s859 + $0xf8] sm:$0xf]
      %v923 = vld [vmem:[%s859 + $0xfc] sm:$0xf]
      %v926 = vunpack.c.l.b16 %v856
      %v927 = vunpack.c.h.b16 %v856
      %v928 = vunpack.c.l.b16 %v857
      %v929 = vunpack.c.h.b16 %v857
      %v930 = vpack.c.b16 %v926, %v926
      %v931 = vpack.c.b16 %v927, %v927
      %v932 = vpack.c.b16 %v928, %v928
      %v933 = vpack.c.b16 %v929, %v929
      %v934 = vrot.slane %v930, 1
      %v935 = vrot.slane %v931, 1
      %v936 = vrot.slane %v932, 1
      %v937 = vrot.slane %v933, 1
      %v1006 = vunpack.c.l.b16 %v860
      %v1007 = vunpack.c.l.b16 %v861
      %v1008 = vunpack.c.l.b16 %v862
      %v1009 = vunpack.c.l.b16 %v863
      %v1010 = vunpack.c.l.b16 %v864
      %v1011 = vunpack.c.l.b16 %v865
      %v1012 = vunpack.c.l.b16 %v866
      %v1013 = vunpack.c.l.b16 %v867
      %v1014 = vunpack.c.l.b16 %v868
      %v1015 = vunpack.c.l.b16 %v869
      %v1016 = vunpack.c.l.b16 %v870
      %v1017 = vunpack.c.l.b16 %v871
      %v1018 = vunpack.c.l.b16 %v872
      %v1019 = vunpack.c.l.b16 %v873
      %v1020 = vunpack.c.l.b16 %v874
      %v1021 = vunpack.c.l.b16 %v875
      %v1022 = vunpack.c.l.b16 %v876
      %v1023 = vunpack.c.l.b16 %v877
      %v1024 = vunpack.c.l.b16 %v878
      %v1025 = vunpack.c.l.b16 %v879
      %v1026 = vunpack.c.l.b16 %v880
      %v1027 = vunpack.c.l.b16 %v881
      %v1028 = vunpack.c.l.b16 %v882
      %v1029 = vunpack.c.l.b16 %v883
      %v1030 = vunpack.c.l.b16 %v884
      %v1031 = vunpack.c.l.b16 %v885
      %v1032 = vunpack.c.l.b16 %v886
      %v1033 = vunpack.c.l.b16 %v887
      %v1034 = vunpack.c.l.b16 %v888
      %v1035 = vunpack.c.l.b16 %v889
      %v1036 = vunpack.c.l.b16 %v890
      %v1037 = vunpack.c.l.b16 %v891
      %v1038 = vunpack.c.l.b16 %v892
      %v1039 = vunpack.c.l.b16 %v893
      %v1040 = vunpack.c.l.b16 %v894
      %v1041 = vunpack.c.l.b16 %v895
      %v1042 = vunpack.c.l.b16 %v896
      %v1043 = vunpack.c.l.b16 %v897
      %v1044 = vunpack.c.l.b16 %v898
      %v1045 = vunpack.c.l.b16 %v899
      %v1046 = vunpack.c.l.b16 %v900
      %v1047 = vunpack.c.l.b16 %v901
      %v1048 = vunpack.c.l.b16 %v902
      %v1049 = vunpack.c.l.b16 %v903
      %v1050 = vunpack.c.l.b16 %v904
      %v1051 = vunpack.c.l.b16 %v905
      %v1052 = vunpack.c.l.b16 %v906
      %v1053 = vunpack.c.l.b16 %v907
      %v1054 = vunpack.c.l.b16 %v908
      %v1055 = vunpack.c.l.b16 %v909
      %v1056 = vunpack.c.l.b16 %v910
      %v1057 = vunpack.c.l.b16 %v911
      %v1058 = vunpack.c.l.b16 %v912
      %v1059 = vunpack.c.l.b16 %v913
      %v1060 = vunpack.c.l.b16 %v914
      %v1061 = vunpack.c.l.b16 %v915
      %v1062 = vunpack.c.l.b16 %v916
      %v1063 = vunpack.c.l.b16 %v917
      %v1064 = vunpack.c.l.b16 %v918
      %v1065 = vunpack.c.l.b16 %v919
      %v1066 = vunpack.c.l.b16 %v920
      %v1067 = vunpack.c.l.b16 %v921
      %v1068 = vunpack.c.l.b16 %v922
      %v1069 = vunpack.c.l.b16 %v923
      %v1070 = vpack.c.b16 %v1007, %v1006
      %v1071 = vpack.c.b16 %v1009, %v1008
      %v1072 = vpack.c.b16 %v1011, %v1010
      %v1073 = vpack.c.b16 %v1013, %v1012
      %v1074 = vpack.c.b16 %v1015, %v1014
      %v1075 = vpack.c.b16 %v1017, %v1016
      %v1076 = vpack.c.b16 %v1019, %v1018
      %v1077 = vpack.c.b16 %v1021, %v1020
      %v1078 = vpack.c.b16 %v1023, %v1022
      %v1079 = vpack.c.b16 %v1025, %v1024
      %v1080 = vpack.c.b16 %v1027, %v1026
      %v1081 = vpack.c.b16 %v1029, %v1028
      %v1082 = vpack.c.b16 %v1031, %v1030
      %v1083 = vpack.c.b16 %v1033, %v1032
      %v1084 = vpack.c.b16 %v1035, %v1034
      %v1085 = vpack.c.b16 %v1037, %v1036
      %v1086 = vpack.c.b16 %v1039, %v1038
      %v1087 = vpack.c.b16 %v1041, %v1040
      %v1088 = vpack.c.b16 %v1043, %v1042
      %v1089 = vpack.c.b16 %v1045, %v1044
      %v1090 = vpack.c.b16 %v1047, %v1046
      %v1091 = vpack.c.b16 %v1049, %v1048
      %v1092 = vpack.c.b16 %v1051, %v1050
      %v1093 = vpack.c.b16 %v1053, %v1052
      %v1094 = vpack.c.b16 %v1055, %v1054
      %v1095 = vpack.c.b16 %v1057, %v1056
      %v1096 = vpack.c.b16 %v1059, %v1058
      %v1097 = vpack.c.b16 %v1061, %v1060
      %v1098 = vpack.c.b16 %v1063, %v1062
      %v1099 = vpack.c.b16 %v1065, %v1064
      %v1100 = vpack.c.b16 %v1067, %v1066
      %v1101 = vpack.c.b16 %v1069, %v1068
      %1134 = vmatprep.subr.bf16.mxu0 0
      %1135 = vmatpush1.bf16.msra.mxu0 %v1077
      %1136 = vmatprep.subr.bf16.mxu0 0
      %1137 = vmatpush1.bf16.msra.mxu0 %v1076
      %1138 = vmatprep.subr.bf16.mxu0 0
      %1139 = vmatpush1.bf16.msra.mxu0 %v1075
      %1140 = vmatprep.subr.bf16.mxu0 0
      %1141 = vmatpush1.bf16.msra.mxu0 %v1074
      %1142 = vmatprep.subr.bf16.mxu0 0
      %1143 = vmatpush1.bf16.msra.mxu0 %v1073
      %1144 = vmatprep.subr.bf16.mxu0 0
      %1145 = vmatpush1.bf16.msra.mxu0 %v1072
      %1146 = vmatprep.subr.bf16.mxu0 0
      %1147 = vmatpush1.bf16.msra.mxu0 %v1071
      %1148 = vmatprep.subr.bf16.mxu0 0
      %1149 = vmatpush1.bf16.msra.mxu0 %v1070
      %1150 = vmatprep.subr.bf16.mxu0 0
      %1151 = vmatpush2.bf16.msra.mxu0 %v1085
      %1152 = vmatprep.subr.bf16.mxu0 0
      %1153 = vmatpush2.bf16.msra.mxu0 %v1084
      %1154 = vmatprep.subr.bf16.mxu0 0
      %1155 = vmatpush2.bf16.msra.mxu0 %v1083
      %1156 = vmatprep.subr.bf16.mxu0 0
      %1157 = vmatpush2.bf16.msra.mxu0 %v1082
      %1158 = vmatprep.subr.bf16.mxu0 0
      %1159 = vmatpush2.bf16.msra.mxu0 %v1081
      %1160 = vmatprep.subr.bf16.mxu0 0
      %1161 = vmatpush2.bf16.msra.mxu0 %v1080
      %1162 = vmatprep.subr.bf16.mxu0 0
      %1163 = vmatpush2.bf16.msra.mxu0 %v1079
      %1164 = vmatprep.subr.bf16.mxu0 0
      %1165 = vmatpush2.bf16.msra.mxu0 %v1078
      %1166 = vmatprep.mubr.bf16.mxu0 %v935
      %1167 = vmatmul.mubr.bf16.gmra.mxu0 %v934
      %v1168 = vpop.f32.mrf.mxu0
      %v1169 = vadd.f32 0.0, %v1168
      %v1170 = vpop.f32.mrf.mxu0
      %v1171 = vpop.f32.mrf.mxu0
      %v1172 = vpop.f32.mrf.mxu0
      %1173 = vdwg.mxu0
      %1174 = vmatprep.subr.bf16.mxu0 0
      %1175 = vmatpush1.bf16.msra.mxu0 %v1093
      %1176 = vmatprep.subr.bf16.mxu0 0
      %1177 = vmatpush1.bf16.msra.mxu0 %v1092
      %1178 = vmatprep.subr.bf16.mxu0 0
      %1179 = vmatpush1.bf16.msra.mxu0 %v1091
      %1180 = vmatprep.subr.bf16.mxu0 0
      %1181 = vmatpush1.bf16.msra.mxu0 %v1090
      %1182 = vmatprep.subr.bf16.mxu0 0
      %1183 = vmatpush1.bf16.msra.mxu0 %v1089
      %1184 = vmatprep.subr.bf16.mxu0 0
      %1185 = vmatpush1.bf16.msra.mxu0 %v1088
      %1186 = vmatprep.subr.bf16.mxu0 0
      %1187 = vmatpush1.bf16.msra.mxu0 %v1087
      %1188 = vmatprep.subr.bf16.mxu0 0
      %1189 = vmatpush1.bf16.msra.mxu0 %v1086
      %1190 = vmatprep.subr.bf16.mxu0 0
      %1191 = vmatpush2.bf16.msra.mxu0 %v1101
      %1192 = vmatprep.subr.bf16.mxu0 0
      %1193 = vmatpush2.bf16.msra.mxu0 %v1100
      %1194 = vmatprep.subr.bf16.mxu0 0
      %1195 = vmatpush2.bf16.msra.mxu0 %v1099
      %1196 = vmatprep.subr.bf16.mxu0 0
      %1197 = vmatpush2.bf16.msra.mxu0 %v1098
      %1198 = vmatprep.subr.bf16.mxu0 0
      %1199 = vmatpush2.bf16.msra.mxu0 %v1097
      %1200 = vmatprep.subr.bf16.mxu0 0
      %1201 = vmatpush2.bf16.msra.mxu0 %v1096
      %1202 = vmatprep.subr.bf16.mxu0 0
      %1203 = vmatpush2.bf16.msra.mxu0 %v1095
      %1204 = vmatprep.subr.bf16.mxu0 0
      %1205 = vmatpush2.bf16.msra.mxu0 %v1094
      %1206 = vmatprep.mubr.bf16.mxu0 %v937
      %1207 = vmatmul.mubr.bf16.gmra.mxu0 %v936
      %v1208 = vpop.f32.mrf.mxu0
      %v1209 = vadd.f32 %v1169, %v1208
      %v1210 = vpop.f32.mrf.mxu0
      %v1211 = vpop.f32.mrf.mxu0
      %v1212 = vpop.f32.mrf.mxu0
      %1213 = vdwg.mxu0
      %v1214 = vadd.f32 %v858, %v1209
      %1215 = vst [vmem:[#allocation2] sm:$0xf] %v1214
      %v1216 = vld [vmem:[%s499] sm:$0x66]
      %v1217 = vld [vmem:[%s499 + $0x8] sm:$0x66]
      %v1218 = vld [vmem:[#allocation2] sm:$0xf]
      %s1219 = scalar_lea.vmem %s1, 768
      %v1220 = vld [vmem:[%s1219] sm:$0xf]
      %v1221 = vld [vmem:[%s1219 + $0x4] sm:$0xf]
      %v1222 = vld [vmem:[%s1219 + $0x8] sm:$0xf]
      %v1223 = vld [vmem:[%s1219 + $0xc] sm:$0xf]
      %v1224 = vld [vmem:[%s1219 + $0x10] sm:$0xf]
      %v1225 = vld [vmem:[%s1219 + $0x14] sm:$0xf]
      %v1226 = vld [vmem:[%s1219 + $0x18] sm:$0xf]
      %v1227 = vld [vmem:[%s1219 + $0x1c] sm:$0xf]
      %v1228 = vld [vmem:[%s1219 + $0x20] sm:$0xf]
      %v1229 = vld [vmem:[%s1219 + $0x24] sm:$0xf]
      %v1230 = vld [vmem:[%s1219 + $0x28] sm:$0xf]
      %v1231 = vld [vmem:[%s1219 + $0x2c] sm:$0xf]
      %v1232 = vld [vmem:[%s1219 + $0x30] sm:$0xf]
      %v1233 = vld [vmem:[%s1219 + $0x34] sm:$0xf]
      %v1234 = vld [vmem:[%s1219 + $0x38] sm:$0xf]
      %v1235 = vld [vmem:[%s1219 + $0x3c] sm:$0xf]
      %v1236 = vld [vmem:[%s1219 + $0x40] sm:$0xf]
      %v1237 = vld [vmem:[%s1219 + $0x44] sm:$0xf]
      %v1238 = vld [vmem:[%s1219 + $0x48] sm:$0xf]
      %v1239 = vld [vmem:[%s1219 + $0x4c] sm:$0xf]
      %v1240 = vld [vmem:[%s1219 + $0x50] sm:$0xf]
      %v1241 = vld [vmem:[%s1219 + $0x54] sm:$0xf]
      %v1242 = vld [vmem:[%s1219 + $0x58] sm:$0xf]
      %v1243 = vld [vmem:[%s1219 + $0x5c] sm:$0xf]
      %v1244 = vld [vmem:[%s1219 + $0x60] sm:$0xf]
      %v1245 = vld [vmem:[%s1219 + $0x64] sm:$0xf]
      %v1246 = vld [vmem:[%s1219 + $0x68] sm:$0xf]
      %v1247 = vld [vmem:[%s1219 + $0x6c] sm:$0xf]
      %v1248 = vld [vmem:[%s1219 + $0x70] sm:$0xf]
      %v1249 = vld [vmem:[%s1219 + $0x74] sm:$0xf]
      %v1250 = vld [vmem:[%s1219 + $0x78] sm:$0xf]
      %v1251 = vld [vmem:[%s1219 + $0x7c] sm:$0xf]
      %v1252 = vld [vmem:[%s1219 + $0x80] sm:$0xf]
      %v1253 = vld [vmem:[%s1219 + $0x84] sm:$0xf]
      %v1254 = vld [vmem:[%s1219 + $0x88] sm:$0xf]
      %v1255 = vld [vmem:[%s1219 + $0x8c] sm:$0xf]
      %v1256 = vld [vmem:[%s1219 + $0x90] sm:$0xf]
      %v1257 = vld [vmem:[%s1219 + $0x94] sm:$0xf]
      %v1258 = vld [vmem:[%s1219 + $0x98] sm:$0xf]
      %v1259 = vld [vmem:[%s1219 + $0x9c] sm:$0xf]
      %v1260 = vld [vmem:[%s1219 + $0xa0] sm:$0xf]
      %v1261 = vld [vmem:[%s1219 + $0xa4] sm:$0xf]
      %v1262 = vld [vmem:[%s1219 + $0xa8] sm:$0xf]
      %v1263 = vld [vmem:[%s1219 + $0xac] sm:$0xf]
      %v1264 = vld [vmem:[%s1219 + $0xb0] sm:$0xf]
      %v1265 = vld [vmem:[%s1219 + $0xb4] sm:$0xf]
      %v1266 = vld [vmem:[%s1219 + $0xb8] sm:$0xf]
      %v1267 = vld [vmem:[%s1219 + $0xbc] sm:$0xf]
      %v1268 = vld [vmem:[%s1219 + $0xc0] sm:$0xf]
      %v1269 = vld [vmem:[%s1219 + $0xc4] sm:$0xf]
      %v1270 = vld [vmem:[%s1219 + $0xc8] sm:$0xf]
      %v1271 = vld [vmem:[%s1219 + $0xcc] sm:$0xf]
      %v1272 = vld [vmem:[%s1219 + $0xd0] sm:$0xf]
      %v1273 = vld [vmem:[%s1219 + $0xd4] sm:$0xf]
      %v1274 = vld [vmem:[%s1219 + $0xd8] sm:$0xf]
      %v1275 = vld [vmem:[%s1219 + $0xdc] sm:$0xf]
      %v1276 = vld [vmem:[%s1219 + $0xe0] sm:$0xf]
      %v1277 = vld [vmem:[%s1219 + $0xe4] sm:$0xf]
      %v1278 = vld [vmem:[%s1219 + $0xe8] sm:$0xf]
      %v1279 = vld [vmem:[%s1219 + $0xec] sm:$0xf]
      %v1280 = vld [vmem:[%s1219 + $0xf0] sm:$0xf]
      %v1281 = vld [vmem:[%s1219 + $0xf4] sm:$0xf]
      %v1282 = vld [vmem:[%s1219 + $0xf8] sm:$0xf]
      %v1283 = vld [vmem:[%s1219 + $0xfc] sm:$0xf]
      %v1286 = vunpack.c.l.b16 %v1216
      %v1287 = vunpack.c.h.b16 %v1216
      %v1288 = vunpack.c.l.b16 %v1217
      %v1289 = vunpack.c.h.b16 %v1217
      %v1290 = vpack.c.b16 %v1286, %v1286
      %v1291 = vpack.c.b16 %v1287, %v1287
      %v1292 = vpack.c.b16 %v1288, %v1288
      %v1293 = vpack.c.b16 %v1289, %v1289
      %v1294 = vrot.slane %v1290, 1
      %v1295 = vrot.slane %v1291, 1
      %v1296 = vrot.slane %v1292, 1
      %v1297 = vrot.slane %v1293, 1
      %v1366 = vunpack.c.l.b16 %v1220
      %v1367 = vunpack.c.l.b16 %v1221
      %v1368 = vunpack.c.l.b16 %v1222
      %v1369 = vunpack.c.l.b16 %v1223
      %v1370 = vunpack.c.l.b16 %v1224
      %v1371 = vunpack.c.l.b16 %v1225
      %v1372 = vunpack.c.l.b16 %v1226
      %v1373 = vunpack.c.l.b16 %v1227
      %v1374 = vunpack.c.l.b16 %v1228
      %v1375 = vunpack.c.l.b16 %v1229
      %v1376 = vunpack.c.l.b16 %v1230
      %v1377 = vunpack.c.l.b16 %v1231
      %v1378 = vunpack.c.l.b16 %v1232
      %v1379 = vunpack.c.l.b16 %v1233
      %v1380 = vunpack.c.l.b16 %v1234
      %v1381 = vunpack.c.l.b16 %v1235
      %v1382 = vunpack.c.l.b16 %v1236
      %v1383 = vunpack.c.l.b16 %v1237
      %v1384 = vunpack.c.l.b16 %v1238
      %v1385 = vunpack.c.l.b16 %v1239
      %v1386 = vunpack.c.l.b16 %v1240
      %v1387 = vunpack.c.l.b16 %v1241
      %v1388 = vunpack.c.l.b16 %v1242
      %v1389 = vunpack.c.l.b16 %v1243
      %v1390 = vunpack.c.l.b16 %v1244
      %v1391 = vunpack.c.l.b16 %v1245
      %v1392 = vunpack.c.l.b16 %v1246
      %v1393 = vunpack.c.l.b16 %v1247
      %v1394 = vunpack.c.l.b16 %v1248
      %v1395 = vunpack.c.l.b16 %v1249
      %v1396 = vunpack.c.l.b16 %v1250
      %v1397 = vunpack.c.l.b16 %v1251
      %v1398 = vunpack.c.l.b16 %v1252
      %v1399 = vunpack.c.l.b16 %v1253
      %v1400 = vunpack.c.l.b16 %v1254
      %v1401 = vunpack.c.l.b16 %v1255
      %v1402 = vunpack.c.l.b16 %v1256
      %v1403 = vunpack.c.l.b16 %v1257
      %v1404 = vunpack.c.l.b16 %v1258
      %v1405 = vunpack.c.l.b16 %v1259
      %v1406 = vunpack.c.l.b16 %v1260
      %v1407 = vunpack.c.l.b16 %v1261
      %v1408 = vunpack.c.l.b16 %v1262
      %v1409 = vunpack.c.l.b16 %v1263
      %v1410 = vunpack.c.l.b16 %v1264
      %v1411 = vunpack.c.l.b16 %v1265
      %v1412 = vunpack.c.l.b16 %v1266
      %v1413 = vunpack.c.l.b16 %v1267
      %v1414 = vunpack.c.l.b16 %v1268
      %v1415 = vunpack.c.l.b16 %v1269
      %v1416 = vunpack.c.l.b16 %v1270
      %v1417 = vunpack.c.l.b16 %v1271
      %v1418 = vunpack.c.l.b16 %v1272
      %v1419 = vunpack.c.l.b16 %v1273
      %v1420 = vunpack.c.l.b16 %v1274
      %v1421 = vunpack.c.l.b16 %v1275
      %v1422 = vunpack.c.l.b16 %v1276
      %v1423 = vunpack.c.l.b16 %v1277
      %v1424 = vunpack.c.l.b16 %v1278
      %v1425 = vunpack.c.l.b16 %v1279
      %v1426 = vunpack.c.l.b16 %v1280
      %v1427 = vunpack.c.l.b16 %v1281
      %v1428 = vunpack.c.l.b16 %v1282
      %v1429 = vunpack.c.l.b16 %v1283
      %v1430 = vpack.c.b16 %v1367, %v1366
      %v1431 = vpack.c.b16 %v1369, %v1368
      %v1432 = vpack.c.b16 %v1371, %v1370
      %v1433 = vpack.c.b16 %v1373, %v1372
      %v1434 = vpack.c.b16 %v1375, %v1374
      %v1435 = vpack.c.b16 %v1377, %v1376
      %v1436 = vpack.c.b16 %v1379, %v1378
      %v1437 = vpack.c.b16 %v1381, %v1380
      %v1438 = vpack.c.b16 %v1383, %v1382
      %v1439 = vpack.c.b16 %v1385, %v1384
      %v1440 = vpack.c.b16 %v1387, %v1386
      %v1441 = vpack.c.b16 %v1389, %v1388
      %v1442 = vpack.c.b16 %v1391, %v1390
      %v1443 = vpack.c.b16 %v1393, %v1392
      %v1444 = vpack.c.b16 %v1395, %v1394
      %v1445 = vpack.c.b16 %v1397, %v1396
      %v1446 = vpack.c.b16 %v1399, %v1398
      %v1447 = vpack.c.b16 %v1401, %v1400
      %v1448 = vpack.c.b16 %v1403, %v1402
      %v1449 = vpack.c.b16 %v1405, %v1404
      %v1450 = vpack.c.b16 %v1407, %v1406
      %v1451 = vpack.c.b16 %v1409, %v1408
      %v1452 = vpack.c.b16 %v1411, %v1410
      %v1453 = vpack.c.b16 %v1413, %v1412
      %v1454 = vpack.c.b16 %v1415, %v1414
      %v1455 = vpack.c.b16 %v1417, %v1416
      %v1456 = vpack.c.b16 %v1419, %v1418
      %v1457 = vpack.c.b16 %v1421, %v1420
      %v1458 = vpack.c.b16 %v1423, %v1422
      %v1459 = vpack.c.b16 %v1425, %v1424
      %v1460 = vpack.c.b16 %v1427, %v1426
      %v1461 = vpack.c.b16 %v1429, %v1428
      %1494 = vmatprep.subr.bf16.mxu0 0
      %1495 = vmatpush1.bf16.msra.mxu0 %v1437
      %1496 = vmatprep.subr.bf16.mxu0 0
      %1497 = vmatpush1.bf16.msra.mxu0 %v1436
      %1498 = vmatprep.subr.bf16.mxu0 0
      %1499 = vmatpush1.bf16.msra.mxu0 %v1435
      %1500 = vmatprep.subr.bf16.mxu0 0
      %1501 = vmatpush1.bf16.msra.mxu0 %v1434
      %1502 = vmatprep.subr.bf16.mxu0 0
      %1503 = vmatpush1.bf16.msra.mxu0 %v1433
      %1504 = vmatprep.subr.bf16.mxu0 0
      %1505 = vmatpush1.bf16.msra.mxu0 %v1432
      %1506 = vmatprep.subr.bf16.mxu0 0
      %1507 = vmatpush1.bf16.msra.mxu0 %v1431
      %1508 = vmatprep.subr.bf16.mxu0 0
      %1509 = vmatpush1.bf16.msra.mxu0 %v1430
      %1510 = vmatprep.subr.bf16.mxu0 0
      %1511 = vmatpush2.bf16.msra.mxu0 %v1445
      %1512 = vmatprep.subr.bf16.mxu0 0
      %1513 = vmatpush2.bf16.msra.mxu0 %v1444
      %1514 = vmatprep.subr.bf16.mxu0 0
      %1515 = vmatpush2.bf16.msra.mxu0 %v1443
      %1516 = vmatprep.subr.bf16.mxu0 0
      %1517 = vmatpush2.bf16.msra.mxu0 %v1442
      %1518 = vmatprep.subr.bf16.mxu0 0
      %1519 = vmatpush2.bf16.msra.mxu0 %v1441
      %1520 = vmatprep.subr.bf16.mxu0 0
      %1521 = vmatpush2.bf16.msra.mxu0 %v1440
      %1522 = vmatprep.subr.bf16.mxu0 0
      %1523 = vmatpush2.bf16.msra.mxu0 %v1439
      %1524 = vmatprep.subr.bf16.mxu0 0
      %1525 = vmatpush2.bf16.msra.mxu0 %v1438
      %1526 = vmatprep.mubr.bf16.mxu0 %v1295
      %1527 = vmatmul.mubr.bf16.gmra.mxu0 %v1294
      %v1528 = vpop.f32.mrf.mxu0
      %v1529 = vadd.f32 0.0, %v1528
      %v1530 = vpop.f32.mrf.mxu0
      %v1531 = vpop.f32.mrf.mxu0
      %v1532 = vpop.f32.mrf.mxu0
      %1533 = vdwg.mxu0
      %1534 = vmatprep.subr.bf16.mxu0 0
      %1535 = vmatpush1.bf16.msra.mxu0 %v1453
      %1536 = vmatprep.subr.bf16.mxu0 0
      %1537 = vmatpush1.bf16.msra.mxu0 %v1452
      %1538 = vmatprep.subr.bf16.mxu0 0
      %1539 = vmatpush1.bf16.msra.mxu0 %v1451
      %1540 = vmatprep.subr.bf16.mxu0 0
      %1541 = vmatpush1.bf16.msra.mxu0 %v1450
      %1542 = vmatprep.subr.bf16.mxu0 0
      %1543 = vmatpush1.bf16.msra.mxu0 %v1449
      %1544 = vmatprep.subr.bf16.mxu0 0
      %1545 = vmatpush1.bf16.msra.mxu0 %v1448
      %1546 = vmatprep.subr.bf16.mxu0 0
      %1547 = vmatpush1.bf16.msra.mxu0 %v1447
      %1548 = vmatprep.subr.bf16.mxu0 0
      %1549 = vmatpush1.bf16.msra.mxu0 %v1446
      %1550 = vmatprep.subr.bf16.mxu0 0
      %1551 = vmatpush2.bf16.msra.mxu0 %v1461
      %1552 = vmatprep.subr.bf16.mxu0 0
      %1553 = vmatpush2.bf16.msra.mxu0 %v1460
      %1554 = vmatprep.subr.bf16.mxu0 0
      %1555 = vmatpush2.bf16.msra.mxu0 %v1459
      %1556 = vmatprep.subr.bf16.mxu0 0
      %1557 = vmatpush2.bf16.msra.mxu0 %v1458
      %1558 = vmatprep.subr.bf16.mxu0 0
      %1559 = vmatpush2.bf16.msra.mxu0 %v1457
      %1560 = vmatprep.subr.bf16.mxu0 0
      %1561 = vmatpush2.bf16.msra.mxu0 %v1456
      %1562 = vmatprep.subr.bf16.mxu0 0
      %1563 = vmatpush2.bf16.msra.mxu0 %v1455
      %1564 = vmatprep.subr.bf16.mxu0 0
      %1565 = vmatpush2.bf16.msra.mxu0 %v1454
      %1566 = vmatprep.mubr.bf16.mxu0 %v1297
      %1567 = vmatmul.mubr.bf16.gmra.mxu0 %v1296
      %v1568 = vpop.f32.mrf.mxu0
      %v1569 = vadd.f32 %v1529, %v1568
      %v1570 = vpop.f32.mrf.mxu0
      %v1571 = vpop.f32.mrf.mxu0
      %v1572 = vpop.f32.mrf.mxu0
      %1573 = vdwg.mxu0
      %v1574 = vadd.f32 %v1218, %v1569
      %1575 = vst [vmem:[#allocation2] sm:$0xf] %v1574
      %v1576 = vld [vmem:[#allocation2] sm:$0xf]
      %vm1577 = vcmp.gt.f32.partialorder %v1576, 0.0
      %v1578 = vmul.f32 %v1576, 0.2
      %v1579 = vsel %vm1577, %v1576, %v1578
      %v1580 = vpack.c.bf16 %v1579, %v1579
      %1581 = vst [vmem:[%s141] sm:$0x3] %v1580
      %p1582 = scmp.lt.s32.totalorder %s13, 1
      %s1583 = scalar_select %p1582, %s13, 1
      %s1584 = smul.addr %s1583, 2
      %s1585 = scalar_lea.vmem %s2, %s1584
      // Predicated region
      $region29: #{discriminator_forward.8} parent=27 // pred_check
        %p1586 = pneg %p78
      $region30: #{discriminator_forward.8} parent=27 // pred_check_branch
        %1588 = sbr.rel (%p1586) target = $region32
      $region31: #{discriminator_forward.8} parent=27 // pred_region
        _
      $region32: #{discriminator_forward.8} parent=27 // pred_fallthru
        _
    $region28: #{discriminator_forward.8} parent=5 // pred_fallthru
      _
    %p1589 = scmp.le.s32.totalorder 2, %s8
    // Predicated region
    $region33: #{discriminator_forward.8} parent=5 // pred_check
      %p1590 = pneg %p1589
    $region34: #{discriminator_forward.8} parent=5 // pred_check_branch
      %1592 = sbr.rel (%p1590) target = $region36
    $region35: #{discriminator_forward.8} parent=5 // pred_region
      %s1593 = ssub.s32 %s8, 2
      // Predicated region
      $region37: #{discriminator_forward.8} parent=35 // pred_check
        %p1594 = pneg %p84
      $region38: #{discriminator_forward.8} parent=35 // pred_check_branch
        %1596 = sbr.rel (%p1594) target = $region40
      $region39: #{discriminator_forward.8} parent=35 // pred_region
        %p1597 = scmp.lt.s32.totalorder %s14, 1
        %s1598 = scalar_select %p1597, %s14, 1
        %s1599 = smul.addr %s1598, 2
        %s1600 = scalar_lea.vmem %s2, %s1599
      $region40: #{discriminator_forward.8} parent=35 // pred_fallthru
        _
    $region36: #{discriminator_forward.8} parent=5 // pred_fallthru
      _
  $region6: #{discriminator_forward.8} parent=0 // loop_footer
    %s12 = sadd.s32 1, %s8
  $region7: #{discriminator_forward.8} parent=0 // loop_footer_branch
    %7 = sbr.rel target = $region3
  $region8: #{discriminator_forward.8} parent=0 // loop_exit
    _

// kernel: discriminator_forward.9
$region0: #{discriminator_forward.9}
  #allocation0 [shape = 'u32[]', space=smem, size = 0x4, offset = 0x4, fixed_abs, tag = 'smem constant byte address 0x4 - core index']
  #allocation1 [shape = 'u32[144,128]{1,0:T(1,128)}', space=vmem, size = 0x12000, scoped, tag = 'internal scratch']
  #allocation2 [shape = 'f32[1]{0:T(128)S(6)}', space=smem, size = 0x200, scoped, tag = 'scoped memory for discriminator_forward.9']
  %s0 = inlined_call_operand.vmem [shape: bf16[2,2,2,512], index: 0, kind: input, shape index: {}]
  %s1 = inlined_call_operand.vmem [shape: bf16[4,512,128], index: 1, kind: input, shape index: {}]
  %s2 = inlined_call_operand.vmem [shape: bf16[1,128,128], index: 2, kind: input, shape index: {}]
  %s3 = inlined_call_operand.<no memory space> [shape: f32[1], index: 3, kind: input, shape index: {}]
  %s4 = inlined_call_operand.vmem [shape: f32[2,1,128], index: 4, kind: output, shape index: {}]
  %s5 = sld [smem:[#allocation0]]
  $region49: #{discriminator_forward.9} parent=0
    _
  %s7 = ssub.s32 1, %s5
  %s8 = scalar_select 0, %s7, %s5
  %9 = sst [smem:[#allocation2]] %s3
  loop: start=0, step=1, limit=4
  $region2: #{discriminator_forward.9} parent=0 // loop_pre_header
    _
  $region3: #{discriminator_forward.9} parent=0 // loop_header
    %s11 = sphi 0, %s15
    %p12 = scmp.ge.s32.totalorder %s11, 4
    %s21 = sphi 0, %s23
    %s24 = sphi 0, %s21
    %s25 = sphi 0, %s24
    %s41 = sphi 0, %s25
    %s45 = sphi 0, %s45
    %s47 = sphi 0, %s45
    %s48 = sphi 0, %s47
    %s62 = sphi 0, %s48
    %s66 = sphi 0, %s66
    %s68 = sphi 0, %s66
    %s69 = sphi 0, %s68
    %s83 = sphi 0, %s69
    %s87 = sphi 0, %s87
    %s89 = sphi 0, %s87
    %s90 = sphi 0, %s89
    %s104 = sphi 0, %s90
    %s110 = sphi 0, %s112
    %s113 = sphi 0, %s110
    %s114 = sphi 0, %s113
    %s130 = sphi 0, %s114
  $region4: #{discriminator_forward.9} parent=0 // loop_header_branch
    %14 = sbr.rel (%p12) target = $region8
  $region5: #{discriminator_forward.9} parent=0 // loop_body
    %s16 = ssub.s32 %s11, 1
    %s17 = ssub.s32 %s11, 2
    %s18 = sadd.s32 %s11, 1
    %s19 = ssub.s32 %s11, %s18
    %p20 = scmp.eq.s32.totalorder %s19, 0
    %s22 = sadd.s32 %s21, 1
    %s23 = scalar_select %p20, %s21, %s22
    %p26 = pneg %p20
    %p27 = scmp.eq.s32.totalorder %s11, 1
    %p28 = por %p26, %p27
    %p29 = scmp.ne.s32.totalorder %s21, %s24
    %p30 = scmp.eq.s32.totalorder %s11, 0
    %p31 = por %p29, %p30
    %p32 = scmp.ne.s32.totalorder %s21, %s24
    %p33 = scmp.eq.s32.totalorder %s16, 1
    %p34 = por %p32, %p33
    %p35 = scmp.ne.s32.totalorder %s24, %s25
    %p36 = scmp.eq.s32.totalorder %s16, 0
    %p37 = por %p35, %p36
    %p38 = scmp.ne.s32.totalorder %s24, %s25
    %p39 = scmp.eq.s32.totalorder %s17, 1
    %p40 = por %p38, %p39
    %p42 = scmp.ne.s32.totalorder %s25, %s41
    %p43 = scmp.eq.s32.totalorder %s17, 0
    %p44 = por %p42, %p43
    %s46 = sadd.s32 %s45, 1
    %p49 = scmp.eq.s32.totalorder %s11, 1
    %p50 = scmp.ne.s32.totalorder %s45, %s47
    %p51 = scmp.eq.s32.totalorder %s11, 0
    %p52 = por %p50, %p51
    %p53 = scmp.ne.s32.totalorder %s45, %s47
    %p54 = scmp.eq.s32.totalorder %s16, 1
    %p55 = por %p53, %p54
    %p56 = scmp.ne.s32.totalorder %s47, %s48
    %p57 = scmp.eq.s32.totalorder %s16, 0
    %p58 = por %p56, %p57
    %p59 = scmp.ne.s32.totalorder %s47, %s48
    %p60 = scmp.eq.s32.totalorder %s17, 1
    %p61 = por %p59, %p60
    %p63 = scmp.ne.s32.totalorder %s48, %s62
    %p64 = scmp.eq.s32.totalorder %s17, 0
    %p65 = por %p63, %p64
    %s67 = sadd.s32 %s66, 1
    %p70 = scmp.eq.s32.totalorder %s11, 1
    %p71 = scmp.ne.s32.totalorder %s66, %s68
    %p72 = scmp.eq.s32.totalorder %s11, 0
    %p73 = por %p71, %p72
    %p74 = scmp.ne.s32.totalorder %s66, %s68
    %p75 = scmp.eq.s32.totalorder %s16, 1
    %p76 = por %p74, %p75
    %p77 = scmp.ne.s32.totalorder %s68, %s69
    %p78 = scmp.eq.s32.totalorder %s16, 0
    %p79 = por %p77, %p78
    %p80 = scmp.ne.s32.totalorder %s68, %s69
    %p81 = scmp.eq.s32.totalorder %s17, 1
    %p82 = por %p80, %p81
    %p84 = scmp.ne.s32.totalorder %s69, %s83
    %p85 = scmp.eq.s32.totalorder %s17, 0
    %p86 = por %p84, %p85
    %s88 = sadd.s32 %s87, 1
    %p91 = scmp.eq.s32.totalorder %s11, 1
    %p92 = scmp.ne.s32.totalorder %s87, %s89
    %p93 = scmp.eq.s32.totalorder %s11, 0
    %p94 = por %p92, %p93
    %p95 = scmp.ne.s32.totalorder %s87, %s89
    %p96 = scmp.eq.s32.totalorder %s16, 1
    %p97 = por %p95, %p96
    %p98 = scmp.ne.s32.totalorder %s89, %s90
    %p99 = scmp.eq.s32.totalorder %s16, 0
    %p100 = por %p98, %p99
    %p101 = scmp.ne.s32.totalorder %s89, %s90
    %p102 = scmp.eq.s32.totalorder %s17, 1
    %p103 = por %p101, %p102
    %p105 = scmp.ne.s32.totalorder %s90, %s104
    %p106 = scmp.eq.s32.totalorder %s17, 0
    %p107 = por %p105, %p106
    %s108 = ssub.s32 %s11, %s18
    %p109 = scmp.eq.s32.totalorder %s108, 0
    %s111 = sadd.s32 %s110, 1
    %s112 = scalar_select %p109, %s110, %s111
    %p115 = pneg %p109
    %p116 = scmp.eq.s32.totalorder %s11, 1
    %p117 = por %p115, %p116
    %p118 = scmp.ne.s32.totalorder %s110, %s113
    %p119 = scmp.eq.s32.totalorder %s11, 0
    %p120 = por %p118, %p119
    %p121 = scmp.ne.s32.totalorder %s110, %s113
    %p122 = scmp.eq.s32.totalorder %s16, 1
    %p123 = por %p121, %p122
    %p124 = scmp.ne.s32.totalorder %s113, %s114
    %p125 = scmp.eq.s32.totalorder %s16, 0
    %p126 = por %p124, %p125
    %p127 = scmp.ne.s32.totalorder %s113, %s114
    %p128 = scmp.eq.s32.totalorder %s17, 1
    %p129 = por %p127, %p128
    %p131 = scmp.ne.s32.totalorder %s114, %s130
    %p132 = scmp.eq.s32.totalorder %s17, 0
    %p133 = por %p131, %p132
    %p134 = scmp.le.s32.totalorder 1, %s11
    %p135 = scmp.lt.s32.totalorder %s11, 3
    %p136 = pnand %p134, %p135
    %p137 = pneg %p136
    // Predicated region
    $region9: #{discriminator_forward.9} parent=5 // pred_check
      _
    $region10: #{discriminator_forward.9} parent=5 // pred_check_branch
      %139 = sbr.rel (%p136) target = $region12
    $region11: #{discriminator_forward.9} parent=5 // pred_region
      %s140 = ssub.s32 %s11, 1
      // Predicated region
      $region13: #{discriminator_forward.9} parent=11 // pred_check
        %p141 = pneg %p58
      $region14: #{discriminator_forward.9} parent=11 // pred_check_branch
        %143 = sbr.rel (%p141) target = $region16
      $region15: #{discriminator_forward.9} parent=11 // pred_region
        _
      $region16: #{discriminator_forward.9} parent=11 // pred_fallthru
        _
      // Predicated region
      $region17: #{discriminator_forward.9} parent=11 // pred_check
        %p144 = pneg %p79
      $region18: #{discriminator_forward.9} parent=11 // pred_check_branch
        %146 = sbr.rel (%p144) target = $region20
      $region19: #{discriminator_forward.9} parent=11 // pred_region
        _
      $region20: #{discriminator_forward.9} parent=11 // pred_fallthru
        _
      // Predicated region
      $region21: #{discriminator_forward.9} parent=11 // pred_check
        %p147 = pneg %p100
      $region22: #{discriminator_forward.9} parent=11 // pred_check_branch
        %149 = sbr.rel (%p147) target = $region24
      $region23: #{discriminator_forward.9} parent=11 // pred_region
        _
      $region24: #{discriminator_forward.9} parent=11 // pred_fallthru
        _
    $region12: #{discriminator_forward.9} parent=5 // pred_fallthru
      _
    %p150 = scmp.lt.s32.totalorder %s11, 2
    // Predicated region
    $region25: #{discriminator_forward.9} parent=5 // pred_check
      %p151 = pneg %p150
    $region26: #{discriminator_forward.9} parent=5 // pred_check_branch
      %153 = sbr.rel (%p151) target = $region28
    $region27: #{discriminator_forward.9} parent=5 // pred_region
      // Predicated region
      $region29: #{discriminator_forward.9} parent=27 // pred_check
        %p154 = pneg %p31
      $region30: #{discriminator_forward.9} parent=27 // pred_check_branch
        %156 = sbr.rel (%p154) target = $region32
      $region31: #{discriminator_forward.9} parent=27 // pred_region
        %p157 = scmp.lt.s32.totalorder %s11, 1
        %s158 = scalar_select %p157, %s11, 1
        %s159 = smul.addr %s158, 8
        %s160 = scalar_lea.vmem %s0, %s159
      $region32: #{discriminator_forward.9} parent=27 // pred_fallthru
        _
    $region28: #{discriminator_forward.9} parent=5 // pred_fallthru
      _
    %p161 = scmp.le.s32.totalorder 1, %s11
    %p162 = scmp.lt.s32.totalorder %s11, 3
    %p163 = pnand %p161, %p162
    %p164 = pneg %p163
    // Predicated region
    $region33: #{discriminator_forward.9} parent=5 // pred_check
      _
    $region34: #{discriminator_forward.9} parent=5 // pred_check_branch
      %166 = sbr.rel (%p163) target = $region36
    $region35: #{discriminator_forward.9} parent=5 // pred_region
      %s167 = ssub.s32 %s11, 1
      %p168 = scmp.lt.s32.totalorder %s16, 1
      %s169 = scalar_select %p168, %s16, 1
      %s170 = smul.addr %s169, 8
      %s171 = scalar_lea.vmem %s0, %s170
      %p172 = pneg %p37
      %p173 = pneg %p34
      %p174 = pneg %p58
      %p175 = pneg %p55
      %p176 = pneg %p79
      %p177 = pneg %p76
      %p178 = pneg %p100
      %p179 = pneg %p97
      %p180 = pneg %p126
      %p181 = pneg %p123
      %p182 = scmp.lt.s32.totalorder %s16, 1
      %s183 = scalar_select %p182, %s16, 1
      %s184 = scalar_lea.vmem %s4, %s183
      %p185 = scmp.lt.s32.totalorder %s16, 1
      %s186 = scalar_select %p185, %s16, 1
      %s187 = smul.addr %s186, 8
      %s188 = scalar_lea.vmem %s0, %s187
      %p189 = scmp.lt.s32.totalorder %s16, 1
      %s190 = scalar_select %p189, %s16, 1
      %s191 = scalar_lea.vmem %s4, %s190
      %v193 = vld [vmem:[%s188] sm:$0xf]
      %v194 = vld [vmem:[%s1] sm:$0xf]
      %v195 = vld [vmem:[%s1 + $0x4] sm:$0xf]
      %v196 = vld [vmem:[%s1 + $0x8] sm:$0xf]
      %v197 = vld [vmem:[%s1 + $0xc] sm:$0xf]
      %v198 = vld [vmem:[%s1 + $0x10] sm:$0xf]
      %v199 = vld [vmem:[%s1 + $0x14] sm:$0xf]
      %v200 = vld [vmem:[%s1 + $0x18] sm:$0xf]
      %v201 = vld [vmem:[%s1 + $0x1c] sm:$0xf]
      %v202 = vld [vmem:[%s1 + $0x20] sm:$0xf]
      %v203 = vld [vmem:[%s1 + $0x24] sm:$0xf]
      %v204 = vld [vmem:[%s1 + $0x28] sm:$0xf]
      %v205 = vld [vmem:[%s1 + $0x2c] sm:$0xf]
      %v206 = vld [vmem:[%s1 + $0x30] sm:$0xf]
      %v207 = vld [vmem:[%s1 + $0x34] sm:$0xf]
      %v208 = vld [vmem:[%s1 + $0x38] sm:$0xf]
      %v209 = vld [vmem:[%s1 + $0x3c] sm:$0xf]
      %v210 = vld [vmem:[%s1 + $0x40] sm:$0xf]
      %v211 = vld [vmem:[%s1 + $0x44] sm:$0xf]
      %v212 = vld [vmem:[%s1 + $0x48] sm:$0xf]
      %v213 = vld [vmem:[%s1 + $0x4c] sm:$0xf]
      %v214 = vld [vmem:[%s1 + $0x50] sm:$0xf]
      %v215 = vld [vmem:[%s1 + $0x54] sm:$0xf]
      %v216 = vld [vmem:[%s1 + $0x58] sm:$0xf]
      %v217 = vld [vmem:[%s1 + $0x5c] sm:$0xf]
      %v218 = vld [vmem:[%s1 + $0x60] sm:$0xf]
      %v219 = vld [vmem:[%s1 + $0x64] sm:$0xf]
      %v220 = vld [vmem:[%s1 + $0x68] sm:$0xf]
      %v221 = vld [vmem:[%s1 + $0x6c] sm:$0xf]
      %v222 = vld [vmem:[%s1 + $0x70] sm:$0xf]
      %v223 = vld [vmem:[%s1 + $0x74] sm:$0xf]
      %v224 = vld [vmem:[%s1 + $0x78] sm:$0xf]
      %v225 = vld [vmem:[%s1 + $0x7c] sm:$0xf]
      %v226 = vld [vmem:[%s1 + $0x80] sm:$0xf]
      %v227 = vld [vmem:[%s1 + $0x84] sm:$0xf]
      %v228 = vld [vmem:[%s1 + $0x88] sm:$0xf]
      %v229 = vld [vmem:[%s1 + $0x8c] sm:$0xf]
      %v230 = vld [vmem:[%s1 + $0x90] sm:$0xf]
      %v231 = vld [vmem:[%s1 + $0x94] sm:$0xf]
      %v232 = vld [vmem:[%s1 + $0x98] sm:$0xf]
      %v233 = vld [vmem:[%s1 + $0x9c] sm:$0xf]
      %v234 = vld [vmem:[%s1 + $0xa0] sm:$0xf]
      %v235 = vld [vmem:[%s1 + $0xa4] sm:$0xf]
      %v236 = vld [vmem:[%s1 + $0xa8] sm:$0xf]
      %v237 = vld [vmem:[%s1 + $0xac] sm:$0xf]
      %v238 = vld [vmem:[%s1 + $0xb0] sm:$0xf]
      %v239 = vld [vmem:[%s1 + $0xb4] sm:$0xf]
      %v240 = vld [vmem:[%s1 + $0xb8] sm:$0xf]
      %v241 = vld [vmem:[%s1 + $0xbc] sm:$0xf]
      %v242 = vld [vmem:[%s1 + $0xc0] sm:$0xf]
      %v243 = vld [vmem:[%s1 + $0xc4] sm:$0xf]
      %v244 = vld [vmem:[%s1 + $0xc8] sm:$0xf]
      %v245 = vld [vmem:[%s1 + $0xcc] sm:$0xf]
      %v246 = vld [vmem:[%s1 + $0xd0] sm:$0xf]
      %v247 = vld [vmem:[%s1 + $0xd4] sm:$0xf]
      %v248 = vld [vmem:[%s1 + $0xd8] sm:$0xf]
      %v249 = vld [vmem:[%s1 + $0xdc] sm:$0xf]
      %v250 = vld [vmem:[%s1 + $0xe0] sm:$0xf]
      %v251 = vld [vmem:[%s1 + $0xe4] sm:$0xf]
      %v252 = vld [vmem:[%s1 + $0xe8] sm:$0xf]
      %v253 = vld [vmem:[%s1 + $0xec] sm:$0xf]
      %v254 = vld [vmem:[%s1 + $0xf0] sm:$0xf]
      %v255 = vld [vmem:[%s1 + $0xf4] sm:$0xf]
      %v256 = vld [vmem:[%s1 + $0xf8] sm:$0xf]
      %v257 = vld [vmem:[%s1 + $0xfc] sm:$0xf]
      %s258 = scalar_lea.vmem %s188, 4
      %v259 = vld [vmem:[%s258] sm:$0xf]
      %s260 = scalar_lea.vmem %s1, 256
      %v261 = vld [vmem:[%s260] sm:$0xf]
      %v262 = vld [vmem:[%s260 + $0x4] sm:$0xf]
      %v263 = vld [vmem:[%s260 + $0x8] sm:$0xf]
      %v264 = vld [vmem:[%s260 + $0xc] sm:$0xf]
      %v265 = vld [vmem:[%s260 + $0x10] sm:$0xf]
      %v266 = vld [vmem:[%s260 + $0x14] sm:$0xf]
      %v267 = vld [vmem:[%s260 + $0x18] sm:$0xf]
      %v268 = vld [vmem:[%s260 + $0x1c] sm:$0xf]
      %v269 = vld [vmem:[%s260 + $0x20] sm:$0xf]
      %v270 = vld [vmem:[%s260 + $0x24] sm:$0xf]
      %v271 = vld [vmem:[%s260 + $0x28] sm:$0xf]
      %v272 = vld [vmem:[%s260 + $0x2c] sm:$0xf]
      %v273 = vld [vmem:[%s260 + $0x30] sm:$0xf]
      %v274 = vld [vmem:[%s260 + $0x34] sm:$0xf]
      %v275 = vld [vmem:[%s260 + $0x38] sm:$0xf]
      %v276 = vld [vmem:[%s260 + $0x3c] sm:$0xf]
      %v277 = vld [vmem:[%s260 + $0x40] sm:$0xf]
      %v278 = vld [vmem:[%s260 + $0x44] sm:$0xf]
      %v279 = vld [vmem:[%s260 + $0x48] sm:$0xf]
      %v280 = vld [vmem:[%s260 + $0x4c] sm:$0xf]
      %v281 = vld [vmem:[%s260 + $0x50] sm:$0xf]
      %v282 = vld [vmem:[%s260 + $0x54] sm:$0xf]
      %v283 = vld [vmem:[%s260 + $0x58] sm:$0xf]
      %v284 = vld [vmem:[%s260 + $0x5c] sm:$0xf]
      %v285 = vld [vmem:[%s260 + $0x60] sm:$0xf]
      %v286 = vld [vmem:[%s260 + $0x64] sm:$0xf]
      %v287 = vld [vmem:[%s260 + $0x68] sm:$0xf]
      %v288 = vld [vmem:[%s260 + $0x6c] sm:$0xf]
      %v289 = vld [vmem:[%s260 + $0x70] sm:$0xf]
      %v290 = vld [vmem:[%s260 + $0x74] sm:$0xf]
      %v291 = vld [vmem:[%s260 + $0x78] sm:$0xf]
      %v292 = vld [vmem:[%s260 + $0x7c] sm:$0xf]
      %v293 = vld [vmem:[%s260 + $0x80] sm:$0xf]
      %v294 = vld [vmem:[%s260 + $0x84] sm:$0xf]
      %v295 = vld [vmem:[%s260 + $0x88] sm:$0xf]
      %v296 = vld [vmem:[%s260 + $0x8c] sm:$0xf]
      %v297 = vld [vmem:[%s260 + $0x90] sm:$0xf]
      %v298 = vld [vmem:[%s260 + $0x94] sm:$0xf]
      %v299 = vld [vmem:[%s260 + $0x98] sm:$0xf]
      %v300 = vld [vmem:[%s260 + $0x9c] sm:$0xf]
      %v301 = vld [vmem:[%s260 + $0xa0] sm:$0xf]
      %v302 = vld [vmem:[%s260 + $0xa4] sm:$0xf]
      %v303 = vld [vmem:[%s260 + $0xa8] sm:$0xf]
      %v304 = vld [vmem:[%s260 + $0xac] sm:$0xf]
      %v305 = vld [vmem:[%s260 + $0xb0] sm:$0xf]
      %v306 = vld [vmem:[%s260 + $0xb4] sm:$0xf]
      %v307 = vld [vmem:[%s260 + $0xb8] sm:$0xf]
      %v308 = vld [vmem:[%s260 + $0xbc] sm:$0xf]
      %v309 = vld [vmem:[%s260 + $0xc0] sm:$0xf]
      %v310 = vld [vmem:[%s260 + $0xc4] sm:$0xf]
      %v311 = vld [vmem:[%s260 + $0xc8] sm:$0xf]
      %v312 = vld [vmem:[%s260 + $0xcc] sm:$0xf]
      %v313 = vld [vmem:[%s260 + $0xd0] sm:$0xf]
      %v314 = vld [vmem:[%s260 + $0xd4] sm:$0xf]
      %v315 = vld [vmem:[%s260 + $0xd8] sm:$0xf]
      %v316 = vld [vmem:[%s260 + $0xdc] sm:$0xf]
      %v317 = vld [vmem:[%s260 + $0xe0] sm:$0xf]
      %v318 = vld [vmem:[%s260 + $0xe4] sm:$0xf]
      %v319 = vld [vmem:[%s260 + $0xe8] sm:$0xf]
      %v320 = vld [vmem:[%s260 + $0xec] sm:$0xf]
      %v321 = vld [vmem:[%s260 + $0xf0] sm:$0xf]
      %v322 = vld [vmem:[%s260 + $0xf4] sm:$0xf]
      %v323 = vld [vmem:[%s260 + $0xf8] sm:$0xf]
      %v324 = vld [vmem:[%s260 + $0xfc] sm:$0xf]
      %v327 = vunpack.c.l.s4 1966171168
      %v328 = vunpack.c.0.s8 %v327
      %v329 = vlaneseq
      %v330 = vshrl.u32 %v329, 7
      %v331 = vsub.s32 %v328, %v330
      %v332 = vrot.slane %v259, %v331
      %v333 = vcombine.high %v332, %v332
      %v335 = vunpack.c.l.s4 1966171168
      %v336 = vunpack.c.0.s8 %v335
      %v337 = vlaneseq
      %v338 = vshrl.u32 %v337, 7
      %v339 = vsub.s32 %v336, %v338
      %v340 = vrot.slane %v332, %v339
      %v342 = vunpack.c.l.s4 1966171168
      %v343 = vunpack.c.0.s8 %v342
      %v344 = vlaneseq
      %v345 = vshrl.u32 %v344, 7
      %v346 = vsub.s32 %v343, %v345
      %v347 = vrot.slane %v333, %v346
      %v348 = vcombine.high %v340, %v340
      %v349 = vcombine.high %v347, %v347
      %v418 = vunpack.c.l.b16 %v261
      %v419 = vunpack.c.l.b16 %v262
      %v420 = vunpack.c.l.b16 %v263
      %v421 = vunpack.c.l.b16 %v264
      %v422 = vunpack.c.l.b16 %v265
      %v423 = vunpack.c.l.b16 %v266
      %v424 = vunpack.c.l.b16 %v267
      %v425 = vunpack.c.l.b16 %v268
      %v426 = vunpack.c.l.b16 %v269
      %v427 = vunpack.c.l.b16 %v270
      %v428 = vunpack.c.l.b16 %v271
      %v429 = vunpack.c.l.b16 %v272
      %v430 = vunpack.c.l.b16 %v273
      %v431 = vunpack.c.l.b16 %v274
      %v432 = vunpack.c.l.b16 %v275
      %v433 = vunpack.c.l.b16 %v276
      %v434 = vunpack.c.l.b16 %v277
      %v435 = vunpack.c.l.b16 %v278
      %v436 = vunpack.c.l.b16 %v279
      %v437 = vunpack.c.l.b16 %v280
      %v438 = vunpack.c.l.b16 %v281
      %v439 = vunpack.c.l.b16 %v282
      %v440 = vunpack.c.l.b16 %v283
      %v441 = vunpack.c.l.b16 %v284
      %v442 = vunpack.c.l.b16 %v285
      %v443 = vunpack.c.l.b16 %v286
      %v444 = vunpack.c.l.b16 %v287
      %v445 = vunpack.c.l.b16 %v288
      %v446 = vunpack.c.l.b16 %v289
      %v447 = vunpack.c.l.b16 %v290
      %v448 = vunpack.c.l.b16 %v291
      %v449 = vunpack.c.l.b16 %v292
      %v450 = vunpack.c.l.b16 %v293
      %v451 = vunpack.c.l.b16 %v294
      %v452 = vunpack.c.l.b16 %v295
      %v453 = vunpack.c.l.b16 %v296
      %v454 = vunpack.c.l.b16 %v297
      %v455 = vunpack.c.l.b16 %v298
      %v456 = vunpack.c.l.b16 %v299
      %v457 = vunpack.c.l.b16 %v300
      %v458 = vunpack.c.l.b16 %v301
      %v459 = vunpack.c.l.b16 %v302
      %v460 = vunpack.c.l.b16 %v303
      %v461 = vunpack.c.l.b16 %v304
      %v462 = vunpack.c.l.b16 %v305
      %v463 = vunpack.c.l.b16 %v306
      %v464 = vunpack.c.l.b16 %v307
      %v465 = vunpack.c.l.b16 %v308
      %v466 = vunpack.c.l.b16 %v309
      %v467 = vunpack.c.l.b16 %v310
      %v468 = vunpack.c.l.b16 %v311
      %v469 = vunpack.c.l.b16 %v312
      %v470 = vunpack.c.l.b16 %v313
      %v471 = vunpack.c.l.b16 %v314
      %v472 = vunpack.c.l.b16 %v315
      %v473 = vunpack.c.l.b16 %v316
      %v474 = vunpack.c.l.b16 %v317
      %v475 = vunpack.c.l.b16 %v318
      %v476 = vunpack.c.l.b16 %v319
      %v477 = vunpack.c.l.b16 %v320
      %v478 = vunpack.c.l.b16 %v321
      %v479 = vunpack.c.l.b16 %v322
      %v480 = vunpack.c.l.b16 %v323
      %v481 = vunpack.c.l.b16 %v324
      %v482 = vpack.c.b16 %v419, %v418
      %v483 = vpack.c.b16 %v421, %v420
      %v484 = vpack.c.b16 %v423, %v422
      %v485 = vpack.c.b16 %v425, %v424
      %v486 = vpack.c.b16 %v427, %v426
      %v487 = vpack.c.b16 %v429, %v428
      %v488 = vpack.c.b16 %v431, %v430
      %v489 = vpack.c.b16 %v433, %v432
      %v490 = vpack.c.b16 %v435, %v434
      %v491 = vpack.c.b16 %v437, %v436
      %v492 = vpack.c.b16 %v439, %v438
      %v493 = vpack.c.b16 %v441, %v440
      %v494 = vpack.c.b16 %v443, %v442
      %v495 = vpack.c.b16 %v445, %v444
      %v496 = vpack.c.b16 %v447, %v446
      %v497 = vpack.c.b16 %v449, %v448
      %v498 = vpack.c.b16 %v451, %v450
      %v499 = vpack.c.b16 %v453, %v452
      %v500 = vpack.c.b16 %v455, %v454
      %v501 = vpack.c.b16 %v457, %v456
      %v502 = vpack.c.b16 %v459, %v458
      %v503 = vpack.c.b16 %v461, %v460
      %v504 = vpack.c.b16 %v463, %v462
      %v505 = vpack.c.b16 %v465, %v464
      %v506 = vpack.c.b16 %v467, %v466
      %v507 = vpack.c.b16 %v469, %v468
      %v508 = vpack.c.b16 %v471, %v470
      %v509 = vpack.c.b16 %v473, %v472
      %v510 = vpack.c.b16 %v475, %v474
      %v511 = vpack.c.b16 %v477, %v476
      %v512 = vpack.c.b16 %v479, %v478
      %v513 = vpack.c.b16 %v481, %v480
      %546 = vmatprep.subr.bf16.mxu0 0
      %547 = vmatpush1.bf16.msra.mxu0 %v489
      %548 = vmatprep.subr.bf16.mxu0 0
      %549 = vmatpush1.bf16.msra.mxu0 %v488
      %550 = vmatprep.subr.bf16.mxu0 0
      %551 = vmatpush1.bf16.msra.mxu0 %v487
      %552 = vmatprep.subr.bf16.mxu0 0
      %553 = vmatpush1.bf16.msra.mxu0 %v486
      %554 = vmatprep.subr.bf16.mxu0 0
      %555 = vmatpush1.bf16.msra.mxu0 %v485
      %556 = vmatprep.subr.bf16.mxu0 0
      %557 = vmatpush1.bf16.msra.mxu0 %v484
      %558 = vmatprep.subr.bf16.mxu0 0
      %559 = vmatpush1.bf16.msra.mxu0 %v483
      %560 = vmatprep.subr.bf16.mxu0 0
      %561 = vmatpush1.bf16.msra.mxu0 %v482
      %562 = vmatprep.subr.bf16.mxu0 0
      %563 = vmatpush2.bf16.msra.mxu0 %v497
      %564 = vmatprep.subr.bf16.mxu0 0
      %565 = vmatpush2.bf16.msra.mxu0 %v496
      %566 = vmatprep.subr.bf16.mxu0 0
      %567 = vmatpush2.bf16.msra.mxu0 %v495
      %568 = vmatprep.subr.bf16.mxu0 0
      %569 = vmatpush2.bf16.msra.mxu0 %v494
      %570 = vmatprep.subr.bf16.mxu0 0
      %571 = vmatpush2.bf16.msra.mxu0 %v493
      %572 = vmatprep.subr.bf16.mxu0 0
      %573 = vmatpush2.bf16.msra.mxu0 %v492
      %574 = vmatprep.subr.bf16.mxu0 0
      %575 = vmatpush2.bf16.msra.mxu0 %v491
      %576 = vmatprep.subr.bf16.mxu0 0
      %577 = vmatpush2.bf16.msra.mxu0 %v490
      %578 = vmatprep.mubr.bf16.mxu0 %v347
      %579 = vmatmul.mubr.bf16.gmra.mxu0 %v340
      %v580 = vpop.f32.mrf.mxu0
      %v581 = vadd.f32 0.0, %v580
      %v582 = vpop.f32.mrf.mxu0
      %v583 = vpop.f32.mrf.mxu0
      %v584 = vpop.f32.mrf.mxu0
      %585 = vdwg.mxu0
      %586 = vmatprep.subr.bf16.mxu0 0
      %587 = vmatpush1.bf16.msra.mxu0 %v505
      %588 = vmatprep.subr.bf16.mxu0 0
      %589 = vmatpush1.bf16.msra.mxu0 %v504
      %590 = vmatprep.subr.bf16.mxu0 0
      %591 = vmatpush1.bf16.msra.mxu0 %v503
      %592 = vmatprep.subr.bf16.mxu0 0
      %593 = vmatpush1.bf16.msra.mxu0 %v502
      %594 = vmatprep.subr.bf16.mxu0 0
      %595 = vmatpush1.bf16.msra.mxu0 %v501
      %596 = vmatprep.subr.bf16.mxu0 0
      %597 = vmatpush1.bf16.msra.mxu0 %v500
      %598 = vmatprep.subr.bf16.mxu0 0
      %599 = vmatpush1.bf16.msra.mxu0 %v499
      %600 = vmatprep.subr.bf16.mxu0 0
      %601 = vmatpush1.bf16.msra.mxu0 %v498
      %602 = vmatprep.subr.bf16.mxu0 0
      %603 = vmatpush2.bf16.msra.mxu0 %v513
      %604 = vmatprep.subr.bf16.mxu0 0
      %605 = vmatpush2.bf16.msra.mxu0 %v512
      %606 = vmatprep.subr.bf16.mxu0 0
      %607 = vmatpush2.bf16.msra.mxu0 %v511
      %608 = vmatprep.subr.bf16.mxu0 0
      %609 = vmatpush2.bf16.msra.mxu0 %v510
      %610 = vmatprep.subr.bf16.mxu0 0
      %611 = vmatpush2.bf16.msra.mxu0 %v509
      %612 = vmatprep.subr.bf16.mxu0 0
      %613 = vmatpush2.bf16.msra.mxu0 %v508
      %614 = vmatprep.subr.bf16.mxu0 0
      %615 = vmatpush2.bf16.msra.mxu0 %v507
      %616 = vmatprep.subr.bf16.mxu0 0
      %617 = vmatpush2.bf16.msra.mxu0 %v506
      %618 = vmatprep.mubr.bf16.mxu0 %v349
      %619 = vmatmul.mubr.bf16.gmra.mxu0 %v348
      %v620 = vpop.f32.mrf.mxu0
      %v621 = vadd.f32 %v581, %v620
      %v622 = vpop.f32.mrf.mxu0
      %v623 = vpop.f32.mrf.mxu0
      %v624 = vpop.f32.mrf.mxu0
      %625 = vdwg.mxu0
      %v628 = vunpack.c.l.s4 1966171168
      %v629 = vunpack.c.0.s8 %v628
      %v630 = vlaneseq
      %v631 = vshrl.u32 %v630, 7
      %v632 = vsub.s32 %v629, %v631
      %v633 = vrot.slane %v193, %v632
      %v634 = vcombine.high %v633, %v633
      %v636 = vunpack.c.l.s4 1966171168
      %v637 = vunpack.c.0.s8 %v636
      %v638 = vlaneseq
      %v639 = vshrl.u32 %v638, 7
      %v640 = vsub.s32 %v637, %v639
      %v641 = vrot.slane %v633, %v640
      %v643 = vunpack.c.l.s4 1966171168
      %v644 = vunpack.c.0.s8 %v643
      %v645 = vlaneseq
      %v646 = vshrl.u32 %v645, 7
      %v647 = vsub.s32 %v644, %v646
      %v648 = vrot.slane %v634, %v647
      %v649 = vcombine.high %v641, %v641
      %v650 = vcombine.high %v648, %v648
      %v719 = vunpack.c.l.b16 %v194
      %v720 = vunpack.c.l.b16 %v195
      %v721 = vunpack.c.l.b16 %v196
      %v722 = vunpack.c.l.b16 %v197
      %v723 = vunpack.c.l.b16 %v198
      %v724 = vunpack.c.l.b16 %v199
      %v725 = vunpack.c.l.b16 %v200
      %v726 = vunpack.c.l.b16 %v201
      %v727 = vunpack.c.l.b16 %v202
      %v728 = vunpack.c.l.b16 %v203
      %v729 = vunpack.c.l.b16 %v204
      %v730 = vunpack.c.l.b16 %v205
      %v731 = vunpack.c.l.b16 %v206
      %v732 = vunpack.c.l.b16 %v207
      %v733 = vunpack.c.l.b16 %v208
      %v734 = vunpack.c.l.b16 %v209
      %v735 = vunpack.c.l.b16 %v210
      %v736 = vunpack.c.l.b16 %v211
      %v737 = vunpack.c.l.b16 %v212
      %v738 = vunpack.c.l.b16 %v213
      %v739 = vunpack.c.l.b16 %v214
      %v740 = vunpack.c.l.b16 %v215
      %v741 = vunpack.c.l.b16 %v216
      %v742 = vunpack.c.l.b16 %v217
      %v743 = vunpack.c.l.b16 %v218
      %v744 = vunpack.c.l.b16 %v219
      %v745 = vunpack.c.l.b16 %v220
      %v746 = vunpack.c.l.b16 %v221
      %v747 = vunpack.c.l.b16 %v222
      %v748 = vunpack.c.l.b16 %v223
      %v749 = vunpack.c.l.b16 %v224
      %v750 = vunpack.c.l.b16 %v225
      %v751 = vunpack.c.l.b16 %v226
      %v752 = vunpack.c.l.b16 %v227
      %v753 = vunpack.c.l.b16 %v228
      %v754 = vunpack.c.l.b16 %v229
      %v755 = vunpack.c.l.b16 %v230
      %v756 = vunpack.c.l.b16 %v231
      %v757 = vunpack.c.l.b16 %v232
      %v758 = vunpack.c.l.b16 %v233
      %v759 = vunpack.c.l.b16 %v234
      %v760 = vunpack.c.l.b16 %v235
      %v761 = vunpack.c.l.b16 %v236
      %v762 = vunpack.c.l.b16 %v237
      %v763 = vunpack.c.l.b16 %v238
      %v764 = vunpack.c.l.b16 %v239
      %v765 = vunpack.c.l.b16 %v240
      %v766 = vunpack.c.l.b16 %v241
      %v767 = vunpack.c.l.b16 %v242
      %v768 = vunpack.c.l.b16 %v243
      %v769 = vunpack.c.l.b16 %v244
      %v770 = vunpack.c.l.b16 %v245
      %v771 = vunpack.c.l.b16 %v246
      %v772 = vunpack.c.l.b16 %v247
      %v773 = vunpack.c.l.b16 %v248
      %v774 = vunpack.c.l.b16 %v249
      %v775 = vunpack.c.l.b16 %v250
      %v776 = vunpack.c.l.b16 %v251
      %v777 = vunpack.c.l.b16 %v252
      %v778 = vunpack.c.l.b16 %v253
      %v779 = vunpack.c.l.b16 %v254
      %v780 = vunpack.c.l.b16 %v255
      %v781 = vunpack.c.l.b16 %v256
      %v782 = vunpack.c.l.b16 %v257
      %v783 = vpack.c.b16 %v720, %v719
      %v784 = vpack.c.b16 %v722, %v721
      %v785 = vpack.c.b16 %v724, %v723
      %v786 = vpack.c.b16 %v726, %v725
      %v787 = vpack.c.b16 %v728, %v727
      %v788 = vpack.c.b16 %v730, %v729
      %v789 = vpack.c.b16 %v732, %v731
      %v790 = vpack.c.b16 %v734, %v733
      %v791 = vpack.c.b16 %v736, %v735
      %v792 = vpack.c.b16 %v738, %v737
      %v793 = vpack.c.b16 %v740, %v739
      %v794 = vpack.c.b16 %v742, %v741
      %v795 = vpack.c.b16 %v744, %v743
      %v796 = vpack.c.b16 %v746, %v745
      %v797 = vpack.c.b16 %v748, %v747
      %v798 = vpack.c.b16 %v750, %v749
      %v799 = vpack.c.b16 %v752, %v751
      %v800 = vpack.c.b16 %v754, %v753
      %v801 = vpack.c.b16 %v756, %v755
      %v802 = vpack.c.b16 %v758, %v757
      %v803 = vpack.c.b16 %v760, %v759
      %v804 = vpack.c.b16 %v762, %v761
      %v805 = vpack.c.b16 %v764, %v763
      %v806 = vpack.c.b16 %v766, %v765
      %v807 = vpack.c.b16 %v768, %v767
      %v808 = vpack.c.b16 %v770, %v769
      %v809 = vpack.c.b16 %v772, %v771
      %v810 = vpack.c.b16 %v774, %v773
      %v811 = vpack.c.b16 %v776, %v775
      %v812 = vpack.c.b16 %v778, %v777
      %v813 = vpack.c.b16 %v780, %v779
      %v814 = vpack.c.b16 %v782, %v781
      %847 = vmatprep.subr.bf16.mxu0 0
      %848 = vmatpush1.bf16.msra.mxu0 %v790
      %849 = vmatprep.subr.bf16.mxu0 0
      %850 = vmatpush1.bf16.msra.mxu0 %v789
      %851 = vmatprep.subr.bf16.mxu0 0
      %852 = vmatpush1.bf16.msra.mxu0 %v788
      %853 = vmatprep.subr.bf16.mxu0 0
      %854 = vmatpush1.bf16.msra.mxu0 %v787
      %855 = vmatprep.subr.bf16.mxu0 0
      %856 = vmatpush1.bf16.msra.mxu0 %v786
      %857 = vmatprep.subr.bf16.mxu0 0
      %858 = vmatpush1.bf16.msra.mxu0 %v785
      %859 = vmatprep.subr.bf16.mxu0 0
      %860 = vmatpush1.bf16.msra.mxu0 %v784
      %861 = vmatprep.subr.bf16.mxu0 0
      %862 = vmatpush1.bf16.msra.mxu0 %v783
      %863 = vmatprep.subr.bf16.mxu0 0
      %864 = vmatpush2.bf16.msra.mxu0 %v798
      %865 = vmatprep.subr.bf16.mxu0 0
      %866 = vmatpush2.bf16.msra.mxu0 %v797
      %867 = vmatprep.subr.bf16.mxu0 0
      %868 = vmatpush2.bf16.msra.mxu0 %v796
      %869 = vmatprep.subr.bf16.mxu0 0
      %870 = vmatpush2.bf16.msra.mxu0 %v795
      %871 = vmatprep.subr.bf16.mxu0 0
      %872 = vmatpush2.bf16.msra.mxu0 %v794
      %873 = vmatprep.subr.bf16.mxu0 0
      %874 = vmatpush2.bf16.msra.mxu0 %v793
      %875 = vmatprep.subr.bf16.mxu0 0
      %876 = vmatpush2.bf16.msra.mxu0 %v792
      %877 = vmatprep.subr.bf16.mxu0 0
      %878 = vmatpush2.bf16.msra.mxu0 %v791
      %879 = vmatprep.mubr.bf16.mxu0 %v648
      %880 = vmatmul.mubr.bf16.gmra.mxu0 %v641
      %v881 = vpop.f32.mrf.mxu0
      %v882 = vadd.f32 %v621, %v881
      %v883 = vpop.f32.mrf.mxu0
      %v884 = vpop.f32.mrf.mxu0
      %v885 = vpop.f32.mrf.mxu0
      %886 = vdwg.mxu0
      %887 = vmatprep.subr.bf16.mxu0 0
      %888 = vmatpush1.bf16.msra.mxu0 %v806
      %889 = vmatprep.subr.bf16.mxu0 0
      %890 = vmatpush1.bf16.msra.mxu0 %v805
      %891 = vmatprep.subr.bf16.mxu0 0
      %892 = vmatpush1.bf16.msra.mxu0 %v804
      %893 = vmatprep.subr.bf16.mxu0 0
      %894 = vmatpush1.bf16.msra.mxu0 %v803
      %895 = vmatprep.subr.bf16.mxu0 0
      %896 = vmatpush1.bf16.msra.mxu0 %v802
      %897 = vmatprep.subr.bf16.mxu0 0
      %898 = vmatpush1.bf16.msra.mxu0 %v801
      %899 = vmatprep.subr.bf16.mxu0 0
      %900 = vmatpush1.bf16.msra.mxu0 %v800
      %901 = vmatprep.subr.bf16.mxu0 0
      %902 = vmatpush1.bf16.msra.mxu0 %v799
      %903 = vmatprep.subr.bf16.mxu0 0
      %904 = vmatpush2.bf16.msra.mxu0 %v814
      %905 = vmatprep.subr.bf16.mxu0 0
      %906 = vmatpush2.bf16.msra.mxu0 %v813
      %907 = vmatprep.subr.bf16.mxu0 0
      %908 = vmatpush2.bf16.msra.mxu0 %v812
      %909 = vmatprep.subr.bf16.mxu0 0
      %910 = vmatpush2.bf16.msra.mxu0 %v811
      %911 = vmatprep.subr.bf16.mxu0 0
      %912 = vmatpush2.bf16.msra.mxu0 %v810
      %913 = vmatprep.subr.bf16.mxu0 0
      %914 = vmatpush2.bf16.msra.mxu0 %v809
      %915 = vmatprep.subr.bf16.mxu0 0
      %916 = vmatpush2.bf16.msra.mxu0 %v808
      %917 = vmatprep.subr.bf16.mxu0 0
      %918 = vmatpush2.bf16.msra.mxu0 %v807
      %919 = vmatprep.mubr.bf16.mxu0 %v650
      %920 = vmatmul.mubr.bf16.gmra.mxu0 %v649
      %v921 = vpop.f32.mrf.mxu0
      %v922 = vadd.f32 %v882, %v921
      %v923 = vpop.f32.mrf.mxu0
      %v924 = vpop.f32.mrf.mxu0
      %v925 = vpop.f32.mrf.mxu0
      %926 = vdwg.mxu0
      %v927 = vld [vmem:[%s188] sm:$0xf]
      %s928 = scalar_lea.vmem %s1, 512
      %v929 = vld [vmem:[%s928] sm:$0xf]
      %v930 = vld [vmem:[%s928 + $0x4] sm:$0xf]
      %v931 = vld [vmem:[%s928 + $0x8] sm:$0xf]
      %v932 = vld [vmem:[%s928 + $0xc] sm:$0xf]
      %v933 = vld [vmem:[%s928 + $0x10] sm:$0xf]
      %v934 = vld [vmem:[%s928 + $0x14] sm:$0xf]
      %v935 = vld [vmem:[%s928 + $0x18] sm:$0xf]
      %v936 = vld [vmem:[%s928 + $0x1c] sm:$0xf]
      %v937 = vld [vmem:[%s928 + $0x20] sm:$0xf]
      %v938 = vld [vmem:[%s928 + $0x24] sm:$0xf]
      %v939 = vld [vmem:[%s928 + $0x28] sm:$0xf]
      %v940 = vld [vmem:[%s928 + $0x2c] sm:$0xf]
      %v941 = vld [vmem:[%s928 + $0x30] sm:$0xf]
      %v942 = vld [vmem:[%s928 + $0x34] sm:$0xf]
      %v943 = vld [vmem:[%s928 + $0x38] sm:$0xf]
      %v944 = vld [vmem:[%s928 + $0x3c] sm:$0xf]
      %v945 = vld [vmem:[%s928 + $0x40] sm:$0xf]
      %v946 = vld [vmem:[%s928 + $0x44] sm:$0xf]
      %v947 = vld [vmem:[%s928 + $0x48] sm:$0xf]
      %v948 = vld [vmem:[%s928 + $0x4c] sm:$0xf]
      %v949 = vld [vmem:[%s928 + $0x50] sm:$0xf]
      %v950 = vld [vmem:[%s928 + $0x54] sm:$0xf]
      %v951 = vld [vmem:[%s928 + $0x58] sm:$0xf]
      %v952 = vld [vmem:[%s928 + $0x5c] sm:$0xf]
      %v953 = vld [vmem:[%s928 + $0x60] sm:$0xf]
      %v954 = vld [vmem:[%s928 + $0x64] sm:$0xf]
      %v955 = vld [vmem:[%s928 + $0x68] sm:$0xf]
      %v956 = vld [vmem:[%s928 + $0x6c] sm:$0xf]
      %v957 = vld [vmem:[%s928 + $0x70] sm:$0xf]
      %v958 = vld [vmem:[%s928 + $0x74] sm:$0xf]
      %v959 = vld [vmem:[%s928 + $0x78] sm:$0xf]
      %v960 = vld [vmem:[%s928 + $0x7c] sm:$0xf]
      %v961 = vld [vmem:[%s928 + $0x80] sm:$0xf]
      %v962 = vld [vmem:[%s928 + $0x84] sm:$0xf]
      %v963 = vld [vmem:[%s928 + $0x88] sm:$0xf]
      %v964 = vld [vmem:[%s928 + $0x8c] sm:$0xf]
      %v965 = vld [vmem:[%s928 + $0x90] sm:$0xf]
      %v966 = vld [vmem:[%s928 + $0x94] sm:$0xf]
      %v967 = vld [vmem:[%s928 + $0x98] sm:$0xf]
      %v968 = vld [vmem:[%s928 + $0x9c] sm:$0xf]
      %v969 = vld [vmem:[%s928 + $0xa0] sm:$0xf]
      %v970 = vld [vmem:[%s928 + $0xa4] sm:$0xf]
      %v971 = vld [vmem:[%s928 + $0xa8] sm:$0xf]
      %v972 = vld [vmem:[%s928 + $0xac] sm:$0xf]
      %v973 = vld [vmem:[%s928 + $0xb0] sm:$0xf]
      %v974 = vld [vmem:[%s928 + $0xb4] sm:$0xf]
      %v975 = vld [vmem:[%s928 + $0xb8] sm:$0xf]
      %v976 = vld [vmem:[%s928 + $0xbc] sm:$0xf]
      %v977 = vld [vmem:[%s928 + $0xc0] sm:$0xf]
      %v978 = vld [vmem:[%s928 + $0xc4] sm:$0xf]
      %v979 = vld [vmem:[%s928 + $0xc8] sm:$0xf]
      %v980 = vld [vmem:[%s928 + $0xcc] sm:$0xf]
      %v981 = vld [vmem:[%s928 + $0xd0] sm:$0xf]
      %v982 = vld [vmem:[%s928 + $0xd4] sm:$0xf]
      %v983 = vld [vmem:[%s928 + $0xd8] sm:$0xf]
      %v984 = vld [vmem:[%s928 + $0xdc] sm:$0xf]
      %v985 = vld [vmem:[%s928 + $0xe0] sm:$0xf]
      %v986 = vld [vmem:[%s928 + $0xe4] sm:$0xf]
      %v987 = vld [vmem:[%s928 + $0xe8] sm:$0xf]
      %v988 = vld [vmem:[%s928 + $0xec] sm:$0xf]
      %v989 = vld [vmem:[%s928 + $0xf0] sm:$0xf]
      %v990 = vld [vmem:[%s928 + $0xf4] sm:$0xf]
      %v991 = vld [vmem:[%s928 + $0xf8] sm:$0xf]
      %v992 = vld [vmem:[%s928 + $0xfc] sm:$0xf]
      %v995 = vunpack.c.l.s4 1966171168
      %v996 = vunpack.c.0.s8 %v995
      %v997 = vlaneseq
      %v998 = vshrl.u32 %v997, 7
      %v999 = vsub.s32 %v996, %v998
      %v1000 = vrot.slane %v927, %v999
      %v1001 = vcombine.high %v1000, %v1000
      %v1003 = vunpack.c.l.s4 1966171168
      %v1004 = vunpack.c.0.s8 %v1003
      %v1005 = vlaneseq
      %v1006 = vshrl.u32 %v1005, 7
      %v1007 = vsub.s32 %v1004, %v1006
      %v1008 = vrot.slane %v1000, %v1007
      %v1010 = vunpack.c.l.s4 1966171168
      %v1011 = vunpack.c.0.s8 %v1010
      %v1012 = vlaneseq
      %v1013 = vshrl.u32 %v1012, 7
      %v1014 = vsub.s32 %v1011, %v1013
      %v1015 = vrot.slane %v1001, %v1014
      %v1016 = vcombine.high %v1008, %v1008
      %v1017 = vcombine.high %v1015, %v1015
      %v1019 = vshrl.u32 %v1008, 16
      %v1022 = vshrl.u32 %v1015, 16
      %v1025 = vshrl.u32 %v1016, 16
      %v1028 = vshrl.u32 %v1017, 16
      %v1098 = vunpack.c.l.b16 %v929
      %v1099 = vunpack.c.l.b16 %v930
      %v1100 = vunpack.c.l.b16 %v931
      %v1101 = vunpack.c.l.b16 %v932
      %v1102 = vunpack.c.l.b16 %v933
      %v1103 = vunpack.c.l.b16 %v934
      %v1104 = vunpack.c.l.b16 %v935
      %v1105 = vunpack.c.l.b16 %v936
      %v1106 = vunpack.c.l.b16 %v937
      %v1107 = vunpack.c.l.b16 %v938
      %v1108 = vunpack.c.l.b16 %v939
      %v1109 = vunpack.c.l.b16 %v940
      %v1110 = vunpack.c.l.b16 %v941
      %v1111 = vunpack.c.l.b16 %v942
      %v1112 = vunpack.c.l.b16 %v943
      %v1113 = vunpack.c.l.b16 %v944
      %v1114 = vunpack.c.l.b16 %v945
      %v1115 = vunpack.c.l.b16 %v946
      %v1116 = vunpack.c.l.b16 %v947
      %v1117 = vunpack.c.l.b16 %v948
      %v1118 = vunpack.c.l.b16 %v949
      %v1119 = vunpack.c.l.b16 %v950
      %v1120 = vunpack.c.l.b16 %v951
      %v1121 = vunpack.c.l.b16 %v952
      %v1122 = vunpack.c.l.b16 %v953
      %v1123 = vunpack.c.l.b16 %v954
      %v1124 = vunpack.c.l.b16 %v955
      %v1125 = vunpack.c.l.b16 %v956
      %v1126 = vunpack.c.l.b16 %v957
      %v1127 = vunpack.c.l.b16 %v958
      %v1128 = vunpack.c.l.b16 %v959
      %v1129 = vunpack.c.l.b16 %v960
      %v1130 = vunpack.c.l.b16 %v961
      %v1131 = vunpack.c.l.b16 %v962
      %v1132 = vunpack.c.l.b16 %v963
      %v1133 = vunpack.c.l.b16 %v964
      %v1134 = vunpack.c.l.b16 %v965
      %v1135 = vunpack.c.l.b16 %v966
      %v1136 = vunpack.c.l.b16 %v967
      %v1137 = vunpack.c.l.b16 %v968
      %v1138 = vunpack.c.l.b16 %v969
      %v1139 = vunpack.c.l.b16 %v970
      %v1140 = vunpack.c.l.b16 %v971
      %v1141 = vunpack.c.l.b16 %v972
      %v1142 = vunpack.c.l.b16 %v973
      %v1143 = vunpack.c.l.b16 %v974
      %v1144 = vunpack.c.l.b16 %v975
      %v1145 = vunpack.c.l.b16 %v976
      %v1146 = vunpack.c.l.b16 %v977
      %v1147 = vunpack.c.l.b16 %v978
      %v1148 = vunpack.c.l.b16 %v979
      %v1149 = vunpack.c.l.b16 %v980
      %v1150 = vunpack.c.l.b16 %v981
      %v1151 = vunpack.c.l.b16 %v982
      %v1152 = vunpack.c.l.b16 %v983
      %v1153 = vunpack.c.l.b16 %v984
      %v1154 = vunpack.c.l.b16 %v985
      %v1155 = vunpack.c.l.b16 %v986
      %v1156 = vunpack.c.l.b16 %v987
      %v1157 = vunpack.c.l.b16 %v988
      %v1158 = vunpack.c.l.b16 %v989
      %v1159 = vunpack.c.l.b16 %v990
      %v1160 = vunpack.c.l.b16 %v991
      %v1161 = vunpack.c.l.b16 %v992
      %v1162 = vpack.c.b16 %v1099, %v1098
      %v1163 = vpack.c.b16 %v1101, %v1100
      %v1164 = vpack.c.b16 %v1103, %v1102
      %v1165 = vpack.c.b16 %v1105, %v1104
      %v1166 = vpack.c.b16 %v1107, %v1106
      %v1167 = vpack.c.b16 %v1109, %v1108
      %v1168 = vpack.c.b16 %v1111, %v1110
      %v1169 = vpack.c.b16 %v1113, %v1112
      %v1170 = vpack.c.b16 %v1115, %v1114
      %v1171 = vpack.c.b16 %v1117, %v1116
      %v1172 = vpack.c.b16 %v1119, %v1118
      %v1173 = vpack.c.b16 %v1121, %v1120
      %v1174 = vpack.c.b16 %v1123, %v1122
      %v1175 = vpack.c.b16 %v1125, %v1124
      %v1176 = vpack.c.b16 %v1127, %v1126
      %v1177 = vpack.c.b16 %v1129, %v1128
      %v1178 = vpack.c.b16 %v1131, %v1130
      %v1179 = vpack.c.b16 %v1133, %v1132
      %v1180 = vpack.c.b16 %v1135, %v1134
      %v1181 = vpack.c.b16 %v1137, %v1136
      %v1182 = vpack.c.b16 %v1139, %v1138
      %v1183 = vpack.c.b16 %v1141, %v1140
      %v1184 = vpack.c.b16 %v1143, %v1142
      %v1185 = vpack.c.b16 %v1145, %v1144
      %v1186 = vpack.c.b16 %v1147, %v1146
      %v1187 = vpack.c.b16 %v1149, %v1148
      %v1188 = vpack.c.b16 %v1151, %v1150
      %v1189 = vpack.c.b16 %v1153, %v1152
      %v1190 = vpack.c.b16 %v1155, %v1154
      %v1191 = vpack.c.b16 %v1157, %v1156
      %v1192 = vpack.c.b16 %v1159, %v1158
      %v1193 = vpack.c.b16 %v1161, %v1160
      %1226 = vmatprep.subr.bf16.mxu0 0
      %1227 = vmatpush1.bf16.msra.mxu0 %v1169
      %1228 = vmatprep.subr.bf16.mxu0 0
      %1229 = vmatpush1.bf16.msra.mxu0 %v1168
      %1230 = vmatprep.subr.bf16.mxu0 0
      %1231 = vmatpush1.bf16.msra.mxu0 %v1167
      %1232 = vmatprep.subr.bf16.mxu0 0
      %1233 = vmatpush1.bf16.msra.mxu0 %v1166
      %1234 = vmatprep.subr.bf16.mxu0 0
      %1235 = vmatpush1.bf16.msra.mxu0 %v1165
      %1236 = vmatprep.subr.bf16.mxu0 0
      %1237 = vmatpush1.bf16.msra.mxu0 %v1164
      %1238 = vmatprep.subr.bf16.mxu0 0
      %1239 = vmatpush1.bf16.msra.mxu0 %v1163
      %1240 = vmatprep.subr.bf16.mxu0 0
      %1241 = vmatpush1.bf16.msra.mxu0 %v1162
      %1242 = vmatprep.subr.bf16.mxu0 0
      %1243 = vmatpush2.bf16.msra.mxu0 %v1177
      %1244 = vmatprep.subr.bf16.mxu0 0
      %1245 = vmatpush2.bf16.msra.mxu0 %v1176
      %1246 = vmatprep.subr.bf16.mxu0 0
      %1247 = vmatpush2.bf16.msra.mxu0 %v1175
      %1248 = vmatprep.subr.bf16.mxu0 0
      %1249 = vmatpush2.bf16.msra.mxu0 %v1174
      %1250 = vmatprep.subr.bf16.mxu0 0
      %1251 = vmatpush2.bf16.msra.mxu0 %v1173
      %1252 = vmatprep.subr.bf16.mxu0 0
      %1253 = vmatpush2.bf16.msra.mxu0 %v1172
      %1254 = vmatprep.subr.bf16.mxu0 0
      %1255 = vmatpush2.bf16.msra.mxu0 %v1171
      %1256 = vmatprep.subr.bf16.mxu0 0
      %1257 = vmatpush2.bf16.msra.mxu0 %v1170
      %1258 = vmatprep.mubr.bf16.mxu0 %v1022
      %1259 = vmatmul.mubr.bf16.gmra.mxu0 %v1019
      %v1260 = vpop.f32.mrf.mxu0
      %v1261 = vadd.f32 0.0, %v1260
      %v1262 = vpop.f32.mrf.mxu0
      %v1263 = vpop.f32.mrf.mxu0
      %v1264 = vpop.f32.mrf.mxu0
      %1265 = vdwg.mxu0
      %1266 = vmatprep.subr.bf16.mxu0 0
      %1267 = vmatpush1.bf16.msra.mxu0 %v1185
      %1268 = vmatprep.subr.bf16.mxu0 0
      %1269 = vmatpush1.bf16.msra.mxu0 %v1184
      %1270 = vmatprep.subr.bf16.mxu0 0
      %1271 = vmatpush1.bf16.msra.mxu0 %v1183
      %1272 = vmatprep.subr.bf16.mxu0 0
      %1273 = vmatpush1.bf16.msra.mxu0 %v1182
      %1274 = vmatprep.subr.bf16.mxu0 0
      %1275 = vmatpush1.bf16.msra.mxu0 %v1181
      %1276 = vmatprep.subr.bf16.mxu0 0
      %1277 = vmatpush1.bf16.msra.mxu0 %v1180
      %1278 = vmatprep.subr.bf16.mxu0 0
      %1279 = vmatpush1.bf16.msra.mxu0 %v1179
      %1280 = vmatprep.subr.bf16.mxu0 0
      %1281 = vmatpush1.bf16.msra.mxu0 %v1178
      %1282 = vmatprep.subr.bf16.mxu0 0
      %1283 = vmatpush2.bf16.msra.mxu0 %v1193
      %1284 = vmatprep.subr.bf16.mxu0 0
      %1285 = vmatpush2.bf16.msra.mxu0 %v1192
      %1286 = vmatprep.subr.bf16.mxu0 0
      %1287 = vmatpush2.bf16.msra.mxu0 %v1191
      %1288 = vmatprep.subr.bf16.mxu0 0
      %1289 = vmatpush2.bf16.msra.mxu0 %v1190
      %1290 = vmatprep.subr.bf16.mxu0 0
      %1291 = vmatpush2.bf16.msra.mxu0 %v1189
      %1292 = vmatprep.subr.bf16.mxu0 0
      %1293 = vmatpush2.bf16.msra.mxu0 %v1188
      %1294 = vmatprep.subr.bf16.mxu0 0
      %1295 = vmatpush2.bf16.msra.mxu0 %v1187
      %1296 = vmatprep.subr.bf16.mxu0 0
      %1297 = vmatpush2.bf16.msra.mxu0 %v1186
      %1298 = vmatprep.mubr.bf16.mxu0 %v1028
      %1299 = vmatmul.mubr.bf16.gmra.mxu0 %v1025
      %v1300 = vpop.f32.mrf.mxu0
      %v1301 = vadd.f32 %v1261, %v1300
      %v1302 = vpop.f32.mrf.mxu0
      %v1303 = vpop.f32.mrf.mxu0
      %v1304 = vpop.f32.mrf.mxu0
      %1305 = vdwg.mxu0
      %v1306 = vadd.f32 %v922, %v1301
      %v1307 = vld [vmem:[%s258] sm:$0xf]
      %s1308 = scalar_lea.vmem %s1, 768
      %v1309 = vld [vmem:[%s1308] sm:$0xf]
      %v1310 = vld [vmem:[%s1308 + $0x4] sm:$0xf]
      %v1311 = vld [vmem:[%s1308 + $0x8] sm:$0xf]
      %v1312 = vld [vmem:[%s1308 + $0xc] sm:$0xf]
      %v1313 = vld [vmem:[%s1308 + $0x10] sm:$0xf]
      %v1314 = vld [vmem:[%s1308 + $0x14] sm:$0xf]
      %v1315 = vld [vmem:[%s1308 + $0x18] sm:$0xf]
      %v1316 = vld [vmem:[%s1308 + $0x1c] sm:$0xf]
      %v1317 = vld [vmem:[%s1308 + $0x20] sm:$0xf]
      %v1318 = vld [vmem:[%s1308 + $0x24] sm:$0xf]
      %v1319 = vld [vmem:[%s1308 + $0x28] sm:$0xf]
      %v1320 = vld [vmem:[%s1308 + $0x2c] sm:$0xf]
      %v1321 = vld [vmem:[%s1308 + $0x30] sm:$0xf]
      %v1322 = vld [vmem:[%s1308 + $0x34] sm:$0xf]
      %v1323 = vld [vmem:[%s1308 + $0x38] sm:$0xf]
      %v1324 = vld [vmem:[%s1308 + $0x3c] sm:$0xf]
      %v1325 = vld [vmem:[%s1308 + $0x40] sm:$0xf]
      %v1326 = vld [vmem:[%s1308 + $0x44] sm:$0xf]
      %v1327 = vld [vmem:[%s1308 + $0x48] sm:$0xf]
      %v1328 = vld [vmem:[%s1308 + $0x4c] sm:$0xf]
      %v1329 = vld [vmem:[%s1308 + $0x50] sm:$0xf]
      %v1330 = vld [vmem:[%s1308 + $0x54] sm:$0xf]
      %v1331 = vld [vmem:[%s1308 + $0x58] sm:$0xf]
      %v1332 = vld [vmem:[%s1308 + $0x5c] sm:$0xf]
      %v1333 = vld [vmem:[%s1308 + $0x60] sm:$0xf]
      %v1334 = vld [vmem:[%s1308 + $0x64] sm:$0xf]
      %v1335 = vld [vmem:[%s1308 + $0x68] sm:$0xf]
      %v1336 = vld [vmem:[%s1308 + $0x6c] sm:$0xf]
      %v1337 = vld [vmem:[%s1308 + $0x70] sm:$0xf]
      %v1338 = vld [vmem:[%s1308 + $0x74] sm:$0xf]
      %v1339 = vld [vmem:[%s1308 + $0x78] sm:$0xf]
      %v1340 = vld [vmem:[%s1308 + $0x7c] sm:$0xf]
      %v1341 = vld [vmem:[%s1308 + $0x80] sm:$0xf]
      %v1342 = vld [vmem:[%s1308 + $0x84] sm:$0xf]
      %v1343 = vld [vmem:[%s1308 + $0x88] sm:$0xf]
      %v1344 = vld [vmem:[%s1308 + $0x8c] sm:$0xf]
      %v1345 = vld [vmem:[%s1308 + $0x90] sm:$0xf]
      %v1346 = vld [vmem:[%s1308 + $0x94] sm:$0xf]
      %v1347 = vld [vmem:[%s1308 + $0x98] sm:$0xf]
      %v1348 = vld [vmem:[%s1308 + $0x9c] sm:$0xf]
      %v1349 = vld [vmem:[%s1308 + $0xa0] sm:$0xf]
      %v1350 = vld [vmem:[%s1308 + $0xa4] sm:$0xf]
      %v1351 = vld [vmem:[%s1308 + $0xa8] sm:$0xf]
      %v1352 = vld [vmem:[%s1308 + $0xac] sm:$0xf]
      %v1353 = vld [vmem:[%s1308 + $0xb0] sm:$0xf]
      %v1354 = vld [vmem:[%s1308 + $0xb4] sm:$0xf]
      %v1355 = vld [vmem:[%s1308 + $0xb8] sm:$0xf]
      %v1356 = vld [vmem:[%s1308 + $0xbc] sm:$0xf]
      %v1357 = vld [vmem:[%s1308 + $0xc0] sm:$0xf]
      %v1358 = vld [vmem:[%s1308 + $0xc4] sm:$0xf]
      %v1359 = vld [vmem:[%s1308 + $0xc8] sm:$0xf]
      %v1360 = vld [vmem:[%s1308 + $0xcc] sm:$0xf]
      %v1361 = vld [vmem:[%s1308 + $0xd0] sm:$0xf]
      %v1362 = vld [vmem:[%s1308 + $0xd4] sm:$0xf]
      %v1363 = vld [vmem:[%s1308 + $0xd8] sm:$0xf]
      %v1364 = vld [vmem:[%s1308 + $0xdc] sm:$0xf]
      %v1365 = vld [vmem:[%s1308 + $0xe0] sm:$0xf]
      %v1366 = vld [vmem:[%s1308 + $0xe4] sm:$0xf]
      %v1367 = vld [vmem:[%s1308 + $0xe8] sm:$0xf]
      %v1368 = vld [vmem:[%s1308 + $0xec] sm:$0xf]
      %v1369 = vld [vmem:[%s1308 + $0xf0] sm:$0xf]
      %v1370 = vld [vmem:[%s1308 + $0xf4] sm:$0xf]
      %v1371 = vld [vmem:[%s1308 + $0xf8] sm:$0xf]
      %v1372 = vld [vmem:[%s1308 + $0xfc] sm:$0xf]
      %v1375 = vunpack.c.l.s4 1966171168
      %v1376 = vunpack.c.0.s8 %v1375
      %v1377 = vlaneseq
      %v1378 = vshrl.u32 %v1377, 7
      %v1379 = vsub.s32 %v1376, %v1378
      %v1380 = vrot.slane %v1307, %v1379
      %v1381 = vcombine.high %v1380, %v1380
      %v1383 = vunpack.c.l.s4 1966171168
      %v1384 = vunpack.c.0.s8 %v1383
      %v1385 = vlaneseq
      %v1386 = vshrl.u32 %v1385, 7
      %v1387 = vsub.s32 %v1384, %v1386
      %v1388 = vrot.slane %v1380, %v1387
      %v1390 = vunpack.c.l.s4 1966171168
      %v1391 = vunpack.c.0.s8 %v1390
      %v1392 = vlaneseq
      %v1393 = vshrl.u32 %v1392, 7
      %v1394 = vsub.s32 %v1391, %v1393
      %v1395 = vrot.slane %v1381, %v1394
      %v1396 = vcombine.high %v1388, %v1388
      %v1397 = vcombine.high %v1395, %v1395
      %v1399 = vshrl.u32 %v1388, 16
      %v1402 = vshrl.u32 %v1395, 16
      %v1405 = vshrl.u32 %v1396, 16
      %v1408 = vshrl.u32 %v1397, 16
      %v1478 = vunpack.c.l.b16 %v1309
      %v1479 = vunpack.c.l.b16 %v1310
      %v1480 = vunpack.c.l.b16 %v1311
      %v1481 = vunpack.c.l.b16 %v1312
      %v1482 = vunpack.c.l.b16 %v1313
      %v1483 = vunpack.c.l.b16 %v1314
      %v1484 = vunpack.c.l.b16 %v1315
      %v1485 = vunpack.c.l.b16 %v1316
      %v1486 = vunpack.c.l.b16 %v1317
      %v1487 = vunpack.c.l.b16 %v1318
      %v1488 = vunpack.c.l.b16 %v1319
      %v1489 = vunpack.c.l.b16 %v1320
      %v1490 = vunpack.c.l.b16 %v1321
      %v1491 = vunpack.c.l.b16 %v1322
      %v1492 = vunpack.c.l.b16 %v1323
      %v1493 = vunpack.c.l.b16 %v1324
      %v1494 = vunpack.c.l.b16 %v1325
      %v1495 = vunpack.c.l.b16 %v1326
      %v1496 = vunpack.c.l.b16 %v1327
      %v1497 = vunpack.c.l.b16 %v1328
      %v1498 = vunpack.c.l.b16 %v1329
      %v1499 = vunpack.c.l.b16 %v1330
      %v1500 = vunpack.c.l.b16 %v1331
      %v1501 = vunpack.c.l.b16 %v1332
      %v1502 = vunpack.c.l.b16 %v1333
      %v1503 = vunpack.c.l.b16 %v1334
      %v1504 = vunpack.c.l.b16 %v1335
      %v1505 = vunpack.c.l.b16 %v1336
      %v1506 = vunpack.c.l.b16 %v1337
      %v1507 = vunpack.c.l.b16 %v1338
      %v1508 = vunpack.c.l.b16 %v1339
      %v1509 = vunpack.c.l.b16 %v1340
      %v1510 = vunpack.c.l.b16 %v1341
      %v1511 = vunpack.c.l.b16 %v1342
      %v1512 = vunpack.c.l.b16 %v1343
      %v1513 = vunpack.c.l.b16 %v1344
      %v1514 = vunpack.c.l.b16 %v1345
      %v1515 = vunpack.c.l.b16 %v1346
      %v1516 = vunpack.c.l.b16 %v1347
      %v1517 = vunpack.c.l.b16 %v1348
      %v1518 = vunpack.c.l.b16 %v1349
      %v1519 = vunpack.c.l.b16 %v1350
      %v1520 = vunpack.c.l.b16 %v1351
      %v1521 = vunpack.c.l.b16 %v1352
      %v1522 = vunpack.c.l.b16 %v1353
      %v1523 = vunpack.c.l.b16 %v1354
      %v1524 = vunpack.c.l.b16 %v1355
      %v1525 = vunpack.c.l.b16 %v1356
      %v1526 = vunpack.c.l.b16 %v1357
      %v1527 = vunpack.c.l.b16 %v1358
      %v1528 = vunpack.c.l.b16 %v1359
      %v1529 = vunpack.c.l.b16 %v1360
      %v1530 = vunpack.c.l.b16 %v1361
      %v1531 = vunpack.c.l.b16 %v1362
      %v1532 = vunpack.c.l.b16 %v1363
      %v1533 = vunpack.c.l.b16 %v1364
      %v1534 = vunpack.c.l.b16 %v1365
      %v1535 = vunpack.c.l.b16 %v1366
      %v1536 = vunpack.c.l.b16 %v1367
      %v1537 = vunpack.c.l.b16 %v1368
      %v1538 = vunpack.c.l.b16 %v1369
      %v1539 = vunpack.c.l.b16 %v1370
      %v1540 = vunpack.c.l.b16 %v1371
      %v1541 = vunpack.c.l.b16 %v1372
      %v1542 = vpack.c.b16 %v1479, %v1478
      %v1543 = vpack.c.b16 %v1481, %v1480
      %v1544 = vpack.c.b16 %v1483, %v1482
      %v1545 = vpack.c.b16 %v1485, %v1484
      %v1546 = vpack.c.b16 %v1487, %v1486
      %v1547 = vpack.c.b16 %v1489, %v1488
      %v1548 = vpack.c.b16 %v1491, %v1490
      %v1549 = vpack.c.b16 %v1493, %v1492
      %v1550 = vpack.c.b16 %v1495, %v1494
      %v1551 = vpack.c.b16 %v1497, %v1496
      %v1552 = vpack.c.b16 %v1499, %v1498
      %v1553 = vpack.c.b16 %v1501, %v1500
      %v1554 = vpack.c.b16 %v1503, %v1502
      %v1555 = vpack.c.b16 %v1505, %v1504
      %v1556 = vpack.c.b16 %v1507, %v1506
      %v1557 = vpack.c.b16 %v1509, %v1508
      %v1558 = vpack.c.b16 %v1511, %v1510
      %v1559 = vpack.c.b16 %v1513, %v1512
      %v1560 = vpack.c.b16 %v1515, %v1514
      %v1561 = vpack.c.b16 %v1517, %v1516
      %v1562 = vpack.c.b16 %v1519, %v1518
      %v1563 = vpack.c.b16 %v1521, %v1520
      %v1564 = vpack.c.b16 %v1523, %v1522
      %v1565 = vpack.c.b16 %v1525, %v1524
      %v1566 = vpack.c.b16 %v1527, %v1526
      %v1567 = vpack.c.b16 %v1529, %v1528
      %v1568 = vpack.c.b16 %v1531, %v1530
      %v1569 = vpack.c.b16 %v1533, %v1532
      %v1570 = vpack.c.b16 %v1535, %v1534
      %v1571 = vpack.c.b16 %v1537, %v1536
      %v1572 = vpack.c.b16 %v1539, %v1538
      %v1573 = vpack.c.b16 %v1541, %v1540
      %1606 = vmatprep.subr.bf16.mxu0 0
      %1607 = vmatpush1.bf16.msra.mxu0 %v1549
      %1608 = vmatprep.subr.bf16.mxu0 0
      %1609 = vmatpush1.bf16.msra.mxu0 %v1548
      %1610 = vmatprep.subr.bf16.mxu0 0
      %1611 = vmatpush1.bf16.msra.mxu0 %v1547
      %1612 = vmatprep.subr.bf16.mxu0 0
      %1613 = vmatpush1.bf16.msra.mxu0 %v1546
      %1614 = vmatprep.subr.bf16.mxu0 0
      %1615 = vmatpush1.bf16.msra.mxu0 %v1545
      %1616 = vmatprep.subr.bf16.mxu0 0
      %1617 = vmatpush1.bf16.msra.mxu0 %v1544
      %1618 = vmatprep.subr.bf16.mxu0 0
      %1619 = vmatpush1.bf16.msra.mxu0 %v1543
      %1620 = vmatprep.subr.bf16.mxu0 0
      %1621 = vmatpush1.bf16.msra.mxu0 %v1542
      %1622 = vmatprep.subr.bf16.mxu0 0
      %1623 = vmatpush2.bf16.msra.mxu0 %v1557
      %1624 = vmatprep.subr.bf16.mxu0 0
      %1625 = vmatpush2.bf16.msra.mxu0 %v1556
      %1626 = vmatprep.subr.bf16.mxu0 0
      %1627 = vmatpush2.bf16.msra.mxu0 %v1555
      %1628 = vmatprep.subr.bf16.mxu0 0
      %1629 = vmatpush2.bf16.msra.mxu0 %v1554
      %1630 = vmatprep.subr.bf16.mxu0 0
      %1631 = vmatpush2.bf16.msra.mxu0 %v1553
      %1632 = vmatprep.subr.bf16.mxu0 0
      %1633 = vmatpush2.bf16.msra.mxu0 %v1552
      %1634 = vmatprep.subr.bf16.mxu0 0
      %1635 = vmatpush2.bf16.msra.mxu0 %v1551
      %1636 = vmatprep.subr.bf16.mxu0 0
      %1637 = vmatpush2.bf16.msra.mxu0 %v1550
      %1638 = vmatprep.mubr.bf16.mxu0 %v1402
      %1639 = vmatmul.mubr.bf16.gmra.mxu0 %v1399
      %v1640 = vpop.f32.mrf.mxu0
      %v1641 = vadd.f32 0.0, %v1640
      %v1642 = vpop.f32.mrf.mxu0
      %v1643 = vpop.f32.mrf.mxu0
      %v1644 = vpop.f32.mrf.mxu0
      %1645 = vdwg.mxu0
      %1646 = vmatprep.subr.bf16.mxu0 0
      %1647 = vmatpush1.bf16.msra.mxu0 %v1565
      %1648 = vmatprep.subr.bf16.mxu0 0
      %1649 = vmatpush1.bf16.msra.mxu0 %v1564
      %1650 = vmatprep.subr.bf16.mxu0 0
      %1651 = vmatpush1.bf16.msra.mxu0 %v1563
      %1652 = vmatprep.subr.bf16.mxu0 0
      %1653 = vmatpush1.bf16.msra.mxu0 %v1562
      %1654 = vmatprep.subr.bf16.mxu0 0
      %1655 = vmatpush1.bf16.msra.mxu0 %v1561
      %1656 = vmatprep.subr.bf16.mxu0 0
      %1657 = vmatpush1.bf16.msra.mxu0 %v1560
      %1658 = vmatprep.subr.bf16.mxu0 0
      %1659 = vmatpush1.bf16.msra.mxu0 %v1559
      %1660 = vmatprep.subr.bf16.mxu0 0
      %1661 = vmatpush1.bf16.msra.mxu0 %v1558
      %1662 = vmatprep.subr.bf16.mxu0 0
      %1663 = vmatpush2.bf16.msra.mxu0 %v1573
      %1664 = vmatprep.subr.bf16.mxu0 0
      %1665 = vmatpush2.bf16.msra.mxu0 %v1572
      %1666 = vmatprep.subr.bf16.mxu0 0
      %1667 = vmatpush2.bf16.msra.mxu0 %v1571
      %1668 = vmatprep.subr.bf16.mxu0 0
      %1669 = vmatpush2.bf16.msra.mxu0 %v1570
      %1670 = vmatprep.subr.bf16.mxu0 0
      %1671 = vmatpush2.bf16.msra.mxu0 %v1569
      %1672 = vmatprep.subr.bf16.mxu0 0
      %1673 = vmatpush2.bf16.msra.mxu0 %v1568
      %1674 = vmatprep.subr.bf16.mxu0 0
      %1675 = vmatpush2.bf16.msra.mxu0 %v1567
      %1676 = vmatprep.subr.bf16.mxu0 0
      %1677 = vmatpush2.bf16.msra.mxu0 %v1566
      %1678 = vmatprep.mubr.bf16.mxu0 %v1408
      %1679 = vmatmul.mubr.bf16.gmra.mxu0 %v1405
      %v1680 = vpop.f32.mrf.mxu0
      %v1681 = vadd.f32 %v1641, %v1680
      %v1682 = vpop.f32.mrf.mxu0
      %v1683 = vpop.f32.mrf.mxu0
      %v1684 = vpop.f32.mrf.mxu0
      %1685 = vdwg.mxu0
      %v1686 = vadd.f32 %v1306, %v1681
      %vm1687 = vcmp.gt.f32.partialorder %v1686, 0.0
      %v1688 = vmul.f32 %v1686, 0.2
      %v1689 = vsel %vm1687, %v1686, %v1688
      %v1690 = vpack.c.bf16 %v1689, %v1689
      %v1691 = vld [vmem:[%s2] sm:$0xf]
      %v1692 = vld [vmem:[%s2 + $0x4] sm:$0xf]
      %v1693 = vld [vmem:[%s2 + $0x8] sm:$0xf]
      %v1694 = vld [vmem:[%s2 + $0xc] sm:$0xf]
      %v1695 = vld [vmem:[%s2 + $0x10] sm:$0xf]
      %v1696 = vld [vmem:[%s2 + $0x14] sm:$0xf]
      %v1697 = vld [vmem:[%s2 + $0x18] sm:$0xf]
      %v1698 = vld [vmem:[%s2 + $0x1c] sm:$0xf]
      %v1699 = vld [vmem:[%s2 + $0x20] sm:$0xf]
      %v1700 = vld [vmem:[%s2 + $0x24] sm:$0xf]
      %v1701 = vld [vmem:[%s2 + $0x28] sm:$0xf]
      %v1702 = vld [vmem:[%s2 + $0x2c] sm:$0xf]
      %v1703 = vld [vmem:[%s2 + $0x30] sm:$0xf]
      %v1704 = vld [vmem:[%s2 + $0x34] sm:$0xf]
      %v1705 = vld [vmem:[%s2 + $0x38] sm:$0xf]
      %v1706 = vld [vmem:[%s2 + $0x3c] sm:$0xf]
      %s1707 = sld [smem:[#allocation2]]
      %v1708 = vstv %s1707
      %v1725 = vunpack.c.l.b16 %v1691
      %v1726 = vunpack.c.l.b16 %v1692
      %v1727 = vunpack.c.l.b16 %v1693
      %v1728 = vunpack.c.l.b16 %v1694
      %v1729 = vunpack.c.l.b16 %v1695
      %v1730 = vunpack.c.l.b16 %v1696
      %v1731 = vunpack.c.l.b16 %v1697
      %v1732 = vunpack.c.l.b16 %v1698
      %v1733 = vunpack.c.l.b16 %v1699
      %v1734 = vunpack.c.l.b16 %v1700
      %v1735 = vunpack.c.l.b16 %v1701
      %v1736 = vunpack.c.l.b16 %v1702
      %v1737 = vunpack.c.l.b16 %v1703
      %v1738 = vunpack.c.l.b16 %v1704
      %v1739 = vunpack.c.l.b16 %v1705
      %v1740 = vunpack.c.l.b16 %v1706
      %v1741 = vpack.c.b16 %v1726, %v1725
      %v1742 = vpack.c.b16 %v1728, %v1727
      %v1743 = vpack.c.b16 %v1730, %v1729
      %v1744 = vpack.c.b16 %v1732, %v1731
      %v1745 = vpack.c.b16 %v1734, %v1733
      %v1746 = vpack.c.b16 %v1736, %v1735
      %v1747 = vpack.c.b16 %v1738, %v1737
      %v1748 = vpack.c.b16 %v1740, %v1739
      %1757 = vmatprep.subr.bf16.mxu0 0
      %1758 = vmatpush1.bf16.msra.mxu0 %v1748
      %1759 = vmatprep.subr.bf16.mxu0 0
      %1760 = vmatpush1.bf16.msra.mxu0 %v1747
      %1761 = vmatprep.subr.bf16.mxu0 0
      %1762 = vmatpush1.bf16.msra.mxu0 %v1746
      %1763 = vmatprep.subr.bf16.mxu0 0
      %1764 = vmatpush1.bf16.msra.mxu0 %v1745
      %1765 = vmatprep.subr.bf16.mxu0 0
      %1766 = vmatpush1.bf16.msra.mxu0 %v1744
      %1767 = vmatprep.subr.bf16.mxu0 0
      %1768 = vmatpush1.bf16.msra.mxu0 %v1743
      %1769 = vmatprep.subr.bf16.mxu0 0
      %1770 = vmatpush1.bf16.msra.mxu0 %v1742
      %1771 = vmatprep.subr.bf16.mxu0 0
      %1772 = vmatpush1.bf16.msra.mxu0 %v1741
      %1773 = vmatprep.subr.bf16.mxu0 0
      %1774 = vmatpush2.bf16.msra.mxu0 0
      %1775 = vmatprep.subr.bf16.mxu0 0
      %1776 = vmatpush2.bf16.msra.mxu0 0
      %1777 = vmatprep.subr.bf16.mxu0 0
      %1778 = vmatpush2.bf16.msra.mxu0 0
      %1779 = vmatprep.subr.bf16.mxu0 0
      %1780 = vmatpush2.bf16.msra.mxu0 0
      %1781 = vmatprep.subr.bf16.mxu0 0
      %1782 = vmatpush2.bf16.msra.mxu0 0
      %1783 = vmatprep.subr.bf16.mxu0 0
      %1784 = vmatpush2.bf16.msra.mxu0 0
      %1785 = vmatprep.subr.bf16.mxu0 0
      %1786 = vmatpush2.bf16.msra.mxu0 0
      %1787 = vmatprep.subr.bf16.mxu0 0
      %1788 = vmatpush2.bf16.msra.mxu0 0
      %1789 = vmatprep.mubr.bf16.mxu0 0
      %1790 = vmatmul.mubr.bf16.gmra.mxu0 %v1690
      %v1791 = vpop.f32.mrf.mxu0
      %v1792 = vadd.f32 %v1708, %v1791
      %v1793 = vpop.f32.mrf.mxu0
      %v1794 = vpop.f32.mrf.mxu0
      %v1795 = vpop.f32.mrf.mxu0
      %1796 = vdwg.mxu0
      %1797 = vst [vmem:[%s191] sm:$0x1] %v1792
      %p1798 = scmp.lt.s32.totalorder %s16, 1
      %s1799 = scalar_select %p1798, %s16, 1
      %s1800 = scalar_lea.vmem %s4, %s1799
      // Predicated region
      $region37: #{discriminator_forward.9} parent=35 // pred_check
        %p1801 = pneg %p123
      $region38: #{discriminator_forward.9} parent=35 // pred_check_branch
        %1803 = sbr.rel (%p1801) target = $region40
      $region39: #{discriminator_forward.9} parent=35 // pred_region
        _
      $region40: #{discriminator_forward.9} parent=35 // pred_fallthru
        _
    $region36: #{discriminator_forward.9} parent=5 // pred_fallthru
      _
    %p1804 = scmp.le.s32.totalorder 2, %s11
    // Predicated region
    $region41: #{discriminator_forward.9} parent=5 // pred_check
      %p1805 = pneg %p1804
    $region42: #{discriminator_forward.9} parent=5 // pred_check_branch
      %1807 = sbr.rel (%p1805) target = $region44
    $region43: #{discriminator_forward.9} parent=5 // pred_region
      %s1808 = ssub.s32 %s11, 2
      // Predicated region
      $region45: #{discriminator_forward.9} parent=43 // pred_check
        %p1809 = pneg %p129
      $region46: #{discriminator_forward.9} parent=43 // pred_check_branch
        %1811 = sbr.rel (%p1809) target = $region48
      $region47: #{discriminator_forward.9} parent=43 // pred_region
        %p1812 = scmp.lt.s32.totalorder %s17, 1
        %s1813 = scalar_select %p1812, %s17, 1
        %s1814 = scalar_lea.vmem %s4, %s1813
      $region48: #{discriminator_forward.9} parent=43 // pred_fallthru
        _
    $region44: #{discriminator_forward.9} parent=5 // pred_fallthru
      _
  $region6: #{discriminator_forward.9} parent=0 // loop_footer
    %s15 = sadd.s32 1, %s11
  $region7: #{discriminator_forward.9} parent=0 // loop_footer_branch
    %10 = sbr.rel target = $region3
  $region8: #{discriminator_forward.9} parent=0 // loop_exit
    _

</llo_original>
